<compile_context>
chip_gen: v7x
topology: tpu7x:2x2x1
jax: 0.10.0
libtpu: 0.0.40
codegen_flags: <defaults>
</compile_context>

<pallas_src>
import math
from functools import partial

import jax
import jax.numpy as jnp
from jax import lax
from jax.experimental import pallas as pl
from jax.experimental.pallas import tpu as pltpu


# ------------------------------ fused kernel --------------------------------

def _encoder_kernel(cx_ref, cy_ref, tx_ref, w_ref, v_ref, out_ref, *,
                    num_heads, head_dim, n_self, n_cross,
                    dx, dy, n_ctx, n_tgt, batch, hidden):
    """One grid step runs the WHOLE encoder for `batch` batch elements in VMEM."""
    f32, bf16 = jnp.float32, jnp.bfloat16
    H, nh, dh = hidden, num_heads, head_dim
    scale = 1.0 / math.sqrt(dh)

    # ---- static row offsets inside the two weight slabs ----------------------
    IN_WX, IN_WY = 0, dx
    CTX_W, TGT_W = dx + dy, dx + dy + dx
    VEC0 = dx + dy + 2 * dx
    IN_B, ENC_G, ENC_B, CTX_B, TGT_B = VEC0, VEC0 + 1, VEC0 + 2, VEC0 + 3, VEC0 + 4
    LAYER0 = VEC0 + 5                                   # bf / ln_g / ln_b per layer

    def vrow(r):                                        # (1, H) f32 vector
        return v_ref[pl.ds(r, 1), :]

    def vmat(r, rows):                                  # small f32 projection matrix
        return v_ref[pl.ds(r, rows), :]

    def wmat(layer, j):                                 # (H, H) bf16 matmul weight
        return w_ref[pl.ds((layer * 5 + j) * H, H), :]

    def layernorm(x, g, b):
        mu = jnp.mean(x, axis=-1, keepdims=True)
        var = jnp.mean((x - mu) ** 2, axis=-1, keepdims=True)
        return (x - mu) * lax.rsqrt(var + 1e-5) * g + b

    def mm(x, w_bf):                                    # bf16 operands, f32 accumulation
        return jnp.dot(x.astype(bf16), w_bf, preferred_element_type=f32)

    def attention_block(layer, xk, xv, xq, sk, sq):
        # xk, xv: (batch*sk, H); xq: (batch*sq, H) -- all batches stacked on sublanes.
        residual = xq
        k = mm(xk, wmat(layer, 0))                      # one full-H matmul per projection
        v = mm(xv, wmat(layer, 1))
        q = mm(xq, wmat(layer, 2)) * scale              # 1/sqrt(dh) folded into q
        outs = []
        for b in range(batch):                          # scores must not mix batches
            kb = k[b * sk:(b + 1) * sk, :]
            vb = v[b * sk:(b + 1) * sk, :]
            qb = q[b * sq:(b + 1) * sq, :]
            heads = []
            for h in range(nh):
                col = slice(h * dh, (h + 1) * dh)       # static 8-lane head slice
                s = lax.dot_general(                     # q @ k^T without explicit transpose
                    qb[:, col].astype(bf16), kb[:, col].astype(bf16),
                    (((1,), (1,)), ((), ())), preferred_element_type=f32)
                s = s - jnp.max(s, axis=-1, keepdims=True)
                p = jnp.exp(s)
                p = p * pl.reciprocal(jnp.sum(p, axis=-1, keepdims=True), approx=True)
                # TODO(synk): attention dropout omitted (p=0 / eval semantics).
                heads.append(jnp.dot(p.astype(bf16), vb[:, col].astype(bf16),
                                     preferred_element_type=f32))
            outs.append(jnp.concatenate(heads, axis=-1))          # (sq, H)
        attn = outs[0] if batch == 1 else jnp.concatenate(outs, axis=0)
        bf_row = LAYER0 + 3 * layer
        # cat([residual, attn]) @ W_f  ==  residual @ W_f[:H] + attn @ W_f[H:]
        r = (mm(residual, wmat(layer, 3)) + mm(attn, wmat(layer, 4))
             + vrow(bf_row) + residual)
        # TODO(synk): residual dropout omitted (p=0 / eval semantics).
        return layernorm(r, vrow(bf_row + 1), vrow(bf_row + 2))

    cx = cx_ref[...].astype(f32)                        # (batch*Nc, dx)
    cy = cy_ref[...].astype(f32)                        # (batch*Nc, dy)
    tx = tx_ref[...].astype(f32)                        # (batch*Nt, dx)

    # input projection: cat([cx, cy], -1) @ in_w == cx @ in_w[:dx] + cy @ in_w[dx:]
    in_wy = vmat(IN_WY, dy)
    proj_y = cy * in_wy if dy == 1 else jnp.dot(cy, in_wy, preferred_element_type=f32)
    enc = (jnp.dot(cx, vmat(IN_WX, dx), preferred_element_type=f32)
           + proj_y + vrow(IN_B))
    enc = layernorm(enc, vrow(ENC_G), vrow(ENC_B))

    # self-attention stack
    for l in range(n_self):
        enc = attention_block(l, enc, enc, enc, n_ctx, n_ctx)

    # target / context projections
    q = jnp.dot(tx, vmat(TGT_W, dx), preferred_element_type=f32) + vrow(TGT_B)
    keys = jnp.dot(cx, vmat(CTX_W, dx), preferred_element_type=f32) + vrow(CTX_B)

    # cross-attention stack (key=keys, value=enc, query=q)
    for l in range(n_cross):
        q = attention_block(n_self + l, keys, enc, q, n_ctx, n_tgt)

    out_ref[...] = q.astype(out_ref.dtype)


# ------------------------------ host-side packing ----------------------------

def pack_encoder_params(params):
    """Pack all parameters into 2 lane-dense slabs (last dim = H):
       wslab (bf16): per layer [wk, wv, wq, wf[:H], wf[H:]] stacked along rows.
       vslab (f32):  in_w / ctx_w / tgt_w + all bias / LayerNorm vectors."""
    H = params["ctx_w"].shape[1]
    layers = list(params["self_attn"]) + list(params["cross_attn"])

    mats = []
    for p in layers:
        mats += [p["wk"], p["wv"], p["wq"], p["wf"][:H, :], p["wf"][H:, :]]
    wslab = jnp.concatenate(mats, axis=0).astype(jnp.bfloat16)      # (5*L*H, H)

    rows = [params["in_w"], params["ctx_w"], params["tgt_w"],
            params["in_b"].reshape(1, H), params["ln_g"].reshape(1, H),
            params["ln_b"].reshape(1, H), params["ctx_b"].reshape(1, H),
            params["tgt_b"].reshape(1, H)]
    for p in layers:
        rows += [p["bf"].reshape(1, H), p["ln_g"].reshape(1, H),
                 p["ln_b"].reshape(1, H)]
    vslab = jnp.concatenate(rows, axis=0).astype(jnp.float32)       # (small, H)

    return {"wslab": wslab, "vslab": vslab}


# ------------------------------ host wrapper ---------------------------------

def deterministic_encoder(packed, context_x, context_y, target_x, *,
                          num_heads, n_self, n_cross, batch_per_step=None):
    B, Nc, dx = context_x.shape
    dy = context_y.shape[-1]
    Nt = target_x.shape[1]
    H = packed["vslab"].shape[-1]
    dh = H // num_heads

    # Default: the whole batch in ONE grid step (v5e/v6e: single TensorCore, so
    # extra grid steps are pure overhead).  On v7x pass batch_per_step = B // 2
    # to split the batch across the two TensorCores.
    if batch_per_step is None:
        batch_per_step = B
    assert B % batch_per_step == 0
    steps = B // batch_per_step
    bb = batch_per_step

    # batch folded onto the sublane axis (no in-kernel reshapes needed)
    cx2 = context_x.reshape(B * Nc, dx)
    cy2 = context_y.reshape(B * Nc, dy)
    tx2 = target_x.reshape(B * Nt, dx)
    wslab, vslab = packed["wslab"], packed["vslab"]

    kernel = partial(_encoder_kernel, num_heads=num_heads, head_dim=dh,
                     n_self=n_self, n_cross=n_cross, dx=dx, dy=dy,
                     n_ctx=Nc, n_tgt=Nt, batch=bb, hidden=H)

    out2 = pl.pallas_call(
        kernel,
        out_shape=jax.ShapeDtypeStruct((B * Nt, H), target_x.dtype),
        grid=(steps,),
        in_specs=[
            pl.BlockSpec((bb * Nc, dx), lambda i: (i, 0)),
            pl.BlockSpec((bb * Nc, dy), lambda i: (i, 0)),
            pl.BlockSpec((bb * Nt, dx), lambda i: (i, 0)),
            pl.BlockSpec(wslab.shape, lambda i: (0, 0)),   # VMEM-resident across steps
            pl.BlockSpec(vslab.shape, lambda i: (0, 0)),
        ],
        out_specs=pl.BlockSpec((bb * Nt, H), lambda i: (i, 0)),
        compiler_params=pltpu.CompilerParams(
            dimension_semantics=("parallel",)),
    )(cx2, cy2, tx2, wslab, vslab)
    return out2.reshape(B, Nt, H)


# --------------------------- pure-JAX reference -------------------------------

def _ref_layernorm(x, g, b):
    mu = x.mean(-1, keepdims=True)
    var = ((x - mu) ** 2).mean(-1, keepdims=True)
    return (x - mu) / jnp.sqrt(var + 1e-5) * g + b


def _ref_attention(p, key, value, query, nh):
    B, Sk, H = key.shape
    Sq = query.shape[1]
    dh = H // nh
    residual = query
    k = key @ p["wk"]
    v = value @ p["wv"]
    q = query @ p["wq"]

    def split(x, S):
        return x.reshape(B, S, nh, dh).transpose(2, 0, 1, 3).reshape(nh * B, S, dh)

    k, v, q = split(k, Sk), split(v, Sk), split(q, Sq)
    attn = jnp.einsum("nqd,nkd->nqk", q, k) / math.sqrt(dh)
    attn = jax.nn.softmax(attn, axis=-1)
    r = jnp.einsum("nqk,nkd->nqd", attn, v)
    r = r.reshape(nh, B, Sq, dh).transpose(1, 2, 0, 3).reshape(B, Sq, H)
    r = jnp.concatenate([residual, r], axis=-1) @ p["wf"] + p["bf"]
    r = r + residual
    return _ref_layernorm(r, p["ln_g"], p["ln_b"])


def reference_encoder(params, cx, cy, tx, nh):
    enc = jnp.concatenate([cx, cy], axis=-1) @ params["in_w"] + params["in_b"]
    enc = _ref_layernorm(enc, params["ln_g"], params["ln_b"])
    for p in params["self_attn"]:
        enc = _ref_attention(p, enc, enc, enc, nh)
    q = tx @ params["tgt_w"] + params["tgt_b"]
    keys = cx @ params["ctx_w"] + params["ctx_b"]
    for p in params["cross_attn"]:
        q = _ref_attention(p, keys, enc, q, nh)
    return q


# ------------------------------ param init ------------------------------------

def _xavier(key, din, dout, gain=1.0):
    bound = gain * math.sqrt(6.0 / (din + dout))
    return jax.random.uniform(key, (din, dout), jnp.float32, -bound, bound)


def _bias(key, din, dout):
    bound = 1.0 / math.sqrt(din)
    return jax.random.uniform(key, (dout,), jnp.float32, -bound, bound)


def init_attention_params(key, hidden):
    ks = jax.random.split(key, 6)
    return {
        "wk": _xavier(ks[0], hidden, hidden),
        "wv": _xavier(ks[1], hidden, hidden),
        "wq": _xavier(ks[2], hidden, hidden),
        "wf": _xavier(ks[3], 2 * hidden, hidden),
        "bf": _bias(ks[4], 2 * hidden, hidden),
        "ln_g": jnp.ones((hidden,), jnp.float32),
        "ln_b": jnp.zeros((hidden,), jnp.float32),
    }


def init_encoder_params(key, input_dim, output_dim, hidden, n_layers):
    ks = jax.random.split(key, 6 + 2 * n_layers)
    return {
        "in_w": _xavier(ks[0], input_dim + output_dim, hidden),
        "in_b": _bias(ks[1], input_dim + output_dim, hidden),
        "ctx_w": _xavier(ks[2], input_dim, hidden),
        "ctx_b": _bias(ks[3], input_dim, hidden),
        "tgt_w": _xavier(ks[4], input_dim, hidden),
        "tgt_b": _bias(ks[5], input_dim, hidden),
        "ln_g": jnp.ones((hidden,), jnp.float32),
        "ln_b": jnp.zeros((hidden,), jnp.float32),
        "self_attn": [init_attention_params(ks[6 + i], hidden)
                      for i in range(n_layers)],
        "cross_attn": [init_attention_params(ks[6 + n_layers + i], hidden)
                       for i in range(n_layers)],
    }


# ---------------------------------- main --------------------------------------

if __name__ == "__main__":
    # config (level=1)
    config = dict(l1_input_dim=3, l1_output_dim=1, hidden_dim=32,
                  num_heads=4, dropout=0.0, attention_layers=2)
    B, Nc, Nt = 2, 8, 8

    root = jax.random.PRNGKey(0)
    kp, kx, ky, kt = jax.random.split(root, 4)

    raw_params = init_encoder_params(kp, config["l1_input_dim"],
                                     config["l1_output_dim"],
                                     config["hidden_dim"],
                                     config["attention_layers"])
    packed = pack_encoder_params(raw_params)

    context_x = jax.random.normal(kx, (B, Nc, config["l1_input_dim"]), jnp.float32)
    context_y = jax.random.normal(ky, (B, Nc, config["l1_output_dim"]), jnp.float32)
    target_x = jax.random.normal(kt, (B, Nt, config["l1_input_dim"]), jnp.float32)

    fwd = jax.jit(partial(deterministic_encoder,
                          num_heads=config["num_heads"],
                          n_self=config["attention_layers"],
                          n_cross=config["attention_layers"]))
    out = fwd(packed, context_x, context_y, target_x)
    jax.block_until_ready(out)

    ref = reference_encoder(raw_params, context_x, context_y, target_x,
                            config["num_heads"])

    assert out.shape == (B, Nt, config["hidden_dim"]), out.shape
    assert bool(jnp.all(jnp.isfinite(out)))
    max_err = float(jnp.max(jnp.abs(out - ref)))
    mean_err = float(jnp.mean(jnp.abs(out - ref)))
    # bf16 matmul operands across 4 attention layers (per perf review) -> allow a
    # few 1e-2 of drift vs the f32 reference; structural bugs would give O(1) errors.
    assert max_err < 1.0e-1 and mean_err < 2.5e-2, (max_err, mean_err)
    print("KERNEL_OK")
</pallas_src>

<mosaic_0001>
module attributes {stable_mosaic.version = 11 : i64} {
  func.func @_encoder_kernel(%arg0: i32, %arg1: memref<16x3xf32, #tpu.memory_space<vmem>>, %arg2: memref<16x1xf32, #tpu.memory_space<vmem>>, %arg3: memref<16x3xf32, #tpu.memory_space<vmem>>, %arg4: memref<640x32xbf16, #tpu.memory_space<vmem>>, %arg5: memref<27x32xf32, #tpu.memory_space<vmem>>, %arg6: memref<16x32xf32, #tpu.memory_space<vmem>>) attributes {dimension_semantics = [#tpu.dimension_semantics<parallel>], iteration_bounds = array<i64: 1>, scalar_prefetch = 0 : i64, scratch_operands = 0 : i64, tpu.core_type = #tpu.core_type<tc>, window_params = [{transform_indices = @transform_0, window_bounds = array<i64: 16, 3>}, {transform_indices = @transform_1, window_bounds = array<i64: 16, 1>}, {transform_indices = @transform_2, window_bounds = array<i64: 16, 3>}, {pipeline_mode = #tpu.pipeline_mode<synchronous>, transform_indices = @transform_3, window_bounds = array<i64: 640, 32>}, {pipeline_mode = #tpu.pipeline_mode<synchronous>, transform_indices = @transform_4, window_bounds = array<i64: 27, 32>}, {transform_indices = @transform_5, window_bounds = array<i64: 16, 32>}]} {
    %c0 = arith.constant 0 : index
    %c0_0 = arith.constant 0 : index
    %0 = vector.load %arg1[%c0, %c0_0] : memref<16x3xf32, #tpu.memory_space<vmem>>, vector<16x3xf32>
    %c0_1 = arith.constant 0 : index
    %c0_2 = arith.constant 0 : index
    %1 = vector.load %arg2[%c0_1, %c0_2] : memref<16x1xf32, #tpu.memory_space<vmem>>, vector<16x1xf32>
    %c0_3 = arith.constant 0 : index
    %c0_4 = arith.constant 0 : index
    %2 = vector.load %arg3[%c0_3, %c0_4] : memref<16x3xf32, #tpu.memory_space<vmem>>, vector<16x3xf32>
    %c3 = arith.constant 3 : index
    %c0_5 = arith.constant 0 : index
    %3 = vector.load %arg5[%c3, %c0_5] : memref<27x32xf32, #tpu.memory_space<vmem>>, vector<1x32xf32>
    %4 = vector.broadcast %1 : vector<16x1xf32> to vector<16x32xf32>
    %5 = vector.broadcast %3 : vector<1x32xf32> to vector<16x32xf32>
    %6 = arith.mulf %4, %5 : vector<16x32xf32>
    %c0_6 = arith.constant 0 : index
    %c0_7 = arith.constant 0 : index
    %7 = vector.load %arg5[%c0_6, %c0_7] : memref<27x32xf32, #tpu.memory_space<vmem>>, vector<3x32xf32>
    %cst = arith.constant dense<0.000000e+00> : vector<16x32xf32>
    %8 = tpu.matmul %0, %7, %cst {dimension_numbers = #tpu.dot_dimension_numbers<[1], [0], [0], [1], [0, 0, 1, 1], [], []>} : vector<16x3xf32>, vector<3x32xf32>, vector<16x32xf32> -> vector<16x32xf32>
    %9 = arith.addf %8, %6 : vector<16x32xf32>
    %c10 = arith.constant 10 : index
    %c0_8 = arith.constant 0 : index
    %10 = vector.load %arg5[%c10, %c0_8] : memref<27x32xf32, #tpu.memory_space<vmem>>, vector<1x32xf32>
    %11 = vector.broadcast %10 : vector<1x32xf32> to vector<16x32xf32>
    %12 = arith.addf %9, %11 : vector<16x32xf32>
    %c11 = arith.constant 11 : index
    %c0_9 = arith.constant 0 : index
    %13 = vector.load %arg5[%c11, %c0_9] : memref<27x32xf32, #tpu.memory_space<vmem>>, vector<1x32xf32>
    %c12 = arith.constant 12 : index
    %c0_10 = arith.constant 0 : index
    %14 = vector.load %arg5[%c12, %c0_10] : memref<27x32xf32, #tpu.memory_space<vmem>>, vector<1x32xf32>
    %cst_11 = arith.constant dense<0.000000e+00> : vector<16xf32>
    %15 = vector.multi_reduction <add>, %12, %cst_11 [1] : vector<16x32xf32> to vector<16xf32>
    %16 = vector.shape_cast %15 : vector<16xf32> to vector<16x1xf32>
    %cst_12 = arith.constant 3.200000e+01 : f32
    %17 = vector.broadcast %cst_12 : f32 to vector<16x1xf32>
    %18 = arith.divf %16, %17 : vector<16x1xf32>
    %19 = vector.broadcast %18 : vector<16x1xf32> to vector<16x32xf32>
    %20 = arith.subf %12, %19 : vector<16x32xf32>
    %21 = arith.mulf %20, %20 : vector<16x32xf32>
    %cst_13 = arith.constant dense<0.000000e+00> : vector<16xf32>
    %22 = vector.multi_reduction <add>, %21, %cst_13 [1] : vector<16x32xf32> to vector<16xf32>
    %23 = vector.shape_cast %22 : vector<16xf32> to vector<16x1xf32>
    %cst_14 = arith.constant 3.200000e+01 : f32
    %24 = vector.broadcast %cst_14 : f32 to vector<16x1xf32>
    %25 = arith.divf %23, %24 : vector<16x1xf32>
    %26 = vector.broadcast %18 : vector<16x1xf32> to vector<16x32xf32>
    %27 = arith.subf %12, %26 : vector<16x32xf32>
    %cst_15 = arith.constant 9.99999974E-6 : f32
    %28 = vector.broadcast %cst_15 : f32 to vector<16x1xf32>
    %29 = arith.addf %25, %28 : vector<16x1xf32>
    %30 = math.rsqrt %29 : vector<16x1xf32>
    %31 = vector.broadcast %30 : vector<16x1xf32> to vector<16x32xf32>
    %32 = arith.mulf %27, %31 : vector<16x32xf32>
    %33 = vector.broadcast %13 : vector<1x32xf32> to vector<16x32xf32>
    %34 = arith.mulf %32, %33 : vector<16x32xf32>
    %35 = vector.broadcast %14 : vector<1x32xf32> to vector<16x32xf32>
    %36 = arith.addf %34, %35 : vector<16x32xf32>
    %c0_16 = arith.constant 0 : index
    %c0_17 = arith.constant 0 : index
    %37 = vector.load %arg4[%c0_16, %c0_17] : memref<640x32xbf16, #tpu.memory_space<vmem>>, vector<32x32xbf16>
    %38 = arith.truncf %36 : vector<16x32xf32> to vector<16x32xbf16>
    %cst_18 = arith.constant dense<0.000000e+00> : vector<16x32xf32>
    %39 = tpu.matmul %38, %37, %cst_18 {dimension_numbers = #tpu.dot_dimension_numbers<[1], [0], [0], [1], [0, 0, 1, 1], [], []>} : vector<16x32xbf16>, vector<32x32xbf16>, vector<16x32xf32> -> vector<16x32xf32>
    %c32 = arith.constant 32 : index
    %c0_19 = arith.constant 0 : index
    %40 = vector.load %arg4[%c32, %c0_19] : memref<640x32xbf16, #tpu.memory_space<vmem>>, vector<32x32xbf16>
    %41 = arith.truncf %36 : vector<16x32xf32> to vector<16x32xbf16>
    %cst_20 = arith.constant dense<0.000000e+00> : vector<16x32xf32>
    %42 = tpu.matmul %41, %40, %cst_20 {dimension_numbers = #tpu.dot_dimension_numbers<[1], [0], [0], [1], [0, 0, 1, 1], [], []>} : vector<16x32xbf16>, vector<32x32xbf16>, vector<16x32xf32> -> vector<16x32xf32>
    %c64 = arith.constant 64 : index
    %c0_21 = arith.constant 0 : index
    %43 = vector.load %arg4[%c64, %c0_21] : memref<640x32xbf16, #tpu.memory_space<vmem>>, vector<32x32xbf16>
    %44 = arith.truncf %36 : vector<16x32xf32> to vector<16x32xbf16>
    %cst_22 = arith.constant dense<0.000000e+00> : vector<16x32xf32>
    %45 = tpu.matmul %44, %43, %cst_22 {dimension_numbers = #tpu.dot_dimension_numbers<[1], [0], [0], [1], [0, 0, 1, 1], [], []>} : vector<16x32xbf16>, vector<32x32xbf16>, vector<16x32xf32> -> vector<16x32xf32>
    %cst_23 = arith.constant 0.353553385 : f32
    %46 = vector.broadcast %cst_23 : f32 to vector<16x32xf32>
    %47 = arith.mulf %45, %46 : vector<16x32xf32>
    %48 = vector.extract_strided_slice %39 {offsets = [0, 0], sizes = [8, 32], strides = [1, 1]} : vector<16x32xf32> to vector<8x32xf32>
    %49 = vector.extract_strided_slice %42 {offsets = [0, 0], sizes = [8, 32], strides = [1, 1]} : vector<16x32xf32> to vector<8x32xf32>
    %50 = vector.extract_strided_slice %47 {offsets = [0, 0], sizes = [8, 32], strides = [1, 1]} : vector<16x32xf32> to vector<8x32xf32>
    %51 = vector.extract_strided_slice %50 {offsets = [0, 0], sizes = [8, 8], strides = [1, 1]} : vector<8x32xf32> to vector<8x8xf32>
    %52 = arith.truncf %51 : vector<8x8xf32> to vector<8x8xbf16>
    %53 = vector.extract_strided_slice %48 {offsets = [0, 0], sizes = [8, 8], strides = [1, 1]} : vector<8x32xf32> to vector<8x8xf32>
    %54 = arith.truncf %53 : vector<8x8xf32> to vector<8x8xbf16>
    %cst_24 = arith.constant dense<0.000000e+00> : vector<8x8xf32>
    %55 = tpu.matmul %52, %54, %cst_24 {dimension_numbers = #tpu.dot_dimension_numbers<[1], [1], [0], [0], [0, 0, 1, 0], [], []>} : vector<8x8xbf16>, vector<8x8xbf16>, vector<8x8xf32> -> vector<8x8xf32>
    %cst_25 = arith.constant dense<0xFF800000> : vector<8xf32>
    %56 = vector.multi_reduction <maximumf>, %55, %cst_25 [1] : vector<8x8xf32> to vector<8xf32>
    %57 = vector.shape_cast %56 : vector<8xf32> to vector<8x1xf32>
    %58 = vector.broadcast %57 : vector<8x1xf32> to vector<8x8xf32>
    %59 = arith.subf %55, %58 : vector<8x8xf32>
    %60 = math.exp %59 : vector<8x8xf32>
    %cst_26 = arith.constant dense<0.000000e+00> : vector<8xf32>
    %61 = vector.multi_reduction <add>, %60, %cst_26 [1] : vector<8x8xf32> to vector<8xf32>
    %62 = vector.shape_cast %61 : vector<8xf32> to vector<8x1xf32>
    %63 = tpu.reciprocal %62 {approx = true} : vector<8x1xf32> -> vector<8x1xf32>
    %64 = vector.broadcast %63 : vector<8x1xf32> to vector<8x8xf32>
    %65 = arith.mulf %60, %64 : vector<8x8xf32>
    %66 = arith.truncf %65 : vector<8x8xf32> to vector<8x8xbf16>
    %67 = vector.extract_strided_slice %49 {offsets = [0, 0], sizes = [8, 8], strides = [1, 1]} : vector<8x32xf32> to vector<8x8xf32>
    %68 = arith.truncf %67 : vector<8x8xf32> to vector<8x8xbf16>
    %cst_27 = arith.constant dense<0.000000e+00> : vector<8x8xf32>
    %69 = tpu.matmul %66, %68, %cst_27 {dimension_numbers = #tpu.dot_dimension_numbers<[1], [0], [0], [1], [0, 0, 1, 1], [], []>} : vector<8x8xbf16>, vector<8x8xbf16>, vector<8x8xf32> -> vector<8x8xf32>
    %70 = vector.extract_strided_slice %50 {offsets = [0, 8], sizes = [8, 8], strides = [1, 1]} : vector<8x32xf32> to vector<8x8xf32>
    %71 = arith.truncf %70 : vector<8x8xf32> to vector<8x8xbf16>
    %72 = vector.extract_strided_slice %48 {offsets = [0, 8], sizes = [8, 8], strides = [1, 1]} : vector<8x32xf32> to vector<8x8xf32>
    %73 = arith.truncf %72 : vector<8x8xf32> to vector<8x8xbf16>
    %cst_28 = arith.constant dense<0.000000e+00> : vector<8x8xf32>
    %74 = tpu.matmul %71, %73, %cst_28 {dimension_numbers = #tpu.dot_dimension_numbers<[1], [1], [0], [0], [0, 0, 1, 0], [], []>} : vector<8x8xbf16>, vector<8x8xbf16>, vector<8x8xf32> -> vector<8x8xf32>
    %cst_29 = arith.constant dense<0xFF800000> : vector<8xf32>
    %75 = vector.multi_reduction <maximumf>, %74, %cst_29 [1] : vector<8x8xf32> to vector<8xf32>
    %76 = vector.shape_cast %75 : vector<8xf32> to vector<8x1xf32>
    %77 = vector.broadcast %76 : vector<8x1xf32> to vector<8x8xf32>
    %78 = arith.subf %74, %77 : vector<8x8xf32>
    %79 = math.exp %78 : vector<8x8xf32>
    %cst_30 = arith.constant dense<0.000000e+00> : vector<8xf32>
    %80 = vector.multi_reduction <add>, %79, %cst_30 [1] : vector<8x8xf32> to vector<8xf32>
    %81 = vector.shape_cast %80 : vector<8xf32> to vector<8x1xf32>
    %82 = tpu.reciprocal %81 {approx = true} : vector<8x1xf32> -> vector<8x1xf32>
    %83 = vector.broadcast %82 : vector<8x1xf32> to vector<8x8xf32>
    %84 = arith.mulf %79, %83 : vector<8x8xf32>
    %85 = arith.truncf %84 : vector<8x8xf32> to vector<8x8xbf16>
    %86 = vector.extract_strided_slice %49 {offsets = [0, 8], sizes = [8, 8], strides = [1, 1]} : vector<8x32xf32> to vector<8x8xf32>
    %87 = arith.truncf %86 : vector<8x8xf32> to vector<8x8xbf16>
    %cst_31 = arith.constant dense<0.000000e+00> : vector<8x8xf32>
    %88 = tpu.matmul %85, %87, %cst_31 {dimension_numbers = #tpu.dot_dimension_numbers<[1], [0], [0], [1], [0, 0, 1, 1], [], []>} : vector<8x8xbf16>, vector<8x8xbf16>, vector<8x8xf32> -> vector<8x8xf32>
    %89 = vector.extract_strided_slice %50 {offsets = [0, 16], sizes = [8, 8], strides = [1, 1]} : vector<8x32xf32> to vector<8x8xf32>
    %90 = arith.truncf %89 : vector<8x8xf32> to vector<8x8xbf16>
    %91 = vector.extract_strided_slice %48 {offsets = [0, 16], sizes = [8, 8], strides = [1, 1]} : vector<8x32xf32> to vector<8x8xf32>
    %92 = arith.truncf %91 : vector<8x8xf32> to vector<8x8xbf16>
    %cst_32 = arith.constant dense<0.000000e+00> : vector<8x8xf32>
    %93 = tpu.matmul %90, %92, %cst_32 {dimension_numbers = #tpu.dot_dimension_numbers<[1], [1], [0], [0], [0, 0, 1, 0], [], []>} : vector<8x8xbf16>, vector<8x8xbf16>, vector<8x8xf32> -> vector<8x8xf32>
    %cst_33 = arith.constant dense<0xFF800000> : vector<8xf32>
    %94 = vector.multi_reduction <maximumf>, %93, %cst_33 [1] : vector<8x8xf32> to vector<8xf32>
    %95 = vector.shape_cast %94 : vector<8xf32> to vector<8x1xf32>
    %96 = vector.broadcast %95 : vector<8x1xf32> to vector<8x8xf32>
    %97 = arith.subf %93, %96 : vector<8x8xf32>
    %98 = math.exp %97 : vector<8x8xf32>
    %cst_34 = arith.constant dense<0.000000e+00> : vector<8xf32>
    %99 = vector.multi_reduction <add>, %98, %cst_34 [1] : vector<8x8xf32> to vector<8xf32>
    %100 = vector.shape_cast %99 : vector<8xf32> to vector<8x1xf32>
    %101 = tpu.reciprocal %100 {approx = true} : vector<8x1xf32> -> vector<8x1xf32>
    %102 = vector.broadcast %101 : vector<8x1xf32> to vector<8x8xf32>
    %103 = arith.mulf %98, %102 : vector<8x8xf32>
    %104 = arith.truncf %103 : vector<8x8xf32> to vector<8x8xbf16>
    %105 = vector.extract_strided_slice %49 {offsets = [0, 16], sizes = [8, 8], strides = [1, 1]} : vector<8x32xf32> to vector<8x8xf32>
    %106 = arith.truncf %105 : vector<8x8xf32> to vector<8x8xbf16>
    %cst_35 = arith.constant dense<0.000000e+00> : vector<8x8xf32>
    %107 = tpu.matmul %104, %106, %cst_35 {dimension_numbers = #tpu.dot_dimension_numbers<[1], [0], [0], [1], [0, 0, 1, 1], [], []>} : vector<8x8xbf16>, vector<8x8xbf16>, vector<8x8xf32> -> vector<8x8xf32>
    %108 = vector.extract_strided_slice %50 {offsets = [0, 24], sizes = [8, 8], strides = [1, 1]} : vector<8x32xf32> to vector<8x8xf32>
    %109 = arith.truncf %108 : vector<8x8xf32> to vector<8x8xbf16>
    %110 = vector.extract_strided_slice %48 {offsets = [0, 24], sizes = [8, 8], strides = [1, 1]} : vector<8x32xf32> to vector<8x8xf32>
    %111 = arith.truncf %110 : vector<8x8xf32> to vector<8x8xbf16>
    %cst_36 = arith.constant dense<0.000000e+00> : vector<8x8xf32>
    %112 = tpu.matmul %109, %111, %cst_36 {dimension_numbers = #tpu.dot_dimension_numbers<[1], [1], [0], [0], [0, 0, 1, 0], [], []>} : vector<8x8xbf16>, vector<8x8xbf16>, vector<8x8xf32> -> vector<8x8xf32>
    %cst_37 = arith.constant dense<0xFF800000> : vector<8xf32>
    %113 = vector.multi_reduction <maximumf>, %112, %cst_37 [1] : vector<8x8xf32> to vector<8xf32>
    %114 = vector.shape_cast %113 : vector<8xf32> to vector<8x1xf32>
    %115 = vector.broadcast %114 : vector<8x1xf32> to vector<8x8xf32>
    %116 = arith.subf %112, %115 : vector<8x8xf32>
    %117 = math.exp %116 : vector<8x8xf32>
    %cst_38 = arith.constant dense<0.000000e+00> : vector<8xf32>
    %118 = vector.multi_reduction <add>, %117, %cst_38 [1] : vector<8x8xf32> to vector<8xf32>
    %119 = vector.shape_cast %118 : vector<8xf32> to vector<8x1xf32>
    %120 = tpu.reciprocal %119 {approx = true} : vector<8x1xf32> -> vector<8x1xf32>
    %121 = vector.broadcast %120 : vector<8x1xf32> to vector<8x8xf32>
    %122 = arith.mulf %117, %121 : vector<8x8xf32>
    %123 = arith.truncf %122 : vector<8x8xf32> to vector<8x8xbf16>
    %124 = vector.extract_strided_slice %49 {offsets = [0, 24], sizes = [8, 8], strides = [1, 1]} : vector<8x32xf32> to vector<8x8xf32>
    %125 = arith.truncf %124 : vector<8x8xf32> to vector<8x8xbf16>
    %cst_39 = arith.constant dense<0.000000e+00> : vector<8x8xf32>
    %126 = tpu.matmul %123, %125, %cst_39 {dimension_numbers = #tpu.dot_dimension_numbers<[1], [0], [0], [1], [0, 0, 1, 1], [], []>} : vector<8x8xbf16>, vector<8x8xbf16>, vector<8x8xf32> -> vector<8x8xf32>
    %127 = tpu.concatenate %69, %88, %107, %126 in 1 : vector<8x8xf32>, vector<8x8xf32>, vector<8x8xf32>, vector<8x8xf32> -> vector<8x32xf32>
    %128 = vector.extract_strided_slice %39 {offsets = [8, 0], sizes = [8, 32], strides = [1, 1]} : vector<16x32xf32> to vector<8x32xf32>
    %129 = vector.extract_strided_slice %42 {offsets = [8, 0], sizes = [8, 32], strides = [1, 1]} : vector<16x32xf32> to vector<8x32xf32>
    %130 = vector.extract_strided_slice %47 {offsets = [8, 0], sizes = [8, 32], strides = [1, 1]} : vector<16x32xf32> to vector<8x32xf32>
    %131 = vector.extract_strided_slice %130 {offsets = [0, 0], sizes = [8, 8], strides = [1, 1]} : vector<8x32xf32> to vector<8x8xf32>
    %132 = arith.truncf %131 : vector<8x8xf32> to vector<8x8xbf16>
    %133 = vector.extract_strided_slice %128 {offsets = [0, 0], sizes = [8, 8], strides = [1, 1]} : vector<8x32xf32> to vector<8x8xf32>
    %134 = arith.truncf %133 : vector<8x8xf32> to vector<8x8xbf16>
    %cst_40 = arith.constant dense<0.000000e+00> : vector<8x8xf32>
    %135 = tpu.matmul %132, %134, %cst_40 {dimension_numbers = #tpu.dot_dimension_numbers<[1], [1], [0], [0], [0, 0, 1, 0], [], []>} : vector<8x8xbf16>, vector<8x8xbf16>, vector<8x8xf32> -> vector<8x8xf32>
    %cst_41 = arith.constant dense<0xFF800000> : vector<8xf32>
    %136 = vector.multi_reduction <maximumf>, %135, %cst_41 [1] : vector<8x8xf32> to vector<8xf32>
    %137 = vector.shape_cast %136 : vector<8xf32> to vector<8x1xf32>
    %138 = vector.broadcast %137 : vector<8x1xf32> to vector<8x8xf32>
    %139 = arith.subf %135, %138 : vector<8x8xf32>
    %140 = math.exp %139 : vector<8x8xf32>
    %cst_42 = arith.constant dense<0.000000e+00> : vector<8xf32>
    %141 = vector.multi_reduction <add>, %140, %cst_42 [1] : vector<8x8xf32> to vector<8xf32>
    %142 = vector.shape_cast %141 : vector<8xf32> to vector<8x1xf32>
    %143 = tpu.reciprocal %142 {approx = true} : vector<8x1xf32> -> vector<8x1xf32>
    %144 = vector.broadcast %143 : vector<8x1xf32> to vector<8x8xf32>
    %145 = arith.mulf %140, %144 : vector<8x8xf32>
    %146 = arith.truncf %145 : vector<8x8xf32> to vector<8x8xbf16>
    %147 = vector.extract_strided_slice %129 {offsets = [0, 0], sizes = [8, 8], strides = [1, 1]} : vector<8x32xf32> to vector<8x8xf32>
    %148 = arith.truncf %147 : vector<8x8xf32> to vector<8x8xbf16>
    %cst_43 = arith.constant dense<0.000000e+00> : vector<8x8xf32>
    %149 = tpu.matmul %146, %148, %cst_43 {dimension_numbers = #tpu.dot_dimension_numbers<[1], [0], [0], [1], [0, 0, 1, 1], [], []>} : vector<8x8xbf16>, vector<8x8xbf16>, vector<8x8xf32> -> vector<8x8xf32>
    %150 = vector.extract_strided_slice %130 {offsets = [0, 8], sizes = [8, 8], strides = [1, 1]} : vector<8x32xf32> to vector<8x8xf32>
    %151 = arith.truncf %150 : vector<8x8xf32> to vector<8x8xbf16>
    %152 = vector.extract_strided_slice %128 {offsets = [0, 8], sizes = [8, 8], strides = [1, 1]} : vector<8x32xf32> to vector<8x8xf32>
    %153 = arith.truncf %152 : vector<8x8xf32> to vector<8x8xbf16>
    %cst_44 = arith.constant dense<0.000000e+00> : vector<8x8xf32>
    %154 = tpu.matmul %151, %153, %cst_44 {dimension_numbers = #tpu.dot_dimension_numbers<[1], [1], [0], [0], [0, 0, 1, 0], [], []>} : vector<8x8xbf16>, vector<8x8xbf16>, vector<8x8xf32> -> vector<8x8xf32>
    %cst_45 = arith.constant dense<0xFF800000> : vector<8xf32>
    %155 = vector.multi_reduction <maximumf>, %154, %cst_45 [1] : vector<8x8xf32> to vector<8xf32>
    %156 = vector.shape_cast %155 : vector<8xf32> to vector<8x1xf32>
    %157 = vector.broadcast %156 : vector<8x1xf32> to vector<8x8xf32>
    %158 = arith.subf %154, %157 : vector<8x8xf32>
    %159 = math.exp %158 : vector<8x8xf32>
    %cst_46 = arith.constant dense<0.000000e+00> : vector<8xf32>
    %160 = vector.multi_reduction <add>, %159, %cst_46 [1] : vector<8x8xf32> to vector<8xf32>
    %161 = vector.shape_cast %160 : vector<8xf32> to vector<8x1xf32>
    %162 = tpu.reciprocal %161 {approx = true} : vector<8x1xf32> -> vector<8x1xf32>
    %163 = vector.broadcast %162 : vector<8x1xf32> to vector<8x8xf32>
    %164 = arith.mulf %159, %163 : vector<8x8xf32>
    %165 = arith.truncf %164 : vector<8x8xf32> to vector<8x8xbf16>
    %166 = vector.extract_strided_slice %129 {offsets = [0, 8], sizes = [8, 8], strides = [1, 1]} : vector<8x32xf32> to vector<8x8xf32>
    %167 = arith.truncf %166 : vector<8x8xf32> to vector<8x8xbf16>
    %cst_47 = arith.constant dense<0.000000e+00> : vector<8x8xf32>
    %168 = tpu.matmul %165, %167, %cst_47 {dimension_numbers = #tpu.dot_dimension_numbers<[1], [0], [0], [1], [0, 0, 1, 1], [], []>} : vector<8x8xbf16>, vector<8x8xbf16>, vector<8x8xf32> -> vector<8x8xf32>
    %169 = vector.extract_strided_slice %130 {offsets = [0, 16], sizes = [8, 8], strides = [1, 1]} : vector<8x32xf32> to vector<8x8xf32>
    %170 = arith.truncf %169 : vector<8x8xf32> to vector<8x8xbf16>
    %171 = vector.extract_strided_slice %128 {offsets = [0, 16], sizes = [8, 8], strides = [1, 1]} : vector<8x32xf32> to vector<8x8xf32>
    %172 = arith.truncf %171 : vector<8x8xf32> to vector<8x8xbf16>
    %cst_48 = arith.constant dense<0.000000e+00> : vector<8x8xf32>
    %173 = tpu.matmul %170, %172, %cst_48 {dimension_numbers = #tpu.dot_dimension_numbers<[1], [1], [0], [0], [0, 0, 1, 0], [], []>} : vector<8x8xbf16>, vector<8x8xbf16>, vector<8x8xf32> -> vector<8x8xf32>
    %cst_49 = arith.constant dense<0xFF800000> : vector<8xf32>
    %174 = vector.multi_reduction <maximumf>, %173, %cst_49 [1] : vector<8x8xf32> to vector<8xf32>
    %175 = vector.shape_cast %174 : vector<8xf32> to vector<8x1xf32>
    %176 = vector.broadcast %175 : vector<8x1xf32> to vector<8x8xf32>
    %177 = arith.subf %173, %176 : vector<8x8xf32>
    %178 = math.exp %177 : vector<8x8xf32>
    %cst_50 = arith.constant dense<0.000000e+00> : vector<8xf32>
    %179 = vector.multi_reduction <add>, %178, %cst_50 [1] : vector<8x8xf32> to vector<8xf32>
    %180 = vector.shape_cast %179 : vector<8xf32> to vector<8x1xf32>
    %181 = tpu.reciprocal %180 {approx = true} : vector<8x1xf32> -> vector<8x1xf32>
    %182 = vector.broadcast %181 : vector<8x1xf32> to vector<8x8xf32>
    %183 = arith.mulf %178, %182 : vector<8x8xf32>
    %184 = arith.truncf %183 : vector<8x8xf32> to vector<8x8xbf16>
    %185 = vector.extract_strided_slice %129 {offsets = [0, 16], sizes = [8, 8], strides = [1, 1]} : vector<8x32xf32> to vector<8x8xf32>
    %186 = arith.truncf %185 : vector<8x8xf32> to vector<8x8xbf16>
    %cst_51 = arith.constant dense<0.000000e+00> : vector<8x8xf32>
    %187 = tpu.matmul %184, %186, %cst_51 {dimension_numbers = #tpu.dot_dimension_numbers<[1], [0], [0], [1], [0, 0, 1, 1], [], []>} : vector<8x8xbf16>, vector<8x8xbf16>, vector<8x8xf32> -> vector<8x8xf32>
    %188 = vector.extract_strided_slice %130 {offsets = [0, 24], sizes = [8, 8], strides = [1, 1]} : vector<8x32xf32> to vector<8x8xf32>
    %189 = arith.truncf %188 : vector<8x8xf32> to vector<8x8xbf16>
    %190 = vector.extract_strided_slice %128 {offsets = [0, 24], sizes = [8, 8], strides = [1, 1]} : vector<8x32xf32> to vector<8x8xf32>
    %191 = arith.truncf %190 : vector<8x8xf32> to vector<8x8xbf16>
    %cst_52 = arith.constant dense<0.000000e+00> : vector<8x8xf32>
    %192 = tpu.matmul %189, %191, %cst_52 {dimension_numbers = #tpu.dot_dimension_numbers<[1], [1], [0], [0], [0, 0, 1, 0], [], []>} : vector<8x8xbf16>, vector<8x8xbf16>, vector<8x8xf32> -> vector<8x8xf32>
    %cst_53 = arith.constant dense<0xFF800000> : vector<8xf32>
    %193 = vector.multi_reduction <maximumf>, %192, %cst_53 [1] : vector<8x8xf32> to vector<8xf32>
    %194 = vector.shape_cast %193 : vector<8xf32> to vector<8x1xf32>
    %195 = vector.broadcast %194 : vector<8x1xf32> to vector<8x8xf32>
    %196 = arith.subf %192, %195 : vector<8x8xf32>
    %197 = math.exp %196 : vector<8x8xf32>
    %cst_54 = arith.constant dense<0.000000e+00> : vector<8xf32>
    %198 = vector.multi_reduction <add>, %197, %cst_54 [1] : vector<8x8xf32> to vector<8xf32>
    %199 = vector.shape_cast %198 : vector<8xf32> to vector<8x1xf32>
    %200 = tpu.reciprocal %199 {approx = true} : vector<8x1xf32> -> vector<8x1xf32>
    %201 = vector.broadcast %200 : vector<8x1xf32> to vector<8x8xf32>
    %202 = arith.mulf %197, %201 : vector<8x8xf32>
    %203 = arith.truncf %202 : vector<8x8xf32> to vector<8x8xbf16>
    %204 = vector.extract_strided_slice %129 {offsets = [0, 24], sizes = [8, 8], strides = [1, 1]} : vector<8x32xf32> to vector<8x8xf32>
    %205 = arith.truncf %204 : vector<8x8xf32> to vector<8x8xbf16>
    %cst_55 = arith.constant dense<0.000000e+00> : vector<8x8xf32>
    %206 = tpu.matmul %203, %205, %cst_55 {dimension_numbers = #tpu.dot_dimension_numbers<[1], [0], [0], [1], [0, 0, 1, 1], [], []>} : vector<8x8xbf16>, vector<8x8xbf16>, vector<8x8xf32> -> vector<8x8xf32>
    %207 = tpu.concatenate %149, %168, %187, %206 in 1 : vector<8x8xf32>, vector<8x8xf32>, vector<8x8xf32>, vector<8x8xf32> -> vector<8x32xf32>
    %208 = tpu.concatenate %127, %207 in 0 : vector<8x32xf32>, vector<8x32xf32> -> vector<16x32xf32>
    %c96 = arith.constant 96 : index
    %c0_56 = arith.constant 0 : index
    %209 = vector.load %arg4[%c96, %c0_56] : memref<640x32xbf16, #tpu.memory_space<vmem>>, vector<32x32xbf16>
    %210 = arith.truncf %36 : vector<16x32xf32> to vector<16x32xbf16>
    %cst_57 = arith.constant dense<0.000000e+00> : vector<16x32xf32>
    %211 = tpu.matmul %210, %209, %cst_57 {dimension_numbers = #tpu.dot_dimension_numbers<[1], [0], [0], [1], [0, 0, 1, 1], [], []>} : vector<16x32xbf16>, vector<32x32xbf16>, vector<16x32xf32> -> vector<16x32xf32>
    %c128 = arith.constant 128 : index
    %c0_58 = arith.constant 0 : index
    %212 = vector.load %arg4[%c128, %c0_58] : memref<640x32xbf16, #tpu.memory_space<vmem>>, vector<32x32xbf16>
    %213 = arith.truncf %208 : vector<16x32xf32> to vector<16x32xbf16>
    %cst_59 = arith.constant dense<0.000000e+00> : vector<16x32xf32>
    %214 = tpu.matmul %213, %212, %cst_59 {dimension_numbers = #tpu.dot_dimension_numbers<[1], [0], [0], [1], [0, 0, 1, 1], [], []>} : vector<16x32xbf16>, vector<32x32xbf16>, vector<16x32xf32> -> vector<16x32xf32>
    %215 = arith.addf %211, %214 : vector<16x32xf32>
    %c15 = arith.constant 15 : index
    %c0_60 = arith.constant 0 : index
    %216 = vector.load %arg5[%c15, %c0_60] : memref<27x32xf32, #tpu.memory_space<vmem>>, vector<1x32xf32>
    %217 = vector.broadcast %216 : vector<1x32xf32> to vector<16x32xf32>
    %218 = arith.addf %215, %217 : vector<16x32xf32>
    %219 = arith.addf %218, %36 : vector<16x32xf32>
    %c16 = arith.constant 16 : index
    %c0_61 = arith.constant 0 : index
    %220 = vector.load %arg5[%c16, %c0_61] : memref<27x32xf32, #tpu.memory_space<vmem>>, vector<1x32xf32>
    %c17 = arith.constant 17 : index
    %c0_62 = arith.constant 0 : index
    %221 = vector.load %arg5[%c17, %c0_62] : memref<27x32xf32, #tpu.memory_space<vmem>>, vector<1x32xf32>
    %cst_63 = arith.constant dense<0.000000e+00> : vector<16xf32>
    %222 = vector.multi_reduction <add>, %219, %cst_63 [1] : vector<16x32xf32> to vector<16xf32>
    %223 = vector.shape_cast %222 : vector<16xf32> to vector<16x1xf32>
    %cst_64 = arith.constant 3.200000e+01 : f32
    %224 = vector.broadcast %cst_64 : f32 to vector<16x1xf32>
    %225 = arith.divf %223, %224 : vector<16x1xf32>
    %226 = vector.broadcast %225 : vector<16x1xf32> to vector<16x32xf32>
    %227 = arith.subf %219, %226 : vector<16x32xf32>
    %228 = arith.mulf %227, %227 : vector<16x32xf32>
    %cst_65 = arith.constant dense<0.000000e+00> : vector<16xf32>
    %229 = vector.multi_reduction <add>, %228, %cst_65 [1] : vector<16x32xf32> to vector<16xf32>
    %230 = vector.shape_cast %229 : vector<16xf32> to vector<16x1xf32>
    %cst_66 = arith.constant 3.200000e+01 : f32
    %231 = vector.broadcast %cst_66 : f32 to vector<16x1xf32>
    %232 = arith.divf %230, %231 : vector<16x1xf32>
    %233 = vector.broadcast %225 : vector<16x1xf32> to vector<16x32xf32>
    %234 = arith.subf %219, %233 : vector<16x32xf32>
    %cst_67 = arith.constant 9.99999974E-6 : f32
    %235 = vector.broadcast %cst_67 : f32 to vector<16x1xf32>
    %236 = arith.addf %232, %235 : vector<16x1xf32>
    %237 = math.rsqrt %236 : vector<16x1xf32>
    %238 = vector.broadcast %237 : vector<16x1xf32> to vector<16x32xf32>
    %239 = arith.mulf %234, %238 : vector<16x32xf32>
    %240 = vector.broadcast %220 : vector<1x32xf32> to vector<16x32xf32>
    %241 = arith.mulf %239, %240 : vector<16x32xf32>
    %242 = vector.broadcast %221 : vector<1x32xf32> to vector<16x32xf32>
    %243 = arith.addf %241, %242 : vector<16x32xf32>
    %c160 = arith.constant 160 : index
    %c0_68 = arith.constant 0 : index
    %244 = vector.load %arg4[%c160, %c0_68] : memref<640x32xbf16, #tpu.memory_space<vmem>>, vector<32x32xbf16>
    %245 = arith.truncf %243 : vector<16x32xf32> to vector<16x32xbf16>
    %cst_69 = arith.constant dense<0.000000e+00> : vector<16x32xf32>
    %246 = tpu.matmul %245, %244, %cst_69 {dimension_numbers = #tpu.dot_dimension_numbers<[1], [0], [0], [1], [0, 0, 1, 1], [], []>} : vector<16x32xbf16>, vector<32x32xbf16>, vector<16x32xf32> -> vector<16x32xf32>
    %c192 = arith.constant 192 : index
    %c0_70 = arith.constant 0 : index
    %247 = vector.load %arg4[%c192, %c0_70] : memref<640x32xbf16, #tpu.memory_space<vmem>>, vector<32x32xbf16>
    %248 = arith.truncf %243 : vector<16x32xf32> to vector<16x32xbf16>
    %cst_71 = arith.constant dense<0.000000e+00> : vector<16x32xf32>
    %249 = tpu.matmul %248, %247, %cst_71 {dimension_numbers = #tpu.dot_dimension_numbers<[1], [0], [0], [1], [0, 0, 1, 1], [], []>} : vector<16x32xbf16>, vector<32x32xbf16>, vector<16x32xf32> -> vector<16x32xf32>
    %c224 = arith.constant 224 : index
    %c0_72 = arith.constant 0 : index
    %250 = vector.load %arg4[%c224, %c0_72] : memref<640x32xbf16, #tpu.memory_space<vmem>>, vector<32x32xbf16>
    %251 = arith.truncf %243 : vector<16x32xf32> to vector<16x32xbf16>
    %cst_73 = arith.constant dense<0.000000e+00> : vector<16x32xf32>
    %252 = tpu.matmul %251, %250, %cst_73 {dimension_numbers = #tpu.dot_dimension_numbers<[1], [0], [0], [1], [0, 0, 1, 1], [], []>} : vector<16x32xbf16>, vector<32x32xbf16>, vector<16x32xf32> -> vector<16x32xf32>
    %cst_74 = arith.constant 0.353553385 : f32
    %253 = vector.broadcast %cst_74 : f32 to vector<16x32xf32>
    %254 = arith.mulf %252, %253 : vector<16x32xf32>
    %255 = vector.extract_strided_slice %246 {offsets = [0, 0], sizes = [8, 32], strides = [1, 1]} : vector<16x32xf32> to vector<8x32xf32>
    %256 = vector.extract_strided_slice %249 {offsets = [0, 0], sizes = [8, 32], strides = [1, 1]} : vector<16x32xf32> to vector<8x32xf32>
    %257 = vector.extract_strided_slice %254 {offsets = [0, 0], sizes = [8, 32], strides = [1, 1]} : vector<16x32xf32> to vector<8x32xf32>
    %258 = vector.extract_strided_slice %257 {offsets = [0, 0], sizes = [8, 8], strides = [1, 1]} : vector<8x32xf32> to vector<8x8xf32>
    %259 = arith.truncf %258 : vector<8x8xf32> to vector<8x8xbf16>
    %260 = vector.extract_strided_slice %255 {offsets = [0, 0], sizes = [8, 8], strides = [1, 1]} : vector<8x32xf32> to vector<8x8xf32>
    %261 = arith.truncf %260 : vector<8x8xf32> to vector<8x8xbf16>
    %cst_75 = arith.constant dense<0.000000e+00> : vector<8x8xf32>
    %262 = tpu.matmul %259, %261, %cst_75 {dimension_numbers = #tpu.dot_dimension_numbers<[1], [1], [0], [0], [0, 0, 1, 0], [], []>} : vector<8x8xbf16>, vector<8x8xbf16>, vector<8x8xf32> -> vector<8x8xf32>
    %cst_76 = arith.constant dense<0xFF800000> : vector<8xf32>
    %263 = vector.multi_reduction <maximumf>, %262, %cst_76 [1] : vector<8x8xf32> to vector<8xf32>
    %264 = vector.shape_cast %263 : vector<8xf32> to vector<8x1xf32>
    %265 = vector.broadcast %264 : vector<8x1xf32> to vector<8x8xf32>
    %266 = arith.subf %262, %265 : vector<8x8xf32>
    %267 = math.exp %266 : vector<8x8xf32>
    %cst_77 = arith.constant dense<0.000000e+00> : vector<8xf32>
    %268 = vector.multi_reduction <add>, %267, %cst_77 [1] : vector<8x8xf32> to vector<8xf32>
    %269 = vector.shape_cast %268 : vector<8xf32> to vector<8x1xf32>
    %270 = tpu.reciprocal %269 {approx = true} : vector<8x1xf32> -> vector<8x1xf32>
    %271 = vector.broadcast %270 : vector<8x1xf32> to vector<8x8xf32>
    %272 = arith.mulf %267, %271 : vector<8x8xf32>
    %273 = arith.truncf %272 : vector<8x8xf32> to vector<8x8xbf16>
    %274 = vector.extract_strided_slice %256 {offsets = [0, 0], sizes = [8, 8], strides = [1, 1]} : vector<8x32xf32> to vector<8x8xf32>
    %275 = arith.truncf %274 : vector<8x8xf32> to vector<8x8xbf16>
    %cst_78 = arith.constant dense<0.000000e+00> : vector<8x8xf32>
    %276 = tpu.matmul %273, %275, %cst_78 {dimension_numbers = #tpu.dot_dimension_numbers<[1], [0], [0], [1], [0, 0, 1, 1], [], []>} : vector<8x8xbf16>, vector<8x8xbf16>, vector<8x8xf32> -> vector<8x8xf32>
    %277 = vector.extract_strided_slice %257 {offsets = [0, 8], sizes = [8, 8], strides = [1, 1]} : vector<8x32xf32> to vector<8x8xf32>
    %278 = arith.truncf %277 : vector<8x8xf32> to vector<8x8xbf16>
    %279 = vector.extract_strided_slice %255 {offsets = [0, 8], sizes = [8, 8], strides = [1, 1]} : vector<8x32xf32> to vector<8x8xf32>
    %280 = arith.truncf %279 : vector<8x8xf32> to vector<8x8xbf16>
    %cst_79 = arith.constant dense<0.000000e+00> : vector<8x8xf32>
    %281 = tpu.matmul %278, %280, %cst_79 {dimension_numbers = #tpu.dot_dimension_numbers<[1], [1], [0], [0], [0, 0, 1, 0], [], []>} : vector<8x8xbf16>, vector<8x8xbf16>, vector<8x8xf32> -> vector<8x8xf32>
    %cst_80 = arith.constant dense<0xFF800000> : vector<8xf32>
    %282 = vector.multi_reduction <maximumf>, %281, %cst_80 [1] : vector<8x8xf32> to vector<8xf32>
    %283 = vector.shape_cast %282 : vector<8xf32> to vector<8x1xf32>
    %284 = vector.broadcast %283 : vector<8x1xf32> to vector<8x8xf32>
    %285 = arith.subf %281, %284 : vector<8x8xf32>
    %286 = math.exp %285 : vector<8x8xf32>
    %cst_81 = arith.constant dense<0.000000e+00> : vector<8xf32>
    %287 = vector.multi_reduction <add>, %286, %cst_81 [1] : vector<8x8xf32> to vector<8xf32>
    %288 = vector.shape_cast %287 : vector<8xf32> to vector<8x1xf32>
    %289 = tpu.reciprocal %288 {approx = true} : vector<8x1xf32> -> vector<8x1xf32>
    %290 = vector.broadcast %289 : vector<8x1xf32> to vector<8x8xf32>
    %291 = arith.mulf %286, %290 : vector<8x8xf32>
    %292 = arith.truncf %291 : vector<8x8xf32> to vector<8x8xbf16>
    %293 = vector.extract_strided_slice %256 {offsets = [0, 8], sizes = [8, 8], strides = [1, 1]} : vector<8x32xf32> to vector<8x8xf32>
    %294 = arith.truncf %293 : vector<8x8xf32> to vector<8x8xbf16>
    %cst_82 = arith.constant dense<0.000000e+00> : vector<8x8xf32>
    %295 = tpu.matmul %292, %294, %cst_82 {dimension_numbers = #tpu.dot_dimension_numbers<[1], [0], [0], [1], [0, 0, 1, 1], [], []>} : vector<8x8xbf16>, vector<8x8xbf16>, vector<8x8xf32> -> vector<8x8xf32>
    %296 = vector.extract_strided_slice %257 {offsets = [0, 16], sizes = [8, 8], strides = [1, 1]} : vector<8x32xf32> to vector<8x8xf32>
    %297 = arith.truncf %296 : vector<8x8xf32> to vector<8x8xbf16>
    %298 = vector.extract_strided_slice %255 {offsets = [0, 16], sizes = [8, 8], strides = [1, 1]} : vector<8x32xf32> to vector<8x8xf32>
    %299 = arith.truncf %298 : vector<8x8xf32> to vector<8x8xbf16>
    %cst_83 = arith.constant dense<0.000000e+00> : vector<8x8xf32>
    %300 = tpu.matmul %297, %299, %cst_83 {dimension_numbers = #tpu.dot_dimension_numbers<[1], [1], [0], [0], [0, 0, 1, 0], [], []>} : vector<8x8xbf16>, vector<8x8xbf16>, vector<8x8xf32> -> vector<8x8xf32>
    %cst_84 = arith.constant dense<0xFF800000> : vector<8xf32>
    %301 = vector.multi_reduction <maximumf>, %300, %cst_84 [1] : vector<8x8xf32> to vector<8xf32>
    %302 = vector.shape_cast %301 : vector<8xf32> to vector<8x1xf32>
    %303 = vector.broadcast %302 : vector<8x1xf32> to vector<8x8xf32>
    %304 = arith.subf %300, %303 : vector<8x8xf32>
    %305 = math.exp %304 : vector<8x8xf32>
    %cst_85 = arith.constant dense<0.000000e+00> : vector<8xf32>
    %306 = vector.multi_reduction <add>, %305, %cst_85 [1] : vector<8x8xf32> to vector<8xf32>
    %307 = vector.shape_cast %306 : vector<8xf32> to vector<8x1xf32>
    %308 = tpu.reciprocal %307 {approx = true} : vector<8x1xf32> -> vector<8x1xf32>
    %309 = vector.broadcast %308 : vector<8x1xf32> to vector<8x8xf32>
    %310 = arith.mulf %305, %309 : vector<8x8xf32>
    %311 = arith.truncf %310 : vector<8x8xf32> to vector<8x8xbf16>
    %312 = vector.extract_strided_slice %256 {offsets = [0, 16], sizes = [8, 8], strides = [1, 1]} : vector<8x32xf32> to vector<8x8xf32>
    %313 = arith.truncf %312 : vector<8x8xf32> to vector<8x8xbf16>
    %cst_86 = arith.constant dense<0.000000e+00> : vector<8x8xf32>
    %314 = tpu.matmul %311, %313, %cst_86 {dimension_numbers = #tpu.dot_dimension_numbers<[1], [0], [0], [1], [0, 0, 1, 1], [], []>} : vector<8x8xbf16>, vector<8x8xbf16>, vector<8x8xf32> -> vector<8x8xf32>
    %315 = vector.extract_strided_slice %257 {offsets = [0, 24], sizes = [8, 8], strides = [1, 1]} : vector<8x32xf32> to vector<8x8xf32>
    %316 = arith.truncf %315 : vector<8x8xf32> to vector<8x8xbf16>
    %317 = vector.extract_strided_slice %255 {offsets = [0, 24], sizes = [8, 8], strides = [1, 1]} : vector<8x32xf32> to vector<8x8xf32>
    %318 = arith.truncf %317 : vector<8x8xf32> to vector<8x8xbf16>
    %cst_87 = arith.constant dense<0.000000e+00> : vector<8x8xf32>
    %319 = tpu.matmul %316, %318, %cst_87 {dimension_numbers = #tpu.dot_dimension_numbers<[1], [1], [0], [0], [0, 0, 1, 0], [], []>} : vector<8x8xbf16>, vector<8x8xbf16>, vector<8x8xf32> -> vector<8x8xf32>
    %cst_88 = arith.constant dense<0xFF800000> : vector<8xf32>
    %320 = vector.multi_reduction <maximumf>, %319, %cst_88 [1] : vector<8x8xf32> to vector<8xf32>
    %321 = vector.shape_cast %320 : vector<8xf32> to vector<8x1xf32>
    %322 = vector.broadcast %321 : vector<8x1xf32> to vector<8x8xf32>
    %323 = arith.subf %319, %322 : vector<8x8xf32>
    %324 = math.exp %323 : vector<8x8xf32>
    %cst_89 = arith.constant dense<0.000000e+00> : vector<8xf32>
    %325 = vector.multi_reduction <add>, %324, %cst_89 [1] : vector<8x8xf32> to vector<8xf32>
    %326 = vector.shape_cast %325 : vector<8xf32> to vector<8x1xf32>
    %327 = tpu.reciprocal %326 {approx = true} : vector<8x1xf32> -> vector<8x1xf32>
    %328 = vector.broadcast %327 : vector<8x1xf32> to vector<8x8xf32>
    %329 = arith.mulf %324, %328 : vector<8x8xf32>
    %330 = arith.truncf %329 : vector<8x8xf32> to vector<8x8xbf16>
    %331 = vector.extract_strided_slice %256 {offsets = [0, 24], sizes = [8, 8], strides = [1, 1]} : vector<8x32xf32> to vector<8x8xf32>
    %332 = arith.truncf %331 : vector<8x8xf32> to vector<8x8xbf16>
    %cst_90 = arith.constant dense<0.000000e+00> : vector<8x8xf32>
    %333 = tpu.matmul %330, %332, %cst_90 {dimension_numbers = #tpu.dot_dimension_numbers<[1], [0], [0], [1], [0, 0, 1, 1], [], []>} : vector<8x8xbf16>, vector<8x8xbf16>, vector<8x8xf32> -> vector<8x8xf32>
    %334 = tpu.concatenate %276, %295, %314, %333 in 1 : vector<8x8xf32>, vector<8x8xf32>, vector<8x8xf32>, vector<8x8xf32> -> vector<8x32xf32>
    %335 = vector.extract_strided_slice %246 {offsets = [8, 0], sizes = [8, 32], strides = [1, 1]} : vector<16x32xf32> to vector<8x32xf32>
    %336 = vector.extract_strided_slice %249 {offsets = [8, 0], sizes = [8, 32], strides = [1, 1]} : vector<16x32xf32> to vector<8x32xf32>
    %337 = vector.extract_strided_slice %254 {offsets = [8, 0], sizes = [8, 32], strides = [1, 1]} : vector<16x32xf32> to vector<8x32xf32>
    %338 = vector.extract_strided_slice %337 {offsets = [0, 0], sizes = [8, 8], strides = [1, 1]} : vector<8x32xf32> to vector<8x8xf32>
    %339 = arith.truncf %338 : vector<8x8xf32> to vector<8x8xbf16>
    %340 = vector.extract_strided_slice %335 {offsets = [0, 0], sizes = [8, 8], strides = [1, 1]} : vector<8x32xf32> to vector<8x8xf32>
    %341 = arith.truncf %340 : vector<8x8xf32> to vector<8x8xbf16>
    %cst_91 = arith.constant dense<0.000000e+00> : vector<8x8xf32>
    %342 = tpu.matmul %339, %341, %cst_91 {dimension_numbers = #tpu.dot_dimension_numbers<[1], [1], [0], [0], [0, 0, 1, 0], [], []>} : vector<8x8xbf16>, vector<8x8xbf16>, vector<8x8xf32> -> vector<8x8xf32>
    %cst_92 = arith.constant dense<0xFF800000> : vector<8xf32>
    %343 = vector.multi_reduction <maximumf>, %342, %cst_92 [1] : vector<8x8xf32> to vector<8xf32>
    %344 = vector.shape_cast %343 : vector<8xf32> to vector<8x1xf32>
    %345 = vector.broadcast %344 : vector<8x1xf32> to vector<8x8xf32>
    %346 = arith.subf %342, %345 : vector<8x8xf32>
    %347 = math.exp %346 : vector<8x8xf32>
    %cst_93 = arith.constant dense<0.000000e+00> : vector<8xf32>
    %348 = vector.multi_reduction <add>, %347, %cst_93 [1] : vector<8x8xf32> to vector<8xf32>
    %349 = vector.shape_cast %348 : vector<8xf32> to vector<8x1xf32>
    %350 = tpu.reciprocal %349 {approx = true} : vector<8x1xf32> -> vector<8x1xf32>
    %351 = vector.broadcast %350 : vector<8x1xf32> to vector<8x8xf32>
    %352 = arith.mulf %347, %351 : vector<8x8xf32>
    %353 = arith.truncf %352 : vector<8x8xf32> to vector<8x8xbf16>
    %354 = vector.extract_strided_slice %336 {offsets = [0, 0], sizes = [8, 8], strides = [1, 1]} : vector<8x32xf32> to vector<8x8xf32>
    %355 = arith.truncf %354 : vector<8x8xf32> to vector<8x8xbf16>
    %cst_94 = arith.constant dense<0.000000e+00> : vector<8x8xf32>
    %356 = tpu.matmul %353, %355, %cst_94 {dimension_numbers = #tpu.dot_dimension_numbers<[1], [0], [0], [1], [0, 0, 1, 1], [], []>} : vector<8x8xbf16>, vector<8x8xbf16>, vector<8x8xf32> -> vector<8x8xf32>
    %357 = vector.extract_strided_slice %337 {offsets = [0, 8], sizes = [8, 8], strides = [1, 1]} : vector<8x32xf32> to vector<8x8xf32>
    %358 = arith.truncf %357 : vector<8x8xf32> to vector<8x8xbf16>
    %359 = vector.extract_strided_slice %335 {offsets = [0, 8], sizes = [8, 8], strides = [1, 1]} : vector<8x32xf32> to vector<8x8xf32>
    %360 = arith.truncf %359 : vector<8x8xf32> to vector<8x8xbf16>
    %cst_95 = arith.constant dense<0.000000e+00> : vector<8x8xf32>
    %361 = tpu.matmul %358, %360, %cst_95 {dimension_numbers = #tpu.dot_dimension_numbers<[1], [1], [0], [0], [0, 0, 1, 0], [], []>} : vector<8x8xbf16>, vector<8x8xbf16>, vector<8x8xf32> -> vector<8x8xf32>
    %cst_96 = arith.constant dense<0xFF800000> : vector<8xf32>
    %362 = vector.multi_reduction <maximumf>, %361, %cst_96 [1] : vector<8x8xf32> to vector<8xf32>
    %363 = vector.shape_cast %362 : vector<8xf32> to vector<8x1xf32>
    %364 = vector.broadcast %363 : vector<8x1xf32> to vector<8x8xf32>
    %365 = arith.subf %361, %364 : vector<8x8xf32>
    %366 = math.exp %365 : vector<8x8xf32>
    %cst_97 = arith.constant dense<0.000000e+00> : vector<8xf32>
    %367 = vector.multi_reduction <add>, %366, %cst_97 [1] : vector<8x8xf32> to vector<8xf32>
    %368 = vector.shape_cast %367 : vector<8xf32> to vector<8x1xf32>
    %369 = tpu.reciprocal %368 {approx = true} : vector<8x1xf32> -> vector<8x1xf32>
    %370 = vector.broadcast %369 : vector<8x1xf32> to vector<8x8xf32>
    %371 = arith.mulf %366, %370 : vector<8x8xf32>
    %372 = arith.truncf %371 : vector<8x8xf32> to vector<8x8xbf16>
    %373 = vector.extract_strided_slice %336 {offsets = [0, 8], sizes = [8, 8], strides = [1, 1]} : vector<8x32xf32> to vector<8x8xf32>
    %374 = arith.truncf %373 : vector<8x8xf32> to vector<8x8xbf16>
    %cst_98 = arith.constant dense<0.000000e+00> : vector<8x8xf32>
    %375 = tpu.matmul %372, %374, %cst_98 {dimension_numbers = #tpu.dot_dimension_numbers<[1], [0], [0], [1], [0, 0, 1, 1], [], []>} : vector<8x8xbf16>, vector<8x8xbf16>, vector<8x8xf32> -> vector<8x8xf32>
    %376 = vector.extract_strided_slice %337 {offsets = [0, 16], sizes = [8, 8], strides = [1, 1]} : vector<8x32xf32> to vector<8x8xf32>
    %377 = arith.truncf %376 : vector<8x8xf32> to vector<8x8xbf16>
    %378 = vector.extract_strided_slice %335 {offsets = [0, 16], sizes = [8, 8], strides = [1, 1]} : vector<8x32xf32> to vector<8x8xf32>
    %379 = arith.truncf %378 : vector<8x8xf32> to vector<8x8xbf16>
    %cst_99 = arith.constant dense<0.000000e+00> : vector<8x8xf32>
    %380 = tpu.matmul %377, %379, %cst_99 {dimension_numbers = #tpu.dot_dimension_numbers<[1], [1], [0], [0], [0, 0, 1, 0], [], []>} : vector<8x8xbf16>, vector<8x8xbf16>, vector<8x8xf32> -> vector<8x8xf32>
    %cst_100 = arith.constant dense<0xFF800000> : vector<8xf32>
    %381 = vector.multi_reduction <maximumf>, %380, %cst_100 [1] : vector<8x8xf32> to vector<8xf32>
    %382 = vector.shape_cast %381 : vector<8xf32> to vector<8x1xf32>
    %383 = vector.broadcast %382 : vector<8x1xf32> to vector<8x8xf32>
    %384 = arith.subf %380, %383 : vector<8x8xf32>
    %385 = math.exp %384 : vector<8x8xf32>
    %cst_101 = arith.constant dense<0.000000e+00> : vector<8xf32>
    %386 = vector.multi_reduction <add>, %385, %cst_101 [1] : vector<8x8xf32> to vector<8xf32>
    %387 = vector.shape_cast %386 : vector<8xf32> to vector<8x1xf32>
    %388 = tpu.reciprocal %387 {approx = true} : vector<8x1xf32> -> vector<8x1xf32>
    %389 = vector.broadcast %388 : vector<8x1xf32> to vector<8x8xf32>
    %390 = arith.mulf %385, %389 : vector<8x8xf32>
    %391 = arith.truncf %390 : vector<8x8xf32> to vector<8x8xbf16>
    %392 = vector.extract_strided_slice %336 {offsets = [0, 16], sizes = [8, 8], strides = [1, 1]} : vector<8x32xf32> to vector<8x8xf32>
    %393 = arith.truncf %392 : vector<8x8xf32> to vector<8x8xbf16>
    %cst_102 = arith.constant dense<0.000000e+00> : vector<8x8xf32>
    %394 = tpu.matmul %391, %393, %cst_102 {dimension_numbers = #tpu.dot_dimension_numbers<[1], [0], [0], [1], [0, 0, 1, 1], [], []>} : vector<8x8xbf16>, vector<8x8xbf16>, vector<8x8xf32> -> vector<8x8xf32>
    %395 = vector.extract_strided_slice %337 {offsets = [0, 24], sizes = [8, 8], strides = [1, 1]} : vector<8x32xf32> to vector<8x8xf32>
    %396 = arith.truncf %395 : vector<8x8xf32> to vector<8x8xbf16>
    %397 = vector.extract_strided_slice %335 {offsets = [0, 24], sizes = [8, 8], strides = [1, 1]} : vector<8x32xf32> to vector<8x8xf32>
    %398 = arith.truncf %397 : vector<8x8xf32> to vector<8x8xbf16>
    %cst_103 = arith.constant dense<0.000000e+00> : vector<8x8xf32>
    %399 = tpu.matmul %396, %398, %cst_103 {dimension_numbers = #tpu.dot_dimension_numbers<[1], [1], [0], [0], [0, 0, 1, 0], [], []>} : vector<8x8xbf16>, vector<8x8xbf16>, vector<8x8xf32> -> vector<8x8xf32>
    %cst_104 = arith.constant dense<0xFF800000> : vector<8xf32>
    %400 = vector.multi_reduction <maximumf>, %399, %cst_104 [1] : vector<8x8xf32> to vector<8xf32>
    %401 = vector.shape_cast %400 : vector<8xf32> to vector<8x1xf32>
    %402 = vector.broadcast %401 : vector<8x1xf32> to vector<8x8xf32>
    %403 = arith.subf %399, %402 : vector<8x8xf32>
    %404 = math.exp %403 : vector<8x8xf32>
    %cst_105 = arith.constant dense<0.000000e+00> : vector<8xf32>
    %405 = vector.multi_reduction <add>, %404, %cst_105 [1] : vector<8x8xf32> to vector<8xf32>
    %406 = vector.shape_cast %405 : vector<8xf32> to vector<8x1xf32>
    %407 = tpu.reciprocal %406 {approx = true} : vector<8x1xf32> -> vector<8x1xf32>
    %408 = vector.broadcast %407 : vector<8x1xf32> to vector<8x8xf32>
    %409 = arith.mulf %404, %408 : vector<8x8xf32>
    %410 = arith.truncf %409 : vector<8x8xf32> to vector<8x8xbf16>
    %411 = vector.extract_strided_slice %336 {offsets = [0, 24], sizes = [8, 8], strides = [1, 1]} : vector<8x32xf32> to vector<8x8xf32>
    %412 = arith.truncf %411 : vector<8x8xf32> to vector<8x8xbf16>
    %cst_106 = arith.constant dense<0.000000e+00> : vector<8x8xf32>
    %413 = tpu.matmul %410, %412, %cst_106 {dimension_numbers = #tpu.dot_dimension_numbers<[1], [0], [0], [1], [0, 0, 1, 1], [], []>} : vector<8x8xbf16>, vector<8x8xbf16>, vector<8x8xf32> -> vector<8x8xf32>
    %414 = tpu.concatenate %356, %375, %394, %413 in 1 : vector<8x8xf32>, vector<8x8xf32>, vector<8x8xf32>, vector<8x8xf32> -> vector<8x32xf32>
    %415 = tpu.concatenate %334, %414 in 0 : vector<8x32xf32>, vector<8x32xf32> -> vector<16x32xf32>
    %c256 = arith.constant 256 : index
    %c0_107 = arith.constant 0 : index
    %416 = vector.load %arg4[%c256, %c0_107] : memref<640x32xbf16, #tpu.memory_space<vmem>>, vector<32x32xbf16>
    %417 = arith.truncf %243 : vector<16x32xf32> to vector<16x32xbf16>
    %cst_108 = arith.constant dense<0.000000e+00> : vector<16x32xf32>
    %418 = tpu.matmul %417, %416, %cst_108 {dimension_numbers = #tpu.dot_dimension_numbers<[1], [0], [0], [1], [0, 0, 1, 1], [], []>} : vector<16x32xbf16>, vector<32x32xbf16>, vector<16x32xf32> -> vector<16x32xf32>
    %c288 = arith.constant 288 : index
    %c0_109 = arith.constant 0 : index
    %419 = vector.load %arg4[%c288, %c0_109] : memref<640x32xbf16, #tpu.memory_space<vmem>>, vector<32x32xbf16>
    %420 = arith.truncf %415 : vector<16x32xf32> to vector<16x32xbf16>
    %cst_110 = arith.constant dense<0.000000e+00> : vector<16x32xf32>
    %421 = tpu.matmul %420, %419, %cst_110 {dimension_numbers = #tpu.dot_dimension_numbers<[1], [0], [0], [1], [0, 0, 1, 1], [], []>} : vector<16x32xbf16>, vector<32x32xbf16>, vector<16x32xf32> -> vector<16x32xf32>
    %422 = arith.addf %418, %421 : vector<16x32xf32>
    %c18 = arith.constant 18 : index
    %c0_111 = arith.constant 0 : index
    %423 = vector.load %arg5[%c18, %c0_111] : memref<27x32xf32, #tpu.memory_space<vmem>>, vector<1x32xf32>
    %424 = vector.broadcast %423 : vector<1x32xf32> to vector<16x32xf32>
    %425 = arith.addf %422, %424 : vector<16x32xf32>
    %426 = arith.addf %425, %243 : vector<16x32xf32>
    %c19 = arith.constant 19 : index
    %c0_112 = arith.constant 0 : index
    %427 = vector.load %arg5[%c19, %c0_112] : memref<27x32xf32, #tpu.memory_space<vmem>>, vector<1x32xf32>
    %c20 = arith.constant 20 : index
    %c0_113 = arith.constant 0 : index
    %428 = vector.load %arg5[%c20, %c0_113] : memref<27x32xf32, #tpu.memory_space<vmem>>, vector<1x32xf32>
    %cst_114 = arith.constant dense<0.000000e+00> : vector<16xf32>
    %429 = vector.multi_reduction <add>, %426, %cst_114 [1] : vector<16x32xf32> to vector<16xf32>
    %430 = vector.shape_cast %429 : vector<16xf32> to vector<16x1xf32>
    %cst_115 = arith.constant 3.200000e+01 : f32
    %431 = vector.broadcast %cst_115 : f32 to vector<16x1xf32>
    %432 = arith.divf %430, %431 : vector<16x1xf32>
    %433 = vector.broadcast %432 : vector<16x1xf32> to vector<16x32xf32>
    %434 = arith.subf %426, %433 : vector<16x32xf32>
    %435 = arith.mulf %434, %434 : vector<16x32xf32>
    %cst_116 = arith.constant dense<0.000000e+00> : vector<16xf32>
    %436 = vector.multi_reduction <add>, %435, %cst_116 [1] : vector<16x32xf32> to vector<16xf32>
    %437 = vector.shape_cast %436 : vector<16xf32> to vector<16x1xf32>
    %cst_117 = arith.constant 3.200000e+01 : f32
    %438 = vector.broadcast %cst_117 : f32 to vector<16x1xf32>
    %439 = arith.divf %437, %438 : vector<16x1xf32>
    %440 = vector.broadcast %432 : vector<16x1xf32> to vector<16x32xf32>
    %441 = arith.subf %426, %440 : vector<16x32xf32>
    %cst_118 = arith.constant 9.99999974E-6 : f32
    %442 = vector.broadcast %cst_118 : f32 to vector<16x1xf32>
    %443 = arith.addf %439, %442 : vector<16x1xf32>
    %444 = math.rsqrt %443 : vector<16x1xf32>
    %445 = vector.broadcast %444 : vector<16x1xf32> to vector<16x32xf32>
    %446 = arith.mulf %441, %445 : vector<16x32xf32>
    %447 = vector.broadcast %427 : vector<1x32xf32> to vector<16x32xf32>
    %448 = arith.mulf %446, %447 : vector<16x32xf32>
    %449 = vector.broadcast %428 : vector<1x32xf32> to vector<16x32xf32>
    %450 = arith.addf %448, %449 : vector<16x32xf32>
    %c7 = arith.constant 7 : index
    %c0_119 = arith.constant 0 : index
    %451 = vector.load %arg5[%c7, %c0_119] : memref<27x32xf32, #tpu.memory_space<vmem>>, vector<3x32xf32>
    %cst_120 = arith.constant dense<0.000000e+00> : vector<16x32xf32>
    %452 = tpu.matmul %2, %451, %cst_120 {dimension_numbers = #tpu.dot_dimension_numbers<[1], [0], [0], [1], [0, 0, 1, 1], [], []>} : vector<16x3xf32>, vector<3x32xf32>, vector<16x32xf32> -> vector<16x32xf32>
    %c14 = arith.constant 14 : index
    %c0_121 = arith.constant 0 : index
    %453 = vector.load %arg5[%c14, %c0_121] : memref<27x32xf32, #tpu.memory_space<vmem>>, vector<1x32xf32>
    %454 = vector.broadcast %453 : vector<1x32xf32> to vector<16x32xf32>
    %455 = arith.addf %452, %454 : vector<16x32xf32>
    %c4 = arith.constant 4 : index
    %c0_122 = arith.constant 0 : index
    %456 = vector.load %arg5[%c4, %c0_122] : memref<27x32xf32, #tpu.memory_space<vmem>>, vector<3x32xf32>
    %cst_123 = arith.constant dense<0.000000e+00> : vector<16x32xf32>
    %457 = tpu.matmul %0, %456, %cst_123 {dimension_numbers = #tpu.dot_dimension_numbers<[1], [0], [0], [1], [0, 0, 1, 1], [], []>} : vector<16x3xf32>, vector<3x32xf32>, vector<16x32xf32> -> vector<16x32xf32>
    %c13 = arith.constant 13 : index
    %c0_124 = arith.constant 0 : index
    %458 = vector.load %arg5[%c13, %c0_124] : memref<27x32xf32, #tpu.memory_space<vmem>>, vector<1x32xf32>
    %459 = vector.broadcast %458 : vector<1x32xf32> to vector<16x32xf32>
    %460 = arith.addf %457, %459 : vector<16x32xf32>
    %c320 = arith.constant 320 : index
    %c0_125 = arith.constant 0 : index
    %461 = vector.load %arg4[%c320, %c0_125] : memref<640x32xbf16, #tpu.memory_space<vmem>>, vector<32x32xbf16>
    %462 = arith.truncf %460 : vector<16x32xf32> to vector<16x32xbf16>
    %cst_126 = arith.constant dense<0.000000e+00> : vector<16x32xf32>
    %463 = tpu.matmul %462, %461, %cst_126 {dimension_numbers = #tpu.dot_dimension_numbers<[1], [0], [0], [1], [0, 0, 1, 1], [], []>} : vector<16x32xbf16>, vector<32x32xbf16>, vector<16x32xf32> -> vector<16x32xf32>
    %c352 = arith.constant 352 : index
    %c0_127 = arith.constant 0 : index
    %464 = vector.load %arg4[%c352, %c0_127] : memref<640x32xbf16, #tpu.memory_space<vmem>>, vector<32x32xbf16>
    %465 = arith.truncf %450 : vector<16x32xf32> to vector<16x32xbf16>
    %cst_128 = arith.constant dense<0.000000e+00> : vector<16x32xf32>
    %466 = tpu.matmul %465, %464, %cst_128 {dimension_numbers = #tpu.dot_dimension_numbers<[1], [0], [0], [1], [0, 0, 1, 1], [], []>} : vector<16x32xbf16>, vector<32x32xbf16>, vector<16x32xf32> -> vector<16x32xf32>
    %c384 = arith.constant 384 : index
    %c0_129 = arith.constant 0 : index
    %467 = vector.load %arg4[%c384, %c0_129] : memref<640x32xbf16, #tpu.memory_space<vmem>>, vector<32x32xbf16>
    %468 = arith.truncf %455 : vector<16x32xf32> to vector<16x32xbf16>
    %cst_130 = arith.constant dense<0.000000e+00> : vector<16x32xf32>
    %469 = tpu.matmul %468, %467, %cst_130 {dimension_numbers = #tpu.dot_dimension_numbers<[1], [0], [0], [1], [0, 0, 1, 1], [], []>} : vector<16x32xbf16>, vector<32x32xbf16>, vector<16x32xf32> -> vector<16x32xf32>
    %cst_131 = arith.constant 0.353553385 : f32
    %470 = vector.broadcast %cst_131 : f32 to vector<16x32xf32>
    %471 = arith.mulf %469, %470 : vector<16x32xf32>
    %472 = vector.extract_strided_slice %463 {offsets = [0, 0], sizes = [8, 32], strides = [1, 1]} : vector<16x32xf32> to vector<8x32xf32>
    %473 = vector.extract_strided_slice %466 {offsets = [0, 0], sizes = [8, 32], strides = [1, 1]} : vector<16x32xf32> to vector<8x32xf32>
    %474 = vector.extract_strided_slice %471 {offsets = [0, 0], sizes = [8, 32], strides = [1, 1]} : vector<16x32xf32> to vector<8x32xf32>
    %475 = vector.extract_strided_slice %474 {offsets = [0, 0], sizes = [8, 8], strides = [1, 1]} : vector<8x32xf32> to vector<8x8xf32>
    %476 = arith.truncf %475 : vector<8x8xf32> to vector<8x8xbf16>
    %477 = vector.extract_strided_slice %472 {offsets = [0, 0], sizes = [8, 8], strides = [1, 1]} : vector<8x32xf32> to vector<8x8xf32>
    %478 = arith.truncf %477 : vector<8x8xf32> to vector<8x8xbf16>
    %cst_132 = arith.constant dense<0.000000e+00> : vector<8x8xf32>
    %479 = tpu.matmul %476, %478, %cst_132 {dimension_numbers = #tpu.dot_dimension_numbers<[1], [1], [0], [0], [0, 0, 1, 0], [], []>} : vector<8x8xbf16>, vector<8x8xbf16>, vector<8x8xf32> -> vector<8x8xf32>
    %cst_133 = arith.constant dense<0xFF800000> : vector<8xf32>
    %480 = vector.multi_reduction <maximumf>, %479, %cst_133 [1] : vector<8x8xf32> to vector<8xf32>
    %481 = vector.shape_cast %480 : vector<8xf32> to vector<8x1xf32>
    %482 = vector.broadcast %481 : vector<8x1xf32> to vector<8x8xf32>
    %483 = arith.subf %479, %482 : vector<8x8xf32>
    %484 = math.exp %483 : vector<8x8xf32>
    %cst_134 = arith.constant dense<0.000000e+00> : vector<8xf32>
    %485 = vector.multi_reduction <add>, %484, %cst_134 [1] : vector<8x8xf32> to vector<8xf32>
    %486 = vector.shape_cast %485 : vector<8xf32> to vector<8x1xf32>
    %487 = tpu.reciprocal %486 {approx = true} : vector<8x1xf32> -> vector<8x1xf32>
    %488 = vector.broadcast %487 : vector<8x1xf32> to vector<8x8xf32>
    %489 = arith.mulf %484, %488 : vector<8x8xf32>
    %490 = arith.truncf %489 : vector<8x8xf32> to vector<8x8xbf16>
    %491 = vector.extract_strided_slice %473 {offsets = [0, 0], sizes = [8, 8], strides = [1, 1]} : vector<8x32xf32> to vector<8x8xf32>
    %492 = arith.truncf %491 : vector<8x8xf32> to vector<8x8xbf16>
    %cst_135 = arith.constant dense<0.000000e+00> : vector<8x8xf32>
    %493 = tpu.matmul %490, %492, %cst_135 {dimension_numbers = #tpu.dot_dimension_numbers<[1], [0], [0], [1], [0, 0, 1, 1], [], []>} : vector<8x8xbf16>, vector<8x8xbf16>, vector<8x8xf32> -> vector<8x8xf32>
    %494 = vector.extract_strided_slice %474 {offsets = [0, 8], sizes = [8, 8], strides = [1, 1]} : vector<8x32xf32> to vector<8x8xf32>
    %495 = arith.truncf %494 : vector<8x8xf32> to vector<8x8xbf16>
    %496 = vector.extract_strided_slice %472 {offsets = [0, 8], sizes = [8, 8], strides = [1, 1]} : vector<8x32xf32> to vector<8x8xf32>
    %497 = arith.truncf %496 : vector<8x8xf32> to vector<8x8xbf16>
    %cst_136 = arith.constant dense<0.000000e+00> : vector<8x8xf32>
    %498 = tpu.matmul %495, %497, %cst_136 {dimension_numbers = #tpu.dot_dimension_numbers<[1], [1], [0], [0], [0, 0, 1, 0], [], []>} : vector<8x8xbf16>, vector<8x8xbf16>, vector<8x8xf32> -> vector<8x8xf32>
    %cst_137 = arith.constant dense<0xFF800000> : vector<8xf32>
    %499 = vector.multi_reduction <maximumf>, %498, %cst_137 [1] : vector<8x8xf32> to vector<8xf32>
    %500 = vector.shape_cast %499 : vector<8xf32> to vector<8x1xf32>
    %501 = vector.broadcast %500 : vector<8x1xf32> to vector<8x8xf32>
    %502 = arith.subf %498, %501 : vector<8x8xf32>
    %503 = math.exp %502 : vector<8x8xf32>
    %cst_138 = arith.constant dense<0.000000e+00> : vector<8xf32>
    %504 = vector.multi_reduction <add>, %503, %cst_138 [1] : vector<8x8xf32> to vector<8xf32>
    %505 = vector.shape_cast %504 : vector<8xf32> to vector<8x1xf32>
    %506 = tpu.reciprocal %505 {approx = true} : vector<8x1xf32> -> vector<8x1xf32>
    %507 = vector.broadcast %506 : vector<8x1xf32> to vector<8x8xf32>
    %508 = arith.mulf %503, %507 : vector<8x8xf32>
    %509 = arith.truncf %508 : vector<8x8xf32> to vector<8x8xbf16>
    %510 = vector.extract_strided_slice %473 {offsets = [0, 8], sizes = [8, 8], strides = [1, 1]} : vector<8x32xf32> to vector<8x8xf32>
    %511 = arith.truncf %510 : vector<8x8xf32> to vector<8x8xbf16>
    %cst_139 = arith.constant dense<0.000000e+00> : vector<8x8xf32>
    %512 = tpu.matmul %509, %511, %cst_139 {dimension_numbers = #tpu.dot_dimension_numbers<[1], [0], [0], [1], [0, 0, 1, 1], [], []>} : vector<8x8xbf16>, vector<8x8xbf16>, vector<8x8xf32> -> vector<8x8xf32>
    %513 = vector.extract_strided_slice %474 {offsets = [0, 16], sizes = [8, 8], strides = [1, 1]} : vector<8x32xf32> to vector<8x8xf32>
    %514 = arith.truncf %513 : vector<8x8xf32> to vector<8x8xbf16>
    %515 = vector.extract_strided_slice %472 {offsets = [0, 16], sizes = [8, 8], strides = [1, 1]} : vector<8x32xf32> to vector<8x8xf32>
    %516 = arith.truncf %515 : vector<8x8xf32> to vector<8x8xbf16>
    %cst_140 = arith.constant dense<0.000000e+00> : vector<8x8xf32>
    %517 = tpu.matmul %514, %516, %cst_140 {dimension_numbers = #tpu.dot_dimension_numbers<[1], [1], [0], [0], [0, 0, 1, 0], [], []>} : vector<8x8xbf16>, vector<8x8xbf16>, vector<8x8xf32> -> vector<8x8xf32>
    %cst_141 = arith.constant dense<0xFF800000> : vector<8xf32>
    %518 = vector.multi_reduction <maximumf>, %517, %cst_141 [1] : vector<8x8xf32> to vector<8xf32>
    %519 = vector.shape_cast %518 : vector<8xf32> to vector<8x1xf32>
    %520 = vector.broadcast %519 : vector<8x1xf32> to vector<8x8xf32>
    %521 = arith.subf %517, %520 : vector<8x8xf32>
    %522 = math.exp %521 : vector<8x8xf32>
    %cst_142 = arith.constant dense<0.000000e+00> : vector<8xf32>
    %523 = vector.multi_reduction <add>, %522, %cst_142 [1] : vector<8x8xf32> to vector<8xf32>
    %524 = vector.shape_cast %523 : vector<8xf32> to vector<8x1xf32>
    %525 = tpu.reciprocal %524 {approx = true} : vector<8x1xf32> -> vector<8x1xf32>
    %526 = vector.broadcast %525 : vector<8x1xf32> to vector<8x8xf32>
    %527 = arith.mulf %522, %526 : vector<8x8xf32>
    %528 = arith.truncf %527 : vector<8x8xf32> to vector<8x8xbf16>
    %529 = vector.extract_strided_slice %473 {offsets = [0, 16], sizes = [8, 8], strides = [1, 1]} : vector<8x32xf32> to vector<8x8xf32>
    %530 = arith.truncf %529 : vector<8x8xf32> to vector<8x8xbf16>
    %cst_143 = arith.constant dense<0.000000e+00> : vector<8x8xf32>
    %531 = tpu.matmul %528, %530, %cst_143 {dimension_numbers = #tpu.dot_dimension_numbers<[1], [0], [0], [1], [0, 0, 1, 1], [], []>} : vector<8x8xbf16>, vector<8x8xbf16>, vector<8x8xf32> -> vector<8x8xf32>
    %532 = vector.extract_strided_slice %474 {offsets = [0, 24], sizes = [8, 8], strides = [1, 1]} : vector<8x32xf32> to vector<8x8xf32>
    %533 = arith.truncf %532 : vector<8x8xf32> to vector<8x8xbf16>
    %534 = vector.extract_strided_slice %472 {offsets = [0, 24], sizes = [8, 8], strides = [1, 1]} : vector<8x32xf32> to vector<8x8xf32>
    %535 = arith.truncf %534 : vector<8x8xf32> to vector<8x8xbf16>
    %cst_144 = arith.constant dense<0.000000e+00> : vector<8x8xf32>
    %536 = tpu.matmul %533, %535, %cst_144 {dimension_numbers = #tpu.dot_dimension_numbers<[1], [1], [0], [0], [0, 0, 1, 0], [], []>} : vector<8x8xbf16>, vector<8x8xbf16>, vector<8x8xf32> -> vector<8x8xf32>
    %cst_145 = arith.constant dense<0xFF800000> : vector<8xf32>
    %537 = vector.multi_reduction <maximumf>, %536, %cst_145 [1] : vector<8x8xf32> to vector<8xf32>
    %538 = vector.shape_cast %537 : vector<8xf32> to vector<8x1xf32>
    %539 = vector.broadcast %538 : vector<8x1xf32> to vector<8x8xf32>
    %540 = arith.subf %536, %539 : vector<8x8xf32>
    %541 = math.exp %540 : vector<8x8xf32>
    %cst_146 = arith.constant dense<0.000000e+00> : vector<8xf32>
    %542 = vector.multi_reduction <add>, %541, %cst_146 [1] : vector<8x8xf32> to vector<8xf32>
    %543 = vector.shape_cast %542 : vector<8xf32> to vector<8x1xf32>
    %544 = tpu.reciprocal %543 {approx = true} : vector<8x1xf32> -> vector<8x1xf32>
    %545 = vector.broadcast %544 : vector<8x1xf32> to vector<8x8xf32>
    %546 = arith.mulf %541, %545 : vector<8x8xf32>
    %547 = arith.truncf %546 : vector<8x8xf32> to vector<8x8xbf16>
    %548 = vector.extract_strided_slice %473 {offsets = [0, 24], sizes = [8, 8], strides = [1, 1]} : vector<8x32xf32> to vector<8x8xf32>
    %549 = arith.truncf %548 : vector<8x8xf32> to vector<8x8xbf16>
    %cst_147 = arith.constant dense<0.000000e+00> : vector<8x8xf32>
    %550 = tpu.matmul %547, %549, %cst_147 {dimension_numbers = #tpu.dot_dimension_numbers<[1], [0], [0], [1], [0, 0, 1, 1], [], []>} : vector<8x8xbf16>, vector<8x8xbf16>, vector<8x8xf32> -> vector<8x8xf32>
    %551 = tpu.concatenate %493, %512, %531, %550 in 1 : vector<8x8xf32>, vector<8x8xf32>, vector<8x8xf32>, vector<8x8xf32> -> vector<8x32xf32>
    %552 = vector.extract_strided_slice %463 {offsets = [8, 0], sizes = [8, 32], strides = [1, 1]} : vector<16x32xf32> to vector<8x32xf32>
    %553 = vector.extract_strided_slice %466 {offsets = [8, 0], sizes = [8, 32], strides = [1, 1]} : vector<16x32xf32> to vector<8x32xf32>
    %554 = vector.extract_strided_slice %471 {offsets = [8, 0], sizes = [8, 32], strides = [1, 1]} : vector<16x32xf32> to vector<8x32xf32>
    %555 = vector.extract_strided_slice %554 {offsets = [0, 0], sizes = [8, 8], strides = [1, 1]} : vector<8x32xf32> to vector<8x8xf32>
    %556 = arith.truncf %555 : vector<8x8xf32> to vector<8x8xbf16>
    %557 = vector.extract_strided_slice %552 {offsets = [0, 0], sizes = [8, 8], strides = [1, 1]} : vector<8x32xf32> to vector<8x8xf32>
    %558 = arith.truncf %557 : vector<8x8xf32> to vector<8x8xbf16>
    %cst_148 = arith.constant dense<0.000000e+00> : vector<8x8xf32>
    %559 = tpu.matmul %556, %558, %cst_148 {dimension_numbers = #tpu.dot_dimension_numbers<[1], [1], [0], [0], [0, 0, 1, 0], [], []>} : vector<8x8xbf16>, vector<8x8xbf16>, vector<8x8xf32> -> vector<8x8xf32>
    %cst_149 = arith.constant dense<0xFF800000> : vector<8xf32>
    %560 = vector.multi_reduction <maximumf>, %559, %cst_149 [1] : vector<8x8xf32> to vector<8xf32>
    %561 = vector.shape_cast %560 : vector<8xf32> to vector<8x1xf32>
    %562 = vector.broadcast %561 : vector<8x1xf32> to vector<8x8xf32>
    %563 = arith.subf %559, %562 : vector<8x8xf32>
    %564 = math.exp %563 : vector<8x8xf32>
    %cst_150 = arith.constant dense<0.000000e+00> : vector<8xf32>
    %565 = vector.multi_reduction <add>, %564, %cst_150 [1] : vector<8x8xf32> to vector<8xf32>
    %566 = vector.shape_cast %565 : vector<8xf32> to vector<8x1xf32>
    %567 = tpu.reciprocal %566 {approx = true} : vector<8x1xf32> -> vector<8x1xf32>
    %568 = vector.broadcast %567 : vector<8x1xf32> to vector<8x8xf32>
    %569 = arith.mulf %564, %568 : vector<8x8xf32>
    %570 = arith.truncf %569 : vector<8x8xf32> to vector<8x8xbf16>
    %571 = vector.extract_strided_slice %553 {offsets = [0, 0], sizes = [8, 8], strides = [1, 1]} : vector<8x32xf32> to vector<8x8xf32>
    %572 = arith.truncf %571 : vector<8x8xf32> to vector<8x8xbf16>
    %cst_151 = arith.constant dense<0.000000e+00> : vector<8x8xf32>
    %573 = tpu.matmul %570, %572, %cst_151 {dimension_numbers = #tpu.dot_dimension_numbers<[1], [0], [0], [1], [0, 0, 1, 1], [], []>} : vector<8x8xbf16>, vector<8x8xbf16>, vector<8x8xf32> -> vector<8x8xf32>
    %574 = vector.extract_strided_slice %554 {offsets = [0, 8], sizes = [8, 8], strides = [1, 1]} : vector<8x32xf32> to vector<8x8xf32>
    %575 = arith.truncf %574 : vector<8x8xf32> to vector<8x8xbf16>
    %576 = vector.extract_strided_slice %552 {offsets = [0, 8], sizes = [8, 8], strides = [1, 1]} : vector<8x32xf32> to vector<8x8xf32>
    %577 = arith.truncf %576 : vector<8x8xf32> to vector<8x8xbf16>
    %cst_152 = arith.constant dense<0.000000e+00> : vector<8x8xf32>
    %578 = tpu.matmul %575, %577, %cst_152 {dimension_numbers = #tpu.dot_dimension_numbers<[1], [1], [0], [0], [0, 0, 1, 0], [], []>} : vector<8x8xbf16>, vector<8x8xbf16>, vector<8x8xf32> -> vector<8x8xf32>
    %cst_153 = arith.constant dense<0xFF800000> : vector<8xf32>
    %579 = vector.multi_reduction <maximumf>, %578, %cst_153 [1] : vector<8x8xf32> to vector<8xf32>
    %580 = vector.shape_cast %579 : vector<8xf32> to vector<8x1xf32>
    %581 = vector.broadcast %580 : vector<8x1xf32> to vector<8x8xf32>
    %582 = arith.subf %578, %581 : vector<8x8xf32>
    %583 = math.exp %582 : vector<8x8xf32>
    %cst_154 = arith.constant dense<0.000000e+00> : vector<8xf32>
    %584 = vector.multi_reduction <add>, %583, %cst_154 [1] : vector<8x8xf32> to vector<8xf32>
    %585 = vector.shape_cast %584 : vector<8xf32> to vector<8x1xf32>
    %586 = tpu.reciprocal %585 {approx = true} : vector<8x1xf32> -> vector<8x1xf32>
    %587 = vector.broadcast %586 : vector<8x1xf32> to vector<8x8xf32>
    %588 = arith.mulf %583, %587 : vector<8x8xf32>
    %589 = arith.truncf %588 : vector<8x8xf32> to vector<8x8xbf16>
    %590 = vector.extract_strided_slice %553 {offsets = [0, 8], sizes = [8, 8], strides = [1, 1]} : vector<8x32xf32> to vector<8x8xf32>
    %591 = arith.truncf %590 : vector<8x8xf32> to vector<8x8xbf16>
    %cst_155 = arith.constant dense<0.000000e+00> : vector<8x8xf32>
    %592 = tpu.matmul %589, %591, %cst_155 {dimension_numbers = #tpu.dot_dimension_numbers<[1], [0], [0], [1], [0, 0, 1, 1], [], []>} : vector<8x8xbf16>, vector<8x8xbf16>, vector<8x8xf32> -> vector<8x8xf32>
    %593 = vector.extract_strided_slice %554 {offsets = [0, 16], sizes = [8, 8], strides = [1, 1]} : vector<8x32xf32> to vector<8x8xf32>
    %594 = arith.truncf %593 : vector<8x8xf32> to vector<8x8xbf16>
    %595 = vector.extract_strided_slice %552 {offsets = [0, 16], sizes = [8, 8], strides = [1, 1]} : vector<8x32xf32> to vector<8x8xf32>
    %596 = arith.truncf %595 : vector<8x8xf32> to vector<8x8xbf16>
    %cst_156 = arith.constant dense<0.000000e+00> : vector<8x8xf32>
    %597 = tpu.matmul %594, %596, %cst_156 {dimension_numbers = #tpu.dot_dimension_numbers<[1], [1], [0], [0], [0, 0, 1, 0], [], []>} : vector<8x8xbf16>, vector<8x8xbf16>, vector<8x8xf32> -> vector<8x8xf32>
    %cst_157 = arith.constant dense<0xFF800000> : vector<8xf32>
    %598 = vector.multi_reduction <maximumf>, %597, %cst_157 [1] : vector<8x8xf32> to vector<8xf32>
    %599 = vector.shape_cast %598 : vector<8xf32> to vector<8x1xf32>
    %600 = vector.broadcast %599 : vector<8x1xf32> to vector<8x8xf32>
    %601 = arith.subf %597, %600 : vector<8x8xf32>
    %602 = math.exp %601 : vector<8x8xf32>
    %cst_158 = arith.constant dense<0.000000e+00> : vector<8xf32>
    %603 = vector.multi_reduction <add>, %602, %cst_158 [1] : vector<8x8xf32> to vector<8xf32>
    %604 = vector.shape_cast %603 : vector<8xf32> to vector<8x1xf32>
    %605 = tpu.reciprocal %604 {approx = true} : vector<8x1xf32> -> vector<8x1xf32>
    %606 = vector.broadcast %605 : vector<8x1xf32> to vector<8x8xf32>
    %607 = arith.mulf %602, %606 : vector<8x8xf32>
    %608 = arith.truncf %607 : vector<8x8xf32> to vector<8x8xbf16>
    %609 = vector.extract_strided_slice %553 {offsets = [0, 16], sizes = [8, 8], strides = [1, 1]} : vector<8x32xf32> to vector<8x8xf32>
    %610 = arith.truncf %609 : vector<8x8xf32> to vector<8x8xbf16>
    %cst_159 = arith.constant dense<0.000000e+00> : vector<8x8xf32>
    %611 = tpu.matmul %608, %610, %cst_159 {dimension_numbers = #tpu.dot_dimension_numbers<[1], [0], [0], [1], [0, 0, 1, 1], [], []>} : vector<8x8xbf16>, vector<8x8xbf16>, vector<8x8xf32> -> vector<8x8xf32>
    %612 = vector.extract_strided_slice %554 {offsets = [0, 24], sizes = [8, 8], strides = [1, 1]} : vector<8x32xf32> to vector<8x8xf32>
    %613 = arith.truncf %612 : vector<8x8xf32> to vector<8x8xbf16>
    %614 = vector.extract_strided_slice %552 {offsets = [0, 24], sizes = [8, 8], strides = [1, 1]} : vector<8x32xf32> to vector<8x8xf32>
    %615 = arith.truncf %614 : vector<8x8xf32> to vector<8x8xbf16>
    %cst_160 = arith.constant dense<0.000000e+00> : vector<8x8xf32>
    %616 = tpu.matmul %613, %615, %cst_160 {dimension_numbers = #tpu.dot_dimension_numbers<[1], [1], [0], [0], [0, 0, 1, 0], [], []>} : vector<8x8xbf16>, vector<8x8xbf16>, vector<8x8xf32> -> vector<8x8xf32>
    %cst_161 = arith.constant dense<0xFF800000> : vector<8xf32>
    %617 = vector.multi_reduction <maximumf>, %616, %cst_161 [1] : vector<8x8xf32> to vector<8xf32>
    %618 = vector.shape_cast %617 : vector<8xf32> to vector<8x1xf32>
    %619 = vector.broadcast %618 : vector<8x1xf32> to vector<8x8xf32>
    %620 = arith.subf %616, %619 : vector<8x8xf32>
    %621 = math.exp %620 : vector<8x8xf32>
    %cst_162 = arith.constant dense<0.000000e+00> : vector<8xf32>
    %622 = vector.multi_reduction <add>, %621, %cst_162 [1] : vector<8x8xf32> to vector<8xf32>
    %623 = vector.shape_cast %622 : vector<8xf32> to vector<8x1xf32>
    %624 = tpu.reciprocal %623 {approx = true} : vector<8x1xf32> -> vector<8x1xf32>
    %625 = vector.broadcast %624 : vector<8x1xf32> to vector<8x8xf32>
    %626 = arith.mulf %621, %625 : vector<8x8xf32>
    %627 = arith.truncf %626 : vector<8x8xf32> to vector<8x8xbf16>
    %628 = vector.extract_strided_slice %553 {offsets = [0, 24], sizes = [8, 8], strides = [1, 1]} : vector<8x32xf32> to vector<8x8xf32>
    %629 = arith.truncf %628 : vector<8x8xf32> to vector<8x8xbf16>
    %cst_163 = arith.constant dense<0.000000e+00> : vector<8x8xf32>
    %630 = tpu.matmul %627, %629, %cst_163 {dimension_numbers = #tpu.dot_dimension_numbers<[1], [0], [0], [1], [0, 0, 1, 1], [], []>} : vector<8x8xbf16>, vector<8x8xbf16>, vector<8x8xf32> -> vector<8x8xf32>
    %631 = tpu.concatenate %573, %592, %611, %630 in 1 : vector<8x8xf32>, vector<8x8xf32>, vector<8x8xf32>, vector<8x8xf32> -> vector<8x32xf32>
    %632 = tpu.concatenate %551, %631 in 0 : vector<8x32xf32>, vector<8x32xf32> -> vector<16x32xf32>
    %c416 = arith.constant 416 : index
    %c0_164 = arith.constant 0 : index
    %633 = vector.load %arg4[%c416, %c0_164] : memref<640x32xbf16, #tpu.memory_space<vmem>>, vector<32x32xbf16>
    %634 = arith.truncf %455 : vector<16x32xf32> to vector<16x32xbf16>
    %cst_165 = arith.constant dense<0.000000e+00> : vector<16x32xf32>
    %635 = tpu.matmul %634, %633, %cst_165 {dimension_numbers = #tpu.dot_dimension_numbers<[1], [0], [0], [1], [0, 0, 1, 1], [], []>} : vector<16x32xbf16>, vector<32x32xbf16>, vector<16x32xf32> -> vector<16x32xf32>
    %c448 = arith.constant 448 : index
    %c0_166 = arith.constant 0 : index
    %636 = vector.load %arg4[%c448, %c0_166] : memref<640x32xbf16, #tpu.memory_space<vmem>>, vector<32x32xbf16>
    %637 = arith.truncf %632 : vector<16x32xf32> to vector<16x32xbf16>
    %cst_167 = arith.constant dense<0.000000e+00> : vector<16x32xf32>
    %638 = tpu.matmul %637, %636, %cst_167 {dimension_numbers = #tpu.dot_dimension_numbers<[1], [0], [0], [1], [0, 0, 1, 1], [], []>} : vector<16x32xbf16>, vector<32x32xbf16>, vector<16x32xf32> -> vector<16x32xf32>
    %639 = arith.addf %635, %638 : vector<16x32xf32>
    %c21 = arith.constant 21 : index
    %c0_168 = arith.constant 0 : index
    %640 = vector.load %arg5[%c21, %c0_168] : memref<27x32xf32, #tpu.memory_space<vmem>>, vector<1x32xf32>
    %641 = vector.broadcast %640 : vector<1x32xf32> to vector<16x32xf32>
    %642 = arith.addf %639, %641 : vector<16x32xf32>
    %643 = arith.addf %642, %455 : vector<16x32xf32>
    %c22 = arith.constant 22 : index
    %c0_169 = arith.constant 0 : index
    %644 = vector.load %arg5[%c22, %c0_169] : memref<27x32xf32, #tpu.memory_space<vmem>>, vector<1x32xf32>
    %c23 = arith.constant 23 : index
    %c0_170 = arith.constant 0 : index
    %645 = vector.load %arg5[%c23, %c0_170] : memref<27x32xf32, #tpu.memory_space<vmem>>, vector<1x32xf32>
    %cst_171 = arith.constant dense<0.000000e+00> : vector<16xf32>
    %646 = vector.multi_reduction <add>, %643, %cst_171 [1] : vector<16x32xf32> to vector<16xf32>
    %647 = vector.shape_cast %646 : vector<16xf32> to vector<16x1xf32>
    %cst_172 = arith.constant 3.200000e+01 : f32
    %648 = vector.broadcast %cst_172 : f32 to vector<16x1xf32>
    %649 = arith.divf %647, %648 : vector<16x1xf32>
    %650 = vector.broadcast %649 : vector<16x1xf32> to vector<16x32xf32>
    %651 = arith.subf %643, %650 : vector<16x32xf32>
    %652 = arith.mulf %651, %651 : vector<16x32xf32>
    %cst_173 = arith.constant dense<0.000000e+00> : vector<16xf32>
    %653 = vector.multi_reduction <add>, %652, %cst_173 [1] : vector<16x32xf32> to vector<16xf32>
    %654 = vector.shape_cast %653 : vector<16xf32> to vector<16x1xf32>
    %cst_174 = arith.constant 3.200000e+01 : f32
    %655 = vector.broadcast %cst_174 : f32 to vector<16x1xf32>
    %656 = arith.divf %654, %655 : vector<16x1xf32>
    %657 = vector.broadcast %649 : vector<16x1xf32> to vector<16x32xf32>
    %658 = arith.subf %643, %657 : vector<16x32xf32>
    %cst_175 = arith.constant 9.99999974E-6 : f32
    %659 = vector.broadcast %cst_175 : f32 to vector<16x1xf32>
    %660 = arith.addf %656, %659 : vector<16x1xf32>
    %661 = math.rsqrt %660 : vector<16x1xf32>
    %662 = vector.broadcast %661 : vector<16x1xf32> to vector<16x32xf32>
    %663 = arith.mulf %658, %662 : vector<16x32xf32>
    %664 = vector.broadcast %644 : vector<1x32xf32> to vector<16x32xf32>
    %665 = arith.mulf %663, %664 : vector<16x32xf32>
    %666 = vector.broadcast %645 : vector<1x32xf32> to vector<16x32xf32>
    %667 = arith.addf %665, %666 : vector<16x32xf32>
    %c480 = arith.constant 480 : index
    %c0_176 = arith.constant 0 : index
    %668 = vector.load %arg4[%c480, %c0_176] : memref<640x32xbf16, #tpu.memory_space<vmem>>, vector<32x32xbf16>
    %669 = arith.truncf %460 : vector<16x32xf32> to vector<16x32xbf16>
    %cst_177 = arith.constant dense<0.000000e+00> : vector<16x32xf32>
    %670 = tpu.matmul %669, %668, %cst_177 {dimension_numbers = #tpu.dot_dimension_numbers<[1], [0], [0], [1], [0, 0, 1, 1], [], []>} : vector<16x32xbf16>, vector<32x32xbf16>, vector<16x32xf32> -> vector<16x32xf32>
    %c512 = arith.constant 512 : index
    %c0_178 = arith.constant 0 : index
    %671 = vector.load %arg4[%c512, %c0_178] : memref<640x32xbf16, #tpu.memory_space<vmem>>, vector<32x32xbf16>
    %672 = arith.truncf %450 : vector<16x32xf32> to vector<16x32xbf16>
    %cst_179 = arith.constant dense<0.000000e+00> : vector<16x32xf32>
    %673 = tpu.matmul %672, %671, %cst_179 {dimension_numbers = #tpu.dot_dimension_numbers<[1], [0], [0], [1], [0, 0, 1, 1], [], []>} : vector<16x32xbf16>, vector<32x32xbf16>, vector<16x32xf32> -> vector<16x32xf32>
    %c544 = arith.constant 544 : index
    %c0_180 = arith.constant 0 : index
    %674 = vector.load %arg4[%c544, %c0_180] : memref<640x32xbf16, #tpu.memory_space<vmem>>, vector<32x32xbf16>
    %675 = arith.truncf %667 : vector<16x32xf32> to vector<16x32xbf16>
    %cst_181 = arith.constant dense<0.000000e+00> : vector<16x32xf32>
    %676 = tpu.matmul %675, %674, %cst_181 {dimension_numbers = #tpu.dot_dimension_numbers<[1], [0], [0], [1], [0, 0, 1, 1], [], []>} : vector<16x32xbf16>, vector<32x32xbf16>, vector<16x32xf32> -> vector<16x32xf32>
    %cst_182 = arith.constant 0.353553385 : f32
    %677 = vector.broadcast %cst_182 : f32 to vector<16x32xf32>
    %678 = arith.mulf %676, %677 : vector<16x32xf32>
    %679 = vector.extract_strided_slice %670 {offsets = [0, 0], sizes = [8, 32], strides = [1, 1]} : vector<16x32xf32> to vector<8x32xf32>
    %680 = vector.extract_strided_slice %673 {offsets = [0, 0], sizes = [8, 32], strides = [1, 1]} : vector<16x32xf32> to vector<8x32xf32>
    %681 = vector.extract_strided_slice %678 {offsets = [0, 0], sizes = [8, 32], strides = [1, 1]} : vector<16x32xf32> to vector<8x32xf32>
    %682 = vector.extract_strided_slice %681 {offsets = [0, 0], sizes = [8, 8], strides = [1, 1]} : vector<8x32xf32> to vector<8x8xf32>
    %683 = arith.truncf %682 : vector<8x8xf32> to vector<8x8xbf16>
    %684 = vector.extract_strided_slice %679 {offsets = [0, 0], sizes = [8, 8], strides = [1, 1]} : vector<8x32xf32> to vector<8x8xf32>
    %685 = arith.truncf %684 : vector<8x8xf32> to vector<8x8xbf16>
    %cst_183 = arith.constant dense<0.000000e+00> : vector<8x8xf32>
    %686 = tpu.matmul %683, %685, %cst_183 {dimension_numbers = #tpu.dot_dimension_numbers<[1], [1], [0], [0], [0, 0, 1, 0], [], []>} : vector<8x8xbf16>, vector<8x8xbf16>, vector<8x8xf32> -> vector<8x8xf32>
    %cst_184 = arith.constant dense<0xFF800000> : vector<8xf32>
    %687 = vector.multi_reduction <maximumf>, %686, %cst_184 [1] : vector<8x8xf32> to vector<8xf32>
    %688 = vector.shape_cast %687 : vector<8xf32> to vector<8x1xf32>
    %689 = vector.broadcast %688 : vector<8x1xf32> to vector<8x8xf32>
    %690 = arith.subf %686, %689 : vector<8x8xf32>
    %691 = math.exp %690 : vector<8x8xf32>
    %cst_185 = arith.constant dense<0.000000e+00> : vector<8xf32>
    %692 = vector.multi_reduction <add>, %691, %cst_185 [1] : vector<8x8xf32> to vector<8xf32>
    %693 = vector.shape_cast %692 : vector<8xf32> to vector<8x1xf32>
    %694 = tpu.reciprocal %693 {approx = true} : vector<8x1xf32> -> vector<8x1xf32>
    %695 = vector.broadcast %694 : vector<8x1xf32> to vector<8x8xf32>
    %696 = arith.mulf %691, %695 : vector<8x8xf32>
    %697 = arith.truncf %696 : vector<8x8xf32> to vector<8x8xbf16>
    %698 = vector.extract_strided_slice %680 {offsets = [0, 0], sizes = [8, 8], strides = [1, 1]} : vector<8x32xf32> to vector<8x8xf32>
    %699 = arith.truncf %698 : vector<8x8xf32> to vector<8x8xbf16>
    %cst_186 = arith.constant dense<0.000000e+00> : vector<8x8xf32>
    %700 = tpu.matmul %697, %699, %cst_186 {dimension_numbers = #tpu.dot_dimension_numbers<[1], [0], [0], [1], [0, 0, 1, 1], [], []>} : vector<8x8xbf16>, vector<8x8xbf16>, vector<8x8xf32> -> vector<8x8xf32>
    %701 = vector.extract_strided_slice %681 {offsets = [0, 8], sizes = [8, 8], strides = [1, 1]} : vector<8x32xf32> to vector<8x8xf32>
    %702 = arith.truncf %701 : vector<8x8xf32> to vector<8x8xbf16>
    %703 = vector.extract_strided_slice %679 {offsets = [0, 8], sizes = [8, 8], strides = [1, 1]} : vector<8x32xf32> to vector<8x8xf32>
    %704 = arith.truncf %703 : vector<8x8xf32> to vector<8x8xbf16>
    %cst_187 = arith.constant dense<0.000000e+00> : vector<8x8xf32>
    %705 = tpu.matmul %702, %704, %cst_187 {dimension_numbers = #tpu.dot_dimension_numbers<[1], [1], [0], [0], [0, 0, 1, 0], [], []>} : vector<8x8xbf16>, vector<8x8xbf16>, vector<8x8xf32> -> vector<8x8xf32>
    %cst_188 = arith.constant dense<0xFF800000> : vector<8xf32>
    %706 = vector.multi_reduction <maximumf>, %705, %cst_188 [1] : vector<8x8xf32> to vector<8xf32>
    %707 = vector.shape_cast %706 : vector<8xf32> to vector<8x1xf32>
    %708 = vector.broadcast %707 : vector<8x1xf32> to vector<8x8xf32>
    %709 = arith.subf %705, %708 : vector<8x8xf32>
    %710 = math.exp %709 : vector<8x8xf32>
    %cst_189 = arith.constant dense<0.000000e+00> : vector<8xf32>
    %711 = vector.multi_reduction <add>, %710, %cst_189 [1] : vector<8x8xf32> to vector<8xf32>
    %712 = vector.shape_cast %711 : vector<8xf32> to vector<8x1xf32>
    %713 = tpu.reciprocal %712 {approx = true} : vector<8x1xf32> -> vector<8x1xf32>
    %714 = vector.broadcast %713 : vector<8x1xf32> to vector<8x8xf32>
    %715 = arith.mulf %710, %714 : vector<8x8xf32>
    %716 = arith.truncf %715 : vector<8x8xf32> to vector<8x8xbf16>
    %717 = vector.extract_strided_slice %680 {offsets = [0, 8], sizes = [8, 8], strides = [1, 1]} : vector<8x32xf32> to vector<8x8xf32>
    %718 = arith.truncf %717 : vector<8x8xf32> to vector<8x8xbf16>
    %cst_190 = arith.constant dense<0.000000e+00> : vector<8x8xf32>
    %719 = tpu.matmul %716, %718, %cst_190 {dimension_numbers = #tpu.dot_dimension_numbers<[1], [0], [0], [1], [0, 0, 1, 1], [], []>} : vector<8x8xbf16>, vector<8x8xbf16>, vector<8x8xf32> -> vector<8x8xf32>
    %720 = vector.extract_strided_slice %681 {offsets = [0, 16], sizes = [8, 8], strides = [1, 1]} : vector<8x32xf32> to vector<8x8xf32>
    %721 = arith.truncf %720 : vector<8x8xf32> to vector<8x8xbf16>
    %722 = vector.extract_strided_slice %679 {offsets = [0, 16], sizes = [8, 8], strides = [1, 1]} : vector<8x32xf32> to vector<8x8xf32>
    %723 = arith.truncf %722 : vector<8x8xf32> to vector<8x8xbf16>
    %cst_191 = arith.constant dense<0.000000e+00> : vector<8x8xf32>
    %724 = tpu.matmul %721, %723, %cst_191 {dimension_numbers = #tpu.dot_dimension_numbers<[1], [1], [0], [0], [0, 0, 1, 0], [], []>} : vector<8x8xbf16>, vector<8x8xbf16>, vector<8x8xf32> -> vector<8x8xf32>
    %cst_192 = arith.constant dense<0xFF800000> : vector<8xf32>
    %725 = vector.multi_reduction <maximumf>, %724, %cst_192 [1] : vector<8x8xf32> to vector<8xf32>
    %726 = vector.shape_cast %725 : vector<8xf32> to vector<8x1xf32>
    %727 = vector.broadcast %726 : vector<8x1xf32> to vector<8x8xf32>
    %728 = arith.subf %724, %727 : vector<8x8xf32>
    %729 = math.exp %728 : vector<8x8xf32>
    %cst_193 = arith.constant dense<0.000000e+00> : vector<8xf32>
    %730 = vector.multi_reduction <add>, %729, %cst_193 [1] : vector<8x8xf32> to vector<8xf32>
    %731 = vector.shape_cast %730 : vector<8xf32> to vector<8x1xf32>
    %732 = tpu.reciprocal %731 {approx = true} : vector<8x1xf32> -> vector<8x1xf32>
    %733 = vector.broadcast %732 : vector<8x1xf32> to vector<8x8xf32>
    %734 = arith.mulf %729, %733 : vector<8x8xf32>
    %735 = arith.truncf %734 : vector<8x8xf32> to vector<8x8xbf16>
    %736 = vector.extract_strided_slice %680 {offsets = [0, 16], sizes = [8, 8], strides = [1, 1]} : vector<8x32xf32> to vector<8x8xf32>
    %737 = arith.truncf %736 : vector<8x8xf32> to vector<8x8xbf16>
    %cst_194 = arith.constant dense<0.000000e+00> : vector<8x8xf32>
    %738 = tpu.matmul %735, %737, %cst_194 {dimension_numbers = #tpu.dot_dimension_numbers<[1], [0], [0], [1], [0, 0, 1, 1], [], []>} : vector<8x8xbf16>, vector<8x8xbf16>, vector<8x8xf32> -> vector<8x8xf32>
    %739 = vector.extract_strided_slice %681 {offsets = [0, 24], sizes = [8, 8], strides = [1, 1]} : vector<8x32xf32> to vector<8x8xf32>
    %740 = arith.truncf %739 : vector<8x8xf32> to vector<8x8xbf16>
    %741 = vector.extract_strided_slice %679 {offsets = [0, 24], sizes = [8, 8], strides = [1, 1]} : vector<8x32xf32> to vector<8x8xf32>
    %742 = arith.truncf %741 : vector<8x8xf32> to vector<8x8xbf16>
    %cst_195 = arith.constant dense<0.000000e+00> : vector<8x8xf32>
    %743 = tpu.matmul %740, %742, %cst_195 {dimension_numbers = #tpu.dot_dimension_numbers<[1], [1], [0], [0], [0, 0, 1, 0], [], []>} : vector<8x8xbf16>, vector<8x8xbf16>, vector<8x8xf32> -> vector<8x8xf32>
    %cst_196 = arith.constant dense<0xFF800000> : vector<8xf32>
    %744 = vector.multi_reduction <maximumf>, %743, %cst_196 [1] : vector<8x8xf32> to vector<8xf32>
    %745 = vector.shape_cast %744 : vector<8xf32> to vector<8x1xf32>
    %746 = vector.broadcast %745 : vector<8x1xf32> to vector<8x8xf32>
    %747 = arith.subf %743, %746 : vector<8x8xf32>
    %748 = math.exp %747 : vector<8x8xf32>
    %cst_197 = arith.constant dense<0.000000e+00> : vector<8xf32>
    %749 = vector.multi_reduction <add>, %748, %cst_197 [1] : vector<8x8xf32> to vector<8xf32>
    %750 = vector.shape_cast %749 : vector<8xf32> to vector<8x1xf32>
    %751 = tpu.reciprocal %750 {approx = true} : vector<8x1xf32> -> vector<8x1xf32>
    %752 = vector.broadcast %751 : vector<8x1xf32> to vector<8x8xf32>
    %753 = arith.mulf %748, %752 : vector<8x8xf32>
    %754 = arith.truncf %753 : vector<8x8xf32> to vector<8x8xbf16>
    %755 = vector.extract_strided_slice %680 {offsets = [0, 24], sizes = [8, 8], strides = [1, 1]} : vector<8x32xf32> to vector<8x8xf32>
    %756 = arith.truncf %755 : vector<8x8xf32> to vector<8x8xbf16>
    %cst_198 = arith.constant dense<0.000000e+00> : vector<8x8xf32>
    %757 = tpu.matmul %754, %756, %cst_198 {dimension_numbers = #tpu.dot_dimension_numbers<[1], [0], [0], [1], [0, 0, 1, 1], [], []>} : vector<8x8xbf16>, vector<8x8xbf16>, vector<8x8xf32> -> vector<8x8xf32>
    %758 = tpu.concatenate %700, %719, %738, %757 in 1 : vector<8x8xf32>, vector<8x8xf32>, vector<8x8xf32>, vector<8x8xf32> -> vector<8x32xf32>
    %759 = vector.extract_strided_slice %670 {offsets = [8, 0], sizes = [8, 32], strides = [1, 1]} : vector<16x32xf32> to vector<8x32xf32>
    %760 = vector.extract_strided_slice %673 {offsets = [8, 0], sizes = [8, 32], strides = [1, 1]} : vector<16x32xf32> to vector<8x32xf32>
    %761 = vector.extract_strided_slice %678 {offsets = [8, 0], sizes = [8, 32], strides = [1, 1]} : vector<16x32xf32> to vector<8x32xf32>
    %762 = vector.extract_strided_slice %761 {offsets = [0, 0], sizes = [8, 8], strides = [1, 1]} : vector<8x32xf32> to vector<8x8xf32>
    %763 = arith.truncf %762 : vector<8x8xf32> to vector<8x8xbf16>
    %764 = vector.extract_strided_slice %759 {offsets = [0, 0], sizes = [8, 8], strides = [1, 1]} : vector<8x32xf32> to vector<8x8xf32>
    %765 = arith.truncf %764 : vector<8x8xf32> to vector<8x8xbf16>
    %cst_199 = arith.constant dense<0.000000e+00> : vector<8x8xf32>
    %766 = tpu.matmul %763, %765, %cst_199 {dimension_numbers = #tpu.dot_dimension_numbers<[1], [1], [0], [0], [0, 0, 1, 0], [], []>} : vector<8x8xbf16>, vector<8x8xbf16>, vector<8x8xf32> -> vector<8x8xf32>
    %cst_200 = arith.constant dense<0xFF800000> : vector<8xf32>
    %767 = vector.multi_reduction <maximumf>, %766, %cst_200 [1] : vector<8x8xf32> to vector<8xf32>
    %768 = vector.shape_cast %767 : vector<8xf32> to vector<8x1xf32>
    %769 = vector.broadcast %768 : vector<8x1xf32> to vector<8x8xf32>
    %770 = arith.subf %766, %769 : vector<8x8xf32>
    %771 = math.exp %770 : vector<8x8xf32>
    %cst_201 = arith.constant dense<0.000000e+00> : vector<8xf32>
    %772 = vector.multi_reduction <add>, %771, %cst_201 [1] : vector<8x8xf32> to vector<8xf32>
    %773 = vector.shape_cast %772 : vector<8xf32> to vector<8x1xf32>
    %774 = tpu.reciprocal %773 {approx = true} : vector<8x1xf32> -> vector<8x1xf32>
    %775 = vector.broadcast %774 : vector<8x1xf32> to vector<8x8xf32>
    %776 = arith.mulf %771, %775 : vector<8x8xf32>
    %777 = arith.truncf %776 : vector<8x8xf32> to vector<8x8xbf16>
    %778 = vector.extract_strided_slice %760 {offsets = [0, 0], sizes = [8, 8], strides = [1, 1]} : vector<8x32xf32> to vector<8x8xf32>
    %779 = arith.truncf %778 : vector<8x8xf32> to vector<8x8xbf16>
    %cst_202 = arith.constant dense<0.000000e+00> : vector<8x8xf32>
    %780 = tpu.matmul %777, %779, %cst_202 {dimension_numbers = #tpu.dot_dimension_numbers<[1], [0], [0], [1], [0, 0, 1, 1], [], []>} : vector<8x8xbf16>, vector<8x8xbf16>, vector<8x8xf32> -> vector<8x8xf32>
    %781 = vector.extract_strided_slice %761 {offsets = [0, 8], sizes = [8, 8], strides = [1, 1]} : vector<8x32xf32> to vector<8x8xf32>
    %782 = arith.truncf %781 : vector<8x8xf32> to vector<8x8xbf16>
    %783 = vector.extract_strided_slice %759 {offsets = [0, 8], sizes = [8, 8], strides = [1, 1]} : vector<8x32xf32> to vector<8x8xf32>
    %784 = arith.truncf %783 : vector<8x8xf32> to vector<8x8xbf16>
    %cst_203 = arith.constant dense<0.000000e+00> : vector<8x8xf32>
    %785 = tpu.matmul %782, %784, %cst_203 {dimension_numbers = #tpu.dot_dimension_numbers<[1], [1], [0], [0], [0, 0, 1, 0], [], []>} : vector<8x8xbf16>, vector<8x8xbf16>, vector<8x8xf32> -> vector<8x8xf32>
    %cst_204 = arith.constant dense<0xFF800000> : vector<8xf32>
    %786 = vector.multi_reduction <maximumf>, %785, %cst_204 [1] : vector<8x8xf32> to vector<8xf32>
    %787 = vector.shape_cast %786 : vector<8xf32> to vector<8x1xf32>
    %788 = vector.broadcast %787 : vector<8x1xf32> to vector<8x8xf32>
    %789 = arith.subf %785, %788 : vector<8x8xf32>
    %790 = math.exp %789 : vector<8x8xf32>
    %cst_205 = arith.constant dense<0.000000e+00> : vector<8xf32>
    %791 = vector.multi_reduction <add>, %790, %cst_205 [1] : vector<8x8xf32> to vector<8xf32>
    %792 = vector.shape_cast %791 : vector<8xf32> to vector<8x1xf32>
    %793 = tpu.reciprocal %792 {approx = true} : vector<8x1xf32> -> vector<8x1xf32>
    %794 = vector.broadcast %793 : vector<8x1xf32> to vector<8x8xf32>
    %795 = arith.mulf %790, %794 : vector<8x8xf32>
    %796 = arith.truncf %795 : vector<8x8xf32> to vector<8x8xbf16>
    %797 = vector.extract_strided_slice %760 {offsets = [0, 8], sizes = [8, 8], strides = [1, 1]} : vector<8x32xf32> to vector<8x8xf32>
    %798 = arith.truncf %797 : vector<8x8xf32> to vector<8x8xbf16>
    %cst_206 = arith.constant dense<0.000000e+00> : vector<8x8xf32>
    %799 = tpu.matmul %796, %798, %cst_206 {dimension_numbers = #tpu.dot_dimension_numbers<[1], [0], [0], [1], [0, 0, 1, 1], [], []>} : vector<8x8xbf16>, vector<8x8xbf16>, vector<8x8xf32> -> vector<8x8xf32>
    %800 = vector.extract_strided_slice %761 {offsets = [0, 16], sizes = [8, 8], strides = [1, 1]} : vector<8x32xf32> to vector<8x8xf32>
    %801 = arith.truncf %800 : vector<8x8xf32> to vector<8x8xbf16>
    %802 = vector.extract_strided_slice %759 {offsets = [0, 16], sizes = [8, 8], strides = [1, 1]} : vector<8x32xf32> to vector<8x8xf32>
    %803 = arith.truncf %802 : vector<8x8xf32> to vector<8x8xbf16>
    %cst_207 = arith.constant dense<0.000000e+00> : vector<8x8xf32>
    %804 = tpu.matmul %801, %803, %cst_207 {dimension_numbers = #tpu.dot_dimension_numbers<[1], [1], [0], [0], [0, 0, 1, 0], [], []>} : vector<8x8xbf16>, vector<8x8xbf16>, vector<8x8xf32> -> vector<8x8xf32>
    %cst_208 = arith.constant dense<0xFF800000> : vector<8xf32>
    %805 = vector.multi_reduction <maximumf>, %804, %cst_208 [1] : vector<8x8xf32> to vector<8xf32>
    %806 = vector.shape_cast %805 : vector<8xf32> to vector<8x1xf32>
    %807 = vector.broadcast %806 : vector<8x1xf32> to vector<8x8xf32>
    %808 = arith.subf %804, %807 : vector<8x8xf32>
    %809 = math.exp %808 : vector<8x8xf32>
    %cst_209 = arith.constant dense<0.000000e+00> : vector<8xf32>
    %810 = vector.multi_reduction <add>, %809, %cst_209 [1] : vector<8x8xf32> to vector<8xf32>
    %811 = vector.shape_cast %810 : vector<8xf32> to vector<8x1xf32>
    %812 = tpu.reciprocal %811 {approx = true} : vector<8x1xf32> -> vector<8x1xf32>
    %813 = vector.broadcast %812 : vector<8x1xf32> to vector<8x8xf32>
    %814 = arith.mulf %809, %813 : vector<8x8xf32>
    %815 = arith.truncf %814 : vector<8x8xf32> to vector<8x8xbf16>
    %816 = vector.extract_strided_slice %760 {offsets = [0, 16], sizes = [8, 8], strides = [1, 1]} : vector<8x32xf32> to vector<8x8xf32>
    %817 = arith.truncf %816 : vector<8x8xf32> to vector<8x8xbf16>
    %cst_210 = arith.constant dense<0.000000e+00> : vector<8x8xf32>
    %818 = tpu.matmul %815, %817, %cst_210 {dimension_numbers = #tpu.dot_dimension_numbers<[1], [0], [0], [1], [0, 0, 1, 1], [], []>} : vector<8x8xbf16>, vector<8x8xbf16>, vector<8x8xf32> -> vector<8x8xf32>
    %819 = vector.extract_strided_slice %761 {offsets = [0, 24], sizes = [8, 8], strides = [1, 1]} : vector<8x32xf32> to vector<8x8xf32>
    %820 = arith.truncf %819 : vector<8x8xf32> to vector<8x8xbf16>
    %821 = vector.extract_strided_slice %759 {offsets = [0, 24], sizes = [8, 8], strides = [1, 1]} : vector<8x32xf32> to vector<8x8xf32>
    %822 = arith.truncf %821 : vector<8x8xf32> to vector<8x8xbf16>
    %cst_211 = arith.constant dense<0.000000e+00> : vector<8x8xf32>
    %823 = tpu.matmul %820, %822, %cst_211 {dimension_numbers = #tpu.dot_dimension_numbers<[1], [1], [0], [0], [0, 0, 1, 0], [], []>} : vector<8x8xbf16>, vector<8x8xbf16>, vector<8x8xf32> -> vector<8x8xf32>
    %cst_212 = arith.constant dense<0xFF800000> : vector<8xf32>
    %824 = vector.multi_reduction <maximumf>, %823, %cst_212 [1] : vector<8x8xf32> to vector<8xf32>
    %825 = vector.shape_cast %824 : vector<8xf32> to vector<8x1xf32>
    %826 = vector.broadcast %825 : vector<8x1xf32> to vector<8x8xf32>
    %827 = arith.subf %823, %826 : vector<8x8xf32>
    %828 = math.exp %827 : vector<8x8xf32>
    %cst_213 = arith.constant dense<0.000000e+00> : vector<8xf32>
    %829 = vector.multi_reduction <add>, %828, %cst_213 [1] : vector<8x8xf32> to vector<8xf32>
    %830 = vector.shape_cast %829 : vector<8xf32> to vector<8x1xf32>
    %831 = tpu.reciprocal %830 {approx = true} : vector<8x1xf32> -> vector<8x1xf32>
    %832 = vector.broadcast %831 : vector<8x1xf32> to vector<8x8xf32>
    %833 = arith.mulf %828, %832 : vector<8x8xf32>
    %834 = arith.truncf %833 : vector<8x8xf32> to vector<8x8xbf16>
    %835 = vector.extract_strided_slice %760 {offsets = [0, 24], sizes = [8, 8], strides = [1, 1]} : vector<8x32xf32> to vector<8x8xf32>
    %836 = arith.truncf %835 : vector<8x8xf32> to vector<8x8xbf16>
    %cst_214 = arith.constant dense<0.000000e+00> : vector<8x8xf32>
    %837 = tpu.matmul %834, %836, %cst_214 {dimension_numbers = #tpu.dot_dimension_numbers<[1], [0], [0], [1], [0, 0, 1, 1], [], []>} : vector<8x8xbf16>, vector<8x8xbf16>, vector<8x8xf32> -> vector<8x8xf32>
    %838 = tpu.concatenate %780, %799, %818, %837 in 1 : vector<8x8xf32>, vector<8x8xf32>, vector<8x8xf32>, vector<8x8xf32> -> vector<8x32xf32>
    %839 = tpu.concatenate %758, %838 in 0 : vector<8x32xf32>, vector<8x32xf32> -> vector<16x32xf32>
    %c576 = arith.constant 576 : index
    %c0_215 = arith.constant 0 : index
    %840 = vector.load %arg4[%c576, %c0_215] : memref<640x32xbf16, #tpu.memory_space<vmem>>, vector<32x32xbf16>
    %841 = arith.truncf %667 : vector<16x32xf32> to vector<16x32xbf16>
    %cst_216 = arith.constant dense<0.000000e+00> : vector<16x32xf32>
    %842 = tpu.matmul %841, %840, %cst_216 {dimension_numbers = #tpu.dot_dimension_numbers<[1], [0], [0], [1], [0, 0, 1, 1], [], []>} : vector<16x32xbf16>, vector<32x32xbf16>, vector<16x32xf32> -> vector<16x32xf32>
    %c608 = arith.constant 608 : index
    %c0_217 = arith.constant 0 : index
    %843 = vector.load %arg4[%c608, %c0_217] : memref<640x32xbf16, #tpu.memory_space<vmem>>, vector<32x32xbf16>
    %844 = arith.truncf %839 : vector<16x32xf32> to vector<16x32xbf16>
    %cst_218 = arith.constant dense<0.000000e+00> : vector<16x32xf32>
    %845 = tpu.matmul %844, %843, %cst_218 {dimension_numbers = #tpu.dot_dimension_numbers<[1], [0], [0], [1], [0, 0, 1, 1], [], []>} : vector<16x32xbf16>, vector<32x32xbf16>, vector<16x32xf32> -> vector<16x32xf32>
    %846 = arith.addf %842, %845 : vector<16x32xf32>
    %c24 = arith.constant 24 : index
    %c0_219 = arith.constant 0 : index
    %847 = vector.load %arg5[%c24, %c0_219] : memref<27x32xf32, #tpu.memory_space<vmem>>, vector<1x32xf32>
    %848 = vector.broadcast %847 : vector<1x32xf32> to vector<16x32xf32>
    %849 = arith.addf %846, %848 : vector<16x32xf32>
    %850 = arith.addf %849, %667 : vector<16x32xf32>
    %c25 = arith.constant 25 : index
    %c0_220 = arith.constant 0 : index
    %851 = vector.load %arg5[%c25, %c0_220] : memref<27x32xf32, #tpu.memory_space<vmem>>, vector<1x32xf32>
    %c26 = arith.constant 26 : index
    %c0_221 = arith.constant 0 : index
    %852 = vector.load %arg5[%c26, %c0_221] : memref<27x32xf32, #tpu.memory_space<vmem>>, vector<1x32xf32>
    %cst_222 = arith.constant dense<0.000000e+00> : vector<16xf32>
    %853 = vector.multi_reduction <add>, %850, %cst_222 [1] : vector<16x32xf32> to vector<16xf32>
    %854 = vector.shape_cast %853 : vector<16xf32> to vector<16x1xf32>
    %cst_223 = arith.constant 3.200000e+01 : f32
    %855 = vector.broadcast %cst_223 : f32 to vector<16x1xf32>
    %856 = arith.divf %854, %855 : vector<16x1xf32>
    %857 = vector.broadcast %856 : vector<16x1xf32> to vector<16x32xf32>
    %858 = arith.subf %850, %857 : vector<16x32xf32>
    %859 = arith.mulf %858, %858 : vector<16x32xf32>
    %cst_224 = arith.constant dense<0.000000e+00> : vector<16xf32>
    %860 = vector.multi_reduction <add>, %859, %cst_224 [1] : vector<16x32xf32> to vector<16xf32>
    %861 = vector.shape_cast %860 : vector<16xf32> to vector<16x1xf32>
    %cst_225 = arith.constant 3.200000e+01 : f32
    %862 = vector.broadcast %cst_225 : f32 to vector<16x1xf32>
    %863 = arith.divf %861, %862 : vector<16x1xf32>
    %864 = vector.broadcast %856 : vector<16x1xf32> to vector<16x32xf32>
    %865 = arith.subf %850, %864 : vector<16x32xf32>
    %cst_226 = arith.constant 9.99999974E-6 : f32
    %866 = vector.broadcast %cst_226 : f32 to vector<16x1xf32>
    %867 = arith.addf %863, %866 : vector<16x1xf32>
    %868 = math.rsqrt %867 : vector<16x1xf32>
    %869 = vector.broadcast %868 : vector<16x1xf32> to vector<16x32xf32>
    %870 = arith.mulf %865, %869 : vector<16x32xf32>
    %871 = vector.broadcast %851 : vector<1x32xf32> to vector<16x32xf32>
    %872 = arith.mulf %870, %871 : vector<16x32xf32>
    %873 = vector.broadcast %852 : vector<1x32xf32> to vector<16x32xf32>
    %874 = arith.addf %872, %873 : vector<16x32xf32>
    %c0_227 = arith.constant 0 : index
    %c0_228 = arith.constant 0 : index
    %875 = vector.load %arg6[%c0_227, %c0_228] : memref<16x32xf32, #tpu.memory_space<vmem>>, vector<16x32xf32>
    tpu.vector_store %arg6[%c0_227, %c0_228], %874 {strides = array<i32>} : memref<16x32xf32, #tpu.memory_space<vmem>>, vector<16x32xf32>,
    return
  }
  func.func @transform_0(%arg0: i32) -> (i32, i32) {
    %c0_i32 = arith.constant 0 : i32
    %c0_i32_0 = arith.constant 0 : i32
    return %arg0, %c0_i32 : i32, i32
  }
  func.func @transform_1(%arg0: i32) -> (i32, i32) {
    %c0_i32 = arith.constant 0 : i32
    %c0_i32_0 = arith.constant 0 : i32
    return %arg0, %c0_i32 : i32, i32
  }
  func.func @transform_2(%arg0: i32) -> (i32, i32) {
    %c0_i32 = arith.constant 0 : i32
    %c0_i32_0 = arith.constant 0 : i32
    return %arg0, %c0_i32 : i32, i32
  }
  func.func @transform_3(%arg0: i32) -> (i32, i32) {
    %c0_i32 = arith.constant 0 : i32
    %c0_i32_0 = arith.constant 0 : i32
    %c0_i32_1 = arith.constant 0 : i32
    return %c0_i32, %c0_i32_0 : i32, i32
  }
  func.func @transform_4(%arg0: i32) -> (i32, i32) {
    %c0_i32 = arith.constant 0 : i32
    %c0_i32_0 = arith.constant 0 : i32
    %c0_i32_1 = arith.constant 0 : i32
    return %c0_i32, %c0_i32_0 : i32, i32
  }
  func.func @transform_5(%arg0: i32) -> (i32, i32) {
    %c0_i32 = arith.constant 0 : i32
    %c0_i32_0 = arith.constant 0 : i32
    return %arg0, %c0_i32 : i32, i32
  }
}

</mosaic_0001>

<llo_original>
// kernel: deterministic_encoder.1
$region0: #{deterministic_encoder.1}
  #allocation0 [shape = 'u32[]', space=smem, size = 0x4, offset = 0x4, fixed_abs, tag = 'smem constant byte address 0x4 - core index']
  #allocation1 [shape = 'u32[144,128]{1,0:T(1,128)}', space=vmem, size = 0x12000, scoped, tag = 'internal scratch']
  %s0 = inlined_call_operand.vmem [shape: f32[16,3], index: 0, kind: input, shape index: {}]
  %s1 = inlined_call_operand.vmem [shape: f32[16,1], index: 1, kind: input, shape index: {}]
  %s2 = inlined_call_operand.vmem [shape: f32[16,3], index: 2, kind: input, shape index: {}]
  %s3 = inlined_call_operand.vmem [shape: bf16[640,32], index: 3, kind: input, shape index: {}]
  %s4 = inlined_call_operand.vmem [shape: f32[27,32], index: 4, kind: input, shape index: {}]
  %s5 = inlined_call_operand.hbm [shape: f32[16,32], index: 5, kind: output, shape index: {}]
  %s6 = sld [smem:[#allocation0]]
  $region30: #{deterministic_encoder.1} parent=0
    _
  %s8 = ssub.s32 1, %s6
  %s9 = scalar_select 0, %s8, %s6
  $region1: #{deterministic_encoder.1} parent=0
    #allocation2 [shape = 'u8[8192]{0}', space=vmem, size = 0x2000, scoped, tag = 'output window, operand 0, single buffered']
    #allocation3 [shape = 's32[1]{0}', space=sflag, size = 0x4, scoped, tag = 'scoped memory for deterministic_encoder.1']
    %10 = vsyncpa [#allocation3], 0
    // Predicated region
    $region2: #{deterministic_encoder.1} parent=1 // pred_check
      _
    $region3: #{deterministic_encoder.1} parent=1 // pred_check_branch
      %12 = sbr.rel (0) target = $region5
    $region4: #{deterministic_encoder.1} parent=1 // pred_region
      _
    $region5: #{deterministic_encoder.1} parent=1 // pred_fallthru
      _
    // Predicated region
    $region6: #{deterministic_encoder.1} parent=1 // pred_check
      _
    $region7: #{deterministic_encoder.1} parent=1 // pred_check_branch
      %14 = sbr.rel (0) target = $region9
    $region8: #{deterministic_encoder.1} parent=1 // pred_region
      _
    $region9: #{deterministic_encoder.1} parent=1 // pred_fallthru
      _
    // Predicated region
    $region10: #{deterministic_encoder.1} parent=1 // pred_check
      _
    $region11: #{deterministic_encoder.1} parent=1 // pred_check_branch
      %16 = sbr.rel (0) target = $region13
    $region12: #{deterministic_encoder.1} parent=1 // pred_region
      _
    $region13: #{deterministic_encoder.1} parent=1 // pred_fallthru
      _
    // Predicated region
    $region14: #{deterministic_encoder.1} parent=1 // pred_check
      _
    $region15: #{deterministic_encoder.1} parent=1 // pred_check_branch
      %18 = sbr.rel (0) target = $region17
    $region16: #{deterministic_encoder.1} parent=1 // pred_region
      _
    $region17: #{deterministic_encoder.1} parent=1 // pred_fallthru
      _
    // Predicated region
    $region18: #{deterministic_encoder.1} parent=1 // pred_check
      _
    $region19: #{deterministic_encoder.1} parent=1 // pred_check_branch
      %20 = sbr.rel (0) target = $region21
    $region20: #{deterministic_encoder.1} parent=1 // pred_region
      _
    $region21: #{deterministic_encoder.1} parent=1 // pred_fallthru
      _
    %v22 = vld [vmem:[%s0] sm:$0xff]
    %v23 = vld [vmem:[%s0 + $0x8] sm:$0xff]
    %v24 = vld [vmem:[%s1] sm:$0xff]
    %v25 = vld [vmem:[%s1 + $0x8] sm:$0xff]
    %v26 = vld [vmem:[%s2] sm:$0xff]
    %v27 = vld [vmem:[%s2 + $0x8] sm:$0xff]
    %v28 = vld [vmem:[%s4 + $0x3] sm:$0x1]
    %30 = vset.pattern.permute.xlu0 0
    %31 = vperm.xlu0 %30, %v24
    %v32 = vpop.permute.xlu0 %31
    %35 = vset.pattern.permute.xlu0 0
    %36 = vperm.xlu0 %35, %v25
    %v37 = vpop.permute.xlu0 %36
    %v39 = vlaneseq
    %v40 = vshrl.u32 %v39, 7
    %v41 = vsub.s32 0, %v40
    %v42 = vrot.slane %v28, %v41
    %v43 = vmul.f32 %v32, %v42
    %v44 = vmul.f32 %v37, %v42
    %v45 = vld [vmem:[%s4] sm:$0x7]
    %vm46 = vcmask 23552
    %v48 = vsel %vm46, %v22, 0
    %v51 = vsel %vm46, %v23, 0
    %vm53 = vcmask 1042432
    %v55 = vsel %vm53, %v45, 0
    %57 = vmatprep.subr.mxu0 0.0
    %58 = vmatpush1.msra.mxu0 %v55
    %59 = vmatprep.subr.mxu0 0.0
    %60 = vmatpush1.msra.mxu0 0.0
    %61 = vmatprep.subr.mxu0 0.0
    %62 = vmatpush1.msra.mxu0 0.0
    %63 = vmatprep.subr.mxu0 0.0
    %64 = vmatpush1.msra.mxu0 0.0
    %65 = vmatprep.subr.mxu0 0.0
    %66 = vmatpush1.msra.mxu0 0.0
    %67 = vmatprep.subr.mxu0 0.0
    %68 = vmatpush1.msra.mxu0 0.0
    %69 = vmatprep.subr.mxu0 0.0
    %70 = vmatpush1.msra.mxu0 0.0
    %71 = vmatprep.subr.mxu0 0.0
    %72 = vmatpush1.msra.mxu0 0.0
    %73 = vmatprep.subr.mxu0 0.0
    %74 = vmatpush1.msra.mxu0 0.0
    %75 = vmatprep.subr.mxu0 0.0
    %76 = vmatpush1.msra.mxu0 0.0
    %77 = vmatprep.subr.mxu0 0.0
    %78 = vmatpush1.msra.mxu0 0.0
    %79 = vmatprep.subr.mxu0 0.0
    %80 = vmatpush1.msra.mxu0 0.0
    %81 = vmatprep.subr.mxu0 0.0
    %82 = vmatpush1.msra.mxu0 0.0
    %83 = vmatprep.subr.mxu0 0.0
    %84 = vmatpush1.msra.mxu0 0.0
    %85 = vmatprep.subr.mxu0 0.0
    %86 = vmatpush1.msra.mxu0 0.0
    %87 = vmatprep.subr.mxu0 0.0
    %88 = vmatpush1.msra.mxu0 0.0
    %89 = vmatprep.subr.mxu0 0.0
    %90 = vmatpush1.msra.mxu0 0.0
    %91 = vmatprep.subr.mxu0 0.0
    %92 = vmatpush1.msra.mxu0 0.0
    %93 = vmatprep.subr.mxu0 0.0
    %94 = vmatpush1.msra.mxu0 0.0
    %95 = vmatprep.subr.mxu0 0.0
    %96 = vmatpush1.msra.mxu0 0.0
    %97 = vmatprep.subr.mxu0 0.0
    %98 = vmatpush1.msra.mxu0 0.0
    %99 = vmatprep.subr.mxu0 0.0
    %100 = vmatpush1.msra.mxu0 0.0
    %101 = vmatprep.subr.mxu0 0.0
    %102 = vmatpush1.msra.mxu0 0.0
    %103 = vmatprep.subr.mxu0 0.0
    %104 = vmatpush1.msra.mxu0 0.0
    %105 = vmatprep.subr.mxu0 0.0
    %106 = vmatpush1.msra.mxu0 0.0
    %107 = vmatprep.subr.mxu0 0.0
    %108 = vmatpush1.msra.mxu0 0.0
    %109 = vmatprep.subr.mxu0 0.0
    %110 = vmatpush1.msra.mxu0 0.0
    %111 = vmatprep.subr.mxu0 0.0
    %112 = vmatpush1.msra.mxu0 0.0
    %113 = vmatprep.subr.mxu0 0.0
    %114 = vmatpush1.msra.mxu0 0.0
    %115 = vmatprep.subr.mxu0 0.0
    %116 = vmatpush1.msra.mxu0 0.0
    %117 = vmatprep.subr.mxu0 0.0
    %118 = vmatpush1.msra.mxu0 0.0
    %119 = vmatprep.subr.mxu0 0.0
    %120 = vmatpush1.msra.mxu0 0.0
    %121 = vmatprep.mubr.f32.mxu0 0.0
    %122 = vmatmul.mubr.f32.gmra.mrb[0].mxu0 %v48
    %v123 = vpop.f32.mrb[0].mxu0
    %v124 = vadd.f32 %v43, %v123
    %v125 = vpop.f32.mrb[0].mxu0
    %126 = vmatprep.mubr.f32.mxu0 0.0
    %127 = vmatmul.mubr.f32.gmra.mrb[0].mxu0 %v51
    %v128 = vpop.f32.mrb[0].mxu0
    %v129 = vadd.f32 %v44, %v128
    %v130 = vpop.f32.mrb[0].mxu0
    %131 = vdwg.mxu0
    %v132 = vld [vmem:[%s4 + $0xa] sm:$0x1]
    %v133 = vlaneseq
    %v134 = vshrl.u32 %v133, 7
    %v135 = vsub.s32 0, %v134
    %v136 = vrot.slane %v132, %v135
    %v137 = vadd.f32 %v124, %v136
    %v138 = vadd.f32 %v129, %v136
    %v139 = vld [vmem:[%s4 + $0xb] sm:$0x1]
    %v140 = vld [vmem:[%s4 + $0xc] sm:$0x1]
    %vm141 = vcmask 261120
    %v142 = vsel %vm141, %v137, 0.0
    %143 = vadd.xlane.f32.xlu0 %v142
    %v144 = vpop.xlane.xlu0 %143
    %v145 = vsel %vm141, %v138, 0.0
    %146 = vadd.xlane.f32.xlu0 %v145
    %v147 = vpop.xlane.xlu0 %146
    %v148 = vrcp.pop 32.0
    %v149 = vmul.f32 %v144, %v148
    %v150 = vmul.f32 %v147, %v148
    %v151 = vsub.f32 %v137, %v149
    %v152 = vsub.f32 %v138, %v150
    %v153 = vmul.f32 %v151, %v151
    %v154 = vmul.f32 %v152, %v152
    %v155 = vsel %vm141, %v153, 0.0
    %156 = vadd.xlane.f32.xlu0 %v155
    %v157 = vpop.xlane.xlu0 %156
    %v158 = vsel %vm141, %v154, 0.0
    %159 = vadd.xlane.f32.xlu0 %v158
    %v160 = vpop.xlane.xlu0 %159
    %v161 = vmul.f32 %v157, %v148
    %v162 = vmul.f32 %v160, %v148
    %v163 = vadd.f32 %v161, 1e-05
    %v164 = vadd.f32 %v162, 1e-05
    %v165 = vrsqrt.pop %v163
    %v166 = vrsqrt.pop %v164
    %v167 = vmul.f32 %v151, %v165
    %v168 = vmul.f32 %v152, %v166
    %v169 = vlaneseq
    %v170 = vshrl.u32 %v169, 7
    %v171 = vsub.s32 0, %v170
    %v172 = vrot.slane %v139, %v171
    %v173 = vmul.f32 %v167, %v172
    %v174 = vmul.f32 %v168, %v172
    %v175 = vlaneseq
    %v176 = vshrl.u32 %v175, 7
    %v177 = vsub.s32 0, %v176
    %v178 = vrot.slane %v140, %v177
    %v179 = vadd.f32 %v173, %v178
    %v180 = vadd.f32 %v174, %v178
    %v181 = vld [vmem:[%s3] sm:$0xf]
    %v182 = vld [vmem:[%s3 + $0x4] sm:$0xf]
    %v183 = vld [vmem:[%s3 + $0x8] sm:$0xf]
    %v184 = vld [vmem:[%s3 + $0xc] sm:$0xf]
    %v185 = vpack.c.bf16 %v180, %v179
    %v190 = vunpack.c.l.b16 %v181
    %v191 = vunpack.c.l.b16 %v182
    %v192 = vunpack.c.l.b16 %v183
    %v193 = vunpack.c.l.b16 %v184
    %v194 = vpack.c.b16 %v191, %v190
    %v195 = vpack.c.b16 %v193, %v192
    %v199 = vsel %vm141, %v185, 0
    %201 = vmatprep.subr.bf16.mxu0 0
    %202 = vmatpush1.bf16.msra.mxu0 %v194
    %203 = vmatprep.subr.bf16.mxu0 0
    %204 = vmatpush1.bf16.msra.mxu0 %v195
    %205 = vmatprep.subr.bf16.mxu0 0
    %206 = vmatpush1.bf16.msra.mxu0 0
    %207 = vmatprep.subr.bf16.mxu0 0
    %208 = vmatpush1.bf16.msra.mxu0 0
    %209 = vmatprep.subr.bf16.mxu0 0
    %210 = vmatpush1.bf16.msra.mxu0 0
    %211 = vmatprep.subr.bf16.mxu0 0
    %212 = vmatpush1.bf16.msra.mxu0 0
    %213 = vmatprep.subr.bf16.mxu0 0
    %214 = vmatpush1.bf16.msra.mxu0 0
    %215 = vmatprep.subr.bf16.mxu0 0
    %216 = vmatpush1.bf16.msra.mxu0 0
    %217 = vmatprep.subr.bf16.mxu0 0
    %218 = vmatpush1.bf16.msra.mxu0 0
    %219 = vmatprep.subr.bf16.mxu0 0
    %220 = vmatpush1.bf16.msra.mxu0 0
    %221 = vmatprep.subr.bf16.mxu0 0
    %222 = vmatpush1.bf16.msra.mxu0 0
    %223 = vmatprep.subr.bf16.mxu0 0
    %224 = vmatpush1.bf16.msra.mxu0 0
    %225 = vmatprep.subr.bf16.mxu0 0
    %226 = vmatpush1.bf16.msra.mxu0 0
    %227 = vmatprep.subr.bf16.mxu0 0
    %228 = vmatpush1.bf16.msra.mxu0 0
    %229 = vmatprep.subr.bf16.mxu0 0
    %230 = vmatpush1.bf16.msra.mxu0 0
    %231 = vmatprep.subr.bf16.mxu0 0
    %232 = vmatpush1.bf16.msra.mxu0 0
    %233 = vmatprep.mubr.bf16.mxu0 0
    %234 = vmatmul.mubr.bf16.gmra.mrb[0].mxu0 %v199
    %v235 = vpop.f32.mrb[0].mxu0
    %v236 = vadd.f32 0.0, %v235
    %v237 = vpop.f32.mrb[0].mxu0
    %v238 = vpop.f32.mrb[0].mxu0
    %v239 = vadd.f32 0.0, %v238
    %v240 = vpop.f32.mrb[0].mxu0
    %241 = vdwg.mxu0
    %v242 = vld [vmem:[%s3 + $0x10] sm:$0xf]
    %v243 = vld [vmem:[%s3 + $0x14] sm:$0xf]
    %v244 = vld [vmem:[%s3 + $0x18] sm:$0xf]
    %v245 = vld [vmem:[%s3 + $0x1c] sm:$0xf]
    %v250 = vunpack.c.l.b16 %v242
    %v251 = vunpack.c.l.b16 %v243
    %v252 = vunpack.c.l.b16 %v244
    %v253 = vunpack.c.l.b16 %v245
    %v254 = vpack.c.b16 %v251, %v250
    %v255 = vpack.c.b16 %v253, %v252
    %258 = vmatprep.subr.bf16.mxu0 0
    %259 = vmatpush1.bf16.msra.mxu0 %v254
    %260 = vmatprep.subr.bf16.mxu0 0
    %261 = vmatpush1.bf16.msra.mxu0 %v255
    %262 = vmatprep.subr.bf16.mxu0 0
    %263 = vmatpush1.bf16.msra.mxu0 0
    %264 = vmatprep.subr.bf16.mxu0 0
    %265 = vmatpush1.bf16.msra.mxu0 0
    %266 = vmatprep.subr.bf16.mxu0 0
    %267 = vmatpush1.bf16.msra.mxu0 0
    %268 = vmatprep.subr.bf16.mxu0 0
    %269 = vmatpush1.bf16.msra.mxu0 0
    %270 = vmatprep.subr.bf16.mxu0 0
    %271 = vmatpush1.bf16.msra.mxu0 0
    %272 = vmatprep.subr.bf16.mxu0 0
    %273 = vmatpush1.bf16.msra.mxu0 0
    %274 = vmatprep.subr.bf16.mxu0 0
    %275 = vmatpush1.bf16.msra.mxu0 0
    %276 = vmatprep.subr.bf16.mxu0 0
    %277 = vmatpush1.bf16.msra.mxu0 0
    %278 = vmatprep.subr.bf16.mxu0 0
    %279 = vmatpush1.bf16.msra.mxu0 0
    %280 = vmatprep.subr.bf16.mxu0 0
    %281 = vmatpush1.bf16.msra.mxu0 0
    %282 = vmatprep.subr.bf16.mxu0 0
    %283 = vmatpush1.bf16.msra.mxu0 0
    %284 = vmatprep.subr.bf16.mxu0 0
    %285 = vmatpush1.bf16.msra.mxu0 0
    %286 = vmatprep.subr.bf16.mxu0 0
    %287 = vmatpush1.bf16.msra.mxu0 0
    %288 = vmatprep.subr.bf16.mxu0 0
    %289 = vmatpush1.bf16.msra.mxu0 0
    %290 = vmatprep.mubr.bf16.mxu0 0
    %291 = vmatmul.mubr.bf16.gmra.mrb[0].mxu0 %v199
    %v292 = vpop.f32.mrb[0].mxu0
    %v293 = vadd.f32 0.0, %v292
    %v294 = vpop.f32.mrb[0].mxu0
    %v295 = vpop.f32.mrb[0].mxu0
    %v296 = vadd.f32 0.0, %v295
    %v297 = vpop.f32.mrb[0].mxu0
    %298 = vdwg.mxu0
    %v299 = vld [vmem:[%s3 + $0x20] sm:$0xf]
    %v300 = vld [vmem:[%s3 + $0x24] sm:$0xf]
    %v301 = vld [vmem:[%s3 + $0x28] sm:$0xf]
    %v302 = vld [vmem:[%s3 + $0x2c] sm:$0xf]
    %v307 = vunpack.c.l.b16 %v299
    %v308 = vunpack.c.l.b16 %v300
    %v309 = vunpack.c.l.b16 %v301
    %v310 = vunpack.c.l.b16 %v302
    %v311 = vpack.c.b16 %v308, %v307
    %v312 = vpack.c.b16 %v310, %v309
    %315 = vmatprep.subr.bf16.mxu0 0
    %316 = vmatpush1.bf16.msra.mxu0 %v311
    %317 = vmatprep.subr.bf16.mxu0 0
    %318 = vmatpush1.bf16.msra.mxu0 %v312
    %319 = vmatprep.subr.bf16.mxu0 0
    %320 = vmatpush1.bf16.msra.mxu0 0
    %321 = vmatprep.subr.bf16.mxu0 0
    %322 = vmatpush1.bf16.msra.mxu0 0
    %323 = vmatprep.subr.bf16.mxu0 0
    %324 = vmatpush1.bf16.msra.mxu0 0
    %325 = vmatprep.subr.bf16.mxu0 0
    %326 = vmatpush1.bf16.msra.mxu0 0
    %327 = vmatprep.subr.bf16.mxu0 0
    %328 = vmatpush1.bf16.msra.mxu0 0
    %329 = vmatprep.subr.bf16.mxu0 0
    %330 = vmatpush1.bf16.msra.mxu0 0
    %331 = vmatprep.subr.bf16.mxu0 0
    %332 = vmatpush1.bf16.msra.mxu0 0
    %333 = vmatprep.subr.bf16.mxu0 0
    %334 = vmatpush1.bf16.msra.mxu0 0
    %335 = vmatprep.subr.bf16.mxu0 0
    %336 = vmatpush1.bf16.msra.mxu0 0
    %337 = vmatprep.subr.bf16.mxu0 0
    %338 = vmatpush1.bf16.msra.mxu0 0
    %339 = vmatprep.subr.bf16.mxu0 0
    %340 = vmatpush1.bf16.msra.mxu0 0
    %341 = vmatprep.subr.bf16.mxu0 0
    %342 = vmatpush1.bf16.msra.mxu0 0
    %343 = vmatprep.subr.bf16.mxu0 0
    %344 = vmatpush1.bf16.msra.mxu0 0
    %345 = vmatprep.subr.bf16.mxu0 0
    %346 = vmatpush1.bf16.msra.mxu0 0
    %347 = vmatprep.mubr.bf16.mxu0 0
    %348 = vmatmul.mubr.bf16.gmra.mrb[0].mxu0 %v199
    %v349 = vpop.f32.mrb[0].mxu0
    %v350 = vadd.f32 0.0, %v349
    %v351 = vpop.f32.mrb[0].mxu0
    %v352 = vpop.f32.mrb[0].mxu0
    %v353 = vadd.f32 0.0, %v352
    %v354 = vpop.f32.mrb[0].mxu0
    %355 = vdwg.mxu0
    %v356 = vmul.f32 %v350, 0.35355338
    %v357 = vmul.f32 %v353, 0.35355338
    %v358 = vpack.c.bf16 %v356, %v356
    %v359 = vpack.c.bf16 %v236, %v236
    %vm360 = vcmask 64512
    %v362 = vsel %vm360, %v358, 0
    %v365 = vsel %vm360, %v359, 0
    %367 = vmatprep.subr.bf16.mxu0 0
    %368 = vmatpush1.bf16.xpose.msra.mxu0 %v365
    %369 = vmatprep.subr.bf16.mxu0 0
    %370 = vmatpush1.bf16.xpose.msra.mxu0 0
    %371 = vmatprep.subr.bf16.mxu0 0
    %372 = vmatpush1.bf16.xpose.msra.mxu0 0
    %373 = vmatprep.subr.bf16.mxu0 0
    %374 = vmatpush1.bf16.xpose.msra.mxu0 0
    %375 = vmatprep.subr.bf16.mxu0 0
    %376 = vmatpush1.bf16.xpose.msra.mxu0 0
    %377 = vmatprep.subr.bf16.mxu0 0
    %378 = vmatpush1.bf16.xpose.msra.mxu0 0
    %379 = vmatprep.subr.bf16.mxu0 0
    %380 = vmatpush1.bf16.xpose.msra.mxu0 0
    %381 = vmatprep.subr.bf16.mxu0 0
    %382 = vmatpush1.bf16.xpose.msra.mxu0 0
    %383 = vmatprep.subr.bf16.mxu0 0
    %384 = vmatpush1.bf16.xpose.msra.mxu0 0
    %385 = vmatprep.subr.bf16.mxu0 0
    %386 = vmatpush1.bf16.xpose.msra.mxu0 0
    %387 = vmatprep.subr.bf16.mxu0 0
    %388 = vmatpush1.bf16.xpose.msra.mxu0 0
    %389 = vmatprep.subr.bf16.mxu0 0
    %390 = vmatpush1.bf16.xpose.msra.mxu0 0
    %391 = vmatprep.subr.bf16.mxu0 0
    %392 = vmatpush1.bf16.xpose.msra.mxu0 0
    %393 = vmatprep.subr.bf16.mxu0 0
    %394 = vmatpush1.bf16.xpose.msra.mxu0 0
    %395 = vmatprep.subr.bf16.mxu0 0
    %396 = vmatpush1.bf16.xpose.msra.mxu0 0
    %397 = vmatprep.subr.bf16.mxu0 0
    %398 = vmatpush1.bf16.xpose.msra.mxu0 0
    %399 = vmatprep.mubr.bf16.mxu0 0
    %400 = vmatmul.mubr.bf16.gmra.mrb[0].mxu0 %v362
    %v401 = vpop.f32.mrb[0].mxu0
    %v402 = vadd.f32 0.0, %v401
    %v403 = vpop.f32.mrb[0].mxu0
    %v404 = vpop.f32.mrb[0].mxu0
    %v405 = vpop.f32.mrb[0].mxu0
    %406 = vdwg.mxu0
    %v407 = vsel %vm360, %v402, -inf
    %408 = vmax.xlane.f32.xlu0 %v407
    %v409 = vpop.xlane.xlu0 %408
    %v410 = vsub.f32 %v402, %v409
    %v411 = vmul.f32 %v410, 1.442695
    %v412 = vpow.pop %v411
    %v413 = vsel %vm360, %v412, 0.0
    %414 = vadd.xlane.f32.xlu0 %v413
    %v415 = vpop.xlane.xlu0 %414
    %v416 = vrcp.pop %v415
    %v417 = vmul.f32 %v412, %v416
    %v418 = vpack.c.bf16 %v417, %v417
    %v419 = vpack.c.bf16 %v293, %v293
    %v421 = vsel %vm360, %v418, 0
    %vm423 = vcmask 1043456
    %v425 = vsel %vm423, %v419, 0
    %427 = vmatprep.subr.bf16.mxu0 0
    %428 = vmatpush1.bf16.msra.mxu0 %v425
    %429 = vmatprep.subr.bf16.mxu0 0
    %430 = vmatpush1.bf16.msra.mxu0 0
    %431 = vmatprep.subr.bf16.mxu0 0
    %432 = vmatpush1.bf16.msra.mxu0 0
    %433 = vmatprep.subr.bf16.mxu0 0
    %434 = vmatpush1.bf16.msra.mxu0 0
    %435 = vmatprep.subr.bf16.mxu0 0
    %436 = vmatpush1.bf16.msra.mxu0 0
    %437 = vmatprep.subr.bf16.mxu0 0
    %438 = vmatpush1.bf16.msra.mxu0 0
    %439 = vmatprep.subr.bf16.mxu0 0
    %440 = vmatpush1.bf16.msra.mxu0 0
    %441 = vmatprep.subr.bf16.mxu0 0
    %442 = vmatpush1.bf16.msra.mxu0 0
    %443 = vmatprep.subr.bf16.mxu0 0
    %444 = vmatpush1.bf16.msra.mxu0 0
    %445 = vmatprep.subr.bf16.mxu0 0
    %446 = vmatpush1.bf16.msra.mxu0 0
    %447 = vmatprep.subr.bf16.mxu0 0
    %448 = vmatpush1.bf16.msra.mxu0 0
    %449 = vmatprep.subr.bf16.mxu0 0
    %450 = vmatpush1.bf16.msra.mxu0 0
    %451 = vmatprep.subr.bf16.mxu0 0
    %452 = vmatpush1.bf16.msra.mxu0 0
    %453 = vmatprep.subr.bf16.mxu0 0
    %454 = vmatpush1.bf16.msra.mxu0 0
    %455 = vmatprep.subr.bf16.mxu0 0
    %456 = vmatpush1.bf16.msra.mxu0 0
    %457 = vmatprep.subr.bf16.mxu0 0
    %458 = vmatpush1.bf16.msra.mxu0 0
    %459 = vmatprep.mubr.bf16.mxu0 0
    %460 = vmatmul.mubr.bf16.gmra.mrb[0].mxu0 %v421
    %v461 = vpop.f32.mrb[0].mxu0
    %v462 = vadd.f32 0.0, %v461
    %v463 = vpop.f32.mrb[0].mxu0
    %v464 = vpop.f32.mrb[0].mxu0
    %v465 = vpop.f32.mrb[0].mxu0
    %466 = vdwg.mxu0
    %468 = vrot.lane.b32.xlu0 %v358, 120
    %v469 = vpop.permute.xlu0 %468
    %471 = vrot.lane.b32.xlu0 %v359, 120
    %v472 = vpop.permute.xlu0 %471
    %v474 = vsel %vm360, %v469, 0
    %v477 = vsel %vm360, %v472, 0
    %479 = vmatprep.subr.bf16.mxu0 0
    %480 = vmatpush1.bf16.xpose.msra.mxu0 %v477
    %481 = vmatprep.subr.bf16.mxu0 0
    %482 = vmatpush1.bf16.xpose.msra.mxu0 0
    %483 = vmatprep.subr.bf16.mxu0 0
    %484 = vmatpush1.bf16.xpose.msra.mxu0 0
    %485 = vmatprep.subr.bf16.mxu0 0
    %486 = vmatpush1.bf16.xpose.msra.mxu0 0
    %487 = vmatprep.subr.bf16.mxu0 0
    %488 = vmatpush1.bf16.xpose.msra.mxu0 0
    %489 = vmatprep.subr.bf16.mxu0 0
    %490 = vmatpush1.bf16.xpose.msra.mxu0 0
    %491 = vmatprep.subr.bf16.mxu0 0
    %492 = vmatpush1.bf16.xpose.msra.mxu0 0
    %493 = vmatprep.subr.bf16.mxu0 0
    %494 = vmatpush1.bf16.xpose.msra.mxu0 0
    %495 = vmatprep.subr.bf16.mxu0 0
    %496 = vmatpush1.bf16.xpose.msra.mxu0 0
    %497 = vmatprep.subr.bf16.mxu0 0
    %498 = vmatpush1.bf16.xpose.msra.mxu0 0
    %499 = vmatprep.subr.bf16.mxu0 0
    %500 = vmatpush1.bf16.xpose.msra.mxu0 0
    %501 = vmatprep.subr.bf16.mxu0 0
    %502 = vmatpush1.bf16.xpose.msra.mxu0 0
    %503 = vmatprep.subr.bf16.mxu0 0
    %504 = vmatpush1.bf16.xpose.msra.mxu0 0
    %505 = vmatprep.subr.bf16.mxu0 0
    %506 = vmatpush1.bf16.xpose.msra.mxu0 0
    %507 = vmatprep.subr.bf16.mxu0 0
    %508 = vmatpush1.bf16.xpose.msra.mxu0 0
    %509 = vmatprep.subr.bf16.mxu0 0
    %510 = vmatpush1.bf16.xpose.msra.mxu0 0
    %511 = vmatprep.mubr.bf16.mxu0 0
    %512 = vmatmul.mubr.bf16.gmra.mrb[0].mxu0 %v474
    %v513 = vpop.f32.mrb[0].mxu0
    %v514 = vadd.f32 0.0, %v513
    %v515 = vpop.f32.mrb[0].mxu0
    %v516 = vpop.f32.mrb[0].mxu0
    %v517 = vpop.f32.mrb[0].mxu0
    %518 = vdwg.mxu0
    %v519 = vsel %vm360, %v514, -inf
    %520 = vmax.xlane.f32.xlu0 %v519
    %v521 = vpop.xlane.xlu0 %520
    %v522 = vsub.f32 %v514, %v521
    %v523 = vmul.f32 %v522, 1.442695
    %v524 = vpow.pop %v523
    %v525 = vsel %vm360, %v524, 0.0
    %526 = vadd.xlane.f32.xlu0 %v525
    %v527 = vpop.xlane.xlu0 %526
    %v528 = vrcp.pop %v527
    %v529 = vmul.f32 %v524, %v528
    %v530 = vpack.c.bf16 %v529, %v529
    %532 = vrot.lane.b32.xlu0 %v419, 120
    %v533 = vpop.permute.xlu0 %532
    %v535 = vsel %vm360, %v530, 0
    %v538 = vsel %vm423, %v533, 0
    %540 = vmatprep.subr.bf16.mxu0 0
    %541 = vmatpush1.bf16.msra.mxu0 %v538
    %542 = vmatprep.subr.bf16.mxu0 0
    %543 = vmatpush1.bf16.msra.mxu0 0
    %544 = vmatprep.subr.bf16.mxu0 0
    %545 = vmatpush1.bf16.msra.mxu0 0
    %546 = vmatprep.subr.bf16.mxu0 0
    %547 = vmatpush1.bf16.msra.mxu0 0
    %548 = vmatprep.subr.bf16.mxu0 0
    %549 = vmatpush1.bf16.msra.mxu0 0
    %550 = vmatprep.subr.bf16.mxu0 0
    %551 = vmatpush1.bf16.msra.mxu0 0
    %552 = vmatprep.subr.bf16.mxu0 0
    %553 = vmatpush1.bf16.msra.mxu0 0
    %554 = vmatprep.subr.bf16.mxu0 0
    %555 = vmatpush1.bf16.msra.mxu0 0
    %556 = vmatprep.subr.bf16.mxu0 0
    %557 = vmatpush1.bf16.msra.mxu0 0
    %558 = vmatprep.subr.bf16.mxu0 0
    %559 = vmatpush1.bf16.msra.mxu0 0
    %560 = vmatprep.subr.bf16.mxu0 0
    %561 = vmatpush1.bf16.msra.mxu0 0
    %562 = vmatprep.subr.bf16.mxu0 0
    %563 = vmatpush1.bf16.msra.mxu0 0
    %564 = vmatprep.subr.bf16.mxu0 0
    %565 = vmatpush1.bf16.msra.mxu0 0
    %566 = vmatprep.subr.bf16.mxu0 0
    %567 = vmatpush1.bf16.msra.mxu0 0
    %568 = vmatprep.subr.bf16.mxu0 0
    %569 = vmatpush1.bf16.msra.mxu0 0
    %570 = vmatprep.subr.bf16.mxu0 0
    %571 = vmatpush1.bf16.msra.mxu0 0
    %572 = vmatprep.mubr.bf16.mxu0 0
    %573 = vmatmul.mubr.bf16.gmra.mrb[0].mxu0 %v535
    %v574 = vpop.f32.mrb[0].mxu0
    %v575 = vadd.f32 0.0, %v574
    %v576 = vpop.f32.mrb[0].mxu0
    %v577 = vpop.f32.mrb[0].mxu0
    %v578 = vpop.f32.mrb[0].mxu0
    %579 = vdwg.mxu0
    %580 = vrot.lane.b32.xlu0 %v358, 112
    %v581 = vpop.permute.xlu0 %580
    %582 = vrot.lane.b32.xlu0 %v359, 112
    %v583 = vpop.permute.xlu0 %582
    %v585 = vsel %vm360, %v581, 0
    %v588 = vsel %vm360, %v583, 0
    %590 = vmatprep.subr.bf16.mxu0 0
    %591 = vmatpush1.bf16.xpose.msra.mxu0 %v588
    %592 = vmatprep.subr.bf16.mxu0 0
    %593 = vmatpush1.bf16.xpose.msra.mxu0 0
    %594 = vmatprep.subr.bf16.mxu0 0
    %595 = vmatpush1.bf16.xpose.msra.mxu0 0
    %596 = vmatprep.subr.bf16.mxu0 0
    %597 = vmatpush1.bf16.xpose.msra.mxu0 0
    %598 = vmatprep.subr.bf16.mxu0 0
    %599 = vmatpush1.bf16.xpose.msra.mxu0 0
    %600 = vmatprep.subr.bf16.mxu0 0
    %601 = vmatpush1.bf16.xpose.msra.mxu0 0
    %602 = vmatprep.subr.bf16.mxu0 0
    %603 = vmatpush1.bf16.xpose.msra.mxu0 0
    %604 = vmatprep.subr.bf16.mxu0 0
    %605 = vmatpush1.bf16.xpose.msra.mxu0 0
    %606 = vmatprep.subr.bf16.mxu0 0
    %607 = vmatpush1.bf16.xpose.msra.mxu0 0
    %608 = vmatprep.subr.bf16.mxu0 0
    %609 = vmatpush1.bf16.xpose.msra.mxu0 0
    %610 = vmatprep.subr.bf16.mxu0 0
    %611 = vmatpush1.bf16.xpose.msra.mxu0 0
    %612 = vmatprep.subr.bf16.mxu0 0
    %613 = vmatpush1.bf16.xpose.msra.mxu0 0
    %614 = vmatprep.subr.bf16.mxu0 0
    %615 = vmatpush1.bf16.xpose.msra.mxu0 0
    %616 = vmatprep.subr.bf16.mxu0 0
    %617 = vmatpush1.bf16.xpose.msra.mxu0 0
    %618 = vmatprep.subr.bf16.mxu0 0
    %619 = vmatpush1.bf16.xpose.msra.mxu0 0
    %620 = vmatprep.subr.bf16.mxu0 0
    %621 = vmatpush1.bf16.xpose.msra.mxu0 0
    %622 = vmatprep.mubr.bf16.mxu0 0
    %623 = vmatmul.mubr.bf16.gmra.mrb[0].mxu0 %v585
    %v624 = vpop.f32.mrb[0].mxu0
    %v625 = vadd.f32 0.0, %v624
    %v626 = vpop.f32.mrb[0].mxu0
    %v627 = vpop.f32.mrb[0].mxu0
    %v628 = vpop.f32.mrb[0].mxu0
    %629 = vdwg.mxu0
    %v630 = vsel %vm360, %v625, -inf
    %631 = vmax.xlane.f32.xlu0 %v630
    %v632 = vpop.xlane.xlu0 %631
    %v633 = vsub.f32 %v625, %v632
    %v634 = vmul.f32 %v633, 1.442695
    %v635 = vpow.pop %v634
    %v636 = vsel %vm360, %v635, 0.0
    %637 = vadd.xlane.f32.xlu0 %v636
    %v638 = vpop.xlane.xlu0 %637
    %v639 = vrcp.pop %v638
    %v640 = vmul.f32 %v635, %v639
    %v641 = vpack.c.bf16 %v640, %v640
    %642 = vrot.lane.b32.xlu0 %v419, 112
    %v643 = vpop.permute.xlu0 %642
    %v645 = vsel %vm360, %v641, 0
    %v648 = vsel %vm423, %v643, 0
    %650 = vmatprep.subr.bf16.mxu0 0
    %651 = vmatpush1.bf16.msra.mxu0 %v648
    %652 = vmatprep.subr.bf16.mxu0 0
    %653 = vmatpush1.bf16.msra.mxu0 0
    %654 = vmatprep.subr.bf16.mxu0 0
    %655 = vmatpush1.bf16.msra.mxu0 0
    %656 = vmatprep.subr.bf16.mxu0 0
    %657 = vmatpush1.bf16.msra.mxu0 0
    %658 = vmatprep.subr.bf16.mxu0 0
    %659 = vmatpush1.bf16.msra.mxu0 0
    %660 = vmatprep.subr.bf16.mxu0 0
    %661 = vmatpush1.bf16.msra.mxu0 0
    %662 = vmatprep.subr.bf16.mxu0 0
    %663 = vmatpush1.bf16.msra.mxu0 0
    %664 = vmatprep.subr.bf16.mxu0 0
    %665 = vmatpush1.bf16.msra.mxu0 0
    %666 = vmatprep.subr.bf16.mxu0 0
    %667 = vmatpush1.bf16.msra.mxu0 0
    %668 = vmatprep.subr.bf16.mxu0 0
    %669 = vmatpush1.bf16.msra.mxu0 0
    %670 = vmatprep.subr.bf16.mxu0 0
    %671 = vmatpush1.bf16.msra.mxu0 0
    %672 = vmatprep.subr.bf16.mxu0 0
    %673 = vmatpush1.bf16.msra.mxu0 0
    %674 = vmatprep.subr.bf16.mxu0 0
    %675 = vmatpush1.bf16.msra.mxu0 0
    %676 = vmatprep.subr.bf16.mxu0 0
    %677 = vmatpush1.bf16.msra.mxu0 0
    %678 = vmatprep.subr.bf16.mxu0 0
    %679 = vmatpush1.bf16.msra.mxu0 0
    %680 = vmatprep.subr.bf16.mxu0 0
    %681 = vmatpush1.bf16.msra.mxu0 0
    %682 = vmatprep.mubr.bf16.mxu0 0
    %683 = vmatmul.mubr.bf16.gmra.mrb[0].mxu0 %v645
    %v684 = vpop.f32.mrb[0].mxu0
    %v685 = vadd.f32 0.0, %v684
    %v686 = vpop.f32.mrb[0].mxu0
    %v687 = vpop.f32.mrb[0].mxu0
    %v688 = vpop.f32.mrb[0].mxu0
    %689 = vdwg.mxu0
    %690 = vrot.lane.b32.xlu0 %v358, 104
    %v691 = vpop.permute.xlu0 %690
    %692 = vrot.lane.b32.xlu0 %v359, 104
    %v693 = vpop.permute.xlu0 %692
    %v695 = vsel %vm360, %v691, 0
    %v698 = vsel %vm360, %v693, 0
    %700 = vmatprep.subr.bf16.mxu0 0
    %701 = vmatpush1.bf16.xpose.msra.mxu0 %v698
    %702 = vmatprep.subr.bf16.mxu0 0
    %703 = vmatpush1.bf16.xpose.msra.mxu0 0
    %704 = vmatprep.subr.bf16.mxu0 0
    %705 = vmatpush1.bf16.xpose.msra.mxu0 0
    %706 = vmatprep.subr.bf16.mxu0 0
    %707 = vmatpush1.bf16.xpose.msra.mxu0 0
    %708 = vmatprep.subr.bf16.mxu0 0
    %709 = vmatpush1.bf16.xpose.msra.mxu0 0
    %710 = vmatprep.subr.bf16.mxu0 0
    %711 = vmatpush1.bf16.xpose.msra.mxu0 0
    %712 = vmatprep.subr.bf16.mxu0 0
    %713 = vmatpush1.bf16.xpose.msra.mxu0 0
    %714 = vmatprep.subr.bf16.mxu0 0
    %715 = vmatpush1.bf16.xpose.msra.mxu0 0
    %716 = vmatprep.subr.bf16.mxu0 0
    %717 = vmatpush1.bf16.xpose.msra.mxu0 0
    %718 = vmatprep.subr.bf16.mxu0 0
    %719 = vmatpush1.bf16.xpose.msra.mxu0 0
    %720 = vmatprep.subr.bf16.mxu0 0
    %721 = vmatpush1.bf16.xpose.msra.mxu0 0
    %722 = vmatprep.subr.bf16.mxu0 0
    %723 = vmatpush1.bf16.xpose.msra.mxu0 0
    %724 = vmatprep.subr.bf16.mxu0 0
    %725 = vmatpush1.bf16.xpose.msra.mxu0 0
    %726 = vmatprep.subr.bf16.mxu0 0
    %727 = vmatpush1.bf16.xpose.msra.mxu0 0
    %728 = vmatprep.subr.bf16.mxu0 0
    %729 = vmatpush1.bf16.xpose.msra.mxu0 0
    %730 = vmatprep.subr.bf16.mxu0 0
    %731 = vmatpush1.bf16.xpose.msra.mxu0 0
    %732 = vmatprep.mubr.bf16.mxu0 0
    %733 = vmatmul.mubr.bf16.gmra.mrb[0].mxu0 %v695
    %v734 = vpop.f32.mrb[0].mxu0
    %v735 = vadd.f32 0.0, %v734
    %v736 = vpop.f32.mrb[0].mxu0
    %v737 = vpop.f32.mrb[0].mxu0
    %v738 = vpop.f32.mrb[0].mxu0
    %739 = vdwg.mxu0
    %v740 = vsel %vm360, %v735, -inf
    %741 = vmax.xlane.f32.xlu0 %v740
    %v742 = vpop.xlane.xlu0 %741
    %v743 = vsub.f32 %v735, %v742
    %v744 = vmul.f32 %v743, 1.442695
    %v745 = vpow.pop %v744
    %v746 = vsel %vm360, %v745, 0.0
    %747 = vadd.xlane.f32.xlu0 %v746
    %v748 = vpop.xlane.xlu0 %747
    %v749 = vrcp.pop %v748
    %v750 = vmul.f32 %v745, %v749
    %v751 = vpack.c.bf16 %v750, %v750
    %752 = vrot.lane.b32.xlu0 %v419, 104
    %v753 = vpop.permute.xlu0 %752
    %v755 = vsel %vm360, %v751, 0
    %v758 = vsel %vm423, %v753, 0
    %760 = vmatprep.subr.bf16.mxu0 0
    %761 = vmatpush1.bf16.msra.mxu0 %v758
    %762 = vmatprep.subr.bf16.mxu0 0
    %763 = vmatpush1.bf16.msra.mxu0 0
    %764 = vmatprep.subr.bf16.mxu0 0
    %765 = vmatpush1.bf16.msra.mxu0 0
    %766 = vmatprep.subr.bf16.mxu0 0
    %767 = vmatpush1.bf16.msra.mxu0 0
    %768 = vmatprep.subr.bf16.mxu0 0
    %769 = vmatpush1.bf16.msra.mxu0 0
    %770 = vmatprep.subr.bf16.mxu0 0
    %771 = vmatpush1.bf16.msra.mxu0 0
    %772 = vmatprep.subr.bf16.mxu0 0
    %773 = vmatpush1.bf16.msra.mxu0 0
    %774 = vmatprep.subr.bf16.mxu0 0
    %775 = vmatpush1.bf16.msra.mxu0 0
    %776 = vmatprep.subr.bf16.mxu0 0
    %777 = vmatpush1.bf16.msra.mxu0 0
    %778 = vmatprep.subr.bf16.mxu0 0
    %779 = vmatpush1.bf16.msra.mxu0 0
    %780 = vmatprep.subr.bf16.mxu0 0
    %781 = vmatpush1.bf16.msra.mxu0 0
    %782 = vmatprep.subr.bf16.mxu0 0
    %783 = vmatpush1.bf16.msra.mxu0 0
    %784 = vmatprep.subr.bf16.mxu0 0
    %785 = vmatpush1.bf16.msra.mxu0 0
    %786 = vmatprep.subr.bf16.mxu0 0
    %787 = vmatpush1.bf16.msra.mxu0 0
    %788 = vmatprep.subr.bf16.mxu0 0
    %789 = vmatpush1.bf16.msra.mxu0 0
    %790 = vmatprep.subr.bf16.mxu0 0
    %791 = vmatpush1.bf16.msra.mxu0 0
    %792 = vmatprep.mubr.bf16.mxu0 0
    %793 = vmatmul.mubr.bf16.gmra.mrb[0].mxu0 %v755
    %v794 = vpop.f32.mrb[0].mxu0
    %v795 = vadd.f32 0.0, %v794
    %v796 = vpop.f32.mrb[0].mxu0
    %v797 = vpop.f32.mrb[0].mxu0
    %v798 = vpop.f32.mrb[0].mxu0
    %799 = vdwg.mxu0
    %801 = vrot.lane.b32.xlu0 %v575, 8
    %v802 = vpop.permute.xlu0 %801
    %805 = vrot.lane.b32.xlu0 %v685, 16
    %v806 = vpop.permute.xlu0 %805
    %809 = vrot.lane.b32.xlu0 %v795, 24
    %v810 = vpop.permute.xlu0 %809
    %v812 = vsel %vm360, %v462, %v802
    %vm813 = vcmask 130048
    %v814 = vsel %vm813, %v812, %v806
    %vm815 = vcmask 195584
    %v816 = vsel %vm815, %v814, %v810
    %v817 = vpack.c.bf16 %v357, %v357
    %v818 = vpack.c.bf16 %v239, %v239
    %v820 = vsel %vm360, %v817, 0
    %v823 = vsel %vm360, %v818, 0
    %825 = vmatprep.subr.bf16.mxu0 0
    %826 = vmatpush1.bf16.xpose.msra.mxu0 %v823
    %827 = vmatprep.subr.bf16.mxu0 0
    %828 = vmatpush1.bf16.xpose.msra.mxu0 0
    %829 = vmatprep.subr.bf16.mxu0 0
    %830 = vmatpush1.bf16.xpose.msra.mxu0 0
    %831 = vmatprep.subr.bf16.mxu0 0
    %832 = vmatpush1.bf16.xpose.msra.mxu0 0
    %833 = vmatprep.subr.bf16.mxu0 0
    %834 = vmatpush1.bf16.xpose.msra.mxu0 0
    %835 = vmatprep.subr.bf16.mxu0 0
    %836 = vmatpush1.bf16.xpose.msra.mxu0 0
    %837 = vmatprep.subr.bf16.mxu0 0
    %838 = vmatpush1.bf16.xpose.msra.mxu0 0
    %839 = vmatprep.subr.bf16.mxu0 0
    %840 = vmatpush1.bf16.xpose.msra.mxu0 0
    %841 = vmatprep.subr.bf16.mxu0 0
    %842 = vmatpush1.bf16.xpose.msra.mxu0 0
    %843 = vmatprep.subr.bf16.mxu0 0
    %844 = vmatpush1.bf16.xpose.msra.mxu0 0
    %845 = vmatprep.subr.bf16.mxu0 0
    %846 = vmatpush1.bf16.xpose.msra.mxu0 0
    %847 = vmatprep.subr.bf16.mxu0 0
    %848 = vmatpush1.bf16.xpose.msra.mxu0 0
    %849 = vmatprep.subr.bf16.mxu0 0
    %850 = vmatpush1.bf16.xpose.msra.mxu0 0
    %851 = vmatprep.subr.bf16.mxu0 0
    %852 = vmatpush1.bf16.xpose.msra.mxu0 0
    %853 = vmatprep.subr.bf16.mxu0 0
    %854 = vmatpush1.bf16.xpose.msra.mxu0 0
    %855 = vmatprep.subr.bf16.mxu0 0
    %856 = vmatpush1.bf16.xpose.msra.mxu0 0
    %857 = vmatprep.mubr.bf16.mxu0 0
    %858 = vmatmul.mubr.bf16.gmra.mrb[0].mxu0 %v820
    %v859 = vpop.f32.mrb[0].mxu0
    %v860 = vadd.f32 0.0, %v859
    %v861 = vpop.f32.mrb[0].mxu0
    %v862 = vpop.f32.mrb[0].mxu0
    %v863 = vpop.f32.mrb[0].mxu0
    %864 = vdwg.mxu0
    %v865 = vsel %vm360, %v860, -inf
    %866 = vmax.xlane.f32.xlu0 %v865
    %v867 = vpop.xlane.xlu0 %866
    %v868 = vsub.f32 %v860, %v867
    %v869 = vmul.f32 %v868, 1.442695
    %v870 = vpow.pop %v869
    %v871 = vsel %vm360, %v870, 0.0
    %872 = vadd.xlane.f32.xlu0 %v871
    %v873 = vpop.xlane.xlu0 %872
    %v874 = vrcp.pop %v873
    %v875 = vmul.f32 %v870, %v874
    %v876 = vpack.c.bf16 %v875, %v875
    %v877 = vpack.c.bf16 %v296, %v296
    %v879 = vsel %vm360, %v876, 0
    %v882 = vsel %vm423, %v877, 0
    %884 = vmatprep.subr.bf16.mxu0 0
    %885 = vmatpush1.bf16.msra.mxu0 %v882
    %886 = vmatprep.subr.bf16.mxu0 0
    %887 = vmatpush1.bf16.msra.mxu0 0
    %888 = vmatprep.subr.bf16.mxu0 0
    %889 = vmatpush1.bf16.msra.mxu0 0
    %890 = vmatprep.subr.bf16.mxu0 0
    %891 = vmatpush1.bf16.msra.mxu0 0
    %892 = vmatprep.subr.bf16.mxu0 0
    %893 = vmatpush1.bf16.msra.mxu0 0
    %894 = vmatprep.subr.bf16.mxu0 0
    %895 = vmatpush1.bf16.msra.mxu0 0
    %896 = vmatprep.subr.bf16.mxu0 0
    %897 = vmatpush1.bf16.msra.mxu0 0
    %898 = vmatprep.subr.bf16.mxu0 0
    %899 = vmatpush1.bf16.msra.mxu0 0
    %900 = vmatprep.subr.bf16.mxu0 0
    %901 = vmatpush1.bf16.msra.mxu0 0
    %902 = vmatprep.subr.bf16.mxu0 0
    %903 = vmatpush1.bf16.msra.mxu0 0
    %904 = vmatprep.subr.bf16.mxu0 0
    %905 = vmatpush1.bf16.msra.mxu0 0
    %906 = vmatprep.subr.bf16.mxu0 0
    %907 = vmatpush1.bf16.msra.mxu0 0
    %908 = vmatprep.subr.bf16.mxu0 0
    %909 = vmatpush1.bf16.msra.mxu0 0
    %910 = vmatprep.subr.bf16.mxu0 0
    %911 = vmatpush1.bf16.msra.mxu0 0
    %912 = vmatprep.subr.bf16.mxu0 0
    %913 = vmatpush1.bf16.msra.mxu0 0
    %914 = vmatprep.subr.bf16.mxu0 0
    %915 = vmatpush1.bf16.msra.mxu0 0
    %916 = vmatprep.mubr.bf16.mxu0 0
    %917 = vmatmul.mubr.bf16.gmra.mrb[0].mxu0 %v879
    %v918 = vpop.f32.mrb[0].mxu0
    %v919 = vadd.f32 0.0, %v918
    %v920 = vpop.f32.mrb[0].mxu0
    %v921 = vpop.f32.mrb[0].mxu0
    %v922 = vpop.f32.mrb[0].mxu0
    %923 = vdwg.mxu0
    %925 = vrot.lane.b32.xlu0 %v817, 120
    %v926 = vpop.permute.xlu0 %925
    %928 = vrot.lane.b32.xlu0 %v818, 120
    %v929 = vpop.permute.xlu0 %928
    %v931 = vsel %vm360, %v926, 0
    %v934 = vsel %vm360, %v929, 0
    %936 = vmatprep.subr.bf16.mxu0 0
    %937 = vmatpush1.bf16.xpose.msra.mxu0 %v934
    %938 = vmatprep.subr.bf16.mxu0 0
    %939 = vmatpush1.bf16.xpose.msra.mxu0 0
    %940 = vmatprep.subr.bf16.mxu0 0
    %941 = vmatpush1.bf16.xpose.msra.mxu0 0
    %942 = vmatprep.subr.bf16.mxu0 0
    %943 = vmatpush1.bf16.xpose.msra.mxu0 0
    %944 = vmatprep.subr.bf16.mxu0 0
    %945 = vmatpush1.bf16.xpose.msra.mxu0 0
    %946 = vmatprep.subr.bf16.mxu0 0
    %947 = vmatpush1.bf16.xpose.msra.mxu0 0
    %948 = vmatprep.subr.bf16.mxu0 0
    %949 = vmatpush1.bf16.xpose.msra.mxu0 0
    %950 = vmatprep.subr.bf16.mxu0 0
    %951 = vmatpush1.bf16.xpose.msra.mxu0 0
    %952 = vmatprep.subr.bf16.mxu0 0
    %953 = vmatpush1.bf16.xpose.msra.mxu0 0
    %954 = vmatprep.subr.bf16.mxu0 0
    %955 = vmatpush1.bf16.xpose.msra.mxu0 0
    %956 = vmatprep.subr.bf16.mxu0 0
    %957 = vmatpush1.bf16.xpose.msra.mxu0 0
    %958 = vmatprep.subr.bf16.mxu0 0
    %959 = vmatpush1.bf16.xpose.msra.mxu0 0
    %960 = vmatprep.subr.bf16.mxu0 0
    %961 = vmatpush1.bf16.xpose.msra.mxu0 0
    %962 = vmatprep.subr.bf16.mxu0 0
    %963 = vmatpush1.bf16.xpose.msra.mxu0 0
    %964 = vmatprep.subr.bf16.mxu0 0
    %965 = vmatpush1.bf16.xpose.msra.mxu0 0
    %966 = vmatprep.subr.bf16.mxu0 0
    %967 = vmatpush1.bf16.xpose.msra.mxu0 0
    %968 = vmatprep.mubr.bf16.mxu0 0
    %969 = vmatmul.mubr.bf16.gmra.mrb[0].mxu0 %v931
    %v970 = vpop.f32.mrb[0].mxu0
    %v971 = vadd.f32 0.0, %v970
    %v972 = vpop.f32.mrb[0].mxu0
    %v973 = vpop.f32.mrb[0].mxu0
    %v974 = vpop.f32.mrb[0].mxu0
    %975 = vdwg.mxu0
    %v976 = vsel %vm360, %v971, -inf
    %977 = vmax.xlane.f32.xlu0 %v976
    %v978 = vpop.xlane.xlu0 %977
    %v979 = vsub.f32 %v971, %v978
    %v980 = vmul.f32 %v979, 1.442695
    %v981 = vpow.pop %v980
    %v982 = vsel %vm360, %v981, 0.0
    %983 = vadd.xlane.f32.xlu0 %v982
    %v984 = vpop.xlane.xlu0 %983
    %v985 = vrcp.pop %v984
    %v986 = vmul.f32 %v981, %v985
    %v987 = vpack.c.bf16 %v986, %v986
    %989 = vrot.lane.b32.xlu0 %v877, 120
    %v990 = vpop.permute.xlu0 %989
    %v992 = vsel %vm360, %v987, 0
    %v995 = vsel %vm423, %v990, 0
    %997 = vmatprep.subr.bf16.mxu0 0
    %998 = vmatpush1.bf16.msra.mxu0 %v995
    %999 = vmatprep.subr.bf16.mxu0 0
    %1000 = vmatpush1.bf16.msra.mxu0 0
    %1001 = vmatprep.subr.bf16.mxu0 0
    %1002 = vmatpush1.bf16.msra.mxu0 0
    %1003 = vmatprep.subr.bf16.mxu0 0
    %1004 = vmatpush1.bf16.msra.mxu0 0
    %1005 = vmatprep.subr.bf16.mxu0 0
    %1006 = vmatpush1.bf16.msra.mxu0 0
    %1007 = vmatprep.subr.bf16.mxu0 0
    %1008 = vmatpush1.bf16.msra.mxu0 0
    %1009 = vmatprep.subr.bf16.mxu0 0
    %1010 = vmatpush1.bf16.msra.mxu0 0
    %1011 = vmatprep.subr.bf16.mxu0 0
    %1012 = vmatpush1.bf16.msra.mxu0 0
    %1013 = vmatprep.subr.bf16.mxu0 0
    %1014 = vmatpush1.bf16.msra.mxu0 0
    %1015 = vmatprep.subr.bf16.mxu0 0
    %1016 = vmatpush1.bf16.msra.mxu0 0
    %1017 = vmatprep.subr.bf16.mxu0 0
    %1018 = vmatpush1.bf16.msra.mxu0 0
    %1019 = vmatprep.subr.bf16.mxu0 0
    %1020 = vmatpush1.bf16.msra.mxu0 0
    %1021 = vmatprep.subr.bf16.mxu0 0
    %1022 = vmatpush1.bf16.msra.mxu0 0
    %1023 = vmatprep.subr.bf16.mxu0 0
    %1024 = vmatpush1.bf16.msra.mxu0 0
    %1025 = vmatprep.subr.bf16.mxu0 0
    %1026 = vmatpush1.bf16.msra.mxu0 0
    %1027 = vmatprep.subr.bf16.mxu0 0
    %1028 = vmatpush1.bf16.msra.mxu0 0
    %1029 = vmatprep.mubr.bf16.mxu0 0
    %1030 = vmatmul.mubr.bf16.gmra.mrb[0].mxu0 %v992
    %v1031 = vpop.f32.mrb[0].mxu0
    %v1032 = vadd.f32 0.0, %v1031
    %v1033 = vpop.f32.mrb[0].mxu0
    %v1034 = vpop.f32.mrb[0].mxu0
    %v1035 = vpop.f32.mrb[0].mxu0
    %1036 = vdwg.mxu0
    %1037 = vrot.lane.b32.xlu0 %v817, 112
    %v1038 = vpop.permute.xlu0 %1037
    %1039 = vrot.lane.b32.xlu0 %v818, 112
    %v1040 = vpop.permute.xlu0 %1039
    %v1042 = vsel %vm360, %v1038, 0
    %v1045 = vsel %vm360, %v1040, 0
    %1047 = vmatprep.subr.bf16.mxu0 0
    %1048 = vmatpush1.bf16.xpose.msra.mxu0 %v1045
    %1049 = vmatprep.subr.bf16.mxu0 0
    %1050 = vmatpush1.bf16.xpose.msra.mxu0 0
    %1051 = vmatprep.subr.bf16.mxu0 0
    %1052 = vmatpush1.bf16.xpose.msra.mxu0 0
    %1053 = vmatprep.subr.bf16.mxu0 0
    %1054 = vmatpush1.bf16.xpose.msra.mxu0 0
    %1055 = vmatprep.subr.bf16.mxu0 0
    %1056 = vmatpush1.bf16.xpose.msra.mxu0 0
    %1057 = vmatprep.subr.bf16.mxu0 0
    %1058 = vmatpush1.bf16.xpose.msra.mxu0 0
    %1059 = vmatprep.subr.bf16.mxu0 0
    %1060 = vmatpush1.bf16.xpose.msra.mxu0 0
    %1061 = vmatprep.subr.bf16.mxu0 0
    %1062 = vmatpush1.bf16.xpose.msra.mxu0 0
    %1063 = vmatprep.subr.bf16.mxu0 0
    %1064 = vmatpush1.bf16.xpose.msra.mxu0 0
    %1065 = vmatprep.subr.bf16.mxu0 0
    %1066 = vmatpush1.bf16.xpose.msra.mxu0 0
    %1067 = vmatprep.subr.bf16.mxu0 0
    %1068 = vmatpush1.bf16.xpose.msra.mxu0 0
    %1069 = vmatprep.subr.bf16.mxu0 0
    %1070 = vmatpush1.bf16.xpose.msra.mxu0 0
    %1071 = vmatprep.subr.bf16.mxu0 0
    %1072 = vmatpush1.bf16.xpose.msra.mxu0 0
    %1073 = vmatprep.subr.bf16.mxu0 0
    %1074 = vmatpush1.bf16.xpose.msra.mxu0 0
    %1075 = vmatprep.subr.bf16.mxu0 0
    %1076 = vmatpush1.bf16.xpose.msra.mxu0 0
    %1077 = vmatprep.subr.bf16.mxu0 0
    %1078 = vmatpush1.bf16.xpose.msra.mxu0 0
    %1079 = vmatprep.mubr.bf16.mxu0 0
    %1080 = vmatmul.mubr.bf16.gmra.mrb[0].mxu0 %v1042
    %v1081 = vpop.f32.mrb[0].mxu0
    %v1082 = vadd.f32 0.0, %v1081
    %v1083 = vpop.f32.mrb[0].mxu0
    %v1084 = vpop.f32.mrb[0].mxu0
    %v1085 = vpop.f32.mrb[0].mxu0
    %1086 = vdwg.mxu0
    %v1087 = vsel %vm360, %v1082, -inf
    %1088 = vmax.xlane.f32.xlu0 %v1087
    %v1089 = vpop.xlane.xlu0 %1088
    %v1090 = vsub.f32 %v1082, %v1089
    %v1091 = vmul.f32 %v1090, 1.442695
    %v1092 = vpow.pop %v1091
    %v1093 = vsel %vm360, %v1092, 0.0
    %1094 = vadd.xlane.f32.xlu0 %v1093
    %v1095 = vpop.xlane.xlu0 %1094
    %v1096 = vrcp.pop %v1095
    %v1097 = vmul.f32 %v1092, %v1096
    %v1098 = vpack.c.bf16 %v1097, %v1097
    %1099 = vrot.lane.b32.xlu0 %v877, 112
    %v1100 = vpop.permute.xlu0 %1099
    %v1102 = vsel %vm360, %v1098, 0
    %v1105 = vsel %vm423, %v1100, 0
    %1107 = vmatprep.subr.bf16.mxu0 0
    %1108 = vmatpush1.bf16.msra.mxu0 %v1105
    %1109 = vmatprep.subr.bf16.mxu0 0
    %1110 = vmatpush1.bf16.msra.mxu0 0
    %1111 = vmatprep.subr.bf16.mxu0 0
    %1112 = vmatpush1.bf16.msra.mxu0 0
    %1113 = vmatprep.subr.bf16.mxu0 0
    %1114 = vmatpush1.bf16.msra.mxu0 0
    %1115 = vmatprep.subr.bf16.mxu0 0
    %1116 = vmatpush1.bf16.msra.mxu0 0
    %1117 = vmatprep.subr.bf16.mxu0 0
    %1118 = vmatpush1.bf16.msra.mxu0 0
    %1119 = vmatprep.subr.bf16.mxu0 0
    %1120 = vmatpush1.bf16.msra.mxu0 0
    %1121 = vmatprep.subr.bf16.mxu0 0
    %1122 = vmatpush1.bf16.msra.mxu0 0
    %1123 = vmatprep.subr.bf16.mxu0 0
    %1124 = vmatpush1.bf16.msra.mxu0 0
    %1125 = vmatprep.subr.bf16.mxu0 0
    %1126 = vmatpush1.bf16.msra.mxu0 0
    %1127 = vmatprep.subr.bf16.mxu0 0
    %1128 = vmatpush1.bf16.msra.mxu0 0
    %1129 = vmatprep.subr.bf16.mxu0 0
    %1130 = vmatpush1.bf16.msra.mxu0 0
    %1131 = vmatprep.subr.bf16.mxu0 0
    %1132 = vmatpush1.bf16.msra.mxu0 0
    %1133 = vmatprep.subr.bf16.mxu0 0
    %1134 = vmatpush1.bf16.msra.mxu0 0
    %1135 = vmatprep.subr.bf16.mxu0 0
    %1136 = vmatpush1.bf16.msra.mxu0 0
    %1137 = vmatprep.subr.bf16.mxu0 0
    %1138 = vmatpush1.bf16.msra.mxu0 0
    %1139 = vmatprep.mubr.bf16.mxu0 0
    %1140 = vmatmul.mubr.bf16.gmra.mrb[0].mxu0 %v1102
    %v1141 = vpop.f32.mrb[0].mxu0
    %v1142 = vadd.f32 0.0, %v1141
    %v1143 = vpop.f32.mrb[0].mxu0
    %v1144 = vpop.f32.mrb[0].mxu0
    %v1145 = vpop.f32.mrb[0].mxu0
    %1146 = vdwg.mxu0
    %1147 = vrot.lane.b32.xlu0 %v817, 104
    %v1148 = vpop.permute.xlu0 %1147
    %1149 = vrot.lane.b32.xlu0 %v818, 104
    %v1150 = vpop.permute.xlu0 %1149
    %v1152 = vsel %vm360, %v1148, 0
    %v1155 = vsel %vm360, %v1150, 0
    %1157 = vmatprep.subr.bf16.mxu0 0
    %1158 = vmatpush1.bf16.xpose.msra.mxu0 %v1155
    %1159 = vmatprep.subr.bf16.mxu0 0
    %1160 = vmatpush1.bf16.xpose.msra.mxu0 0
    %1161 = vmatprep.subr.bf16.mxu0 0
    %1162 = vmatpush1.bf16.xpose.msra.mxu0 0
    %1163 = vmatprep.subr.bf16.mxu0 0
    %1164 = vmatpush1.bf16.xpose.msra.mxu0 0
    %1165 = vmatprep.subr.bf16.mxu0 0
    %1166 = vmatpush1.bf16.xpose.msra.mxu0 0
    %1167 = vmatprep.subr.bf16.mxu0 0
    %1168 = vmatpush1.bf16.xpose.msra.mxu0 0
    %1169 = vmatprep.subr.bf16.mxu0 0
    %1170 = vmatpush1.bf16.xpose.msra.mxu0 0
    %1171 = vmatprep.subr.bf16.mxu0 0
    %1172 = vmatpush1.bf16.xpose.msra.mxu0 0
    %1173 = vmatprep.subr.bf16.mxu0 0
    %1174 = vmatpush1.bf16.xpose.msra.mxu0 0
    %1175 = vmatprep.subr.bf16.mxu0 0
    %1176 = vmatpush1.bf16.xpose.msra.mxu0 0
    %1177 = vmatprep.subr.bf16.mxu0 0
    %1178 = vmatpush1.bf16.xpose.msra.mxu0 0
    %1179 = vmatprep.subr.bf16.mxu0 0
    %1180 = vmatpush1.bf16.xpose.msra.mxu0 0
    %1181 = vmatprep.subr.bf16.mxu0 0
    %1182 = vmatpush1.bf16.xpose.msra.mxu0 0
    %1183 = vmatprep.subr.bf16.mxu0 0
    %1184 = vmatpush1.bf16.xpose.msra.mxu0 0
    %1185 = vmatprep.subr.bf16.mxu0 0
    %1186 = vmatpush1.bf16.xpose.msra.mxu0 0
    %1187 = vmatprep.subr.bf16.mxu0 0
    %1188 = vmatpush1.bf16.xpose.msra.mxu0 0
    %1189 = vmatprep.mubr.bf16.mxu0 0
    %1190 = vmatmul.mubr.bf16.gmra.mrb[0].mxu0 %v1152
    %v1191 = vpop.f32.mrb[0].mxu0
    %v1192 = vadd.f32 0.0, %v1191
    %v1193 = vpop.f32.mrb[0].mxu0
    %v1194 = vpop.f32.mrb[0].mxu0
    %v1195 = vpop.f32.mrb[0].mxu0
    %1196 = vdwg.mxu0
    %v1197 = vsel %vm360, %v1192, -inf
    %1198 = vmax.xlane.f32.xlu0 %v1197
    %v1199 = vpop.xlane.xlu0 %1198
    %v1200 = vsub.f32 %v1192, %v1199
    %v1201 = vmul.f32 %v1200, 1.442695
    %v1202 = vpow.pop %v1201
    %v1203 = vsel %vm360, %v1202, 0.0
    %1204 = vadd.xlane.f32.xlu0 %v1203
    %v1205 = vpop.xlane.xlu0 %1204
    %v1206 = vrcp.pop %v1205
    %v1207 = vmul.f32 %v1202, %v1206
    %v1208 = vpack.c.bf16 %v1207, %v1207
    %1209 = vrot.lane.b32.xlu0 %v877, 104
    %v1210 = vpop.permute.xlu0 %1209
    %v1212 = vsel %vm360, %v1208, 0
    %v1215 = vsel %vm423, %v1210, 0
    %1217 = vmatprep.subr.bf16.mxu0 0
    %1218 = vmatpush1.bf16.msra.mxu0 %v1215
    %1219 = vmatprep.subr.bf16.mxu0 0
    %1220 = vmatpush1.bf16.msra.mxu0 0
    %1221 = vmatprep.subr.bf16.mxu0 0
    %1222 = vmatpush1.bf16.msra.mxu0 0
    %1223 = vmatprep.subr.bf16.mxu0 0
    %1224 = vmatpush1.bf16.msra.mxu0 0
    %1225 = vmatprep.subr.bf16.mxu0 0
    %1226 = vmatpush1.bf16.msra.mxu0 0
    %1227 = vmatprep.subr.bf16.mxu0 0
    %1228 = vmatpush1.bf16.msra.mxu0 0
    %1229 = vmatprep.subr.bf16.mxu0 0
    %1230 = vmatpush1.bf16.msra.mxu0 0
    %1231 = vmatprep.subr.bf16.mxu0 0
    %1232 = vmatpush1.bf16.msra.mxu0 0
    %1233 = vmatprep.subr.bf16.mxu0 0
    %1234 = vmatpush1.bf16.msra.mxu0 0
    %1235 = vmatprep.subr.bf16.mxu0 0
    %1236 = vmatpush1.bf16.msra.mxu0 0
    %1237 = vmatprep.subr.bf16.mxu0 0
    %1238 = vmatpush1.bf16.msra.mxu0 0
    %1239 = vmatprep.subr.bf16.mxu0 0
    %1240 = vmatpush1.bf16.msra.mxu0 0
    %1241 = vmatprep.subr.bf16.mxu0 0
    %1242 = vmatpush1.bf16.msra.mxu0 0
    %1243 = vmatprep.subr.bf16.mxu0 0
    %1244 = vmatpush1.bf16.msra.mxu0 0
    %1245 = vmatprep.subr.bf16.mxu0 0
    %1246 = vmatpush1.bf16.msra.mxu0 0
    %1247 = vmatprep.subr.bf16.mxu0 0
    %1248 = vmatpush1.bf16.msra.mxu0 0
    %1249 = vmatprep.mubr.bf16.mxu0 0
    %1250 = vmatmul.mubr.bf16.gmra.mrb[0].mxu0 %v1212
    %v1251 = vpop.f32.mrb[0].mxu0
    %v1252 = vadd.f32 0.0, %v1251
    %v1253 = vpop.f32.mrb[0].mxu0
    %v1254 = vpop.f32.mrb[0].mxu0
    %v1255 = vpop.f32.mrb[0].mxu0
    %1256 = vdwg.mxu0
    %1258 = vrot.lane.b32.xlu0 %v1032, 8
    %v1259 = vpop.permute.xlu0 %1258
    %1262 = vrot.lane.b32.xlu0 %v1142, 16
    %v1263 = vpop.permute.xlu0 %1262
    %1266 = vrot.lane.b32.xlu0 %v1252, 24
    %v1267 = vpop.permute.xlu0 %1266
    %v1269 = vsel %vm360, %v919, %v1259
    %v1270 = vsel %vm813, %v1269, %v1263
    %v1271 = vsel %vm815, %v1270, %v1267
    %v1272 = vld [vmem:[%s3 + $0x30] sm:$0xf]
    %v1273 = vld [vmem:[%s3 + $0x34] sm:$0xf]
    %v1274 = vld [vmem:[%s3 + $0x38] sm:$0xf]
    %v1275 = vld [vmem:[%s3 + $0x3c] sm:$0xf]
    %v1276 = vld [vmem:[%s3 + $0x40] sm:$0xf]
    %v1277 = vld [vmem:[%s3 + $0x44] sm:$0xf]
    %v1278 = vld [vmem:[%s3 + $0x48] sm:$0xf]
    %v1279 = vld [vmem:[%s3 + $0x4c] sm:$0xf]
    %v1280 = vpack.c.bf16 %v1271, %v816
    %v1285 = vunpack.c.l.b16 %v1276
    %v1286 = vunpack.c.l.b16 %v1277
    %v1287 = vunpack.c.l.b16 %v1278
    %v1288 = vunpack.c.l.b16 %v1279
    %v1289 = vpack.c.b16 %v1286, %v1285
    %v1290 = vpack.c.b16 %v1288, %v1287
    %v1294 = vsel %vm141, %v1280, 0
    %1296 = vmatprep.subr.bf16.mxu0 0
    %1297 = vmatpush1.bf16.msra.mxu0 %v1289
    %1298 = vmatprep.subr.bf16.mxu0 0
    %1299 = vmatpush1.bf16.msra.mxu0 %v1290
    %1300 = vmatprep.subr.bf16.mxu0 0
    %1301 = vmatpush1.bf16.msra.mxu0 0
    %1302 = vmatprep.subr.bf16.mxu0 0
    %1303 = vmatpush1.bf16.msra.mxu0 0
    %1304 = vmatprep.subr.bf16.mxu0 0
    %1305 = vmatpush1.bf16.msra.mxu0 0
    %1306 = vmatprep.subr.bf16.mxu0 0
    %1307 = vmatpush1.bf16.msra.mxu0 0
    %1308 = vmatprep.subr.bf16.mxu0 0
    %1309 = vmatpush1.bf16.msra.mxu0 0
    %1310 = vmatprep.subr.bf16.mxu0 0
    %1311 = vmatpush1.bf16.msra.mxu0 0
    %1312 = vmatprep.subr.bf16.mxu0 0
    %1313 = vmatpush1.bf16.msra.mxu0 0
    %1314 = vmatprep.subr.bf16.mxu0 0
    %1315 = vmatpush1.bf16.msra.mxu0 0
    %1316 = vmatprep.subr.bf16.mxu0 0
    %1317 = vmatpush1.bf16.msra.mxu0 0
    %1318 = vmatprep.subr.bf16.mxu0 0
    %1319 = vmatpush1.bf16.msra.mxu0 0
    %1320 = vmatprep.subr.bf16.mxu0 0
    %1321 = vmatpush1.bf16.msra.mxu0 0
    %1322 = vmatprep.subr.bf16.mxu0 0
    %1323 = vmatpush1.bf16.msra.mxu0 0
    %1324 = vmatprep.subr.bf16.mxu0 0
    %1325 = vmatpush1.bf16.msra.mxu0 0
    %1326 = vmatprep.subr.bf16.mxu0 0
    %1327 = vmatpush1.bf16.msra.mxu0 0
    %1328 = vmatprep.mubr.bf16.mxu0 0
    %1329 = vmatmul.mubr.bf16.gmra.mrb[0].mxu0 %v1294
    %v1330 = vpop.f32.mrb[0].mxu0
    %v1331 = vadd.f32 0.0, %v1330
    %v1332 = vpop.f32.mrb[0].mxu0
    %v1333 = vpop.f32.mrb[0].mxu0
    %v1334 = vadd.f32 0.0, %v1333
    %v1335 = vpop.f32.mrb[0].mxu0
    %1336 = vdwg.mxu0
    %v1341 = vunpack.c.l.b16 %v1272
    %v1342 = vunpack.c.l.b16 %v1273
    %v1343 = vunpack.c.l.b16 %v1274
    %v1344 = vunpack.c.l.b16 %v1275
    %v1345 = vpack.c.b16 %v1342, %v1341
    %v1346 = vpack.c.b16 %v1344, %v1343
    %1349 = vmatprep.subr.bf16.mxu0 0
    %1350 = vmatpush1.bf16.msra.mxu0 %v1345
    %1351 = vmatprep.subr.bf16.mxu0 0
    %1352 = vmatpush1.bf16.msra.mxu0 %v1346
    %1353 = vmatprep.subr.bf16.mxu0 0
    %1354 = vmatpush1.bf16.msra.mxu0 0
    %1355 = vmatprep.subr.bf16.mxu0 0
    %1356 = vmatpush1.bf16.msra.mxu0 0
    %1357 = vmatprep.subr.bf16.mxu0 0
    %1358 = vmatpush1.bf16.msra.mxu0 0
    %1359 = vmatprep.subr.bf16.mxu0 0
    %1360 = vmatpush1.bf16.msra.mxu0 0
    %1361 = vmatprep.subr.bf16.mxu0 0
    %1362 = vmatpush1.bf16.msra.mxu0 0
    %1363 = vmatprep.subr.bf16.mxu0 0
    %1364 = vmatpush1.bf16.msra.mxu0 0
    %1365 = vmatprep.subr.bf16.mxu0 0
    %1366 = vmatpush1.bf16.msra.mxu0 0
    %1367 = vmatprep.subr.bf16.mxu0 0
    %1368 = vmatpush1.bf16.msra.mxu0 0
    %1369 = vmatprep.subr.bf16.mxu0 0
    %1370 = vmatpush1.bf16.msra.mxu0 0
    %1371 = vmatprep.subr.bf16.mxu0 0
    %1372 = vmatpush1.bf16.msra.mxu0 0
    %1373 = vmatprep.subr.bf16.mxu0 0
    %1374 = vmatpush1.bf16.msra.mxu0 0
    %1375 = vmatprep.subr.bf16.mxu0 0
    %1376 = vmatpush1.bf16.msra.mxu0 0
    %1377 = vmatprep.subr.bf16.mxu0 0
    %1378 = vmatpush1.bf16.msra.mxu0 0
    %1379 = vmatprep.subr.bf16.mxu0 0
    %1380 = vmatpush1.bf16.msra.mxu0 0
    %1381 = vmatprep.mubr.bf16.mxu0 0
    %1382 = vmatmul.mubr.bf16.gmra.mrb[0].mxu0 %v199
    %v1383 = vpop.f32.mrb[0].mxu0
    %v1384 = vadd.f32 %v1331, %v1383
    %v1385 = vpop.f32.mrb[0].mxu0
    %v1386 = vpop.f32.mrb[0].mxu0
    %v1387 = vadd.f32 %v1334, %v1386
    %v1388 = vpop.f32.mrb[0].mxu0
    %1389 = vdwg.mxu0
    %v1390 = vld [vmem:[%s4 + $0xf] sm:$0x1]
    %v1391 = vlaneseq
    %v1392 = vshrl.u32 %v1391, 7
    %v1393 = vsub.s32 0, %v1392
    %v1394 = vrot.slane %v1390, %v1393
    %v1395 = vadd.f32 %v1384, %v1394
    %v1396 = vadd.f32 %v1387, %v1394
    %v1397 = vadd.f32 %v1395, %v179
    %v1398 = vadd.f32 %v1396, %v180
    %v1399 = vld [vmem:[%s4 + $0x10] sm:$0x1]
    %v1400 = vld [vmem:[%s4 + $0x11] sm:$0x1]
    %v1401 = vsel %vm141, %v1397, 0.0
    %1402 = vadd.xlane.f32.xlu0 %v1401
    %v1403 = vpop.xlane.xlu0 %1402
    %v1404 = vsel %vm141, %v1398, 0.0
    %1405 = vadd.xlane.f32.xlu0 %v1404
    %v1406 = vpop.xlane.xlu0 %1405
    %v1407 = vmul.f32 %v1403, %v148
    %v1408 = vmul.f32 %v1406, %v148
    %v1409 = vsub.f32 %v1397, %v1407
    %v1410 = vsub.f32 %v1398, %v1408
    %v1411 = vmul.f32 %v1409, %v1409
    %v1412 = vmul.f32 %v1410, %v1410
    %v1413 = vsel %vm141, %v1411, 0.0
    %1414 = vadd.xlane.f32.xlu0 %v1413
    %v1415 = vpop.xlane.xlu0 %1414
    %v1416 = vsel %vm141, %v1412, 0.0
    %1417 = vadd.xlane.f32.xlu0 %v1416
    %v1418 = vpop.xlane.xlu0 %1417
    %v1419 = vmul.f32 %v1415, %v148
    %v1420 = vmul.f32 %v1418, %v148
    %v1421 = vadd.f32 %v1419, 1e-05
    %v1422 = vadd.f32 %v1420, 1e-05
    %v1423 = vrsqrt.pop %v1421
    %v1424 = vrsqrt.pop %v1422
    %v1425 = vmul.f32 %v1409, %v1423
    %v1426 = vmul.f32 %v1410, %v1424
    %v1427 = vlaneseq
    %v1428 = vshrl.u32 %v1427, 7
    %v1429 = vsub.s32 0, %v1428
    %v1430 = vrot.slane %v1399, %v1429
    %v1431 = vmul.f32 %v1425, %v1430
    %v1432 = vmul.f32 %v1426, %v1430
    %v1433 = vlaneseq
    %v1434 = vshrl.u32 %v1433, 7
    %v1435 = vsub.s32 0, %v1434
    %v1436 = vrot.slane %v1400, %v1435
    %v1437 = vadd.f32 %v1431, %v1436
    %v1438 = vadd.f32 %v1432, %v1436
    %v1439 = vld [vmem:[%s3 + $0x50] sm:$0xf]
    %v1440 = vld [vmem:[%s3 + $0x54] sm:$0xf]
    %v1441 = vld [vmem:[%s3 + $0x58] sm:$0xf]
    %v1442 = vld [vmem:[%s3 + $0x5c] sm:$0xf]
    %v1443 = vpack.c.bf16 %v1438, %v1437
    %v1448 = vunpack.c.l.b16 %v1439
    %v1449 = vunpack.c.l.b16 %v1440
    %v1450 = vunpack.c.l.b16 %v1441
    %v1451 = vunpack.c.l.b16 %v1442
    %v1452 = vpack.c.b16 %v1449, %v1448
    %v1453 = vpack.c.b16 %v1451, %v1450
    %v1457 = vsel %vm141, %v1443, 0
    %1459 = vmatprep.subr.bf16.mxu0 0
    %1460 = vmatpush1.bf16.msra.mxu0 %v1452
    %1461 = vmatprep.subr.bf16.mxu0 0
    %1462 = vmatpush1.bf16.msra.mxu0 %v1453
    %1463 = vmatprep.subr.bf16.mxu0 0
    %1464 = vmatpush1.bf16.msra.mxu0 0
    %1465 = vmatprep.subr.bf16.mxu0 0
    %1466 = vmatpush1.bf16.msra.mxu0 0
    %1467 = vmatprep.subr.bf16.mxu0 0
    %1468 = vmatpush1.bf16.msra.mxu0 0
    %1469 = vmatprep.subr.bf16.mxu0 0
    %1470 = vmatpush1.bf16.msra.mxu0 0
    %1471 = vmatprep.subr.bf16.mxu0 0
    %1472 = vmatpush1.bf16.msra.mxu0 0
    %1473 = vmatprep.subr.bf16.mxu0 0
    %1474 = vmatpush1.bf16.msra.mxu0 0
    %1475 = vmatprep.subr.bf16.mxu0 0
    %1476 = vmatpush1.bf16.msra.mxu0 0
    %1477 = vmatprep.subr.bf16.mxu0 0
    %1478 = vmatpush1.bf16.msra.mxu0 0
    %1479 = vmatprep.subr.bf16.mxu0 0
    %1480 = vmatpush1.bf16.msra.mxu0 0
    %1481 = vmatprep.subr.bf16.mxu0 0
    %1482 = vmatpush1.bf16.msra.mxu0 0
    %1483 = vmatprep.subr.bf16.mxu0 0
    %1484 = vmatpush1.bf16.msra.mxu0 0
    %1485 = vmatprep.subr.bf16.mxu0 0
    %1486 = vmatpush1.bf16.msra.mxu0 0
    %1487 = vmatprep.subr.bf16.mxu0 0
    %1488 = vmatpush1.bf16.msra.mxu0 0
    %1489 = vmatprep.subr.bf16.mxu0 0
    %1490 = vmatpush1.bf16.msra.mxu0 0
    %1491 = vmatprep.mubr.bf16.mxu0 0
    %1492 = vmatmul.mubr.bf16.gmra.mrb[0].mxu0 %v1457
    %v1493 = vpop.f32.mrb[0].mxu0
    %v1494 = vadd.f32 0.0, %v1493
    %v1495 = vpop.f32.mrb[0].mxu0
    %v1496 = vpop.f32.mrb[0].mxu0
    %v1497 = vadd.f32 0.0, %v1496
    %v1498 = vpop.f32.mrb[0].mxu0
    %1499 = vdwg.mxu0
    %v1500 = vld [vmem:[%s3 + $0x60] sm:$0xf]
    %v1501 = vld [vmem:[%s3 + $0x64] sm:$0xf]
    %v1502 = vld [vmem:[%s3 + $0x68] sm:$0xf]
    %v1503 = vld [vmem:[%s3 + $0x6c] sm:$0xf]
    %v1508 = vunpack.c.l.b16 %v1500
    %v1509 = vunpack.c.l.b16 %v1501
    %v1510 = vunpack.c.l.b16 %v1502
    %v1511 = vunpack.c.l.b16 %v1503
    %v1512 = vpack.c.b16 %v1509, %v1508
    %v1513 = vpack.c.b16 %v1511, %v1510
    %1516 = vmatprep.subr.bf16.mxu0 0
    %1517 = vmatpush1.bf16.msra.mxu0 %v1512
    %1518 = vmatprep.subr.bf16.mxu0 0
    %1519 = vmatpush1.bf16.msra.mxu0 %v1513
    %1520 = vmatprep.subr.bf16.mxu0 0
    %1521 = vmatpush1.bf16.msra.mxu0 0
    %1522 = vmatprep.subr.bf16.mxu0 0
    %1523 = vmatpush1.bf16.msra.mxu0 0
    %1524 = vmatprep.subr.bf16.mxu0 0
    %1525 = vmatpush1.bf16.msra.mxu0 0
    %1526 = vmatprep.subr.bf16.mxu0 0
    %1527 = vmatpush1.bf16.msra.mxu0 0
    %1528 = vmatprep.subr.bf16.mxu0 0
    %1529 = vmatpush1.bf16.msra.mxu0 0
    %1530 = vmatprep.subr.bf16.mxu0 0
    %1531 = vmatpush1.bf16.msra.mxu0 0
    %1532 = vmatprep.subr.bf16.mxu0 0
    %1533 = vmatpush1.bf16.msra.mxu0 0
    %1534 = vmatprep.subr.bf16.mxu0 0
    %1535 = vmatpush1.bf16.msra.mxu0 0
    %1536 = vmatprep.subr.bf16.mxu0 0
    %1537 = vmatpush1.bf16.msra.mxu0 0
    %1538 = vmatprep.subr.bf16.mxu0 0
    %1539 = vmatpush1.bf16.msra.mxu0 0
    %1540 = vmatprep.subr.bf16.mxu0 0
    %1541 = vmatpush1.bf16.msra.mxu0 0
    %1542 = vmatprep.subr.bf16.mxu0 0
    %1543 = vmatpush1.bf16.msra.mxu0 0
    %1544 = vmatprep.subr.bf16.mxu0 0
    %1545 = vmatpush1.bf16.msra.mxu0 0
    %1546 = vmatprep.subr.bf16.mxu0 0
    %1547 = vmatpush1.bf16.msra.mxu0 0
    %1548 = vmatprep.mubr.bf16.mxu0 0
    %1549 = vmatmul.mubr.bf16.gmra.mrb[0].mxu0 %v1457
    %v1550 = vpop.f32.mrb[0].mxu0
    %v1551 = vadd.f32 0.0, %v1550
    %v1552 = vpop.f32.mrb[0].mxu0
    %v1553 = vpop.f32.mrb[0].mxu0
    %v1554 = vadd.f32 0.0, %v1553
    %v1555 = vpop.f32.mrb[0].mxu0
    %1556 = vdwg.mxu0
    %v1557 = vld [vmem:[%s3 + $0x70] sm:$0xf]
    %v1558 = vld [vmem:[%s3 + $0x74] sm:$0xf]
    %v1559 = vld [vmem:[%s3 + $0x78] sm:$0xf]
    %v1560 = vld [vmem:[%s3 + $0x7c] sm:$0xf]
    %v1565 = vunpack.c.l.b16 %v1557
    %v1566 = vunpack.c.l.b16 %v1558
    %v1567 = vunpack.c.l.b16 %v1559
    %v1568 = vunpack.c.l.b16 %v1560
    %v1569 = vpack.c.b16 %v1566, %v1565
    %v1570 = vpack.c.b16 %v1568, %v1567
    %1573 = vmatprep.subr.bf16.mxu0 0
    %1574 = vmatpush1.bf16.msra.mxu0 %v1569
    %1575 = vmatprep.subr.bf16.mxu0 0
    %1576 = vmatpush1.bf16.msra.mxu0 %v1570
    %1577 = vmatprep.subr.bf16.mxu0 0
    %1578 = vmatpush1.bf16.msra.mxu0 0
    %1579 = vmatprep.subr.bf16.mxu0 0
    %1580 = vmatpush1.bf16.msra.mxu0 0
    %1581 = vmatprep.subr.bf16.mxu0 0
    %1582 = vmatpush1.bf16.msra.mxu0 0
    %1583 = vmatprep.subr.bf16.mxu0 0
    %1584 = vmatpush1.bf16.msra.mxu0 0
    %1585 = vmatprep.subr.bf16.mxu0 0
    %1586 = vmatpush1.bf16.msra.mxu0 0
    %1587 = vmatprep.subr.bf16.mxu0 0
    %1588 = vmatpush1.bf16.msra.mxu0 0
    %1589 = vmatprep.subr.bf16.mxu0 0
    %1590 = vmatpush1.bf16.msra.mxu0 0
    %1591 = vmatprep.subr.bf16.mxu0 0
    %1592 = vmatpush1.bf16.msra.mxu0 0
    %1593 = vmatprep.subr.bf16.mxu0 0
    %1594 = vmatpush1.bf16.msra.mxu0 0
    %1595 = vmatprep.subr.bf16.mxu0 0
    %1596 = vmatpush1.bf16.msra.mxu0 0
    %1597 = vmatprep.subr.bf16.mxu0 0
    %1598 = vmatpush1.bf16.msra.mxu0 0
    %1599 = vmatprep.subr.bf16.mxu0 0
    %1600 = vmatpush1.bf16.msra.mxu0 0
    %1601 = vmatprep.subr.bf16.mxu0 0
    %1602 = vmatpush1.bf16.msra.mxu0 0
    %1603 = vmatprep.subr.bf16.mxu0 0
    %1604 = vmatpush1.bf16.msra.mxu0 0
    %1605 = vmatprep.mubr.bf16.mxu0 0
    %1606 = vmatmul.mubr.bf16.gmra.mrb[0].mxu0 %v1457
    %v1607 = vpop.f32.mrb[0].mxu0
    %v1608 = vadd.f32 0.0, %v1607
    %v1609 = vpop.f32.mrb[0].mxu0
    %v1610 = vpop.f32.mrb[0].mxu0
    %v1611 = vadd.f32 0.0, %v1610
    %v1612 = vpop.f32.mrb[0].mxu0
    %1613 = vdwg.mxu0
    %v1614 = vmul.f32 %v1608, 0.35355338
    %v1615 = vmul.f32 %v1611, 0.35355338
    %v1616 = vpack.c.bf16 %v1614, %v1614
    %v1617 = vpack.c.bf16 %v1494, %v1494
    %v1619 = vsel %vm360, %v1616, 0
    %v1622 = vsel %vm360, %v1617, 0
    %1624 = vmatprep.subr.bf16.mxu0 0
    %1625 = vmatpush1.bf16.xpose.msra.mxu0 %v1622
    %1626 = vmatprep.subr.bf16.mxu0 0
    %1627 = vmatpush1.bf16.xpose.msra.mxu0 0
    %1628 = vmatprep.subr.bf16.mxu0 0
    %1629 = vmatpush1.bf16.xpose.msra.mxu0 0
    %1630 = vmatprep.subr.bf16.mxu0 0
    %1631 = vmatpush1.bf16.xpose.msra.mxu0 0
    %1632 = vmatprep.subr.bf16.mxu0 0
    %1633 = vmatpush1.bf16.xpose.msra.mxu0 0
    %1634 = vmatprep.subr.bf16.mxu0 0
    %1635 = vmatpush1.bf16.xpose.msra.mxu0 0
    %1636 = vmatprep.subr.bf16.mxu0 0
    %1637 = vmatpush1.bf16.xpose.msra.mxu0 0
    %1638 = vmatprep.subr.bf16.mxu0 0
    %1639 = vmatpush1.bf16.xpose.msra.mxu0 0
    %1640 = vmatprep.subr.bf16.mxu0 0
    %1641 = vmatpush1.bf16.xpose.msra.mxu0 0
    %1642 = vmatprep.subr.bf16.mxu0 0
    %1643 = vmatpush1.bf16.xpose.msra.mxu0 0
    %1644 = vmatprep.subr.bf16.mxu0 0
    %1645 = vmatpush1.bf16.xpose.msra.mxu0 0
    %1646 = vmatprep.subr.bf16.mxu0 0
    %1647 = vmatpush1.bf16.xpose.msra.mxu0 0
    %1648 = vmatprep.subr.bf16.mxu0 0
    %1649 = vmatpush1.bf16.xpose.msra.mxu0 0
    %1650 = vmatprep.subr.bf16.mxu0 0
    %1651 = vmatpush1.bf16.xpose.msra.mxu0 0
    %1652 = vmatprep.subr.bf16.mxu0 0
    %1653 = vmatpush1.bf16.xpose.msra.mxu0 0
    %1654 = vmatprep.subr.bf16.mxu0 0
    %1655 = vmatpush1.bf16.xpose.msra.mxu0 0
    %1656 = vmatprep.mubr.bf16.mxu0 0
    %1657 = vmatmul.mubr.bf16.gmra.mrb[0].mxu0 %v1619
    %v1658 = vpop.f32.mrb[0].mxu0
    %v1659 = vadd.f32 0.0, %v1658
    %v1660 = vpop.f32.mrb[0].mxu0
    %v1661 = vpop.f32.mrb[0].mxu0
    %v1662 = vpop.f32.mrb[0].mxu0
    %1663 = vdwg.mxu0
    %v1664 = vsel %vm360, %v1659, -inf
    %1665 = vmax.xlane.f32.xlu0 %v1664
    %v1666 = vpop.xlane.xlu0 %1665
    %v1667 = vsub.f32 %v1659, %v1666
    %v1668 = vmul.f32 %v1667, 1.442695
    %v1669 = vpow.pop %v1668
    %v1670 = vsel %vm360, %v1669, 0.0
    %1671 = vadd.xlane.f32.xlu0 %v1670
    %v1672 = vpop.xlane.xlu0 %1671
    %v1673 = vrcp.pop %v1672
    %v1674 = vmul.f32 %v1669, %v1673
    %v1675 = vpack.c.bf16 %v1674, %v1674
    %v1676 = vpack.c.bf16 %v1551, %v1551
    %v1678 = vsel %vm360, %v1675, 0
    %v1681 = vsel %vm423, %v1676, 0
    %1683 = vmatprep.subr.bf16.mxu0 0
    %1684 = vmatpush1.bf16.msra.mxu0 %v1681
    %1685 = vmatprep.subr.bf16.mxu0 0
    %1686 = vmatpush1.bf16.msra.mxu0 0
    %1687 = vmatprep.subr.bf16.mxu0 0
    %1688 = vmatpush1.bf16.msra.mxu0 0
    %1689 = vmatprep.subr.bf16.mxu0 0
    %1690 = vmatpush1.bf16.msra.mxu0 0
    %1691 = vmatprep.subr.bf16.mxu0 0
    %1692 = vmatpush1.bf16.msra.mxu0 0
    %1693 = vmatprep.subr.bf16.mxu0 0
    %1694 = vmatpush1.bf16.msra.mxu0 0
    %1695 = vmatprep.subr.bf16.mxu0 0
    %1696 = vmatpush1.bf16.msra.mxu0 0
    %1697 = vmatprep.subr.bf16.mxu0 0
    %1698 = vmatpush1.bf16.msra.mxu0 0
    %1699 = vmatprep.subr.bf16.mxu0 0
    %1700 = vmatpush1.bf16.msra.mxu0 0
    %1701 = vmatprep.subr.bf16.mxu0 0
    %1702 = vmatpush1.bf16.msra.mxu0 0
    %1703 = vmatprep.subr.bf16.mxu0 0
    %1704 = vmatpush1.bf16.msra.mxu0 0
    %1705 = vmatprep.subr.bf16.mxu0 0
    %1706 = vmatpush1.bf16.msra.mxu0 0
    %1707 = vmatprep.subr.bf16.mxu0 0
    %1708 = vmatpush1.bf16.msra.mxu0 0
    %1709 = vmatprep.subr.bf16.mxu0 0
    %1710 = vmatpush1.bf16.msra.mxu0 0
    %1711 = vmatprep.subr.bf16.mxu0 0
    %1712 = vmatpush1.bf16.msra.mxu0 0
    %1713 = vmatprep.subr.bf16.mxu0 0
    %1714 = vmatpush1.bf16.msra.mxu0 0
    %1715 = vmatprep.mubr.bf16.mxu0 0
    %1716 = vmatmul.mubr.bf16.gmra.mrb[0].mxu0 %v1678
    %v1717 = vpop.f32.mrb[0].mxu0
    %v1718 = vadd.f32 0.0, %v1717
    %v1719 = vpop.f32.mrb[0].mxu0
    %v1720 = vpop.f32.mrb[0].mxu0
    %v1721 = vpop.f32.mrb[0].mxu0
    %1722 = vdwg.mxu0
    %1724 = vrot.lane.b32.xlu0 %v1616, 120
    %v1725 = vpop.permute.xlu0 %1724
    %1727 = vrot.lane.b32.xlu0 %v1617, 120
    %v1728 = vpop.permute.xlu0 %1727
    %v1730 = vsel %vm360, %v1725, 0
    %v1733 = vsel %vm360, %v1728, 0
    %1735 = vmatprep.subr.bf16.mxu0 0
    %1736 = vmatpush1.bf16.xpose.msra.mxu0 %v1733
    %1737 = vmatprep.subr.bf16.mxu0 0
    %1738 = vmatpush1.bf16.xpose.msra.mxu0 0
    %1739 = vmatprep.subr.bf16.mxu0 0
    %1740 = vmatpush1.bf16.xpose.msra.mxu0 0
    %1741 = vmatprep.subr.bf16.mxu0 0
    %1742 = vmatpush1.bf16.xpose.msra.mxu0 0
    %1743 = vmatprep.subr.bf16.mxu0 0
    %1744 = vmatpush1.bf16.xpose.msra.mxu0 0
    %1745 = vmatprep.subr.bf16.mxu0 0
    %1746 = vmatpush1.bf16.xpose.msra.mxu0 0
    %1747 = vmatprep.subr.bf16.mxu0 0
    %1748 = vmatpush1.bf16.xpose.msra.mxu0 0
    %1749 = vmatprep.subr.bf16.mxu0 0
    %1750 = vmatpush1.bf16.xpose.msra.mxu0 0
    %1751 = vmatprep.subr.bf16.mxu0 0
    %1752 = vmatpush1.bf16.xpose.msra.mxu0 0
    %1753 = vmatprep.subr.bf16.mxu0 0
    %1754 = vmatpush1.bf16.xpose.msra.mxu0 0
    %1755 = vmatprep.subr.bf16.mxu0 0
    %1756 = vmatpush1.bf16.xpose.msra.mxu0 0
    %1757 = vmatprep.subr.bf16.mxu0 0
    %1758 = vmatpush1.bf16.xpose.msra.mxu0 0
    %1759 = vmatprep.subr.bf16.mxu0 0
    %1760 = vmatpush1.bf16.xpose.msra.mxu0 0
    %1761 = vmatprep.subr.bf16.mxu0 0
    %1762 = vmatpush1.bf16.xpose.msra.mxu0 0
    %1763 = vmatprep.subr.bf16.mxu0 0
    %1764 = vmatpush1.bf16.xpose.msra.mxu0 0
    %1765 = vmatprep.subr.bf16.mxu0 0
    %1766 = vmatpush1.bf16.xpose.msra.mxu0 0
    %1767 = vmatprep.mubr.bf16.mxu0 0
    %1768 = vmatmul.mubr.bf16.gmra.mrb[0].mxu0 %v1730
    %v1769 = vpop.f32.mrb[0].mxu0
    %v1770 = vadd.f32 0.0, %v1769
    %v1771 = vpop.f32.mrb[0].mxu0
    %v1772 = vpop.f32.mrb[0].mxu0
    %v1773 = vpop.f32.mrb[0].mxu0
    %1774 = vdwg.mxu0
    %v1775 = vsel %vm360, %v1770, -inf
    %1776 = vmax.xlane.f32.xlu0 %v1775
    %v1777 = vpop.xlane.xlu0 %1776
    %v1778 = vsub.f32 %v1770, %v1777
    %v1779 = vmul.f32 %v1778, 1.442695
    %v1780 = vpow.pop %v1779
    %v1781 = vsel %vm360, %v1780, 0.0
    %1782 = vadd.xlane.f32.xlu0 %v1781
    %v1783 = vpop.xlane.xlu0 %1782
    %v1784 = vrcp.pop %v1783
    %v1785 = vmul.f32 %v1780, %v1784
    %v1786 = vpack.c.bf16 %v1785, %v1785
    %1788 = vrot.lane.b32.xlu0 %v1676, 120
    %v1789 = vpop.permute.xlu0 %1788
    %v1791 = vsel %vm360, %v1786, 0
    %v1794 = vsel %vm423, %v1789, 0
    %1796 = vmatprep.subr.bf16.mxu0 0
    %1797 = vmatpush1.bf16.msra.mxu0 %v1794
    %1798 = vmatprep.subr.bf16.mxu0 0
    %1799 = vmatpush1.bf16.msra.mxu0 0
    %1800 = vmatprep.subr.bf16.mxu0 0
    %1801 = vmatpush1.bf16.msra.mxu0 0
    %1802 = vmatprep.subr.bf16.mxu0 0
    %1803 = vmatpush1.bf16.msra.mxu0 0
    %1804 = vmatprep.subr.bf16.mxu0 0
    %1805 = vmatpush1.bf16.msra.mxu0 0
    %1806 = vmatprep.subr.bf16.mxu0 0
    %1807 = vmatpush1.bf16.msra.mxu0 0
    %1808 = vmatprep.subr.bf16.mxu0 0
    %1809 = vmatpush1.bf16.msra.mxu0 0
    %1810 = vmatprep.subr.bf16.mxu0 0
    %1811 = vmatpush1.bf16.msra.mxu0 0
    %1812 = vmatprep.subr.bf16.mxu0 0
    %1813 = vmatpush1.bf16.msra.mxu0 0
    %1814 = vmatprep.subr.bf16.mxu0 0
    %1815 = vmatpush1.bf16.msra.mxu0 0
    %1816 = vmatprep.subr.bf16.mxu0 0
    %1817 = vmatpush1.bf16.msra.mxu0 0
    %1818 = vmatprep.subr.bf16.mxu0 0
    %1819 = vmatpush1.bf16.msra.mxu0 0
    %1820 = vmatprep.subr.bf16.mxu0 0
    %1821 = vmatpush1.bf16.msra.mxu0 0
    %1822 = vmatprep.subr.bf16.mxu0 0
    %1823 = vmatpush1.bf16.msra.mxu0 0
    %1824 = vmatprep.subr.bf16.mxu0 0
    %1825 = vmatpush1.bf16.msra.mxu0 0
    %1826 = vmatprep.subr.bf16.mxu0 0
    %1827 = vmatpush1.bf16.msra.mxu0 0
    %1828 = vmatprep.mubr.bf16.mxu0 0
    %1829 = vmatmul.mubr.bf16.gmra.mrb[0].mxu0 %v1791
    %v1830 = vpop.f32.mrb[0].mxu0
    %v1831 = vadd.f32 0.0, %v1830
    %v1832 = vpop.f32.mrb[0].mxu0
    %v1833 = vpop.f32.mrb[0].mxu0
    %v1834 = vpop.f32.mrb[0].mxu0
    %1835 = vdwg.mxu0
    %1836 = vrot.lane.b32.xlu0 %v1616, 112
    %v1837 = vpop.permute.xlu0 %1836
    %1838 = vrot.lane.b32.xlu0 %v1617, 112
    %v1839 = vpop.permute.xlu0 %1838
    %v1841 = vsel %vm360, %v1837, 0
    %v1844 = vsel %vm360, %v1839, 0
    %1846 = vmatprep.subr.bf16.mxu0 0
    %1847 = vmatpush1.bf16.xpose.msra.mxu0 %v1844
    %1848 = vmatprep.subr.bf16.mxu0 0
    %1849 = vmatpush1.bf16.xpose.msra.mxu0 0
    %1850 = vmatprep.subr.bf16.mxu0 0
    %1851 = vmatpush1.bf16.xpose.msra.mxu0 0
    %1852 = vmatprep.subr.bf16.mxu0 0
    %1853 = vmatpush1.bf16.xpose.msra.mxu0 0
    %1854 = vmatprep.subr.bf16.mxu0 0
    %1855 = vmatpush1.bf16.xpose.msra.mxu0 0
    %1856 = vmatprep.subr.bf16.mxu0 0
    %1857 = vmatpush1.bf16.xpose.msra.mxu0 0
    %1858 = vmatprep.subr.bf16.mxu0 0
    %1859 = vmatpush1.bf16.xpose.msra.mxu0 0
    %1860 = vmatprep.subr.bf16.mxu0 0
    %1861 = vmatpush1.bf16.xpose.msra.mxu0 0
    %1862 = vmatprep.subr.bf16.mxu0 0
    %1863 = vmatpush1.bf16.xpose.msra.mxu0 0
    %1864 = vmatprep.subr.bf16.mxu0 0
    %1865 = vmatpush1.bf16.xpose.msra.mxu0 0
    %1866 = vmatprep.subr.bf16.mxu0 0
    %1867 = vmatpush1.bf16.xpose.msra.mxu0 0
    %1868 = vmatprep.subr.bf16.mxu0 0
    %1869 = vmatpush1.bf16.xpose.msra.mxu0 0
    %1870 = vmatprep.subr.bf16.mxu0 0
    %1871 = vmatpush1.bf16.xpose.msra.mxu0 0
    %1872 = vmatprep.subr.bf16.mxu0 0
    %1873 = vmatpush1.bf16.xpose.msra.mxu0 0
    %1874 = vmatprep.subr.bf16.mxu0 0
    %1875 = vmatpush1.bf16.xpose.msra.mxu0 0
    %1876 = vmatprep.subr.bf16.mxu0 0
    %1877 = vmatpush1.bf16.xpose.msra.mxu0 0
    %1878 = vmatprep.mubr.bf16.mxu0 0
    %1879 = vmatmul.mubr.bf16.gmra.mrb[0].mxu0 %v1841
    %v1880 = vpop.f32.mrb[0].mxu0
    %v1881 = vadd.f32 0.0, %v1880
    %v1882 = vpop.f32.mrb[0].mxu0
    %v1883 = vpop.f32.mrb[0].mxu0
    %v1884 = vpop.f32.mrb[0].mxu0
    %1885 = vdwg.mxu0
    %v1886 = vsel %vm360, %v1881, -inf
    %1887 = vmax.xlane.f32.xlu0 %v1886
    %v1888 = vpop.xlane.xlu0 %1887
    %v1889 = vsub.f32 %v1881, %v1888
    %v1890 = vmul.f32 %v1889, 1.442695
    %v1891 = vpow.pop %v1890
    %v1892 = vsel %vm360, %v1891, 0.0
    %1893 = vadd.xlane.f32.xlu0 %v1892
    %v1894 = vpop.xlane.xlu0 %1893
    %v1895 = vrcp.pop %v1894
    %v1896 = vmul.f32 %v1891, %v1895
    %v1897 = vpack.c.bf16 %v1896, %v1896
    %1898 = vrot.lane.b32.xlu0 %v1676, 112
    %v1899 = vpop.permute.xlu0 %1898
    %v1901 = vsel %vm360, %v1897, 0
    %v1904 = vsel %vm423, %v1899, 0
    %1906 = vmatprep.subr.bf16.mxu0 0
    %1907 = vmatpush1.bf16.msra.mxu0 %v1904
    %1908 = vmatprep.subr.bf16.mxu0 0
    %1909 = vmatpush1.bf16.msra.mxu0 0
    %1910 = vmatprep.subr.bf16.mxu0 0
    %1911 = vmatpush1.bf16.msra.mxu0 0
    %1912 = vmatprep.subr.bf16.mxu0 0
    %1913 = vmatpush1.bf16.msra.mxu0 0
    %1914 = vmatprep.subr.bf16.mxu0 0
    %1915 = vmatpush1.bf16.msra.mxu0 0
    %1916 = vmatprep.subr.bf16.mxu0 0
    %1917 = vmatpush1.bf16.msra.mxu0 0
    %1918 = vmatprep.subr.bf16.mxu0 0
    %1919 = vmatpush1.bf16.msra.mxu0 0
    %1920 = vmatprep.subr.bf16.mxu0 0
    %1921 = vmatpush1.bf16.msra.mxu0 0
    %1922 = vmatprep.subr.bf16.mxu0 0
    %1923 = vmatpush1.bf16.msra.mxu0 0
    %1924 = vmatprep.subr.bf16.mxu0 0
    %1925 = vmatpush1.bf16.msra.mxu0 0
    %1926 = vmatprep.subr.bf16.mxu0 0
    %1927 = vmatpush1.bf16.msra.mxu0 0
    %1928 = vmatprep.subr.bf16.mxu0 0
    %1929 = vmatpush1.bf16.msra.mxu0 0
    %1930 = vmatprep.subr.bf16.mxu0 0
    %1931 = vmatpush1.bf16.msra.mxu0 0
    %1932 = vmatprep.subr.bf16.mxu0 0
    %1933 = vmatpush1.bf16.msra.mxu0 0
    %1934 = vmatprep.subr.bf16.mxu0 0
    %1935 = vmatpush1.bf16.msra.mxu0 0
    %1936 = vmatprep.subr.bf16.mxu0 0
    %1937 = vmatpush1.bf16.msra.mxu0 0
    %1938 = vmatprep.mubr.bf16.mxu0 0
    %1939 = vmatmul.mubr.bf16.gmra.mrb[0].mxu0 %v1901
    %v1940 = vpop.f32.mrb[0].mxu0
    %v1941 = vadd.f32 0.0, %v1940
    %v1942 = vpop.f32.mrb[0].mxu0
    %v1943 = vpop.f32.mrb[0].mxu0
    %v1944 = vpop.f32.mrb[0].mxu0
    %1945 = vdwg.mxu0
    %1946 = vrot.lane.b32.xlu0 %v1616, 104
    %v1947 = vpop.permute.xlu0 %1946
    %1948 = vrot.lane.b32.xlu0 %v1617, 104
    %v1949 = vpop.permute.xlu0 %1948
    %v1951 = vsel %vm360, %v1947, 0
    %v1954 = vsel %vm360, %v1949, 0
    %1956 = vmatprep.subr.bf16.mxu0 0
    %1957 = vmatpush1.bf16.xpose.msra.mxu0 %v1954
    %1958 = vmatprep.subr.bf16.mxu0 0
    %1959 = vmatpush1.bf16.xpose.msra.mxu0 0
    %1960 = vmatprep.subr.bf16.mxu0 0
    %1961 = vmatpush1.bf16.xpose.msra.mxu0 0
    %1962 = vmatprep.subr.bf16.mxu0 0
    %1963 = vmatpush1.bf16.xpose.msra.mxu0 0
    %1964 = vmatprep.subr.bf16.mxu0 0
    %1965 = vmatpush1.bf16.xpose.msra.mxu0 0
    %1966 = vmatprep.subr.bf16.mxu0 0
    %1967 = vmatpush1.bf16.xpose.msra.mxu0 0
    %1968 = vmatprep.subr.bf16.mxu0 0
    %1969 = vmatpush1.bf16.xpose.msra.mxu0 0
    %1970 = vmatprep.subr.bf16.mxu0 0
    %1971 = vmatpush1.bf16.xpose.msra.mxu0 0
    %1972 = vmatprep.subr.bf16.mxu0 0
    %1973 = vmatpush1.bf16.xpose.msra.mxu0 0
    %1974 = vmatprep.subr.bf16.mxu0 0
    %1975 = vmatpush1.bf16.xpose.msra.mxu0 0
    %1976 = vmatprep.subr.bf16.mxu0 0
    %1977 = vmatpush1.bf16.xpose.msra.mxu0 0
    %1978 = vmatprep.subr.bf16.mxu0 0
    %1979 = vmatpush1.bf16.xpose.msra.mxu0 0
    %1980 = vmatprep.subr.bf16.mxu0 0
    %1981 = vmatpush1.bf16.xpose.msra.mxu0 0
    %1982 = vmatprep.subr.bf16.mxu0 0
    %1983 = vmatpush1.bf16.xpose.msra.mxu0 0
    %1984 = vmatprep.subr.bf16.mxu0 0
    %1985 = vmatpush1.bf16.xpose.msra.mxu0 0
    %1986 = vmatprep.subr.bf16.mxu0 0
    %1987 = vmatpush1.bf16.xpose.msra.mxu0 0
    %1988 = vmatprep.mubr.bf16.mxu0 0
    %1989 = vmatmul.mubr.bf16.gmra.mrb[0].mxu0 %v1951
    %v1990 = vpop.f32.mrb[0].mxu0
    %v1991 = vadd.f32 0.0, %v1990
    %v1992 = vpop.f32.mrb[0].mxu0
    %v1993 = vpop.f32.mrb[0].mxu0
    %v1994 = vpop.f32.mrb[0].mxu0
    %1995 = vdwg.mxu0
    %v1996 = vsel %vm360, %v1991, -inf
    %1997 = vmax.xlane.f32.xlu0 %v1996
    %v1998 = vpop.xlane.xlu0 %1997
    %v1999 = vsub.f32 %v1991, %v1998
    %v2000 = vmul.f32 %v1999, 1.442695
    %v2001 = vpow.pop %v2000
    %v2002 = vsel %vm360, %v2001, 0.0
    %2003 = vadd.xlane.f32.xlu0 %v2002
    %v2004 = vpop.xlane.xlu0 %2003
    %v2005 = vrcp.pop %v2004
    %v2006 = vmul.f32 %v2001, %v2005
    %v2007 = vpack.c.bf16 %v2006, %v2006
    %2008 = vrot.lane.b32.xlu0 %v1676, 104
    %v2009 = vpop.permute.xlu0 %2008
    %v2011 = vsel %vm360, %v2007, 0
    %v2014 = vsel %vm423, %v2009, 0
    %2016 = vmatprep.subr.bf16.mxu0 0
    %2017 = vmatpush1.bf16.msra.mxu0 %v2014
    %2018 = vmatprep.subr.bf16.mxu0 0
    %2019 = vmatpush1.bf16.msra.mxu0 0
    %2020 = vmatprep.subr.bf16.mxu0 0
    %2021 = vmatpush1.bf16.msra.mxu0 0
    %2022 = vmatprep.subr.bf16.mxu0 0
    %2023 = vmatpush1.bf16.msra.mxu0 0
    %2024 = vmatprep.subr.bf16.mxu0 0
    %2025 = vmatpush1.bf16.msra.mxu0 0
    %2026 = vmatprep.subr.bf16.mxu0 0
    %2027 = vmatpush1.bf16.msra.mxu0 0
    %2028 = vmatprep.subr.bf16.mxu0 0
    %2029 = vmatpush1.bf16.msra.mxu0 0
    %2030 = vmatprep.subr.bf16.mxu0 0
    %2031 = vmatpush1.bf16.msra.mxu0 0
    %2032 = vmatprep.subr.bf16.mxu0 0
    %2033 = vmatpush1.bf16.msra.mxu0 0
    %2034 = vmatprep.subr.bf16.mxu0 0
    %2035 = vmatpush1.bf16.msra.mxu0 0
    %2036 = vmatprep.subr.bf16.mxu0 0
    %2037 = vmatpush1.bf16.msra.mxu0 0
    %2038 = vmatprep.subr.bf16.mxu0 0
    %2039 = vmatpush1.bf16.msra.mxu0 0
    %2040 = vmatprep.subr.bf16.mxu0 0
    %2041 = vmatpush1.bf16.msra.mxu0 0
    %2042 = vmatprep.subr.bf16.mxu0 0
    %2043 = vmatpush1.bf16.msra.mxu0 0
    %2044 = vmatprep.subr.bf16.mxu0 0
    %2045 = vmatpush1.bf16.msra.mxu0 0
    %2046 = vmatprep.subr.bf16.mxu0 0
    %2047 = vmatpush1.bf16.msra.mxu0 0
    %2048 = vmatprep.mubr.bf16.mxu0 0
    %2049 = vmatmul.mubr.bf16.gmra.mrb[0].mxu0 %v2011
    %v2050 = vpop.f32.mrb[0].mxu0
    %v2051 = vadd.f32 0.0, %v2050
    %v2052 = vpop.f32.mrb[0].mxu0
    %v2053 = vpop.f32.mrb[0].mxu0
    %v2054 = vpop.f32.mrb[0].mxu0
    %2055 = vdwg.mxu0
    %2057 = vrot.lane.b32.xlu0 %v1831, 8
    %v2058 = vpop.permute.xlu0 %2057
    %2061 = vrot.lane.b32.xlu0 %v1941, 16
    %v2062 = vpop.permute.xlu0 %2061
    %2065 = vrot.lane.b32.xlu0 %v2051, 24
    %v2066 = vpop.permute.xlu0 %2065
    %v2068 = vsel %vm360, %v1718, %v2058
    %v2069 = vsel %vm813, %v2068, %v2062
    %v2070 = vsel %vm815, %v2069, %v2066
    %v2071 = vpack.c.bf16 %v1615, %v1615
    %v2072 = vpack.c.bf16 %v1497, %v1497
    %v2074 = vsel %vm360, %v2071, 0
    %v2077 = vsel %vm360, %v2072, 0
    %2079 = vmatprep.subr.bf16.mxu0 0
    %2080 = vmatpush1.bf16.xpose.msra.mxu0 %v2077
    %2081 = vmatprep.subr.bf16.mxu0 0
    %2082 = vmatpush1.bf16.xpose.msra.mxu0 0
    %2083 = vmatprep.subr.bf16.mxu0 0
    %2084 = vmatpush1.bf16.xpose.msra.mxu0 0
    %2085 = vmatprep.subr.bf16.mxu0 0
    %2086 = vmatpush1.bf16.xpose.msra.mxu0 0
    %2087 = vmatprep.subr.bf16.mxu0 0
    %2088 = vmatpush1.bf16.xpose.msra.mxu0 0
    %2089 = vmatprep.subr.bf16.mxu0 0
    %2090 = vmatpush1.bf16.xpose.msra.mxu0 0
    %2091 = vmatprep.subr.bf16.mxu0 0
    %2092 = vmatpush1.bf16.xpose.msra.mxu0 0
    %2093 = vmatprep.subr.bf16.mxu0 0
    %2094 = vmatpush1.bf16.xpose.msra.mxu0 0
    %2095 = vmatprep.subr.bf16.mxu0 0
    %2096 = vmatpush1.bf16.xpose.msra.mxu0 0
    %2097 = vmatprep.subr.bf16.mxu0 0
    %2098 = vmatpush1.bf16.xpose.msra.mxu0 0
    %2099 = vmatprep.subr.bf16.mxu0 0
    %2100 = vmatpush1.bf16.xpose.msra.mxu0 0
    %2101 = vmatprep.subr.bf16.mxu0 0
    %2102 = vmatpush1.bf16.xpose.msra.mxu0 0
    %2103 = vmatprep.subr.bf16.mxu0 0
    %2104 = vmatpush1.bf16.xpose.msra.mxu0 0
    %2105 = vmatprep.subr.bf16.mxu0 0
    %2106 = vmatpush1.bf16.xpose.msra.mxu0 0
    %2107 = vmatprep.subr.bf16.mxu0 0
    %2108 = vmatpush1.bf16.xpose.msra.mxu0 0
    %2109 = vmatprep.subr.bf16.mxu0 0
    %2110 = vmatpush1.bf16.xpose.msra.mxu0 0
    %2111 = vmatprep.mubr.bf16.mxu0 0
    %2112 = vmatmul.mubr.bf16.gmra.mrb[0].mxu0 %v2074
    %v2113 = vpop.f32.mrb[0].mxu0
    %v2114 = vadd.f32 0.0, %v2113
    %v2115 = vpop.f32.mrb[0].mxu0
    %v2116 = vpop.f32.mrb[0].mxu0
    %v2117 = vpop.f32.mrb[0].mxu0
    %2118 = vdwg.mxu0
    %v2119 = vsel %vm360, %v2114, -inf
    %2120 = vmax.xlane.f32.xlu0 %v2119
    %v2121 = vpop.xlane.xlu0 %2120
    %v2122 = vsub.f32 %v2114, %v2121
    %v2123 = vmul.f32 %v2122, 1.442695
    %v2124 = vpow.pop %v2123
    %v2125 = vsel %vm360, %v2124, 0.0
    %2126 = vadd.xlane.f32.xlu0 %v2125
    %v2127 = vpop.xlane.xlu0 %2126
    %v2128 = vrcp.pop %v2127
    %v2129 = vmul.f32 %v2124, %v2128
    %v2130 = vpack.c.bf16 %v2129, %v2129
    %v2131 = vpack.c.bf16 %v1554, %v1554
    %v2133 = vsel %vm360, %v2130, 0
    %v2136 = vsel %vm423, %v2131, 0
    %2138 = vmatprep.subr.bf16.mxu0 0
    %2139 = vmatpush1.bf16.msra.mxu0 %v2136
    %2140 = vmatprep.subr.bf16.mxu0 0
    %2141 = vmatpush1.bf16.msra.mxu0 0
    %2142 = vmatprep.subr.bf16.mxu0 0
    %2143 = vmatpush1.bf16.msra.mxu0 0
    %2144 = vmatprep.subr.bf16.mxu0 0
    %2145 = vmatpush1.bf16.msra.mxu0 0
    %2146 = vmatprep.subr.bf16.mxu0 0
    %2147 = vmatpush1.bf16.msra.mxu0 0
    %2148 = vmatprep.subr.bf16.mxu0 0
    %2149 = vmatpush1.bf16.msra.mxu0 0
    %2150 = vmatprep.subr.bf16.mxu0 0
    %2151 = vmatpush1.bf16.msra.mxu0 0
    %2152 = vmatprep.subr.bf16.mxu0 0
    %2153 = vmatpush1.bf16.msra.mxu0 0
    %2154 = vmatprep.subr.bf16.mxu0 0
    %2155 = vmatpush1.bf16.msra.mxu0 0
    %2156 = vmatprep.subr.bf16.mxu0 0
    %2157 = vmatpush1.bf16.msra.mxu0 0
    %2158 = vmatprep.subr.bf16.mxu0 0
    %2159 = vmatpush1.bf16.msra.mxu0 0
    %2160 = vmatprep.subr.bf16.mxu0 0
    %2161 = vmatpush1.bf16.msra.mxu0 0
    %2162 = vmatprep.subr.bf16.mxu0 0
    %2163 = vmatpush1.bf16.msra.mxu0 0
    %2164 = vmatprep.subr.bf16.mxu0 0
    %2165 = vmatpush1.bf16.msra.mxu0 0
    %2166 = vmatprep.subr.bf16.mxu0 0
    %2167 = vmatpush1.bf16.msra.mxu0 0
    %2168 = vmatprep.subr.bf16.mxu0 0
    %2169 = vmatpush1.bf16.msra.mxu0 0
    %2170 = vmatprep.mubr.bf16.mxu0 0
    %2171 = vmatmul.mubr.bf16.gmra.mrb[0].mxu0 %v2133
    %v2172 = vpop.f32.mrb[0].mxu0
    %v2173 = vadd.f32 0.0, %v2172
    %v2174 = vpop.f32.mrb[0].mxu0
    %v2175 = vpop.f32.mrb[0].mxu0
    %v2176 = vpop.f32.mrb[0].mxu0
    %2177 = vdwg.mxu0
    %2179 = vrot.lane.b32.xlu0 %v2071, 120
    %v2180 = vpop.permute.xlu0 %2179
    %2182 = vrot.lane.b32.xlu0 %v2072, 120
    %v2183 = vpop.permute.xlu0 %2182
    %v2185 = vsel %vm360, %v2180, 0
    %v2188 = vsel %vm360, %v2183, 0
    %2190 = vmatprep.subr.bf16.mxu0 0
    %2191 = vmatpush1.bf16.xpose.msra.mxu0 %v2188
    %2192 = vmatprep.subr.bf16.mxu0 0
    %2193 = vmatpush1.bf16.xpose.msra.mxu0 0
    %2194 = vmatprep.subr.bf16.mxu0 0
    %2195 = vmatpush1.bf16.xpose.msra.mxu0 0
    %2196 = vmatprep.subr.bf16.mxu0 0
    %2197 = vmatpush1.bf16.xpose.msra.mxu0 0
    %2198 = vmatprep.subr.bf16.mxu0 0
    %2199 = vmatpush1.bf16.xpose.msra.mxu0 0
    %2200 = vmatprep.subr.bf16.mxu0 0
    %2201 = vmatpush1.bf16.xpose.msra.mxu0 0
    %2202 = vmatprep.subr.bf16.mxu0 0
    %2203 = vmatpush1.bf16.xpose.msra.mxu0 0
    %2204 = vmatprep.subr.bf16.mxu0 0
    %2205 = vmatpush1.bf16.xpose.msra.mxu0 0
    %2206 = vmatprep.subr.bf16.mxu0 0
    %2207 = vmatpush1.bf16.xpose.msra.mxu0 0
    %2208 = vmatprep.subr.bf16.mxu0 0
    %2209 = vmatpush1.bf16.xpose.msra.mxu0 0
    %2210 = vmatprep.subr.bf16.mxu0 0
    %2211 = vmatpush1.bf16.xpose.msra.mxu0 0
    %2212 = vmatprep.subr.bf16.mxu0 0
    %2213 = vmatpush1.bf16.xpose.msra.mxu0 0
    %2214 = vmatprep.subr.bf16.mxu0 0
    %2215 = vmatpush1.bf16.xpose.msra.mxu0 0
    %2216 = vmatprep.subr.bf16.mxu0 0
    %2217 = vmatpush1.bf16.xpose.msra.mxu0 0
    %2218 = vmatprep.subr.bf16.mxu0 0
    %2219 = vmatpush1.bf16.xpose.msra.mxu0 0
    %2220 = vmatprep.subr.bf16.mxu0 0
    %2221 = vmatpush1.bf16.xpose.msra.mxu0 0
    %2222 = vmatprep.mubr.bf16.mxu0 0
    %2223 = vmatmul.mubr.bf16.gmra.mrb[0].mxu0 %v2185
    %v2224 = vpop.f32.mrb[0].mxu0
    %v2225 = vadd.f32 0.0, %v2224
    %v2226 = vpop.f32.mrb[0].mxu0
    %v2227 = vpop.f32.mrb[0].mxu0
    %v2228 = vpop.f32.mrb[0].mxu0
    %2229 = vdwg.mxu0
    %v2230 = vsel %vm360, %v2225, -inf
    %2231 = vmax.xlane.f32.xlu0 %v2230
    %v2232 = vpop.xlane.xlu0 %2231
    %v2233 = vsub.f32 %v2225, %v2232
    %v2234 = vmul.f32 %v2233, 1.442695
    %v2235 = vpow.pop %v2234
    %v2236 = vsel %vm360, %v2235, 0.0
    %2237 = vadd.xlane.f32.xlu0 %v2236
    %v2238 = vpop.xlane.xlu0 %2237
    %v2239 = vrcp.pop %v2238
    %v2240 = vmul.f32 %v2235, %v2239
    %v2241 = vpack.c.bf16 %v2240, %v2240
    %2243 = vrot.lane.b32.xlu0 %v2131, 120
    %v2244 = vpop.permute.xlu0 %2243
    %v2246 = vsel %vm360, %v2241, 0
    %v2249 = vsel %vm423, %v2244, 0
    %2251 = vmatprep.subr.bf16.mxu0 0
    %2252 = vmatpush1.bf16.msra.mxu0 %v2249
    %2253 = vmatprep.subr.bf16.mxu0 0
    %2254 = vmatpush1.bf16.msra.mxu0 0
    %2255 = vmatprep.subr.bf16.mxu0 0
    %2256 = vmatpush1.bf16.msra.mxu0 0
    %2257 = vmatprep.subr.bf16.mxu0 0
    %2258 = vmatpush1.bf16.msra.mxu0 0
    %2259 = vmatprep.subr.bf16.mxu0 0
    %2260 = vmatpush1.bf16.msra.mxu0 0
    %2261 = vmatprep.subr.bf16.mxu0 0
    %2262 = vmatpush1.bf16.msra.mxu0 0
    %2263 = vmatprep.subr.bf16.mxu0 0
    %2264 = vmatpush1.bf16.msra.mxu0 0
    %2265 = vmatprep.subr.bf16.mxu0 0
    %2266 = vmatpush1.bf16.msra.mxu0 0
    %2267 = vmatprep.subr.bf16.mxu0 0
    %2268 = vmatpush1.bf16.msra.mxu0 0
    %2269 = vmatprep.subr.bf16.mxu0 0
    %2270 = vmatpush1.bf16.msra.mxu0 0
    %2271 = vmatprep.subr.bf16.mxu0 0
    %2272 = vmatpush1.bf16.msra.mxu0 0
    %2273 = vmatprep.subr.bf16.mxu0 0
    %2274 = vmatpush1.bf16.msra.mxu0 0
    %2275 = vmatprep.subr.bf16.mxu0 0
    %2276 = vmatpush1.bf16.msra.mxu0 0
    %2277 = vmatprep.subr.bf16.mxu0 0
    %2278 = vmatpush1.bf16.msra.mxu0 0
    %2279 = vmatprep.subr.bf16.mxu0 0
    %2280 = vmatpush1.bf16.msra.mxu0 0
    %2281 = vmatprep.subr.bf16.mxu0 0
    %2282 = vmatpush1.bf16.msra.mxu0 0
    %2283 = vmatprep.mubr.bf16.mxu0 0
    %2284 = vmatmul.mubr.bf16.gmra.mrb[0].mxu0 %v2246
    %v2285 = vpop.f32.mrb[0].mxu0
    %v2286 = vadd.f32 0.0, %v2285
    %v2287 = vpop.f32.mrb[0].mxu0
    %v2288 = vpop.f32.mrb[0].mxu0
    %v2289 = vpop.f32.mrb[0].mxu0
    %2290 = vdwg.mxu0
    %2291 = vrot.lane.b32.xlu0 %v2071, 112
    %v2292 = vpop.permute.xlu0 %2291
    %2293 = vrot.lane.b32.xlu0 %v2072, 112
    %v2294 = vpop.permute.xlu0 %2293
    %v2296 = vsel %vm360, %v2292, 0
    %v2299 = vsel %vm360, %v2294, 0
    %2301 = vmatprep.subr.bf16.mxu0 0
    %2302 = vmatpush1.bf16.xpose.msra.mxu0 %v2299
    %2303 = vmatprep.subr.bf16.mxu0 0
    %2304 = vmatpush1.bf16.xpose.msra.mxu0 0
    %2305 = vmatprep.subr.bf16.mxu0 0
    %2306 = vmatpush1.bf16.xpose.msra.mxu0 0
    %2307 = vmatprep.subr.bf16.mxu0 0
    %2308 = vmatpush1.bf16.xpose.msra.mxu0 0
    %2309 = vmatprep.subr.bf16.mxu0 0
    %2310 = vmatpush1.bf16.xpose.msra.mxu0 0
    %2311 = vmatprep.subr.bf16.mxu0 0
    %2312 = vmatpush1.bf16.xpose.msra.mxu0 0
    %2313 = vmatprep.subr.bf16.mxu0 0
    %2314 = vmatpush1.bf16.xpose.msra.mxu0 0
    %2315 = vmatprep.subr.bf16.mxu0 0
    %2316 = vmatpush1.bf16.xpose.msra.mxu0 0
    %2317 = vmatprep.subr.bf16.mxu0 0
    %2318 = vmatpush1.bf16.xpose.msra.mxu0 0
    %2319 = vmatprep.subr.bf16.mxu0 0
    %2320 = vmatpush1.bf16.xpose.msra.mxu0 0
    %2321 = vmatprep.subr.bf16.mxu0 0
    %2322 = vmatpush1.bf16.xpose.msra.mxu0 0
    %2323 = vmatprep.subr.bf16.mxu0 0
    %2324 = vmatpush1.bf16.xpose.msra.mxu0 0
    %2325 = vmatprep.subr.bf16.mxu0 0
    %2326 = vmatpush1.bf16.xpose.msra.mxu0 0
    %2327 = vmatprep.subr.bf16.mxu0 0
    %2328 = vmatpush1.bf16.xpose.msra.mxu0 0
    %2329 = vmatprep.subr.bf16.mxu0 0
    %2330 = vmatpush1.bf16.xpose.msra.mxu0 0
    %2331 = vmatprep.subr.bf16.mxu0 0
    %2332 = vmatpush1.bf16.xpose.msra.mxu0 0
    %2333 = vmatprep.mubr.bf16.mxu0 0
    %2334 = vmatmul.mubr.bf16.gmra.mrb[0].mxu0 %v2296
    %v2335 = vpop.f32.mrb[0].mxu0
    %v2336 = vadd.f32 0.0, %v2335
    %v2337 = vpop.f32.mrb[0].mxu0
    %v2338 = vpop.f32.mrb[0].mxu0
    %v2339 = vpop.f32.mrb[0].mxu0
    %2340 = vdwg.mxu0
    %v2341 = vsel %vm360, %v2336, -inf
    %2342 = vmax.xlane.f32.xlu0 %v2341
    %v2343 = vpop.xlane.xlu0 %2342
    %v2344 = vsub.f32 %v2336, %v2343
    %v2345 = vmul.f32 %v2344, 1.442695
    %v2346 = vpow.pop %v2345
    %v2347 = vsel %vm360, %v2346, 0.0
    %2348 = vadd.xlane.f32.xlu0 %v2347
    %v2349 = vpop.xlane.xlu0 %2348
    %v2350 = vrcp.pop %v2349
    %v2351 = vmul.f32 %v2346, %v2350
    %v2352 = vpack.c.bf16 %v2351, %v2351
    %2353 = vrot.lane.b32.xlu0 %v2131, 112
    %v2354 = vpop.permute.xlu0 %2353
    %v2356 = vsel %vm360, %v2352, 0
    %v2359 = vsel %vm423, %v2354, 0
    %2361 = vmatprep.subr.bf16.mxu0 0
    %2362 = vmatpush1.bf16.msra.mxu0 %v2359
    %2363 = vmatprep.subr.bf16.mxu0 0
    %2364 = vmatpush1.bf16.msra.mxu0 0
    %2365 = vmatprep.subr.bf16.mxu0 0
    %2366 = vmatpush1.bf16.msra.mxu0 0
    %2367 = vmatprep.subr.bf16.mxu0 0
    %2368 = vmatpush1.bf16.msra.mxu0 0
    %2369 = vmatprep.subr.bf16.mxu0 0
    %2370 = vmatpush1.bf16.msra.mxu0 0
    %2371 = vmatprep.subr.bf16.mxu0 0
    %2372 = vmatpush1.bf16.msra.mxu0 0
    %2373 = vmatprep.subr.bf16.mxu0 0
    %2374 = vmatpush1.bf16.msra.mxu0 0
    %2375 = vmatprep.subr.bf16.mxu0 0
    %2376 = vmatpush1.bf16.msra.mxu0 0
    %2377 = vmatprep.subr.bf16.mxu0 0
    %2378 = vmatpush1.bf16.msra.mxu0 0
    %2379 = vmatprep.subr.bf16.mxu0 0
    %2380 = vmatpush1.bf16.msra.mxu0 0
    %2381 = vmatprep.subr.bf16.mxu0 0
    %2382 = vmatpush1.bf16.msra.mxu0 0
    %2383 = vmatprep.subr.bf16.mxu0 0
    %2384 = vmatpush1.bf16.msra.mxu0 0
    %2385 = vmatprep.subr.bf16.mxu0 0
    %2386 = vmatpush1.bf16.msra.mxu0 0
    %2387 = vmatprep.subr.bf16.mxu0 0
    %2388 = vmatpush1.bf16.msra.mxu0 0
    %2389 = vmatprep.subr.bf16.mxu0 0
    %2390 = vmatpush1.bf16.msra.mxu0 0
    %2391 = vmatprep.subr.bf16.mxu0 0
    %2392 = vmatpush1.bf16.msra.mxu0 0
    %2393 = vmatprep.mubr.bf16.mxu0 0
    %2394 = vmatmul.mubr.bf16.gmra.mrb[0].mxu0 %v2356
    %v2395 = vpop.f32.mrb[0].mxu0
    %v2396 = vadd.f32 0.0, %v2395
    %v2397 = vpop.f32.mrb[0].mxu0
    %v2398 = vpop.f32.mrb[0].mxu0
    %v2399 = vpop.f32.mrb[0].mxu0
    %2400 = vdwg.mxu0
    %2401 = vrot.lane.b32.xlu0 %v2071, 104
    %v2402 = vpop.permute.xlu0 %2401
    %2403 = vrot.lane.b32.xlu0 %v2072, 104
    %v2404 = vpop.permute.xlu0 %2403
    %v2406 = vsel %vm360, %v2402, 0
    %v2409 = vsel %vm360, %v2404, 0
    %2411 = vmatprep.subr.bf16.mxu0 0
    %2412 = vmatpush1.bf16.xpose.msra.mxu0 %v2409
    %2413 = vmatprep.subr.bf16.mxu0 0
    %2414 = vmatpush1.bf16.xpose.msra.mxu0 0
    %2415 = vmatprep.subr.bf16.mxu0 0
    %2416 = vmatpush1.bf16.xpose.msra.mxu0 0
    %2417 = vmatprep.subr.bf16.mxu0 0
    %2418 = vmatpush1.bf16.xpose.msra.mxu0 0
    %2419 = vmatprep.subr.bf16.mxu0 0
    %2420 = vmatpush1.bf16.xpose.msra.mxu0 0
    %2421 = vmatprep.subr.bf16.mxu0 0
    %2422 = vmatpush1.bf16.xpose.msra.mxu0 0
    %2423 = vmatprep.subr.bf16.mxu0 0
    %2424 = vmatpush1.bf16.xpose.msra.mxu0 0
    %2425 = vmatprep.subr.bf16.mxu0 0
    %2426 = vmatpush1.bf16.xpose.msra.mxu0 0
    %2427 = vmatprep.subr.bf16.mxu0 0
    %2428 = vmatpush1.bf16.xpose.msra.mxu0 0
    %2429 = vmatprep.subr.bf16.mxu0 0
    %2430 = vmatpush1.bf16.xpose.msra.mxu0 0
    %2431 = vmatprep.subr.bf16.mxu0 0
    %2432 = vmatpush1.bf16.xpose.msra.mxu0 0
    %2433 = vmatprep.subr.bf16.mxu0 0
    %2434 = vmatpush1.bf16.xpose.msra.mxu0 0
    %2435 = vmatprep.subr.bf16.mxu0 0
    %2436 = vmatpush1.bf16.xpose.msra.mxu0 0
    %2437 = vmatprep.subr.bf16.mxu0 0
    %2438 = vmatpush1.bf16.xpose.msra.mxu0 0
    %2439 = vmatprep.subr.bf16.mxu0 0
    %2440 = vmatpush1.bf16.xpose.msra.mxu0 0
    %2441 = vmatprep.subr.bf16.mxu0 0
    %2442 = vmatpush1.bf16.xpose.msra.mxu0 0
    %2443 = vmatprep.mubr.bf16.mxu0 0
    %2444 = vmatmul.mubr.bf16.gmra.mrb[0].mxu0 %v2406
    %v2445 = vpop.f32.mrb[0].mxu0
    %v2446 = vadd.f32 0.0, %v2445
    %v2447 = vpop.f32.mrb[0].mxu0
    %v2448 = vpop.f32.mrb[0].mxu0
    %v2449 = vpop.f32.mrb[0].mxu0
    %2450 = vdwg.mxu0
    %v2451 = vsel %vm360, %v2446, -inf
    %2452 = vmax.xlane.f32.xlu0 %v2451
    %v2453 = vpop.xlane.xlu0 %2452
    %v2454 = vsub.f32 %v2446, %v2453
    %v2455 = vmul.f32 %v2454, 1.442695
    %v2456 = vpow.pop %v2455
    %v2457 = vsel %vm360, %v2456, 0.0
    %2458 = vadd.xlane.f32.xlu0 %v2457
    %v2459 = vpop.xlane.xlu0 %2458
    %v2460 = vrcp.pop %v2459
    %v2461 = vmul.f32 %v2456, %v2460
    %v2462 = vpack.c.bf16 %v2461, %v2461
    %2463 = vrot.lane.b32.xlu0 %v2131, 104
    %v2464 = vpop.permute.xlu0 %2463
    %v2466 = vsel %vm360, %v2462, 0
    %v2469 = vsel %vm423, %v2464, 0
    %2471 = vmatprep.subr.bf16.mxu0 0
    %2472 = vmatpush1.bf16.msra.mxu0 %v2469
    %2473 = vmatprep.subr.bf16.mxu0 0
    %2474 = vmatpush1.bf16.msra.mxu0 0
    %2475 = vmatprep.subr.bf16.mxu0 0
    %2476 = vmatpush1.bf16.msra.mxu0 0
    %2477 = vmatprep.subr.bf16.mxu0 0
    %2478 = vmatpush1.bf16.msra.mxu0 0
    %2479 = vmatprep.subr.bf16.mxu0 0
    %2480 = vmatpush1.bf16.msra.mxu0 0
    %2481 = vmatprep.subr.bf16.mxu0 0
    %2482 = vmatpush1.bf16.msra.mxu0 0
    %2483 = vmatprep.subr.bf16.mxu0 0
    %2484 = vmatpush1.bf16.msra.mxu0 0
    %2485 = vmatprep.subr.bf16.mxu0 0
    %2486 = vmatpush1.bf16.msra.mxu0 0
    %2487 = vmatprep.subr.bf16.mxu0 0
    %2488 = vmatpush1.bf16.msra.mxu0 0
    %2489 = vmatprep.subr.bf16.mxu0 0
    %2490 = vmatpush1.bf16.msra.mxu0 0
    %2491 = vmatprep.subr.bf16.mxu0 0
    %2492 = vmatpush1.bf16.msra.mxu0 0
    %2493 = vmatprep.subr.bf16.mxu0 0
    %2494 = vmatpush1.bf16.msra.mxu0 0
    %2495 = vmatprep.subr.bf16.mxu0 0
    %2496 = vmatpush1.bf16.msra.mxu0 0
    %2497 = vmatprep.subr.bf16.mxu0 0
    %2498 = vmatpush1.bf16.msra.mxu0 0
    %2499 = vmatprep.subr.bf16.mxu0 0
    %2500 = vmatpush1.bf16.msra.mxu0 0
    %2501 = vmatprep.subr.bf16.mxu0 0
    %2502 = vmatpush1.bf16.msra.mxu0 0
    %2503 = vmatprep.mubr.bf16.mxu0 0
    %2504 = vmatmul.mubr.bf16.gmra.mrb[0].mxu0 %v2466
    %v2505 = vpop.f32.mrb[0].mxu0
    %v2506 = vadd.f32 0.0, %v2505
    %v2507 = vpop.f32.mrb[0].mxu0
    %v2508 = vpop.f32.mrb[0].mxu0
    %v2509 = vpop.f32.mrb[0].mxu0
    %2510 = vdwg.mxu0
    %2512 = vrot.lane.b32.xlu0 %v2286, 8
    %v2513 = vpop.permute.xlu0 %2512
    %2516 = vrot.lane.b32.xlu0 %v2396, 16
    %v2517 = vpop.permute.xlu0 %2516
    %2520 = vrot.lane.b32.xlu0 %v2506, 24
    %v2521 = vpop.permute.xlu0 %2520
    %v2523 = vsel %vm360, %v2173, %v2513
    %v2524 = vsel %vm813, %v2523, %v2517
    %v2525 = vsel %vm815, %v2524, %v2521
    %v2526 = vld [vmem:[%s3 + $0x80] sm:$0xf]
    %v2527 = vld [vmem:[%s3 + $0x84] sm:$0xf]
    %v2528 = vld [vmem:[%s3 + $0x88] sm:$0xf]
    %v2529 = vld [vmem:[%s3 + $0x8c] sm:$0xf]
    %v2530 = vld [vmem:[%s3 + $0x90] sm:$0xf]
    %v2531 = vld [vmem:[%s3 + $0x94] sm:$0xf]
    %v2532 = vld [vmem:[%s3 + $0x98] sm:$0xf]
    %v2533 = vld [vmem:[%s3 + $0x9c] sm:$0xf]
    %v2534 = vpack.c.bf16 %v2525, %v2070
    %v2539 = vunpack.c.l.b16 %v2530
    %v2540 = vunpack.c.l.b16 %v2531
    %v2541 = vunpack.c.l.b16 %v2532
    %v2542 = vunpack.c.l.b16 %v2533
    %v2543 = vpack.c.b16 %v2540, %v2539
    %v2544 = vpack.c.b16 %v2542, %v2541
    %v2548 = vsel %vm141, %v2534, 0
    %2550 = vmatprep.subr.bf16.mxu0 0
    %2551 = vmatpush1.bf16.msra.mxu0 %v2543
    %2552 = vmatprep.subr.bf16.mxu0 0
    %2553 = vmatpush1.bf16.msra.mxu0 %v2544
    %2554 = vmatprep.subr.bf16.mxu0 0
    %2555 = vmatpush1.bf16.msra.mxu0 0
    %2556 = vmatprep.subr.bf16.mxu0 0
    %2557 = vmatpush1.bf16.msra.mxu0 0
    %2558 = vmatprep.subr.bf16.mxu0 0
    %2559 = vmatpush1.bf16.msra.mxu0 0
    %2560 = vmatprep.subr.bf16.mxu0 0
    %2561 = vmatpush1.bf16.msra.mxu0 0
    %2562 = vmatprep.subr.bf16.mxu0 0
    %2563 = vmatpush1.bf16.msra.mxu0 0
    %2564 = vmatprep.subr.bf16.mxu0 0
    %2565 = vmatpush1.bf16.msra.mxu0 0
    %2566 = vmatprep.subr.bf16.mxu0 0
    %2567 = vmatpush1.bf16.msra.mxu0 0
    %2568 = vmatprep.subr.bf16.mxu0 0
    %2569 = vmatpush1.bf16.msra.mxu0 0
    %2570 = vmatprep.subr.bf16.mxu0 0
    %2571 = vmatpush1.bf16.msra.mxu0 0
    %2572 = vmatprep.subr.bf16.mxu0 0
    %2573 = vmatpush1.bf16.msra.mxu0 0
    %2574 = vmatprep.subr.bf16.mxu0 0
    %2575 = vmatpush1.bf16.msra.mxu0 0
    %2576 = vmatprep.subr.bf16.mxu0 0
    %2577 = vmatpush1.bf16.msra.mxu0 0
    %2578 = vmatprep.subr.bf16.mxu0 0
    %2579 = vmatpush1.bf16.msra.mxu0 0
    %2580 = vmatprep.subr.bf16.mxu0 0
    %2581 = vmatpush1.bf16.msra.mxu0 0
    %2582 = vmatprep.mubr.bf16.mxu0 0
    %2583 = vmatmul.mubr.bf16.gmra.mrb[0].mxu0 %v2548
    %v2584 = vpop.f32.mrb[0].mxu0
    %v2585 = vadd.f32 0.0, %v2584
    %v2586 = vpop.f32.mrb[0].mxu0
    %v2587 = vpop.f32.mrb[0].mxu0
    %v2588 = vadd.f32 0.0, %v2587
    %v2589 = vpop.f32.mrb[0].mxu0
    %2590 = vdwg.mxu0
    %v2595 = vunpack.c.l.b16 %v2526
    %v2596 = vunpack.c.l.b16 %v2527
    %v2597 = vunpack.c.l.b16 %v2528
    %v2598 = vunpack.c.l.b16 %v2529
    %v2599 = vpack.c.b16 %v2596, %v2595
    %v2600 = vpack.c.b16 %v2598, %v2597
    %2603 = vmatprep.subr.bf16.mxu0 0
    %2604 = vmatpush1.bf16.msra.mxu0 %v2599
    %2605 = vmatprep.subr.bf16.mxu0 0
    %2606 = vmatpush1.bf16.msra.mxu0 %v2600
    %2607 = vmatprep.subr.bf16.mxu0 0
    %2608 = vmatpush1.bf16.msra.mxu0 0
    %2609 = vmatprep.subr.bf16.mxu0 0
    %2610 = vmatpush1.bf16.msra.mxu0 0
    %2611 = vmatprep.subr.bf16.mxu0 0
    %2612 = vmatpush1.bf16.msra.mxu0 0
    %2613 = vmatprep.subr.bf16.mxu0 0
    %2614 = vmatpush1.bf16.msra.mxu0 0
    %2615 = vmatprep.subr.bf16.mxu0 0
    %2616 = vmatpush1.bf16.msra.mxu0 0
    %2617 = vmatprep.subr.bf16.mxu0 0
    %2618 = vmatpush1.bf16.msra.mxu0 0
    %2619 = vmatprep.subr.bf16.mxu0 0
    %2620 = vmatpush1.bf16.msra.mxu0 0
    %2621 = vmatprep.subr.bf16.mxu0 0
    %2622 = vmatpush1.bf16.msra.mxu0 0
    %2623 = vmatprep.subr.bf16.mxu0 0
    %2624 = vmatpush1.bf16.msra.mxu0 0
    %2625 = vmatprep.subr.bf16.mxu0 0
    %2626 = vmatpush1.bf16.msra.mxu0 0
    %2627 = vmatprep.subr.bf16.mxu0 0
    %2628 = vmatpush1.bf16.msra.mxu0 0
    %2629 = vmatprep.subr.bf16.mxu0 0
    %2630 = vmatpush1.bf16.msra.mxu0 0
    %2631 = vmatprep.subr.bf16.mxu0 0
    %2632 = vmatpush1.bf16.msra.mxu0 0
    %2633 = vmatprep.subr.bf16.mxu0 0
    %2634 = vmatpush1.bf16.msra.mxu0 0
    %2635 = vmatprep.mubr.bf16.mxu0 0
    %2636 = vmatmul.mubr.bf16.gmra.mrb[0].mxu0 %v1457
    %v2637 = vpop.f32.mrb[0].mxu0
    %v2638 = vadd.f32 %v2585, %v2637
    %v2639 = vpop.f32.mrb[0].mxu0
    %v2640 = vpop.f32.mrb[0].mxu0
    %v2641 = vadd.f32 %v2588, %v2640
    %v2642 = vpop.f32.mrb[0].mxu0
    %2643 = vdwg.mxu0
    %v2644 = vld [vmem:[%s4 + $0x12] sm:$0x1]
    %v2645 = vlaneseq
    %v2646 = vshrl.u32 %v2645, 7
    %v2647 = vsub.s32 0, %v2646
    %v2648 = vrot.slane %v2644, %v2647
    %v2649 = vadd.f32 %v2638, %v2648
    %v2650 = vadd.f32 %v2641, %v2648
    %v2651 = vadd.f32 %v2649, %v1437
    %v2652 = vadd.f32 %v2650, %v1438
    %v2653 = vld [vmem:[%s4 + $0x13] sm:$0x1]
    %v2654 = vld [vmem:[%s4 + $0x14] sm:$0x1]
    %v2655 = vsel %vm141, %v2651, 0.0
    %2656 = vadd.xlane.f32.xlu0 %v2655
    %v2657 = vpop.xlane.xlu0 %2656
    %v2658 = vsel %vm141, %v2652, 0.0
    %2659 = vadd.xlane.f32.xlu0 %v2658
    %v2660 = vpop.xlane.xlu0 %2659
    %v2661 = vmul.f32 %v2657, %v148
    %v2662 = vmul.f32 %v2660, %v148
    %v2663 = vsub.f32 %v2651, %v2661
    %v2664 = vsub.f32 %v2652, %v2662
    %v2665 = vmul.f32 %v2663, %v2663
    %v2666 = vmul.f32 %v2664, %v2664
    %v2667 = vsel %vm141, %v2665, 0.0
    %2668 = vadd.xlane.f32.xlu0 %v2667
    %v2669 = vpop.xlane.xlu0 %2668
    %v2670 = vsel %vm141, %v2666, 0.0
    %2671 = vadd.xlane.f32.xlu0 %v2670
    %v2672 = vpop.xlane.xlu0 %2671
    %v2673 = vmul.f32 %v2669, %v148
    %v2674 = vmul.f32 %v2672, %v148
    %v2675 = vadd.f32 %v2673, 1e-05
    %v2676 = vadd.f32 %v2674, 1e-05
    %v2677 = vrsqrt.pop %v2675
    %v2678 = vrsqrt.pop %v2676
    %v2679 = vmul.f32 %v2663, %v2677
    %v2680 = vmul.f32 %v2664, %v2678
    %v2681 = vlaneseq
    %v2682 = vshrl.u32 %v2681, 7
    %v2683 = vsub.s32 0, %v2682
    %v2684 = vrot.slane %v2653, %v2683
    %v2685 = vmul.f32 %v2679, %v2684
    %v2686 = vmul.f32 %v2680, %v2684
    %v2687 = vlaneseq
    %v2688 = vshrl.u32 %v2687, 7
    %v2689 = vsub.s32 0, %v2688
    %v2690 = vrot.slane %v2654, %v2689
    %v2691 = vadd.f32 %v2685, %v2690
    %v2692 = vadd.f32 %v2686, %v2690
    %v2693 = vld [vmem:[%s4 + $0x7] sm:$0x7]
    %v2694 = vld [vmem:[%s4 + $0xe] sm:$0x1]
    %v2695 = vlaneseq
    %v2696 = vshrl.u32 %v2695, 7
    %v2697 = vsub.s32 0, %v2696
    %v2698 = vrot.slane %v2694, %v2697
    %v2700 = vsel %vm46, %v26, 0
    %v2703 = vsel %vm46, %v27, 0
    %v2706 = vsel %vm53, %v2693, 0
    %2708 = vmatprep.subr.mxu0 0.0
    %2709 = vmatpush1.msra.mxu0 %v2706
    %2710 = vmatprep.subr.mxu0 0.0
    %2711 = vmatpush1.msra.mxu0 0.0
    %2712 = vmatprep.subr.mxu0 0.0
    %2713 = vmatpush1.msra.mxu0 0.0
    %2714 = vmatprep.subr.mxu0 0.0
    %2715 = vmatpush1.msra.mxu0 0.0
    %2716 = vmatprep.subr.mxu0 0.0
    %2717 = vmatpush1.msra.mxu0 0.0
    %2718 = vmatprep.subr.mxu0 0.0
    %2719 = vmatpush1.msra.mxu0 0.0
    %2720 = vmatprep.subr.mxu0 0.0
    %2721 = vmatpush1.msra.mxu0 0.0
    %2722 = vmatprep.subr.mxu0 0.0
    %2723 = vmatpush1.msra.mxu0 0.0
    %2724 = vmatprep.subr.mxu0 0.0
    %2725 = vmatpush1.msra.mxu0 0.0
    %2726 = vmatprep.subr.mxu0 0.0
    %2727 = vmatpush1.msra.mxu0 0.0
    %2728 = vmatprep.subr.mxu0 0.0
    %2729 = vmatpush1.msra.mxu0 0.0
    %2730 = vmatprep.subr.mxu0 0.0
    %2731 = vmatpush1.msra.mxu0 0.0
    %2732 = vmatprep.subr.mxu0 0.0
    %2733 = vmatpush1.msra.mxu0 0.0
    %2734 = vmatprep.subr.mxu0 0.0
    %2735 = vmatpush1.msra.mxu0 0.0
    %2736 = vmatprep.subr.mxu0 0.0
    %2737 = vmatpush1.msra.mxu0 0.0
    %2738 = vmatprep.subr.mxu0 0.0
    %2739 = vmatpush1.msra.mxu0 0.0
    %2740 = vmatprep.subr.mxu0 0.0
    %2741 = vmatpush1.msra.mxu0 0.0
    %2742 = vmatprep.subr.mxu0 0.0
    %2743 = vmatpush1.msra.mxu0 0.0
    %2744 = vmatprep.subr.mxu0 0.0
    %2745 = vmatpush1.msra.mxu0 0.0
    %2746 = vmatprep.subr.mxu0 0.0
    %2747 = vmatpush1.msra.mxu0 0.0
    %2748 = vmatprep.subr.mxu0 0.0
    %2749 = vmatpush1.msra.mxu0 0.0
    %2750 = vmatprep.subr.mxu0 0.0
    %2751 = vmatpush1.msra.mxu0 0.0
    %2752 = vmatprep.subr.mxu0 0.0
    %2753 = vmatpush1.msra.mxu0 0.0
    %2754 = vmatprep.subr.mxu0 0.0
    %2755 = vmatpush1.msra.mxu0 0.0
    %2756 = vmatprep.subr.mxu0 0.0
    %2757 = vmatpush1.msra.mxu0 0.0
    %2758 = vmatprep.subr.mxu0 0.0
    %2759 = vmatpush1.msra.mxu0 0.0
    %2760 = vmatprep.subr.mxu0 0.0
    %2761 = vmatpush1.msra.mxu0 0.0
    %2762 = vmatprep.subr.mxu0 0.0
    %2763 = vmatpush1.msra.mxu0 0.0
    %2764 = vmatprep.subr.mxu0 0.0
    %2765 = vmatpush1.msra.mxu0 0.0
    %2766 = vmatprep.subr.mxu0 0.0
    %2767 = vmatpush1.msra.mxu0 0.0
    %2768 = vmatprep.subr.mxu0 0.0
    %2769 = vmatpush1.msra.mxu0 0.0
    %2770 = vmatprep.subr.mxu0 0.0
    %2771 = vmatpush1.msra.mxu0 0.0
    %2772 = vmatprep.mubr.f32.mxu0 0.0
    %2773 = vmatmul.mubr.f32.gmra.mrb[0].mxu0 %v2700
    %v2774 = vpop.f32.mrb[0].mxu0
    %v2775 = vadd.f32 %v2698, %v2774
    %v2776 = vpop.f32.mrb[0].mxu0
    %2777 = vmatprep.mubr.f32.mxu0 0.0
    %2778 = vmatmul.mubr.f32.gmra.mrb[0].mxu0 %v2703
    %v2779 = vpop.f32.mrb[0].mxu0
    %v2780 = vadd.f32 %v2698, %v2779
    %v2781 = vpop.f32.mrb[0].mxu0
    %2782 = vdwg.mxu0
    %v2783 = vld [vmem:[%s4 + $0x4] sm:$0x7]
    %v2784 = vld [vmem:[%s4 + $0xd] sm:$0x1]
    %v2785 = vlaneseq
    %v2786 = vshrl.u32 %v2785, 7
    %v2787 = vsub.s32 0, %v2786
    %v2788 = vrot.slane %v2784, %v2787
    %v2790 = vsel %vm53, %v2783, 0
    %2792 = vmatprep.subr.mxu0 0.0
    %2793 = vmatpush1.msra.mxu0 %v2790
    %2794 = vmatprep.subr.mxu0 0.0
    %2795 = vmatpush1.msra.mxu0 0.0
    %2796 = vmatprep.subr.mxu0 0.0
    %2797 = vmatpush1.msra.mxu0 0.0
    %2798 = vmatprep.subr.mxu0 0.0
    %2799 = vmatpush1.msra.mxu0 0.0
    %2800 = vmatprep.subr.mxu0 0.0
    %2801 = vmatpush1.msra.mxu0 0.0
    %2802 = vmatprep.subr.mxu0 0.0
    %2803 = vmatpush1.msra.mxu0 0.0
    %2804 = vmatprep.subr.mxu0 0.0
    %2805 = vmatpush1.msra.mxu0 0.0
    %2806 = vmatprep.subr.mxu0 0.0
    %2807 = vmatpush1.msra.mxu0 0.0
    %2808 = vmatprep.subr.mxu0 0.0
    %2809 = vmatpush1.msra.mxu0 0.0
    %2810 = vmatprep.subr.mxu0 0.0
    %2811 = vmatpush1.msra.mxu0 0.0
    %2812 = vmatprep.subr.mxu0 0.0
    %2813 = vmatpush1.msra.mxu0 0.0
    %2814 = vmatprep.subr.mxu0 0.0
    %2815 = vmatpush1.msra.mxu0 0.0
    %2816 = vmatprep.subr.mxu0 0.0
    %2817 = vmatpush1.msra.mxu0 0.0
    %2818 = vmatprep.subr.mxu0 0.0
    %2819 = vmatpush1.msra.mxu0 0.0
    %2820 = vmatprep.subr.mxu0 0.0
    %2821 = vmatpush1.msra.mxu0 0.0
    %2822 = vmatprep.subr.mxu0 0.0
    %2823 = vmatpush1.msra.mxu0 0.0
    %2824 = vmatprep.subr.mxu0 0.0
    %2825 = vmatpush1.msra.mxu0 0.0
    %2826 = vmatprep.subr.mxu0 0.0
    %2827 = vmatpush1.msra.mxu0 0.0
    %2828 = vmatprep.subr.mxu0 0.0
    %2829 = vmatpush1.msra.mxu0 0.0
    %2830 = vmatprep.subr.mxu0 0.0
    %2831 = vmatpush1.msra.mxu0 0.0
    %2832 = vmatprep.subr.mxu0 0.0
    %2833 = vmatpush1.msra.mxu0 0.0
    %2834 = vmatprep.subr.mxu0 0.0
    %2835 = vmatpush1.msra.mxu0 0.0
    %2836 = vmatprep.subr.mxu0 0.0
    %2837 = vmatpush1.msra.mxu0 0.0
    %2838 = vmatprep.subr.mxu0 0.0
    %2839 = vmatpush1.msra.mxu0 0.0
    %2840 = vmatprep.subr.mxu0 0.0
    %2841 = vmatpush1.msra.mxu0 0.0
    %2842 = vmatprep.subr.mxu0 0.0
    %2843 = vmatpush1.msra.mxu0 0.0
    %2844 = vmatprep.subr.mxu0 0.0
    %2845 = vmatpush1.msra.mxu0 0.0
    %2846 = vmatprep.subr.mxu0 0.0
    %2847 = vmatpush1.msra.mxu0 0.0
    %2848 = vmatprep.subr.mxu0 0.0
    %2849 = vmatpush1.msra.mxu0 0.0
    %2850 = vmatprep.subr.mxu0 0.0
    %2851 = vmatpush1.msra.mxu0 0.0
    %2852 = vmatprep.subr.mxu0 0.0
    %2853 = vmatpush1.msra.mxu0 0.0
    %2854 = vmatprep.subr.mxu0 0.0
    %2855 = vmatpush1.msra.mxu0 0.0
    %2856 = vmatprep.mubr.f32.mxu0 0.0
    %2857 = vmatmul.mubr.f32.gmra.mrb[0].mxu0 %v48
    %v2858 = vpop.f32.mrb[0].mxu0
    %v2859 = vadd.f32 %v2788, %v2858
    %v2860 = vpop.f32.mrb[0].mxu0
    %2861 = vmatprep.mubr.f32.mxu0 0.0
    %2862 = vmatmul.mubr.f32.gmra.mrb[0].mxu0 %v51
    %v2863 = vpop.f32.mrb[0].mxu0
    %v2864 = vadd.f32 %v2788, %v2863
    %v2865 = vpop.f32.mrb[0].mxu0
    %2866 = vdwg.mxu0
    %v2867 = vld [vmem:[%s3 + $0xa0] sm:$0xf]
    %v2868 = vld [vmem:[%s3 + $0xa4] sm:$0xf]
    %v2869 = vld [vmem:[%s3 + $0xa8] sm:$0xf]
    %v2870 = vld [vmem:[%s3 + $0xac] sm:$0xf]
    %v2871 = vpack.c.bf16 %v2864, %v2859
    %v2876 = vunpack.c.l.b16 %v2867
    %v2877 = vunpack.c.l.b16 %v2868
    %v2878 = vunpack.c.l.b16 %v2869
    %v2879 = vunpack.c.l.b16 %v2870
    %v2880 = vpack.c.b16 %v2877, %v2876
    %v2881 = vpack.c.b16 %v2879, %v2878
    %v2885 = vsel %vm141, %v2871, 0
    %2887 = vmatprep.subr.bf16.mxu0 0
    %2888 = vmatpush1.bf16.msra.mxu0 %v2880
    %2889 = vmatprep.subr.bf16.mxu0 0
    %2890 = vmatpush1.bf16.msra.mxu0 %v2881
    %2891 = vmatprep.subr.bf16.mxu0 0
    %2892 = vmatpush1.bf16.msra.mxu0 0
    %2893 = vmatprep.subr.bf16.mxu0 0
    %2894 = vmatpush1.bf16.msra.mxu0 0
    %2895 = vmatprep.subr.bf16.mxu0 0
    %2896 = vmatpush1.bf16.msra.mxu0 0
    %2897 = vmatprep.subr.bf16.mxu0 0
    %2898 = vmatpush1.bf16.msra.mxu0 0
    %2899 = vmatprep.subr.bf16.mxu0 0
    %2900 = vmatpush1.bf16.msra.mxu0 0
    %2901 = vmatprep.subr.bf16.mxu0 0
    %2902 = vmatpush1.bf16.msra.mxu0 0
    %2903 = vmatprep.subr.bf16.mxu0 0
    %2904 = vmatpush1.bf16.msra.mxu0 0
    %2905 = vmatprep.subr.bf16.mxu0 0
    %2906 = vmatpush1.bf16.msra.mxu0 0
    %2907 = vmatprep.subr.bf16.mxu0 0
    %2908 = vmatpush1.bf16.msra.mxu0 0
    %2909 = vmatprep.subr.bf16.mxu0 0
    %2910 = vmatpush1.bf16.msra.mxu0 0
    %2911 = vmatprep.subr.bf16.mxu0 0
    %2912 = vmatpush1.bf16.msra.mxu0 0
    %2913 = vmatprep.subr.bf16.mxu0 0
    %2914 = vmatpush1.bf16.msra.mxu0 0
    %2915 = vmatprep.subr.bf16.mxu0 0
    %2916 = vmatpush1.bf16.msra.mxu0 0
    %2917 = vmatprep.subr.bf16.mxu0 0
    %2918 = vmatpush1.bf16.msra.mxu0 0
    %2919 = vmatprep.mubr.bf16.mxu0 0
    %2920 = vmatmul.mubr.bf16.gmra.mrb[0].mxu0 %v2885
    %v2921 = vpop.f32.mrb[0].mxu0
    %v2922 = vadd.f32 0.0, %v2921
    %v2923 = vpop.f32.mrb[0].mxu0
    %v2924 = vpop.f32.mrb[0].mxu0
    %v2925 = vadd.f32 0.0, %v2924
    %v2926 = vpop.f32.mrb[0].mxu0
    %2927 = vdwg.mxu0
    %v2928 = vld [vmem:[%s3 + $0xb0] sm:$0xf]
    %v2929 = vld [vmem:[%s3 + $0xb4] sm:$0xf]
    %v2930 = vld [vmem:[%s3 + $0xb8] sm:$0xf]
    %v2931 = vld [vmem:[%s3 + $0xbc] sm:$0xf]
    %v2932 = vpack.c.bf16 %v2692, %v2691
    %v2937 = vunpack.c.l.b16 %v2928
    %v2938 = vunpack.c.l.b16 %v2929
    %v2939 = vunpack.c.l.b16 %v2930
    %v2940 = vunpack.c.l.b16 %v2931
    %v2941 = vpack.c.b16 %v2938, %v2937
    %v2942 = vpack.c.b16 %v2940, %v2939
    %v2946 = vsel %vm141, %v2932, 0
    %2948 = vmatprep.subr.bf16.mxu0 0
    %2949 = vmatpush1.bf16.msra.mxu0 %v2941
    %2950 = vmatprep.subr.bf16.mxu0 0
    %2951 = vmatpush1.bf16.msra.mxu0 %v2942
    %2952 = vmatprep.subr.bf16.mxu0 0
    %2953 = vmatpush1.bf16.msra.mxu0 0
    %2954 = vmatprep.subr.bf16.mxu0 0
    %2955 = vmatpush1.bf16.msra.mxu0 0
    %2956 = vmatprep.subr.bf16.mxu0 0
    %2957 = vmatpush1.bf16.msra.mxu0 0
    %2958 = vmatprep.subr.bf16.mxu0 0
    %2959 = vmatpush1.bf16.msra.mxu0 0
    %2960 = vmatprep.subr.bf16.mxu0 0
    %2961 = vmatpush1.bf16.msra.mxu0 0
    %2962 = vmatprep.subr.bf16.mxu0 0
    %2963 = vmatpush1.bf16.msra.mxu0 0
    %2964 = vmatprep.subr.bf16.mxu0 0
    %2965 = vmatpush1.bf16.msra.mxu0 0
    %2966 = vmatprep.subr.bf16.mxu0 0
    %2967 = vmatpush1.bf16.msra.mxu0 0
    %2968 = vmatprep.subr.bf16.mxu0 0
    %2969 = vmatpush1.bf16.msra.mxu0 0
    %2970 = vmatprep.subr.bf16.mxu0 0
    %2971 = vmatpush1.bf16.msra.mxu0 0
    %2972 = vmatprep.subr.bf16.mxu0 0
    %2973 = vmatpush1.bf16.msra.mxu0 0
    %2974 = vmatprep.subr.bf16.mxu0 0
    %2975 = vmatpush1.bf16.msra.mxu0 0
    %2976 = vmatprep.subr.bf16.mxu0 0
    %2977 = vmatpush1.bf16.msra.mxu0 0
    %2978 = vmatprep.subr.bf16.mxu0 0
    %2979 = vmatpush1.bf16.msra.mxu0 0
    %2980 = vmatprep.mubr.bf16.mxu0 0
    %2981 = vmatmul.mubr.bf16.gmra.mrb[0].mxu0 %v2946
    %v2982 = vpop.f32.mrb[0].mxu0
    %v2983 = vadd.f32 0.0, %v2982
    %v2984 = vpop.f32.mrb[0].mxu0
    %v2985 = vpop.f32.mrb[0].mxu0
    %v2986 = vadd.f32 0.0, %v2985
    %v2987 = vpop.f32.mrb[0].mxu0
    %2988 = vdwg.mxu0
    %v2989 = vld [vmem:[%s3 + $0xc0] sm:$0xf]
    %v2990 = vld [vmem:[%s3 + $0xc4] sm:$0xf]
    %v2991 = vld [vmem:[%s3 + $0xc8] sm:$0xf]
    %v2992 = vld [vmem:[%s3 + $0xcc] sm:$0xf]
    %v2993 = vpack.c.bf16 %v2780, %v2775
    %v2998 = vunpack.c.l.b16 %v2989
    %v2999 = vunpack.c.l.b16 %v2990
    %v3000 = vunpack.c.l.b16 %v2991
    %v3001 = vunpack.c.l.b16 %v2992
    %v3002 = vpack.c.b16 %v2999, %v2998
    %v3003 = vpack.c.b16 %v3001, %v3000
    %v3007 = vsel %vm141, %v2993, 0
    %3009 = vmatprep.subr.bf16.mxu0 0
    %3010 = vmatpush1.bf16.msra.mxu0 %v3002
    %3011 = vmatprep.subr.bf16.mxu0 0
    %3012 = vmatpush1.bf16.msra.mxu0 %v3003
    %3013 = vmatprep.subr.bf16.mxu0 0
    %3014 = vmatpush1.bf16.msra.mxu0 0
    %3015 = vmatprep.subr.bf16.mxu0 0
    %3016 = vmatpush1.bf16.msra.mxu0 0
    %3017 = vmatprep.subr.bf16.mxu0 0
    %3018 = vmatpush1.bf16.msra.mxu0 0
    %3019 = vmatprep.subr.bf16.mxu0 0
    %3020 = vmatpush1.bf16.msra.mxu0 0
    %3021 = vmatprep.subr.bf16.mxu0 0
    %3022 = vmatpush1.bf16.msra.mxu0 0
    %3023 = vmatprep.subr.bf16.mxu0 0
    %3024 = vmatpush1.bf16.msra.mxu0 0
    %3025 = vmatprep.subr.bf16.mxu0 0
    %3026 = vmatpush1.bf16.msra.mxu0 0
    %3027 = vmatprep.subr.bf16.mxu0 0
    %3028 = vmatpush1.bf16.msra.mxu0 0
    %3029 = vmatprep.subr.bf16.mxu0 0
    %3030 = vmatpush1.bf16.msra.mxu0 0
    %3031 = vmatprep.subr.bf16.mxu0 0
    %3032 = vmatpush1.bf16.msra.mxu0 0
    %3033 = vmatprep.subr.bf16.mxu0 0
    %3034 = vmatpush1.bf16.msra.mxu0 0
    %3035 = vmatprep.subr.bf16.mxu0 0
    %3036 = vmatpush1.bf16.msra.mxu0 0
    %3037 = vmatprep.subr.bf16.mxu0 0
    %3038 = vmatpush1.bf16.msra.mxu0 0
    %3039 = vmatprep.subr.bf16.mxu0 0
    %3040 = vmatpush1.bf16.msra.mxu0 0
    %3041 = vmatprep.mubr.bf16.mxu0 0
    %3042 = vmatmul.mubr.bf16.gmra.mrb[0].mxu0 %v3007
    %v3043 = vpop.f32.mrb[0].mxu0
    %v3044 = vadd.f32 0.0, %v3043
    %v3045 = vpop.f32.mrb[0].mxu0
    %v3046 = vpop.f32.mrb[0].mxu0
    %v3047 = vadd.f32 0.0, %v3046
    %v3048 = vpop.f32.mrb[0].mxu0
    %3049 = vdwg.mxu0
    %v3050 = vmul.f32 %v3044, 0.35355338
    %v3051 = vmul.f32 %v3047, 0.35355338
    %v3052 = vpack.c.bf16 %v3050, %v3050
    %v3053 = vpack.c.bf16 %v2922, %v2922
    %v3055 = vsel %vm360, %v3052, 0
    %v3058 = vsel %vm360, %v3053, 0
    %3060 = vmatprep.subr.bf16.mxu0 0
    %3061 = vmatpush1.bf16.xpose.msra.mxu0 %v3058
    %3062 = vmatprep.subr.bf16.mxu0 0
    %3063 = vmatpush1.bf16.xpose.msra.mxu0 0
    %3064 = vmatprep.subr.bf16.mxu0 0
    %3065 = vmatpush1.bf16.xpose.msra.mxu0 0
    %3066 = vmatprep.subr.bf16.mxu0 0
    %3067 = vmatpush1.bf16.xpose.msra.mxu0 0
    %3068 = vmatprep.subr.bf16.mxu0 0
    %3069 = vmatpush1.bf16.xpose.msra.mxu0 0
    %3070 = vmatprep.subr.bf16.mxu0 0
    %3071 = vmatpush1.bf16.xpose.msra.mxu0 0
    %3072 = vmatprep.subr.bf16.mxu0 0
    %3073 = vmatpush1.bf16.xpose.msra.mxu0 0
    %3074 = vmatprep.subr.bf16.mxu0 0
    %3075 = vmatpush1.bf16.xpose.msra.mxu0 0
    %3076 = vmatprep.subr.bf16.mxu0 0
    %3077 = vmatpush1.bf16.xpose.msra.mxu0 0
    %3078 = vmatprep.subr.bf16.mxu0 0
    %3079 = vmatpush1.bf16.xpose.msra.mxu0 0
    %3080 = vmatprep.subr.bf16.mxu0 0
    %3081 = vmatpush1.bf16.xpose.msra.mxu0 0
    %3082 = vmatprep.subr.bf16.mxu0 0
    %3083 = vmatpush1.bf16.xpose.msra.mxu0 0
    %3084 = vmatprep.subr.bf16.mxu0 0
    %3085 = vmatpush1.bf16.xpose.msra.mxu0 0
    %3086 = vmatprep.subr.bf16.mxu0 0
    %3087 = vmatpush1.bf16.xpose.msra.mxu0 0
    %3088 = vmatprep.subr.bf16.mxu0 0
    %3089 = vmatpush1.bf16.xpose.msra.mxu0 0
    %3090 = vmatprep.subr.bf16.mxu0 0
    %3091 = vmatpush1.bf16.xpose.msra.mxu0 0
    %3092 = vmatprep.mubr.bf16.mxu0 0
    %3093 = vmatmul.mubr.bf16.gmra.mrb[0].mxu0 %v3055
    %v3094 = vpop.f32.mrb[0].mxu0
    %v3095 = vadd.f32 0.0, %v3094
    %v3096 = vpop.f32.mrb[0].mxu0
    %v3097 = vpop.f32.mrb[0].mxu0
    %v3098 = vpop.f32.mrb[0].mxu0
    %3099 = vdwg.mxu0
    %v3100 = vsel %vm360, %v3095, -inf
    %3101 = vmax.xlane.f32.xlu0 %v3100
    %v3102 = vpop.xlane.xlu0 %3101
    %v3103 = vsub.f32 %v3095, %v3102
    %v3104 = vmul.f32 %v3103, 1.442695
    %v3105 = vpow.pop %v3104
    %v3106 = vsel %vm360, %v3105, 0.0
    %3107 = vadd.xlane.f32.xlu0 %v3106
    %v3108 = vpop.xlane.xlu0 %3107
    %v3109 = vrcp.pop %v3108
    %v3110 = vmul.f32 %v3105, %v3109
    %v3111 = vpack.c.bf16 %v3110, %v3110
    %v3112 = vpack.c.bf16 %v2983, %v2983
    %v3114 = vsel %vm360, %v3111, 0
    %v3117 = vsel %vm423, %v3112, 0
    %3119 = vmatprep.subr.bf16.mxu0 0
    %3120 = vmatpush1.bf16.msra.mxu0 %v3117
    %3121 = vmatprep.subr.bf16.mxu0 0
    %3122 = vmatpush1.bf16.msra.mxu0 0
    %3123 = vmatprep.subr.bf16.mxu0 0
    %3124 = vmatpush1.bf16.msra.mxu0 0
    %3125 = vmatprep.subr.bf16.mxu0 0
    %3126 = vmatpush1.bf16.msra.mxu0 0
    %3127 = vmatprep.subr.bf16.mxu0 0
    %3128 = vmatpush1.bf16.msra.mxu0 0
    %3129 = vmatprep.subr.bf16.mxu0 0
    %3130 = vmatpush1.bf16.msra.mxu0 0
    %3131 = vmatprep.subr.bf16.mxu0 0
    %3132 = vmatpush1.bf16.msra.mxu0 0
    %3133 = vmatprep.subr.bf16.mxu0 0
    %3134 = vmatpush1.bf16.msra.mxu0 0
    %3135 = vmatprep.subr.bf16.mxu0 0
    %3136 = vmatpush1.bf16.msra.mxu0 0
    %3137 = vmatprep.subr.bf16.mxu0 0
    %3138 = vmatpush1.bf16.msra.mxu0 0
    %3139 = vmatprep.subr.bf16.mxu0 0
    %3140 = vmatpush1.bf16.msra.mxu0 0
    %3141 = vmatprep.subr.bf16.mxu0 0
    %3142 = vmatpush1.bf16.msra.mxu0 0
    %3143 = vmatprep.subr.bf16.mxu0 0
    %3144 = vmatpush1.bf16.msra.mxu0 0
    %3145 = vmatprep.subr.bf16.mxu0 0
    %3146 = vmatpush1.bf16.msra.mxu0 0
    %3147 = vmatprep.subr.bf16.mxu0 0
    %3148 = vmatpush1.bf16.msra.mxu0 0
    %3149 = vmatprep.subr.bf16.mxu0 0
    %3150 = vmatpush1.bf16.msra.mxu0 0
    %3151 = vmatprep.mubr.bf16.mxu0 0
    %3152 = vmatmul.mubr.bf16.gmra.mrb[0].mxu0 %v3114
    %v3153 = vpop.f32.mrb[0].mxu0
    %v3154 = vadd.f32 0.0, %v3153
    %v3155 = vpop.f32.mrb[0].mxu0
    %v3156 = vpop.f32.mrb[0].mxu0
    %v3157 = vpop.f32.mrb[0].mxu0
    %3158 = vdwg.mxu0
    %3160 = vrot.lane.b32.xlu0 %v3052, 120
    %v3161 = vpop.permute.xlu0 %3160
    %3163 = vrot.lane.b32.xlu0 %v3053, 120
    %v3164 = vpop.permute.xlu0 %3163
    %v3166 = vsel %vm360, %v3161, 0
    %v3169 = vsel %vm360, %v3164, 0
    %3171 = vmatprep.subr.bf16.mxu0 0
    %3172 = vmatpush1.bf16.xpose.msra.mxu0 %v3169
    %3173 = vmatprep.subr.bf16.mxu0 0
    %3174 = vmatpush1.bf16.xpose.msra.mxu0 0
    %3175 = vmatprep.subr.bf16.mxu0 0
    %3176 = vmatpush1.bf16.xpose.msra.mxu0 0
    %3177 = vmatprep.subr.bf16.mxu0 0
    %3178 = vmatpush1.bf16.xpose.msra.mxu0 0
    %3179 = vmatprep.subr.bf16.mxu0 0
    %3180 = vmatpush1.bf16.xpose.msra.mxu0 0
    %3181 = vmatprep.subr.bf16.mxu0 0
    %3182 = vmatpush1.bf16.xpose.msra.mxu0 0
    %3183 = vmatprep.subr.bf16.mxu0 0
    %3184 = vmatpush1.bf16.xpose.msra.mxu0 0
    %3185 = vmatprep.subr.bf16.mxu0 0
    %3186 = vmatpush1.bf16.xpose.msra.mxu0 0
    %3187 = vmatprep.subr.bf16.mxu0 0
    %3188 = vmatpush1.bf16.xpose.msra.mxu0 0
    %3189 = vmatprep.subr.bf16.mxu0 0
    %3190 = vmatpush1.bf16.xpose.msra.mxu0 0
    %3191 = vmatprep.subr.bf16.mxu0 0
    %3192 = vmatpush1.bf16.xpose.msra.mxu0 0
    %3193 = vmatprep.subr.bf16.mxu0 0
    %3194 = vmatpush1.bf16.xpose.msra.mxu0 0
    %3195 = vmatprep.subr.bf16.mxu0 0
    %3196 = vmatpush1.bf16.xpose.msra.mxu0 0
    %3197 = vmatprep.subr.bf16.mxu0 0
    %3198 = vmatpush1.bf16.xpose.msra.mxu0 0
    %3199 = vmatprep.subr.bf16.mxu0 0
    %3200 = vmatpush1.bf16.xpose.msra.mxu0 0
    %3201 = vmatprep.subr.bf16.mxu0 0
    %3202 = vmatpush1.bf16.xpose.msra.mxu0 0
    %3203 = vmatprep.mubr.bf16.mxu0 0
    %3204 = vmatmul.mubr.bf16.gmra.mrb[0].mxu0 %v3166
    %v3205 = vpop.f32.mrb[0].mxu0
    %v3206 = vadd.f32 0.0, %v3205
    %v3207 = vpop.f32.mrb[0].mxu0
    %v3208 = vpop.f32.mrb[0].mxu0
    %v3209 = vpop.f32.mrb[0].mxu0
    %3210 = vdwg.mxu0
    %v3211 = vsel %vm360, %v3206, -inf
    %3212 = vmax.xlane.f32.xlu0 %v3211
    %v3213 = vpop.xlane.xlu0 %3212
    %v3214 = vsub.f32 %v3206, %v3213
    %v3215 = vmul.f32 %v3214, 1.442695
    %v3216 = vpow.pop %v3215
    %v3217 = vsel %vm360, %v3216, 0.0
    %3218 = vadd.xlane.f32.xlu0 %v3217
    %v3219 = vpop.xlane.xlu0 %3218
    %v3220 = vrcp.pop %v3219
    %v3221 = vmul.f32 %v3216, %v3220
    %v3222 = vpack.c.bf16 %v3221, %v3221
    %3224 = vrot.lane.b32.xlu0 %v3112, 120
    %v3225 = vpop.permute.xlu0 %3224
    %v3227 = vsel %vm360, %v3222, 0
    %v3230 = vsel %vm423, %v3225, 0
    %3232 = vmatprep.subr.bf16.mxu0 0
    %3233 = vmatpush1.bf16.msra.mxu0 %v3230
    %3234 = vmatprep.subr.bf16.mxu0 0
    %3235 = vmatpush1.bf16.msra.mxu0 0
    %3236 = vmatprep.subr.bf16.mxu0 0
    %3237 = vmatpush1.bf16.msra.mxu0 0
    %3238 = vmatprep.subr.bf16.mxu0 0
    %3239 = vmatpush1.bf16.msra.mxu0 0
    %3240 = vmatprep.subr.bf16.mxu0 0
    %3241 = vmatpush1.bf16.msra.mxu0 0
    %3242 = vmatprep.subr.bf16.mxu0 0
    %3243 = vmatpush1.bf16.msra.mxu0 0
    %3244 = vmatprep.subr.bf16.mxu0 0
    %3245 = vmatpush1.bf16.msra.mxu0 0
    %3246 = vmatprep.subr.bf16.mxu0 0
    %3247 = vmatpush1.bf16.msra.mxu0 0
    %3248 = vmatprep.subr.bf16.mxu0 0
    %3249 = vmatpush1.bf16.msra.mxu0 0
    %3250 = vmatprep.subr.bf16.mxu0 0
    %3251 = vmatpush1.bf16.msra.mxu0 0
    %3252 = vmatprep.subr.bf16.mxu0 0
    %3253 = vmatpush1.bf16.msra.mxu0 0
    %3254 = vmatprep.subr.bf16.mxu0 0
    %3255 = vmatpush1.bf16.msra.mxu0 0
    %3256 = vmatprep.subr.bf16.mxu0 0
    %3257 = vmatpush1.bf16.msra.mxu0 0
    %3258 = vmatprep.subr.bf16.mxu0 0
    %3259 = vmatpush1.bf16.msra.mxu0 0
    %3260 = vmatprep.subr.bf16.mxu0 0
    %3261 = vmatpush1.bf16.msra.mxu0 0
    %3262 = vmatprep.subr.bf16.mxu0 0
    %3263 = vmatpush1.bf16.msra.mxu0 0
    %3264 = vmatprep.mubr.bf16.mxu0 0
    %3265 = vmatmul.mubr.bf16.gmra.mrb[0].mxu0 %v3227
    %v3266 = vpop.f32.mrb[0].mxu0
    %v3267 = vadd.f32 0.0, %v3266
    %v3268 = vpop.f32.mrb[0].mxu0
    %v3269 = vpop.f32.mrb[0].mxu0
    %v3270 = vpop.f32.mrb[0].mxu0
    %3271 = vdwg.mxu0
    %3272 = vrot.lane.b32.xlu0 %v3052, 112
    %v3273 = vpop.permute.xlu0 %3272
    %3274 = vrot.lane.b32.xlu0 %v3053, 112
    %v3275 = vpop.permute.xlu0 %3274
    %v3277 = vsel %vm360, %v3273, 0
    %v3280 = vsel %vm360, %v3275, 0
    %3282 = vmatprep.subr.bf16.mxu0 0
    %3283 = vmatpush1.bf16.xpose.msra.mxu0 %v3280
    %3284 = vmatprep.subr.bf16.mxu0 0
    %3285 = vmatpush1.bf16.xpose.msra.mxu0 0
    %3286 = vmatprep.subr.bf16.mxu0 0
    %3287 = vmatpush1.bf16.xpose.msra.mxu0 0
    %3288 = vmatprep.subr.bf16.mxu0 0
    %3289 = vmatpush1.bf16.xpose.msra.mxu0 0
    %3290 = vmatprep.subr.bf16.mxu0 0
    %3291 = vmatpush1.bf16.xpose.msra.mxu0 0
    %3292 = vmatprep.subr.bf16.mxu0 0
    %3293 = vmatpush1.bf16.xpose.msra.mxu0 0
    %3294 = vmatprep.subr.bf16.mxu0 0
    %3295 = vmatpush1.bf16.xpose.msra.mxu0 0
    %3296 = vmatprep.subr.bf16.mxu0 0
    %3297 = vmatpush1.bf16.xpose.msra.mxu0 0
    %3298 = vmatprep.subr.bf16.mxu0 0
    %3299 = vmatpush1.bf16.xpose.msra.mxu0 0
    %3300 = vmatprep.subr.bf16.mxu0 0
    %3301 = vmatpush1.bf16.xpose.msra.mxu0 0
    %3302 = vmatprep.subr.bf16.mxu0 0
    %3303 = vmatpush1.bf16.xpose.msra.mxu0 0
    %3304 = vmatprep.subr.bf16.mxu0 0
    %3305 = vmatpush1.bf16.xpose.msra.mxu0 0
    %3306 = vmatprep.subr.bf16.mxu0 0
    %3307 = vmatpush1.bf16.xpose.msra.mxu0 0
    %3308 = vmatprep.subr.bf16.mxu0 0
    %3309 = vmatpush1.bf16.xpose.msra.mxu0 0
    %3310 = vmatprep.subr.bf16.mxu0 0
    %3311 = vmatpush1.bf16.xpose.msra.mxu0 0
    %3312 = vmatprep.subr.bf16.mxu0 0
    %3313 = vmatpush1.bf16.xpose.msra.mxu0 0
    %3314 = vmatprep.mubr.bf16.mxu0 0
    %3315 = vmatmul.mubr.bf16.gmra.mrb[0].mxu0 %v3277
    %v3316 = vpop.f32.mrb[0].mxu0
    %v3317 = vadd.f32 0.0, %v3316
    %v3318 = vpop.f32.mrb[0].mxu0
    %v3319 = vpop.f32.mrb[0].mxu0
    %v3320 = vpop.f32.mrb[0].mxu0
    %3321 = vdwg.mxu0
    %v3322 = vsel %vm360, %v3317, -inf
    %3323 = vmax.xlane.f32.xlu0 %v3322
    %v3324 = vpop.xlane.xlu0 %3323
    %v3325 = vsub.f32 %v3317, %v3324
    %v3326 = vmul.f32 %v3325, 1.442695
    %v3327 = vpow.pop %v3326
    %v3328 = vsel %vm360, %v3327, 0.0
    %3329 = vadd.xlane.f32.xlu0 %v3328
    %v3330 = vpop.xlane.xlu0 %3329
    %v3331 = vrcp.pop %v3330
    %v3332 = vmul.f32 %v3327, %v3331
    %v3333 = vpack.c.bf16 %v3332, %v3332
    %3334 = vrot.lane.b32.xlu0 %v3112, 112
    %v3335 = vpop.permute.xlu0 %3334
    %v3337 = vsel %vm360, %v3333, 0
    %v3340 = vsel %vm423, %v3335, 0
    %3342 = vmatprep.subr.bf16.mxu0 0
    %3343 = vmatpush1.bf16.msra.mxu0 %v3340
    %3344 = vmatprep.subr.bf16.mxu0 0
    %3345 = vmatpush1.bf16.msra.mxu0 0
    %3346 = vmatprep.subr.bf16.mxu0 0
    %3347 = vmatpush1.bf16.msra.mxu0 0
    %3348 = vmatprep.subr.bf16.mxu0 0
    %3349 = vmatpush1.bf16.msra.mxu0 0
    %3350 = vmatprep.subr.bf16.mxu0 0
    %3351 = vmatpush1.bf16.msra.mxu0 0
    %3352 = vmatprep.subr.bf16.mxu0 0
    %3353 = vmatpush1.bf16.msra.mxu0 0
    %3354 = vmatprep.subr.bf16.mxu0 0
    %3355 = vmatpush1.bf16.msra.mxu0 0
    %3356 = vmatprep.subr.bf16.mxu0 0
    %3357 = vmatpush1.bf16.msra.mxu0 0
    %3358 = vmatprep.subr.bf16.mxu0 0
    %3359 = vmatpush1.bf16.msra.mxu0 0
    %3360 = vmatprep.subr.bf16.mxu0 0
    %3361 = vmatpush1.bf16.msra.mxu0 0
    %3362 = vmatprep.subr.bf16.mxu0 0
    %3363 = vmatpush1.bf16.msra.mxu0 0
    %3364 = vmatprep.subr.bf16.mxu0 0
    %3365 = vmatpush1.bf16.msra.mxu0 0
    %3366 = vmatprep.subr.bf16.mxu0 0
    %3367 = vmatpush1.bf16.msra.mxu0 0
    %3368 = vmatprep.subr.bf16.mxu0 0
    %3369 = vmatpush1.bf16.msra.mxu0 0
    %3370 = vmatprep.subr.bf16.mxu0 0
    %3371 = vmatpush1.bf16.msra.mxu0 0
    %3372 = vmatprep.subr.bf16.mxu0 0
    %3373 = vmatpush1.bf16.msra.mxu0 0
    %3374 = vmatprep.mubr.bf16.mxu0 0
    %3375 = vmatmul.mubr.bf16.gmra.mrb[0].mxu0 %v3337
    %v3376 = vpop.f32.mrb[0].mxu0
    %v3377 = vadd.f32 0.0, %v3376
    %v3378 = vpop.f32.mrb[0].mxu0
    %v3379 = vpop.f32.mrb[0].mxu0
    %v3380 = vpop.f32.mrb[0].mxu0
    %3381 = vdwg.mxu0
    %3382 = vrot.lane.b32.xlu0 %v3052, 104
    %v3383 = vpop.permute.xlu0 %3382
    %3384 = vrot.lane.b32.xlu0 %v3053, 104
    %v3385 = vpop.permute.xlu0 %3384
    %v3387 = vsel %vm360, %v3383, 0
    %v3390 = vsel %vm360, %v3385, 0
    %3392 = vmatprep.subr.bf16.mxu0 0
    %3393 = vmatpush1.bf16.xpose.msra.mxu0 %v3390
    %3394 = vmatprep.subr.bf16.mxu0 0
    %3395 = vmatpush1.bf16.xpose.msra.mxu0 0
    %3396 = vmatprep.subr.bf16.mxu0 0
    %3397 = vmatpush1.bf16.xpose.msra.mxu0 0
    %3398 = vmatprep.subr.bf16.mxu0 0
    %3399 = vmatpush1.bf16.xpose.msra.mxu0 0
    %3400 = vmatprep.subr.bf16.mxu0 0
    %3401 = vmatpush1.bf16.xpose.msra.mxu0 0
    %3402 = vmatprep.subr.bf16.mxu0 0
    %3403 = vmatpush1.bf16.xpose.msra.mxu0 0
    %3404 = vmatprep.subr.bf16.mxu0 0
    %3405 = vmatpush1.bf16.xpose.msra.mxu0 0
    %3406 = vmatprep.subr.bf16.mxu0 0
    %3407 = vmatpush1.bf16.xpose.msra.mxu0 0
    %3408 = vmatprep.subr.bf16.mxu0 0
    %3409 = vmatpush1.bf16.xpose.msra.mxu0 0
    %3410 = vmatprep.subr.bf16.mxu0 0
    %3411 = vmatpush1.bf16.xpose.msra.mxu0 0
    %3412 = vmatprep.subr.bf16.mxu0 0
    %3413 = vmatpush1.bf16.xpose.msra.mxu0 0
    %3414 = vmatprep.subr.bf16.mxu0 0
    %3415 = vmatpush1.bf16.xpose.msra.mxu0 0
    %3416 = vmatprep.subr.bf16.mxu0 0
    %3417 = vmatpush1.bf16.xpose.msra.mxu0 0
    %3418 = vmatprep.subr.bf16.mxu0 0
    %3419 = vmatpush1.bf16.xpose.msra.mxu0 0
    %3420 = vmatprep.subr.bf16.mxu0 0
    %3421 = vmatpush1.bf16.xpose.msra.mxu0 0
    %3422 = vmatprep.subr.bf16.mxu0 0
    %3423 = vmatpush1.bf16.xpose.msra.mxu0 0
    %3424 = vmatprep.mubr.bf16.mxu0 0
    %3425 = vmatmul.mubr.bf16.gmra.mrb[0].mxu0 %v3387
    %v3426 = vpop.f32.mrb[0].mxu0
    %v3427 = vadd.f32 0.0, %v3426
    %v3428 = vpop.f32.mrb[0].mxu0
    %v3429 = vpop.f32.mrb[0].mxu0
    %v3430 = vpop.f32.mrb[0].mxu0
    %3431 = vdwg.mxu0
    %v3432 = vsel %vm360, %v3427, -inf
    %3433 = vmax.xlane.f32.xlu0 %v3432
    %v3434 = vpop.xlane.xlu0 %3433
    %v3435 = vsub.f32 %v3427, %v3434
    %v3436 = vmul.f32 %v3435, 1.442695
    %v3437 = vpow.pop %v3436
    %v3438 = vsel %vm360, %v3437, 0.0
    %3439 = vadd.xlane.f32.xlu0 %v3438
    %v3440 = vpop.xlane.xlu0 %3439
    %v3441 = vrcp.pop %v3440
    %v3442 = vmul.f32 %v3437, %v3441
    %v3443 = vpack.c.bf16 %v3442, %v3442
    %3444 = vrot.lane.b32.xlu0 %v3112, 104
    %v3445 = vpop.permute.xlu0 %3444
    %v3447 = vsel %vm360, %v3443, 0
    %v3450 = vsel %vm423, %v3445, 0
    %3452 = vmatprep.subr.bf16.mxu0 0
    %3453 = vmatpush1.bf16.msra.mxu0 %v3450
    %3454 = vmatprep.subr.bf16.mxu0 0
    %3455 = vmatpush1.bf16.msra.mxu0 0
    %3456 = vmatprep.subr.bf16.mxu0 0
    %3457 = vmatpush1.bf16.msra.mxu0 0
    %3458 = vmatprep.subr.bf16.mxu0 0
    %3459 = vmatpush1.bf16.msra.mxu0 0
    %3460 = vmatprep.subr.bf16.mxu0 0
    %3461 = vmatpush1.bf16.msra.mxu0 0
    %3462 = vmatprep.subr.bf16.mxu0 0
    %3463 = vmatpush1.bf16.msra.mxu0 0
    %3464 = vmatprep.subr.bf16.mxu0 0
    %3465 = vmatpush1.bf16.msra.mxu0 0
    %3466 = vmatprep.subr.bf16.mxu0 0
    %3467 = vmatpush1.bf16.msra.mxu0 0
    %3468 = vmatprep.subr.bf16.mxu0 0
    %3469 = vmatpush1.bf16.msra.mxu0 0
    %3470 = vmatprep.subr.bf16.mxu0 0
    %3471 = vmatpush1.bf16.msra.mxu0 0
    %3472 = vmatprep.subr.bf16.mxu0 0
    %3473 = vmatpush1.bf16.msra.mxu0 0
    %3474 = vmatprep.subr.bf16.mxu0 0
    %3475 = vmatpush1.bf16.msra.mxu0 0
    %3476 = vmatprep.subr.bf16.mxu0 0
    %3477 = vmatpush1.bf16.msra.mxu0 0
    %3478 = vmatprep.subr.bf16.mxu0 0
    %3479 = vmatpush1.bf16.msra.mxu0 0
    %3480 = vmatprep.subr.bf16.mxu0 0
    %3481 = vmatpush1.bf16.msra.mxu0 0
    %3482 = vmatprep.subr.bf16.mxu0 0
    %3483 = vmatpush1.bf16.msra.mxu0 0
    %3484 = vmatprep.mubr.bf16.mxu0 0
    %3485 = vmatmul.mubr.bf16.gmra.mrb[0].mxu0 %v3447
    %v3486 = vpop.f32.mrb[0].mxu0
    %v3487 = vadd.f32 0.0, %v3486
    %v3488 = vpop.f32.mrb[0].mxu0
    %v3489 = vpop.f32.mrb[0].mxu0
    %v3490 = vpop.f32.mrb[0].mxu0
    %3491 = vdwg.mxu0
    %3493 = vrot.lane.b32.xlu0 %v3267, 8
    %v3494 = vpop.permute.xlu0 %3493
    %3497 = vrot.lane.b32.xlu0 %v3377, 16
    %v3498 = vpop.permute.xlu0 %3497
    %3501 = vrot.lane.b32.xlu0 %v3487, 24
    %v3502 = vpop.permute.xlu0 %3501
    %v3504 = vsel %vm360, %v3154, %v3494
    %v3505 = vsel %vm813, %v3504, %v3498
    %v3506 = vsel %vm815, %v3505, %v3502
    %v3507 = vpack.c.bf16 %v3051, %v3051
    %v3508 = vpack.c.bf16 %v2925, %v2925
    %v3510 = vsel %vm360, %v3507, 0
    %v3513 = vsel %vm360, %v3508, 0
    %3515 = vmatprep.subr.bf16.mxu0 0
    %3516 = vmatpush1.bf16.xpose.msra.mxu0 %v3513
    %3517 = vmatprep.subr.bf16.mxu0 0
    %3518 = vmatpush1.bf16.xpose.msra.mxu0 0
    %3519 = vmatprep.subr.bf16.mxu0 0
    %3520 = vmatpush1.bf16.xpose.msra.mxu0 0
    %3521 = vmatprep.subr.bf16.mxu0 0
    %3522 = vmatpush1.bf16.xpose.msra.mxu0 0
    %3523 = vmatprep.subr.bf16.mxu0 0
    %3524 = vmatpush1.bf16.xpose.msra.mxu0 0
    %3525 = vmatprep.subr.bf16.mxu0 0
    %3526 = vmatpush1.bf16.xpose.msra.mxu0 0
    %3527 = vmatprep.subr.bf16.mxu0 0
    %3528 = vmatpush1.bf16.xpose.msra.mxu0 0
    %3529 = vmatprep.subr.bf16.mxu0 0
    %3530 = vmatpush1.bf16.xpose.msra.mxu0 0
    %3531 = vmatprep.subr.bf16.mxu0 0
    %3532 = vmatpush1.bf16.xpose.msra.mxu0 0
    %3533 = vmatprep.subr.bf16.mxu0 0
    %3534 = vmatpush1.bf16.xpose.msra.mxu0 0
    %3535 = vmatprep.subr.bf16.mxu0 0
    %3536 = vmatpush1.bf16.xpose.msra.mxu0 0
    %3537 = vmatprep.subr.bf16.mxu0 0
    %3538 = vmatpush1.bf16.xpose.msra.mxu0 0
    %3539 = vmatprep.subr.bf16.mxu0 0
    %3540 = vmatpush1.bf16.xpose.msra.mxu0 0
    %3541 = vmatprep.subr.bf16.mxu0 0
    %3542 = vmatpush1.bf16.xpose.msra.mxu0 0
    %3543 = vmatprep.subr.bf16.mxu0 0
    %3544 = vmatpush1.bf16.xpose.msra.mxu0 0
    %3545 = vmatprep.subr.bf16.mxu0 0
    %3546 = vmatpush1.bf16.xpose.msra.mxu0 0
    %3547 = vmatprep.mubr.bf16.mxu0 0
    %3548 = vmatmul.mubr.bf16.gmra.mrb[0].mxu0 %v3510
    %v3549 = vpop.f32.mrb[0].mxu0
    %v3550 = vadd.f32 0.0, %v3549
    %v3551 = vpop.f32.mrb[0].mxu0
    %v3552 = vpop.f32.mrb[0].mxu0
    %v3553 = vpop.f32.mrb[0].mxu0
    %3554 = vdwg.mxu0
    %v3555 = vsel %vm360, %v3550, -inf
    %3556 = vmax.xlane.f32.xlu0 %v3555
    %v3557 = vpop.xlane.xlu0 %3556
    %v3558 = vsub.f32 %v3550, %v3557
    %v3559 = vmul.f32 %v3558, 1.442695
    %v3560 = vpow.pop %v3559
    %v3561 = vsel %vm360, %v3560, 0.0
    %3562 = vadd.xlane.f32.xlu0 %v3561
    %v3563 = vpop.xlane.xlu0 %3562
    %v3564 = vrcp.pop %v3563
    %v3565 = vmul.f32 %v3560, %v3564
    %v3566 = vpack.c.bf16 %v3565, %v3565
    %v3567 = vpack.c.bf16 %v2986, %v2986
    %v3569 = vsel %vm360, %v3566, 0
    %v3572 = vsel %vm423, %v3567, 0
    %3574 = vmatprep.subr.bf16.mxu0 0
    %3575 = vmatpush1.bf16.msra.mxu0 %v3572
    %3576 = vmatprep.subr.bf16.mxu0 0
    %3577 = vmatpush1.bf16.msra.mxu0 0
    %3578 = vmatprep.subr.bf16.mxu0 0
    %3579 = vmatpush1.bf16.msra.mxu0 0
    %3580 = vmatprep.subr.bf16.mxu0 0
    %3581 = vmatpush1.bf16.msra.mxu0 0
    %3582 = vmatprep.subr.bf16.mxu0 0
    %3583 = vmatpush1.bf16.msra.mxu0 0
    %3584 = vmatprep.subr.bf16.mxu0 0
    %3585 = vmatpush1.bf16.msra.mxu0 0
    %3586 = vmatprep.subr.bf16.mxu0 0
    %3587 = vmatpush1.bf16.msra.mxu0 0
    %3588 = vmatprep.subr.bf16.mxu0 0
    %3589 = vmatpush1.bf16.msra.mxu0 0
    %3590 = vmatprep.subr.bf16.mxu0 0
    %3591 = vmatpush1.bf16.msra.mxu0 0
    %3592 = vmatprep.subr.bf16.mxu0 0
    %3593 = vmatpush1.bf16.msra.mxu0 0
    %3594 = vmatprep.subr.bf16.mxu0 0
    %3595 = vmatpush1.bf16.msra.mxu0 0
    %3596 = vmatprep.subr.bf16.mxu0 0
    %3597 = vmatpush1.bf16.msra.mxu0 0
    %3598 = vmatprep.subr.bf16.mxu0 0
    %3599 = vmatpush1.bf16.msra.mxu0 0
    %3600 = vmatprep.subr.bf16.mxu0 0
    %3601 = vmatpush1.bf16.msra.mxu0 0
    %3602 = vmatprep.subr.bf16.mxu0 0
    %3603 = vmatpush1.bf16.msra.mxu0 0
    %3604 = vmatprep.subr.bf16.mxu0 0
    %3605 = vmatpush1.bf16.msra.mxu0 0
    %3606 = vmatprep.mubr.bf16.mxu0 0
    %3607 = vmatmul.mubr.bf16.gmra.mrb[0].mxu0 %v3569
    %v3608 = vpop.f32.mrb[0].mxu0
    %v3609 = vadd.f32 0.0, %v3608
    %v3610 = vpop.f32.mrb[0].mxu0
    %v3611 = vpop.f32.mrb[0].mxu0
    %v3612 = vpop.f32.mrb[0].mxu0
    %3613 = vdwg.mxu0
    %3615 = vrot.lane.b32.xlu0 %v3507, 120
    %v3616 = vpop.permute.xlu0 %3615
    %3618 = vrot.lane.b32.xlu0 %v3508, 120
    %v3619 = vpop.permute.xlu0 %3618
    %v3621 = vsel %vm360, %v3616, 0
    %v3624 = vsel %vm360, %v3619, 0
    %3626 = vmatprep.subr.bf16.mxu0 0
    %3627 = vmatpush1.bf16.xpose.msra.mxu0 %v3624
    %3628 = vmatprep.subr.bf16.mxu0 0
    %3629 = vmatpush1.bf16.xpose.msra.mxu0 0
    %3630 = vmatprep.subr.bf16.mxu0 0
    %3631 = vmatpush1.bf16.xpose.msra.mxu0 0
    %3632 = vmatprep.subr.bf16.mxu0 0
    %3633 = vmatpush1.bf16.xpose.msra.mxu0 0
    %3634 = vmatprep.subr.bf16.mxu0 0
    %3635 = vmatpush1.bf16.xpose.msra.mxu0 0
    %3636 = vmatprep.subr.bf16.mxu0 0
    %3637 = vmatpush1.bf16.xpose.msra.mxu0 0
    %3638 = vmatprep.subr.bf16.mxu0 0
    %3639 = vmatpush1.bf16.xpose.msra.mxu0 0
    %3640 = vmatprep.subr.bf16.mxu0 0
    %3641 = vmatpush1.bf16.xpose.msra.mxu0 0
    %3642 = vmatprep.subr.bf16.mxu0 0
    %3643 = vmatpush1.bf16.xpose.msra.mxu0 0
    %3644 = vmatprep.subr.bf16.mxu0 0
    %3645 = vmatpush1.bf16.xpose.msra.mxu0 0
    %3646 = vmatprep.subr.bf16.mxu0 0
    %3647 = vmatpush1.bf16.xpose.msra.mxu0 0
    %3648 = vmatprep.subr.bf16.mxu0 0
    %3649 = vmatpush1.bf16.xpose.msra.mxu0 0
    %3650 = vmatprep.subr.bf16.mxu0 0
    %3651 = vmatpush1.bf16.xpose.msra.mxu0 0
    %3652 = vmatprep.subr.bf16.mxu0 0
    %3653 = vmatpush1.bf16.xpose.msra.mxu0 0
    %3654 = vmatprep.subr.bf16.mxu0 0
    %3655 = vmatpush1.bf16.xpose.msra.mxu0 0
    %3656 = vmatprep.subr.bf16.mxu0 0
    %3657 = vmatpush1.bf16.xpose.msra.mxu0 0
    %3658 = vmatprep.mubr.bf16.mxu0 0
    %3659 = vmatmul.mubr.bf16.gmra.mrb[0].mxu0 %v3621
    %v3660 = vpop.f32.mrb[0].mxu0
    %v3661 = vadd.f32 0.0, %v3660
    %v3662 = vpop.f32.mrb[0].mxu0
    %v3663 = vpop.f32.mrb[0].mxu0
    %v3664 = vpop.f32.mrb[0].mxu0
    %3665 = vdwg.mxu0
    %v3666 = vsel %vm360, %v3661, -inf
    %3667 = vmax.xlane.f32.xlu0 %v3666
    %v3668 = vpop.xlane.xlu0 %3667
    %v3669 = vsub.f32 %v3661, %v3668
    %v3670 = vmul.f32 %v3669, 1.442695
    %v3671 = vpow.pop %v3670
    %v3672 = vsel %vm360, %v3671, 0.0
    %3673 = vadd.xlane.f32.xlu0 %v3672
    %v3674 = vpop.xlane.xlu0 %3673
    %v3675 = vrcp.pop %v3674
    %v3676 = vmul.f32 %v3671, %v3675
    %v3677 = vpack.c.bf16 %v3676, %v3676
    %3679 = vrot.lane.b32.xlu0 %v3567, 120
    %v3680 = vpop.permute.xlu0 %3679
    %v3682 = vsel %vm360, %v3677, 0
    %v3685 = vsel %vm423, %v3680, 0
    %3687 = vmatprep.subr.bf16.mxu0 0
    %3688 = vmatpush1.bf16.msra.mxu0 %v3685
    %3689 = vmatprep.subr.bf16.mxu0 0
    %3690 = vmatpush1.bf16.msra.mxu0 0
    %3691 = vmatprep.subr.bf16.mxu0 0
    %3692 = vmatpush1.bf16.msra.mxu0 0
    %3693 = vmatprep.subr.bf16.mxu0 0
    %3694 = vmatpush1.bf16.msra.mxu0 0
    %3695 = vmatprep.subr.bf16.mxu0 0
    %3696 = vmatpush1.bf16.msra.mxu0 0
    %3697 = vmatprep.subr.bf16.mxu0 0
    %3698 = vmatpush1.bf16.msra.mxu0 0
    %3699 = vmatprep.subr.bf16.mxu0 0
    %3700 = vmatpush1.bf16.msra.mxu0 0
    %3701 = vmatprep.subr.bf16.mxu0 0
    %3702 = vmatpush1.bf16.msra.mxu0 0
    %3703 = vmatprep.subr.bf16.mxu0 0
    %3704 = vmatpush1.bf16.msra.mxu0 0
    %3705 = vmatprep.subr.bf16.mxu0 0
    %3706 = vmatpush1.bf16.msra.mxu0 0
    %3707 = vmatprep.subr.bf16.mxu0 0
    %3708 = vmatpush1.bf16.msra.mxu0 0
    %3709 = vmatprep.subr.bf16.mxu0 0
    %3710 = vmatpush1.bf16.msra.mxu0 0
    %3711 = vmatprep.subr.bf16.mxu0 0
    %3712 = vmatpush1.bf16.msra.mxu0 0
    %3713 = vmatprep.subr.bf16.mxu0 0
    %3714 = vmatpush1.bf16.msra.mxu0 0
    %3715 = vmatprep.subr.bf16.mxu0 0
    %3716 = vmatpush1.bf16.msra.mxu0 0
    %3717 = vmatprep.subr.bf16.mxu0 0
    %3718 = vmatpush1.bf16.msra.mxu0 0
    %3719 = vmatprep.mubr.bf16.mxu0 0
    %3720 = vmatmul.mubr.bf16.gmra.mrb[0].mxu0 %v3682
    %v3721 = vpop.f32.mrb[0].mxu0
    %v3722 = vadd.f32 0.0, %v3721
    %v3723 = vpop.f32.mrb[0].mxu0
    %v3724 = vpop.f32.mrb[0].mxu0
    %v3725 = vpop.f32.mrb[0].mxu0
    %3726 = vdwg.mxu0
    %3727 = vrot.lane.b32.xlu0 %v3507, 112
    %v3728 = vpop.permute.xlu0 %3727
    %3729 = vrot.lane.b32.xlu0 %v3508, 112
    %v3730 = vpop.permute.xlu0 %3729
    %v3732 = vsel %vm360, %v3728, 0
    %v3735 = vsel %vm360, %v3730, 0
    %3737 = vmatprep.subr.bf16.mxu0 0
    %3738 = vmatpush1.bf16.xpose.msra.mxu0 %v3735
    %3739 = vmatprep.subr.bf16.mxu0 0
    %3740 = vmatpush1.bf16.xpose.msra.mxu0 0
    %3741 = vmatprep.subr.bf16.mxu0 0
    %3742 = vmatpush1.bf16.xpose.msra.mxu0 0
    %3743 = vmatprep.subr.bf16.mxu0 0
    %3744 = vmatpush1.bf16.xpose.msra.mxu0 0
    %3745 = vmatprep.subr.bf16.mxu0 0
    %3746 = vmatpush1.bf16.xpose.msra.mxu0 0
    %3747 = vmatprep.subr.bf16.mxu0 0
    %3748 = vmatpush1.bf16.xpose.msra.mxu0 0
    %3749 = vmatprep.subr.bf16.mxu0 0
    %3750 = vmatpush1.bf16.xpose.msra.mxu0 0
    %3751 = vmatprep.subr.bf16.mxu0 0
    %3752 = vmatpush1.bf16.xpose.msra.mxu0 0
    %3753 = vmatprep.subr.bf16.mxu0 0
    %3754 = vmatpush1.bf16.xpose.msra.mxu0 0
    %3755 = vmatprep.subr.bf16.mxu0 0
    %3756 = vmatpush1.bf16.xpose.msra.mxu0 0
    %3757 = vmatprep.subr.bf16.mxu0 0
    %3758 = vmatpush1.bf16.xpose.msra.mxu0 0
    %3759 = vmatprep.subr.bf16.mxu0 0
    %3760 = vmatpush1.bf16.xpose.msra.mxu0 0
    %3761 = vmatprep.subr.bf16.mxu0 0
    %3762 = vmatpush1.bf16.xpose.msra.mxu0 0
    %3763 = vmatprep.subr.bf16.mxu0 0
    %3764 = vmatpush1.bf16.xpose.msra.mxu0 0
    %3765 = vmatprep.subr.bf16.mxu0 0
    %3766 = vmatpush1.bf16.xpose.msra.mxu0 0
    %3767 = vmatprep.subr.bf16.mxu0 0
    %3768 = vmatpush1.bf16.xpose.msra.mxu0 0
    %3769 = vmatprep.mubr.bf16.mxu0 0
    %3770 = vmatmul.mubr.bf16.gmra.mrb[0].mxu0 %v3732
    %v3771 = vpop.f32.mrb[0].mxu0
    %v3772 = vadd.f32 0.0, %v3771
    %v3773 = vpop.f32.mrb[0].mxu0
    %v3774 = vpop.f32.mrb[0].mxu0
    %v3775 = vpop.f32.mrb[0].mxu0
    %3776 = vdwg.mxu0
    %v3777 = vsel %vm360, %v3772, -inf
    %3778 = vmax.xlane.f32.xlu0 %v3777
    %v3779 = vpop.xlane.xlu0 %3778
    %v3780 = vsub.f32 %v3772, %v3779
    %v3781 = vmul.f32 %v3780, 1.442695
    %v3782 = vpow.pop %v3781
    %v3783 = vsel %vm360, %v3782, 0.0
    %3784 = vadd.xlane.f32.xlu0 %v3783
    %v3785 = vpop.xlane.xlu0 %3784
    %v3786 = vrcp.pop %v3785
    %v3787 = vmul.f32 %v3782, %v3786
    %v3788 = vpack.c.bf16 %v3787, %v3787
    %3789 = vrot.lane.b32.xlu0 %v3567, 112
    %v3790 = vpop.permute.xlu0 %3789
    %v3792 = vsel %vm360, %v3788, 0
    %v3795 = vsel %vm423, %v3790, 0
    %3797 = vmatprep.subr.bf16.mxu0 0
    %3798 = vmatpush1.bf16.msra.mxu0 %v3795
    %3799 = vmatprep.subr.bf16.mxu0 0
    %3800 = vmatpush1.bf16.msra.mxu0 0
    %3801 = vmatprep.subr.bf16.mxu0 0
    %3802 = vmatpush1.bf16.msra.mxu0 0
    %3803 = vmatprep.subr.bf16.mxu0 0
    %3804 = vmatpush1.bf16.msra.mxu0 0
    %3805 = vmatprep.subr.bf16.mxu0 0
    %3806 = vmatpush1.bf16.msra.mxu0 0
    %3807 = vmatprep.subr.bf16.mxu0 0
    %3808 = vmatpush1.bf16.msra.mxu0 0
    %3809 = vmatprep.subr.bf16.mxu0 0
    %3810 = vmatpush1.bf16.msra.mxu0 0
    %3811 = vmatprep.subr.bf16.mxu0 0
    %3812 = vmatpush1.bf16.msra.mxu0 0
    %3813 = vmatprep.subr.bf16.mxu0 0
    %3814 = vmatpush1.bf16.msra.mxu0 0
    %3815 = vmatprep.subr.bf16.mxu0 0
    %3816 = vmatpush1.bf16.msra.mxu0 0
    %3817 = vmatprep.subr.bf16.mxu0 0
    %3818 = vmatpush1.bf16.msra.mxu0 0
    %3819 = vmatprep.subr.bf16.mxu0 0
    %3820 = vmatpush1.bf16.msra.mxu0 0
    %3821 = vmatprep.subr.bf16.mxu0 0
    %3822 = vmatpush1.bf16.msra.mxu0 0
    %3823 = vmatprep.subr.bf16.mxu0 0
    %3824 = vmatpush1.bf16.msra.mxu0 0
    %3825 = vmatprep.subr.bf16.mxu0 0
    %3826 = vmatpush1.bf16.msra.mxu0 0
    %3827 = vmatprep.subr.bf16.mxu0 0
    %3828 = vmatpush1.bf16.msra.mxu0 0
    %3829 = vmatprep.mubr.bf16.mxu0 0
    %3830 = vmatmul.mubr.bf16.gmra.mrb[0].mxu0 %v3792
    %v3831 = vpop.f32.mrb[0].mxu0
    %v3832 = vadd.f32 0.0, %v3831
    %v3833 = vpop.f32.mrb[0].mxu0
    %v3834 = vpop.f32.mrb[0].mxu0
    %v3835 = vpop.f32.mrb[0].mxu0
    %3836 = vdwg.mxu0
    %3837 = vrot.lane.b32.xlu0 %v3507, 104
    %v3838 = vpop.permute.xlu0 %3837
    %3839 = vrot.lane.b32.xlu0 %v3508, 104
    %v3840 = vpop.permute.xlu0 %3839
    %v3842 = vsel %vm360, %v3838, 0
    %v3845 = vsel %vm360, %v3840, 0
    %3847 = vmatprep.subr.bf16.mxu0 0
    %3848 = vmatpush1.bf16.xpose.msra.mxu0 %v3845
    %3849 = vmatprep.subr.bf16.mxu0 0
    %3850 = vmatpush1.bf16.xpose.msra.mxu0 0
    %3851 = vmatprep.subr.bf16.mxu0 0
    %3852 = vmatpush1.bf16.xpose.msra.mxu0 0
    %3853 = vmatprep.subr.bf16.mxu0 0
    %3854 = vmatpush1.bf16.xpose.msra.mxu0 0
    %3855 = vmatprep.subr.bf16.mxu0 0
    %3856 = vmatpush1.bf16.xpose.msra.mxu0 0
    %3857 = vmatprep.subr.bf16.mxu0 0
    %3858 = vmatpush1.bf16.xpose.msra.mxu0 0
    %3859 = vmatprep.subr.bf16.mxu0 0
    %3860 = vmatpush1.bf16.xpose.msra.mxu0 0
    %3861 = vmatprep.subr.bf16.mxu0 0
    %3862 = vmatpush1.bf16.xpose.msra.mxu0 0
    %3863 = vmatprep.subr.bf16.mxu0 0
    %3864 = vmatpush1.bf16.xpose.msra.mxu0 0
    %3865 = vmatprep.subr.bf16.mxu0 0
    %3866 = vmatpush1.bf16.xpose.msra.mxu0 0
    %3867 = vmatprep.subr.bf16.mxu0 0
    %3868 = vmatpush1.bf16.xpose.msra.mxu0 0
    %3869 = vmatprep.subr.bf16.mxu0 0
    %3870 = vmatpush1.bf16.xpose.msra.mxu0 0
    %3871 = vmatprep.subr.bf16.mxu0 0
    %3872 = vmatpush1.bf16.xpose.msra.mxu0 0
    %3873 = vmatprep.subr.bf16.mxu0 0
    %3874 = vmatpush1.bf16.xpose.msra.mxu0 0
    %3875 = vmatprep.subr.bf16.mxu0 0
    %3876 = vmatpush1.bf16.xpose.msra.mxu0 0
    %3877 = vmatprep.subr.bf16.mxu0 0
    %3878 = vmatpush1.bf16.xpose.msra.mxu0 0
    %3879 = vmatprep.mubr.bf16.mxu0 0
    %3880 = vmatmul.mubr.bf16.gmra.mrb[0].mxu0 %v3842
    %v3881 = vpop.f32.mrb[0].mxu0
    %v3882 = vadd.f32 0.0, %v3881
    %v3883 = vpop.f32.mrb[0].mxu0
    %v3884 = vpop.f32.mrb[0].mxu0
    %v3885 = vpop.f32.mrb[0].mxu0
    %3886 = vdwg.mxu0
    %v3887 = vsel %vm360, %v3882, -inf
    %3888 = vmax.xlane.f32.xlu0 %v3887
    %v3889 = vpop.xlane.xlu0 %3888
    %v3890 = vsub.f32 %v3882, %v3889
    %v3891 = vmul.f32 %v3890, 1.442695
    %v3892 = vpow.pop %v3891
    %v3893 = vsel %vm360, %v3892, 0.0
    %3894 = vadd.xlane.f32.xlu0 %v3893
    %v3895 = vpop.xlane.xlu0 %3894
    %v3896 = vrcp.pop %v3895
    %v3897 = vmul.f32 %v3892, %v3896
    %v3898 = vpack.c.bf16 %v3897, %v3897
    %3899 = vrot.lane.b32.xlu0 %v3567, 104
    %v3900 = vpop.permute.xlu0 %3899
    %v3902 = vsel %vm360, %v3898, 0
    %v3905 = vsel %vm423, %v3900, 0
    %3907 = vmatprep.subr.bf16.mxu0 0
    %3908 = vmatpush1.bf16.msra.mxu0 %v3905
    %3909 = vmatprep.subr.bf16.mxu0 0
    %3910 = vmatpush1.bf16.msra.mxu0 0
    %3911 = vmatprep.subr.bf16.mxu0 0
    %3912 = vmatpush1.bf16.msra.mxu0 0
    %3913 = vmatprep.subr.bf16.mxu0 0
    %3914 = vmatpush1.bf16.msra.mxu0 0
    %3915 = vmatprep.subr.bf16.mxu0 0
    %3916 = vmatpush1.bf16.msra.mxu0 0
    %3917 = vmatprep.subr.bf16.mxu0 0
    %3918 = vmatpush1.bf16.msra.mxu0 0
    %3919 = vmatprep.subr.bf16.mxu0 0
    %3920 = vmatpush1.bf16.msra.mxu0 0
    %3921 = vmatprep.subr.bf16.mxu0 0
    %3922 = vmatpush1.bf16.msra.mxu0 0
    %3923 = vmatprep.subr.bf16.mxu0 0
    %3924 = vmatpush1.bf16.msra.mxu0 0
    %3925 = vmatprep.subr.bf16.mxu0 0
    %3926 = vmatpush1.bf16.msra.mxu0 0
    %3927 = vmatprep.subr.bf16.mxu0 0
    %3928 = vmatpush1.bf16.msra.mxu0 0
    %3929 = vmatprep.subr.bf16.mxu0 0
    %3930 = vmatpush1.bf16.msra.mxu0 0
    %3931 = vmatprep.subr.bf16.mxu0 0
    %3932 = vmatpush1.bf16.msra.mxu0 0
    %3933 = vmatprep.subr.bf16.mxu0 0
    %3934 = vmatpush1.bf16.msra.mxu0 0
    %3935 = vmatprep.subr.bf16.mxu0 0
    %3936 = vmatpush1.bf16.msra.mxu0 0
    %3937 = vmatprep.subr.bf16.mxu0 0
    %3938 = vmatpush1.bf16.msra.mxu0 0
    %3939 = vmatprep.mubr.bf16.mxu0 0
    %3940 = vmatmul.mubr.bf16.gmra.mrb[0].mxu0 %v3902
    %v3941 = vpop.f32.mrb[0].mxu0
    %v3942 = vadd.f32 0.0, %v3941
    %v3943 = vpop.f32.mrb[0].mxu0
    %v3944 = vpop.f32.mrb[0].mxu0
    %v3945 = vpop.f32.mrb[0].mxu0
    %3946 = vdwg.mxu0
    %3948 = vrot.lane.b32.xlu0 %v3722, 8
    %v3949 = vpop.permute.xlu0 %3948
    %3952 = vrot.lane.b32.xlu0 %v3832, 16
    %v3953 = vpop.permute.xlu0 %3952
    %3956 = vrot.lane.b32.xlu0 %v3942, 24
    %v3957 = vpop.permute.xlu0 %3956
    %v3959 = vsel %vm360, %v3609, %v3949
    %v3960 = vsel %vm813, %v3959, %v3953
    %v3961 = vsel %vm815, %v3960, %v3957
    %v3962 = vld [vmem:[%s3 + $0xd0] sm:$0xf]
    %v3963 = vld [vmem:[%s3 + $0xd4] sm:$0xf]
    %v3964 = vld [vmem:[%s3 + $0xd8] sm:$0xf]
    %v3965 = vld [vmem:[%s3 + $0xdc] sm:$0xf]
    %v3966 = vld [vmem:[%s3 + $0xe0] sm:$0xf]
    %v3967 = vld [vmem:[%s3 + $0xe4] sm:$0xf]
    %v3968 = vld [vmem:[%s3 + $0xe8] sm:$0xf]
    %v3969 = vld [vmem:[%s3 + $0xec] sm:$0xf]
    %v3970 = vpack.c.bf16 %v3961, %v3506
    %v3975 = vunpack.c.l.b16 %v3966
    %v3976 = vunpack.c.l.b16 %v3967
    %v3977 = vunpack.c.l.b16 %v3968
    %v3978 = vunpack.c.l.b16 %v3969
    %v3979 = vpack.c.b16 %v3976, %v3975
    %v3980 = vpack.c.b16 %v3978, %v3977
    %v3984 = vsel %vm141, %v3970, 0
    %3986 = vmatprep.subr.bf16.mxu0 0
    %3987 = vmatpush1.bf16.msra.mxu0 %v3979
    %3988 = vmatprep.subr.bf16.mxu0 0
    %3989 = vmatpush1.bf16.msra.mxu0 %v3980
    %3990 = vmatprep.subr.bf16.mxu0 0
    %3991 = vmatpush1.bf16.msra.mxu0 0
    %3992 = vmatprep.subr.bf16.mxu0 0
    %3993 = vmatpush1.bf16.msra.mxu0 0
    %3994 = vmatprep.subr.bf16.mxu0 0
    %3995 = vmatpush1.bf16.msra.mxu0 0
    %3996 = vmatprep.subr.bf16.mxu0 0
    %3997 = vmatpush1.bf16.msra.mxu0 0
    %3998 = vmatprep.subr.bf16.mxu0 0
    %3999 = vmatpush1.bf16.msra.mxu0 0
    %4000 = vmatprep.subr.bf16.mxu0 0
    %4001 = vmatpush1.bf16.msra.mxu0 0
    %4002 = vmatprep.subr.bf16.mxu0 0
    %4003 = vmatpush1.bf16.msra.mxu0 0
    %4004 = vmatprep.subr.bf16.mxu0 0
    %4005 = vmatpush1.bf16.msra.mxu0 0
    %4006 = vmatprep.subr.bf16.mxu0 0
    %4007 = vmatpush1.bf16.msra.mxu0 0
    %4008 = vmatprep.subr.bf16.mxu0 0
    %4009 = vmatpush1.bf16.msra.mxu0 0
    %4010 = vmatprep.subr.bf16.mxu0 0
    %4011 = vmatpush1.bf16.msra.mxu0 0
    %4012 = vmatprep.subr.bf16.mxu0 0
    %4013 = vmatpush1.bf16.msra.mxu0 0
    %4014 = vmatprep.subr.bf16.mxu0 0
    %4015 = vmatpush1.bf16.msra.mxu0 0
    %4016 = vmatprep.subr.bf16.mxu0 0
    %4017 = vmatpush1.bf16.msra.mxu0 0
    %4018 = vmatprep.mubr.bf16.mxu0 0
    %4019 = vmatmul.mubr.bf16.gmra.mrb[0].mxu0 %v3984
    %v4020 = vpop.f32.mrb[0].mxu0
    %v4021 = vadd.f32 0.0, %v4020
    %v4022 = vpop.f32.mrb[0].mxu0
    %v4023 = vpop.f32.mrb[0].mxu0
    %v4024 = vadd.f32 0.0, %v4023
    %v4025 = vpop.f32.mrb[0].mxu0
    %4026 = vdwg.mxu0
    %v4031 = vunpack.c.l.b16 %v3962
    %v4032 = vunpack.c.l.b16 %v3963
    %v4033 = vunpack.c.l.b16 %v3964
    %v4034 = vunpack.c.l.b16 %v3965
    %v4035 = vpack.c.b16 %v4032, %v4031
    %v4036 = vpack.c.b16 %v4034, %v4033
    %4039 = vmatprep.subr.bf16.mxu0 0
    %4040 = vmatpush1.bf16.msra.mxu0 %v4035
    %4041 = vmatprep.subr.bf16.mxu0 0
    %4042 = vmatpush1.bf16.msra.mxu0 %v4036
    %4043 = vmatprep.subr.bf16.mxu0 0
    %4044 = vmatpush1.bf16.msra.mxu0 0
    %4045 = vmatprep.subr.bf16.mxu0 0
    %4046 = vmatpush1.bf16.msra.mxu0 0
    %4047 = vmatprep.subr.bf16.mxu0 0
    %4048 = vmatpush1.bf16.msra.mxu0 0
    %4049 = vmatprep.subr.bf16.mxu0 0
    %4050 = vmatpush1.bf16.msra.mxu0 0
    %4051 = vmatprep.subr.bf16.mxu0 0
    %4052 = vmatpush1.bf16.msra.mxu0 0
    %4053 = vmatprep.subr.bf16.mxu0 0
    %4054 = vmatpush1.bf16.msra.mxu0 0
    %4055 = vmatprep.subr.bf16.mxu0 0
    %4056 = vmatpush1.bf16.msra.mxu0 0
    %4057 = vmatprep.subr.bf16.mxu0 0
    %4058 = vmatpush1.bf16.msra.mxu0 0
    %4059 = vmatprep.subr.bf16.mxu0 0
    %4060 = vmatpush1.bf16.msra.mxu0 0
    %4061 = vmatprep.subr.bf16.mxu0 0
    %4062 = vmatpush1.bf16.msra.mxu0 0
    %4063 = vmatprep.subr.bf16.mxu0 0
    %4064 = vmatpush1.bf16.msra.mxu0 0
    %4065 = vmatprep.subr.bf16.mxu0 0
    %4066 = vmatpush1.bf16.msra.mxu0 0
    %4067 = vmatprep.subr.bf16.mxu0 0
    %4068 = vmatpush1.bf16.msra.mxu0 0
    %4069 = vmatprep.subr.bf16.mxu0 0
    %4070 = vmatpush1.bf16.msra.mxu0 0
    %4071 = vmatprep.mubr.bf16.mxu0 0
    %4072 = vmatmul.mubr.bf16.gmra.mrb[0].mxu0 %v3007
    %v4073 = vpop.f32.mrb[0].mxu0
    %v4074 = vadd.f32 %v4021, %v4073
    %v4075 = vpop.f32.mrb[0].mxu0
    %v4076 = vpop.f32.mrb[0].mxu0
    %v4077 = vadd.f32 %v4024, %v4076
    %v4078 = vpop.f32.mrb[0].mxu0
    %4079 = vdwg.mxu0
    %v4080 = vld [vmem:[%s4 + $0x15] sm:$0x1]
    %v4081 = vlaneseq
    %v4082 = vshrl.u32 %v4081, 7
    %v4083 = vsub.s32 0, %v4082
    %v4084 = vrot.slane %v4080, %v4083
    %v4085 = vadd.f32 %v4074, %v4084
    %v4086 = vadd.f32 %v4077, %v4084
    %v4087 = vadd.f32 %v4085, %v2775
    %v4088 = vadd.f32 %v4086, %v2780
    %v4089 = vld [vmem:[%s4 + $0x16] sm:$0x1]
    %v4090 = vld [vmem:[%s4 + $0x17] sm:$0x1]
    %v4091 = vsel %vm141, %v4087, 0.0
    %4092 = vadd.xlane.f32.xlu0 %v4091
    %v4093 = vpop.xlane.xlu0 %4092
    %v4094 = vsel %vm141, %v4088, 0.0
    %4095 = vadd.xlane.f32.xlu0 %v4094
    %v4096 = vpop.xlane.xlu0 %4095
    %v4097 = vmul.f32 %v4093, %v148
    %v4098 = vmul.f32 %v4096, %v148
    %v4099 = vsub.f32 %v4087, %v4097
    %v4100 = vsub.f32 %v4088, %v4098
    %v4101 = vmul.f32 %v4099, %v4099
    %v4102 = vmul.f32 %v4100, %v4100
    %v4103 = vsel %vm141, %v4101, 0.0
    %4104 = vadd.xlane.f32.xlu0 %v4103
    %v4105 = vpop.xlane.xlu0 %4104
    %v4106 = vsel %vm141, %v4102, 0.0
    %4107 = vadd.xlane.f32.xlu0 %v4106
    %v4108 = vpop.xlane.xlu0 %4107
    %v4109 = vmul.f32 %v4105, %v148
    %v4110 = vmul.f32 %v4108, %v148
    %v4111 = vadd.f32 %v4109, 1e-05
    %v4112 = vadd.f32 %v4110, 1e-05
    %v4113 = vrsqrt.pop %v4111
    %v4114 = vrsqrt.pop %v4112
    %v4115 = vmul.f32 %v4099, %v4113
    %v4116 = vmul.f32 %v4100, %v4114
    %v4117 = vlaneseq
    %v4118 = vshrl.u32 %v4117, 7
    %v4119 = vsub.s32 0, %v4118
    %v4120 = vrot.slane %v4089, %v4119
    %v4121 = vmul.f32 %v4115, %v4120
    %v4122 = vmul.f32 %v4116, %v4120
    %v4123 = vlaneseq
    %v4124 = vshrl.u32 %v4123, 7
    %v4125 = vsub.s32 0, %v4124
    %v4126 = vrot.slane %v4090, %v4125
    %v4127 = vadd.f32 %v4121, %v4126
    %v4128 = vadd.f32 %v4122, %v4126
    %v4129 = vld [vmem:[%s3 + $0xf0] sm:$0xf]
    %v4130 = vld [vmem:[%s3 + $0xf4] sm:$0xf]
    %v4131 = vld [vmem:[%s3 + $0xf8] sm:$0xf]
    %v4132 = vld [vmem:[%s3 + $0xfc] sm:$0xf]
    %v4137 = vunpack.c.l.b16 %v4129
    %v4138 = vunpack.c.l.b16 %v4130
    %v4139 = vunpack.c.l.b16 %v4131
    %v4140 = vunpack.c.l.b16 %v4132
    %v4141 = vpack.c.b16 %v4138, %v4137
    %v4142 = vpack.c.b16 %v4140, %v4139
    %4145 = vmatprep.subr.bf16.mxu0 0
    %4146 = vmatpush1.bf16.msra.mxu0 %v4141
    %4147 = vmatprep.subr.bf16.mxu0 0
    %4148 = vmatpush1.bf16.msra.mxu0 %v4142
    %4149 = vmatprep.subr.bf16.mxu0 0
    %4150 = vmatpush1.bf16.msra.mxu0 0
    %4151 = vmatprep.subr.bf16.mxu0 0
    %4152 = vmatpush1.bf16.msra.mxu0 0
    %4153 = vmatprep.subr.bf16.mxu0 0
    %4154 = vmatpush1.bf16.msra.mxu0 0
    %4155 = vmatprep.subr.bf16.mxu0 0
    %4156 = vmatpush1.bf16.msra.mxu0 0
    %4157 = vmatprep.subr.bf16.mxu0 0
    %4158 = vmatpush1.bf16.msra.mxu0 0
    %4159 = vmatprep.subr.bf16.mxu0 0
    %4160 = vmatpush1.bf16.msra.mxu0 0
    %4161 = vmatprep.subr.bf16.mxu0 0
    %4162 = vmatpush1.bf16.msra.mxu0 0
    %4163 = vmatprep.subr.bf16.mxu0 0
    %4164 = vmatpush1.bf16.msra.mxu0 0
    %4165 = vmatprep.subr.bf16.mxu0 0
    %4166 = vmatpush1.bf16.msra.mxu0 0
    %4167 = vmatprep.subr.bf16.mxu0 0
    %4168 = vmatpush1.bf16.msra.mxu0 0
    %4169 = vmatprep.subr.bf16.mxu0 0
    %4170 = vmatpush1.bf16.msra.mxu0 0
    %4171 = vmatprep.subr.bf16.mxu0 0
    %4172 = vmatpush1.bf16.msra.mxu0 0
    %4173 = vmatprep.subr.bf16.mxu0 0
    %4174 = vmatpush1.bf16.msra.mxu0 0
    %4175 = vmatprep.subr.bf16.mxu0 0
    %4176 = vmatpush1.bf16.msra.mxu0 0
    %4177 = vmatprep.mubr.bf16.mxu0 0
    %4178 = vmatmul.mubr.bf16.gmra.mrb[0].mxu0 %v2885
    %v4179 = vpop.f32.mrb[0].mxu0
    %v4180 = vadd.f32 0.0, %v4179
    %v4181 = vpop.f32.mrb[0].mxu0
    %v4182 = vpop.f32.mrb[0].mxu0
    %v4183 = vadd.f32 0.0, %v4182
    %v4184 = vpop.f32.mrb[0].mxu0
    %4185 = vdwg.mxu0
    %v4186 = vld [vmem:[%s3 + $0x100] sm:$0xf]
    %v4187 = vld [vmem:[%s3 + $0x104] sm:$0xf]
    %v4188 = vld [vmem:[%s3 + $0x108] sm:$0xf]
    %v4189 = vld [vmem:[%s3 + $0x10c] sm:$0xf]
    %v4194 = vunpack.c.l.b16 %v4186
    %v4195 = vunpack.c.l.b16 %v4187
    %v4196 = vunpack.c.l.b16 %v4188
    %v4197 = vunpack.c.l.b16 %v4189
    %v4198 = vpack.c.b16 %v4195, %v4194
    %v4199 = vpack.c.b16 %v4197, %v4196
    %4202 = vmatprep.subr.bf16.mxu0 0
    %4203 = vmatpush1.bf16.msra.mxu0 %v4198
    %4204 = vmatprep.subr.bf16.mxu0 0
    %4205 = vmatpush1.bf16.msra.mxu0 %v4199
    %4206 = vmatprep.subr.bf16.mxu0 0
    %4207 = vmatpush1.bf16.msra.mxu0 0
    %4208 = vmatprep.subr.bf16.mxu0 0
    %4209 = vmatpush1.bf16.msra.mxu0 0
    %4210 = vmatprep.subr.bf16.mxu0 0
    %4211 = vmatpush1.bf16.msra.mxu0 0
    %4212 = vmatprep.subr.bf16.mxu0 0
    %4213 = vmatpush1.bf16.msra.mxu0 0
    %4214 = vmatprep.subr.bf16.mxu0 0
    %4215 = vmatpush1.bf16.msra.mxu0 0
    %4216 = vmatprep.subr.bf16.mxu0 0
    %4217 = vmatpush1.bf16.msra.mxu0 0
    %4218 = vmatprep.subr.bf16.mxu0 0
    %4219 = vmatpush1.bf16.msra.mxu0 0
    %4220 = vmatprep.subr.bf16.mxu0 0
    %4221 = vmatpush1.bf16.msra.mxu0 0
    %4222 = vmatprep.subr.bf16.mxu0 0
    %4223 = vmatpush1.bf16.msra.mxu0 0
    %4224 = vmatprep.subr.bf16.mxu0 0
    %4225 = vmatpush1.bf16.msra.mxu0 0
    %4226 = vmatprep.subr.bf16.mxu0 0
    %4227 = vmatpush1.bf16.msra.mxu0 0
    %4228 = vmatprep.subr.bf16.mxu0 0
    %4229 = vmatpush1.bf16.msra.mxu0 0
    %4230 = vmatprep.subr.bf16.mxu0 0
    %4231 = vmatpush1.bf16.msra.mxu0 0
    %4232 = vmatprep.subr.bf16.mxu0 0
    %4233 = vmatpush1.bf16.msra.mxu0 0
    %4234 = vmatprep.mubr.bf16.mxu0 0
    %4235 = vmatmul.mubr.bf16.gmra.mrb[0].mxu0 %v2946
    %v4236 = vpop.f32.mrb[0].mxu0
    %v4237 = vadd.f32 0.0, %v4236
    %v4238 = vpop.f32.mrb[0].mxu0
    %v4239 = vpop.f32.mrb[0].mxu0
    %v4240 = vadd.f32 0.0, %v4239
    %v4241 = vpop.f32.mrb[0].mxu0
    %4242 = vdwg.mxu0
    %v4243 = vld [vmem:[%s3 + $0x110] sm:$0xf]
    %v4244 = vld [vmem:[%s3 + $0x114] sm:$0xf]
    %v4245 = vld [vmem:[%s3 + $0x118] sm:$0xf]
    %v4246 = vld [vmem:[%s3 + $0x11c] sm:$0xf]
    %v4247 = vpack.c.bf16 %v4128, %v4127
    %v4252 = vunpack.c.l.b16 %v4243
    %v4253 = vunpack.c.l.b16 %v4244
    %v4254 = vunpack.c.l.b16 %v4245
    %v4255 = vunpack.c.l.b16 %v4246
    %v4256 = vpack.c.b16 %v4253, %v4252
    %v4257 = vpack.c.b16 %v4255, %v4254
    %v4261 = vsel %vm141, %v4247, 0
    %4263 = vmatprep.subr.bf16.mxu0 0
    %4264 = vmatpush1.bf16.msra.mxu0 %v4256
    %4265 = vmatprep.subr.bf16.mxu0 0
    %4266 = vmatpush1.bf16.msra.mxu0 %v4257
    %4267 = vmatprep.subr.bf16.mxu0 0
    %4268 = vmatpush1.bf16.msra.mxu0 0
    %4269 = vmatprep.subr.bf16.mxu0 0
    %4270 = vmatpush1.bf16.msra.mxu0 0
    %4271 = vmatprep.subr.bf16.mxu0 0
    %4272 = vmatpush1.bf16.msra.mxu0 0
    %4273 = vmatprep.subr.bf16.mxu0 0
    %4274 = vmatpush1.bf16.msra.mxu0 0
    %4275 = vmatprep.subr.bf16.mxu0 0
    %4276 = vmatpush1.bf16.msra.mxu0 0
    %4277 = vmatprep.subr.bf16.mxu0 0
    %4278 = vmatpush1.bf16.msra.mxu0 0
    %4279 = vmatprep.subr.bf16.mxu0 0
    %4280 = vmatpush1.bf16.msra.mxu0 0
    %4281 = vmatprep.subr.bf16.mxu0 0
    %4282 = vmatpush1.bf16.msra.mxu0 0
    %4283 = vmatprep.subr.bf16.mxu0 0
    %4284 = vmatpush1.bf16.msra.mxu0 0
    %4285 = vmatprep.subr.bf16.mxu0 0
    %4286 = vmatpush1.bf16.msra.mxu0 0
    %4287 = vmatprep.subr.bf16.mxu0 0
    %4288 = vmatpush1.bf16.msra.mxu0 0
    %4289 = vmatprep.subr.bf16.mxu0 0
    %4290 = vmatpush1.bf16.msra.mxu0 0
    %4291 = vmatprep.subr.bf16.mxu0 0
    %4292 = vmatpush1.bf16.msra.mxu0 0
    %4293 = vmatprep.subr.bf16.mxu0 0
    %4294 = vmatpush1.bf16.msra.mxu0 0
    %4295 = vmatprep.mubr.bf16.mxu0 0
    %4296 = vmatmul.mubr.bf16.gmra.mrb[0].mxu0 %v4261
    %v4297 = vpop.f32.mrb[0].mxu0
    %v4298 = vadd.f32 0.0, %v4297
    %v4299 = vpop.f32.mrb[0].mxu0
    %v4300 = vpop.f32.mrb[0].mxu0
    %v4301 = vadd.f32 0.0, %v4300
    %v4302 = vpop.f32.mrb[0].mxu0
    %4303 = vdwg.mxu0
    %v4304 = vmul.f32 %v4298, 0.35355338
    %v4305 = vmul.f32 %v4301, 0.35355338
    %v4306 = vpack.c.bf16 %v4304, %v4304
    %v4307 = vpack.c.bf16 %v4180, %v4180
    %v4309 = vsel %vm360, %v4306, 0
    %v4312 = vsel %vm360, %v4307, 0
    %4314 = vmatprep.subr.bf16.mxu0 0
    %4315 = vmatpush1.bf16.xpose.msra.mxu0 %v4312
    %4316 = vmatprep.subr.bf16.mxu0 0
    %4317 = vmatpush1.bf16.xpose.msra.mxu0 0
    %4318 = vmatprep.subr.bf16.mxu0 0
    %4319 = vmatpush1.bf16.xpose.msra.mxu0 0
    %4320 = vmatprep.subr.bf16.mxu0 0
    %4321 = vmatpush1.bf16.xpose.msra.mxu0 0
    %4322 = vmatprep.subr.bf16.mxu0 0
    %4323 = vmatpush1.bf16.xpose.msra.mxu0 0
    %4324 = vmatprep.subr.bf16.mxu0 0
    %4325 = vmatpush1.bf16.xpose.msra.mxu0 0
    %4326 = vmatprep.subr.bf16.mxu0 0
    %4327 = vmatpush1.bf16.xpose.msra.mxu0 0
    %4328 = vmatprep.subr.bf16.mxu0 0
    %4329 = vmatpush1.bf16.xpose.msra.mxu0 0
    %4330 = vmatprep.subr.bf16.mxu0 0
    %4331 = vmatpush1.bf16.xpose.msra.mxu0 0
    %4332 = vmatprep.subr.bf16.mxu0 0
    %4333 = vmatpush1.bf16.xpose.msra.mxu0 0
    %4334 = vmatprep.subr.bf16.mxu0 0
    %4335 = vmatpush1.bf16.xpose.msra.mxu0 0
    %4336 = vmatprep.subr.bf16.mxu0 0
    %4337 = vmatpush1.bf16.xpose.msra.mxu0 0
    %4338 = vmatprep.subr.bf16.mxu0 0
    %4339 = vmatpush1.bf16.xpose.msra.mxu0 0
    %4340 = vmatprep.subr.bf16.mxu0 0
    %4341 = vmatpush1.bf16.xpose.msra.mxu0 0
    %4342 = vmatprep.subr.bf16.mxu0 0
    %4343 = vmatpush1.bf16.xpose.msra.mxu0 0
    %4344 = vmatprep.subr.bf16.mxu0 0
    %4345 = vmatpush1.bf16.xpose.msra.mxu0 0
    %4346 = vmatprep.mubr.bf16.mxu0 0
    %4347 = vmatmul.mubr.bf16.gmra.mrb[0].mxu0 %v4309
    %v4348 = vpop.f32.mrb[0].mxu0
    %v4349 = vadd.f32 0.0, %v4348
    %v4350 = vpop.f32.mrb[0].mxu0
    %v4351 = vpop.f32.mrb[0].mxu0
    %v4352 = vpop.f32.mrb[0].mxu0
    %4353 = vdwg.mxu0
    %v4354 = vsel %vm360, %v4349, -inf
    %4355 = vmax.xlane.f32.xlu0 %v4354
    %v4356 = vpop.xlane.xlu0 %4355
    %v4357 = vsub.f32 %v4349, %v4356
    %v4358 = vmul.f32 %v4357, 1.442695
    %v4359 = vpow.pop %v4358
    %v4360 = vsel %vm360, %v4359, 0.0
    %4361 = vadd.xlane.f32.xlu0 %v4360
    %v4362 = vpop.xlane.xlu0 %4361
    %v4363 = vrcp.pop %v4362
    %v4364 = vmul.f32 %v4359, %v4363
    %v4365 = vpack.c.bf16 %v4364, %v4364
    %v4366 = vpack.c.bf16 %v4237, %v4237
    %v4368 = vsel %vm360, %v4365, 0
    %v4371 = vsel %vm423, %v4366, 0
    %4373 = vmatprep.subr.bf16.mxu0 0
    %4374 = vmatpush1.bf16.msra.mxu0 %v4371
    %4375 = vmatprep.subr.bf16.mxu0 0
    %4376 = vmatpush1.bf16.msra.mxu0 0
    %4377 = vmatprep.subr.bf16.mxu0 0
    %4378 = vmatpush1.bf16.msra.mxu0 0
    %4379 = vmatprep.subr.bf16.mxu0 0
    %4380 = vmatpush1.bf16.msra.mxu0 0
    %4381 = vmatprep.subr.bf16.mxu0 0
    %4382 = vmatpush1.bf16.msra.mxu0 0
    %4383 = vmatprep.subr.bf16.mxu0 0
    %4384 = vmatpush1.bf16.msra.mxu0 0
    %4385 = vmatprep.subr.bf16.mxu0 0
    %4386 = vmatpush1.bf16.msra.mxu0 0
    %4387 = vmatprep.subr.bf16.mxu0 0
    %4388 = vmatpush1.bf16.msra.mxu0 0
    %4389 = vmatprep.subr.bf16.mxu0 0
    %4390 = vmatpush1.bf16.msra.mxu0 0
    %4391 = vmatprep.subr.bf16.mxu0 0
    %4392 = vmatpush1.bf16.msra.mxu0 0
    %4393 = vmatprep.subr.bf16.mxu0 0
    %4394 = vmatpush1.bf16.msra.mxu0 0
    %4395 = vmatprep.subr.bf16.mxu0 0
    %4396 = vmatpush1.bf16.msra.mxu0 0
    %4397 = vmatprep.subr.bf16.mxu0 0
    %4398 = vmatpush1.bf16.msra.mxu0 0
    %4399 = vmatprep.subr.bf16.mxu0 0
    %4400 = vmatpush1.bf16.msra.mxu0 0
    %4401 = vmatprep.subr.bf16.mxu0 0
    %4402 = vmatpush1.bf16.msra.mxu0 0
    %4403 = vmatprep.subr.bf16.mxu0 0
    %4404 = vmatpush1.bf16.msra.mxu0 0
    %4405 = vmatprep.mubr.bf16.mxu0 0
    %4406 = vmatmul.mubr.bf16.gmra.mrb[0].mxu0 %v4368
    %v4407 = vpop.f32.mrb[0].mxu0
    %v4408 = vadd.f32 0.0, %v4407
    %v4409 = vpop.f32.mrb[0].mxu0
    %v4410 = vpop.f32.mrb[0].mxu0
    %v4411 = vpop.f32.mrb[0].mxu0
    %4412 = vdwg.mxu0
    %4414 = vrot.lane.b32.xlu0 %v4306, 120
    %v4415 = vpop.permute.xlu0 %4414
    %4417 = vrot.lane.b32.xlu0 %v4307, 120
    %v4418 = vpop.permute.xlu0 %4417
    %v4420 = vsel %vm360, %v4415, 0
    %v4423 = vsel %vm360, %v4418, 0
    %4425 = vmatprep.subr.bf16.mxu0 0
    %4426 = vmatpush1.bf16.xpose.msra.mxu0 %v4423
    %4427 = vmatprep.subr.bf16.mxu0 0
    %4428 = vmatpush1.bf16.xpose.msra.mxu0 0
    %4429 = vmatprep.subr.bf16.mxu0 0
    %4430 = vmatpush1.bf16.xpose.msra.mxu0 0
    %4431 = vmatprep.subr.bf16.mxu0 0
    %4432 = vmatpush1.bf16.xpose.msra.mxu0 0
    %4433 = vmatprep.subr.bf16.mxu0 0
    %4434 = vmatpush1.bf16.xpose.msra.mxu0 0
    %4435 = vmatprep.subr.bf16.mxu0 0
    %4436 = vmatpush1.bf16.xpose.msra.mxu0 0
    %4437 = vmatprep.subr.bf16.mxu0 0
    %4438 = vmatpush1.bf16.xpose.msra.mxu0 0
    %4439 = vmatprep.subr.bf16.mxu0 0
    %4440 = vmatpush1.bf16.xpose.msra.mxu0 0
    %4441 = vmatprep.subr.bf16.mxu0 0
    %4442 = vmatpush1.bf16.xpose.msra.mxu0 0
    %4443 = vmatprep.subr.bf16.mxu0 0
    %4444 = vmatpush1.bf16.xpose.msra.mxu0 0
    %4445 = vmatprep.subr.bf16.mxu0 0
    %4446 = vmatpush1.bf16.xpose.msra.mxu0 0
    %4447 = vmatprep.subr.bf16.mxu0 0
    %4448 = vmatpush1.bf16.xpose.msra.mxu0 0
    %4449 = vmatprep.subr.bf16.mxu0 0
    %4450 = vmatpush1.bf16.xpose.msra.mxu0 0
    %4451 = vmatprep.subr.bf16.mxu0 0
    %4452 = vmatpush1.bf16.xpose.msra.mxu0 0
    %4453 = vmatprep.subr.bf16.mxu0 0
    %4454 = vmatpush1.bf16.xpose.msra.mxu0 0
    %4455 = vmatprep.subr.bf16.mxu0 0
    %4456 = vmatpush1.bf16.xpose.msra.mxu0 0
    %4457 = vmatprep.mubr.bf16.mxu0 0
    %4458 = vmatmul.mubr.bf16.gmra.mrb[0].mxu0 %v4420
    %v4459 = vpop.f32.mrb[0].mxu0
    %v4460 = vadd.f32 0.0, %v4459
    %v4461 = vpop.f32.mrb[0].mxu0
    %v4462 = vpop.f32.mrb[0].mxu0
    %v4463 = vpop.f32.mrb[0].mxu0
    %4464 = vdwg.mxu0
    %v4465 = vsel %vm360, %v4460, -inf
    %4466 = vmax.xlane.f32.xlu0 %v4465
    %v4467 = vpop.xlane.xlu0 %4466
    %v4468 = vsub.f32 %v4460, %v4467
    %v4469 = vmul.f32 %v4468, 1.442695
    %v4470 = vpow.pop %v4469
    %v4471 = vsel %vm360, %v4470, 0.0
    %4472 = vadd.xlane.f32.xlu0 %v4471
    %v4473 = vpop.xlane.xlu0 %4472
    %v4474 = vrcp.pop %v4473
    %v4475 = vmul.f32 %v4470, %v4474
    %v4476 = vpack.c.bf16 %v4475, %v4475
    %4478 = vrot.lane.b32.xlu0 %v4366, 120
    %v4479 = vpop.permute.xlu0 %4478
    %v4481 = vsel %vm360, %v4476, 0
    %v4484 = vsel %vm423, %v4479, 0
    %4486 = vmatprep.subr.bf16.mxu0 0
    %4487 = vmatpush1.bf16.msra.mxu0 %v4484
    %4488 = vmatprep.subr.bf16.mxu0 0
    %4489 = vmatpush1.bf16.msra.mxu0 0
    %4490 = vmatprep.subr.bf16.mxu0 0
    %4491 = vmatpush1.bf16.msra.mxu0 0
    %4492 = vmatprep.subr.bf16.mxu0 0
    %4493 = vmatpush1.bf16.msra.mxu0 0
    %4494 = vmatprep.subr.bf16.mxu0 0
    %4495 = vmatpush1.bf16.msra.mxu0 0
    %4496 = vmatprep.subr.bf16.mxu0 0
    %4497 = vmatpush1.bf16.msra.mxu0 0
    %4498 = vmatprep.subr.bf16.mxu0 0
    %4499 = vmatpush1.bf16.msra.mxu0 0
    %4500 = vmatprep.subr.bf16.mxu0 0
    %4501 = vmatpush1.bf16.msra.mxu0 0
    %4502 = vmatprep.subr.bf16.mxu0 0
    %4503 = vmatpush1.bf16.msra.mxu0 0
    %4504 = vmatprep.subr.bf16.mxu0 0
    %4505 = vmatpush1.bf16.msra.mxu0 0
    %4506 = vmatprep.subr.bf16.mxu0 0
    %4507 = vmatpush1.bf16.msra.mxu0 0
    %4508 = vmatprep.subr.bf16.mxu0 0
    %4509 = vmatpush1.bf16.msra.mxu0 0
    %4510 = vmatprep.subr.bf16.mxu0 0
    %4511 = vmatpush1.bf16.msra.mxu0 0
    %4512 = vmatprep.subr.bf16.mxu0 0
    %4513 = vmatpush1.bf16.msra.mxu0 0
    %4514 = vmatprep.subr.bf16.mxu0 0
    %4515 = vmatpush1.bf16.msra.mxu0 0
    %4516 = vmatprep.subr.bf16.mxu0 0
    %4517 = vmatpush1.bf16.msra.mxu0 0
    %4518 = vmatprep.mubr.bf16.mxu0 0
    %4519 = vmatmul.mubr.bf16.gmra.mrb[0].mxu0 %v4481
    %v4520 = vpop.f32.mrb[0].mxu0
    %v4521 = vadd.f32 0.0, %v4520
    %v4522 = vpop.f32.mrb[0].mxu0
    %v4523 = vpop.f32.mrb[0].mxu0
    %v4524 = vpop.f32.mrb[0].mxu0
    %4525 = vdwg.mxu0
    %4526 = vrot.lane.b32.xlu0 %v4306, 112
    %v4527 = vpop.permute.xlu0 %4526
    %4528 = vrot.lane.b32.xlu0 %v4307, 112
    %v4529 = vpop.permute.xlu0 %4528
    %v4531 = vsel %vm360, %v4527, 0
    %v4534 = vsel %vm360, %v4529, 0
    %4536 = vmatprep.subr.bf16.mxu0 0
    %4537 = vmatpush1.bf16.xpose.msra.mxu0 %v4534
    %4538 = vmatprep.subr.bf16.mxu0 0
    %4539 = vmatpush1.bf16.xpose.msra.mxu0 0
    %4540 = vmatprep.subr.bf16.mxu0 0
    %4541 = vmatpush1.bf16.xpose.msra.mxu0 0
    %4542 = vmatprep.subr.bf16.mxu0 0
    %4543 = vmatpush1.bf16.xpose.msra.mxu0 0
    %4544 = vmatprep.subr.bf16.mxu0 0
    %4545 = vmatpush1.bf16.xpose.msra.mxu0 0
    %4546 = vmatprep.subr.bf16.mxu0 0
    %4547 = vmatpush1.bf16.xpose.msra.mxu0 0
    %4548 = vmatprep.subr.bf16.mxu0 0
    %4549 = vmatpush1.bf16.xpose.msra.mxu0 0
    %4550 = vmatprep.subr.bf16.mxu0 0
    %4551 = vmatpush1.bf16.xpose.msra.mxu0 0
    %4552 = vmatprep.subr.bf16.mxu0 0
    %4553 = vmatpush1.bf16.xpose.msra.mxu0 0
    %4554 = vmatprep.subr.bf16.mxu0 0
    %4555 = vmatpush1.bf16.xpose.msra.mxu0 0
    %4556 = vmatprep.subr.bf16.mxu0 0
    %4557 = vmatpush1.bf16.xpose.msra.mxu0 0
    %4558 = vmatprep.subr.bf16.mxu0 0
    %4559 = vmatpush1.bf16.xpose.msra.mxu0 0
    %4560 = vmatprep.subr.bf16.mxu0 0
    %4561 = vmatpush1.bf16.xpose.msra.mxu0 0
    %4562 = vmatprep.subr.bf16.mxu0 0
    %4563 = vmatpush1.bf16.xpose.msra.mxu0 0
    %4564 = vmatprep.subr.bf16.mxu0 0
    %4565 = vmatpush1.bf16.xpose.msra.mxu0 0
    %4566 = vmatprep.subr.bf16.mxu0 0
    %4567 = vmatpush1.bf16.xpose.msra.mxu0 0
    %4568 = vmatprep.mubr.bf16.mxu0 0
    %4569 = vmatmul.mubr.bf16.gmra.mrb[0].mxu0 %v4531
    %v4570 = vpop.f32.mrb[0].mxu0
    %v4571 = vadd.f32 0.0, %v4570
    %v4572 = vpop.f32.mrb[0].mxu0
    %v4573 = vpop.f32.mrb[0].mxu0
    %v4574 = vpop.f32.mrb[0].mxu0
    %4575 = vdwg.mxu0
    %v4576 = vsel %vm360, %v4571, -inf
    %4577 = vmax.xlane.f32.xlu0 %v4576
    %v4578 = vpop.xlane.xlu0 %4577
    %v4579 = vsub.f32 %v4571, %v4578
    %v4580 = vmul.f32 %v4579, 1.442695
    %v4581 = vpow.pop %v4580
    %v4582 = vsel %vm360, %v4581, 0.0
    %4583 = vadd.xlane.f32.xlu0 %v4582
    %v4584 = vpop.xlane.xlu0 %4583
    %v4585 = vrcp.pop %v4584
    %v4586 = vmul.f32 %v4581, %v4585
    %v4587 = vpack.c.bf16 %v4586, %v4586
    %4588 = vrot.lane.b32.xlu0 %v4366, 112
    %v4589 = vpop.permute.xlu0 %4588
    %v4591 = vsel %vm360, %v4587, 0
    %v4594 = vsel %vm423, %v4589, 0
    %4596 = vmatprep.subr.bf16.mxu0 0
    %4597 = vmatpush1.bf16.msra.mxu0 %v4594
    %4598 = vmatprep.subr.bf16.mxu0 0
    %4599 = vmatpush1.bf16.msra.mxu0 0
    %4600 = vmatprep.subr.bf16.mxu0 0
    %4601 = vmatpush1.bf16.msra.mxu0 0
    %4602 = vmatprep.subr.bf16.mxu0 0
    %4603 = vmatpush1.bf16.msra.mxu0 0
    %4604 = vmatprep.subr.bf16.mxu0 0
    %4605 = vmatpush1.bf16.msra.mxu0 0
    %4606 = vmatprep.subr.bf16.mxu0 0
    %4607 = vmatpush1.bf16.msra.mxu0 0
    %4608 = vmatprep.subr.bf16.mxu0 0
    %4609 = vmatpush1.bf16.msra.mxu0 0
    %4610 = vmatprep.subr.bf16.mxu0 0
    %4611 = vmatpush1.bf16.msra.mxu0 0
    %4612 = vmatprep.subr.bf16.mxu0 0
    %4613 = vmatpush1.bf16.msra.mxu0 0
    %4614 = vmatprep.subr.bf16.mxu0 0
    %4615 = vmatpush1.bf16.msra.mxu0 0
    %4616 = vmatprep.subr.bf16.mxu0 0
    %4617 = vmatpush1.bf16.msra.mxu0 0
    %4618 = vmatprep.subr.bf16.mxu0 0
    %4619 = vmatpush1.bf16.msra.mxu0 0
    %4620 = vmatprep.subr.bf16.mxu0 0
    %4621 = vmatpush1.bf16.msra.mxu0 0
    %4622 = vmatprep.subr.bf16.mxu0 0
    %4623 = vmatpush1.bf16.msra.mxu0 0
    %4624 = vmatprep.subr.bf16.mxu0 0
    %4625 = vmatpush1.bf16.msra.mxu0 0
    %4626 = vmatprep.subr.bf16.mxu0 0
    %4627 = vmatpush1.bf16.msra.mxu0 0
    %4628 = vmatprep.mubr.bf16.mxu0 0
    %4629 = vmatmul.mubr.bf16.gmra.mrb[0].mxu0 %v4591
    %v4630 = vpop.f32.mrb[0].mxu0
    %v4631 = vadd.f32 0.0, %v4630
    %v4632 = vpop.f32.mrb[0].mxu0
    %v4633 = vpop.f32.mrb[0].mxu0
    %v4634 = vpop.f32.mrb[0].mxu0
    %4635 = vdwg.mxu0
    %4636 = vrot.lane.b32.xlu0 %v4306, 104
    %v4637 = vpop.permute.xlu0 %4636
    %4638 = vrot.lane.b32.xlu0 %v4307, 104
    %v4639 = vpop.permute.xlu0 %4638
    %v4641 = vsel %vm360, %v4637, 0
    %v4644 = vsel %vm360, %v4639, 0
    %4646 = vmatprep.subr.bf16.mxu0 0
    %4647 = vmatpush1.bf16.xpose.msra.mxu0 %v4644
    %4648 = vmatprep.subr.bf16.mxu0 0
    %4649 = vmatpush1.bf16.xpose.msra.mxu0 0
    %4650 = vmatprep.subr.bf16.mxu0 0
    %4651 = vmatpush1.bf16.xpose.msra.mxu0 0
    %4652 = vmatprep.subr.bf16.mxu0 0
    %4653 = vmatpush1.bf16.xpose.msra.mxu0 0
    %4654 = vmatprep.subr.bf16.mxu0 0
    %4655 = vmatpush1.bf16.xpose.msra.mxu0 0
    %4656 = vmatprep.subr.bf16.mxu0 0
    %4657 = vmatpush1.bf16.xpose.msra.mxu0 0
    %4658 = vmatprep.subr.bf16.mxu0 0
    %4659 = vmatpush1.bf16.xpose.msra.mxu0 0
    %4660 = vmatprep.subr.bf16.mxu0 0
    %4661 = vmatpush1.bf16.xpose.msra.mxu0 0
    %4662 = vmatprep.subr.bf16.mxu0 0
    %4663 = vmatpush1.bf16.xpose.msra.mxu0 0
    %4664 = vmatprep.subr.bf16.mxu0 0
    %4665 = vmatpush1.bf16.xpose.msra.mxu0 0
    %4666 = vmatprep.subr.bf16.mxu0 0
    %4667 = vmatpush1.bf16.xpose.msra.mxu0 0
    %4668 = vmatprep.subr.bf16.mxu0 0
    %4669 = vmatpush1.bf16.xpose.msra.mxu0 0
    %4670 = vmatprep.subr.bf16.mxu0 0
    %4671 = vmatpush1.bf16.xpose.msra.mxu0 0
    %4672 = vmatprep.subr.bf16.mxu0 0
    %4673 = vmatpush1.bf16.xpose.msra.mxu0 0
    %4674 = vmatprep.subr.bf16.mxu0 0
    %4675 = vmatpush1.bf16.xpose.msra.mxu0 0
    %4676 = vmatprep.subr.bf16.mxu0 0
    %4677 = vmatpush1.bf16.xpose.msra.mxu0 0
    %4678 = vmatprep.mubr.bf16.mxu0 0
    %4679 = vmatmul.mubr.bf16.gmra.mrb[0].mxu0 %v4641
    %v4680 = vpop.f32.mrb[0].mxu0
    %v4681 = vadd.f32 0.0, %v4680
    %v4682 = vpop.f32.mrb[0].mxu0
    %v4683 = vpop.f32.mrb[0].mxu0
    %v4684 = vpop.f32.mrb[0].mxu0
    %4685 = vdwg.mxu0
    %v4686 = vsel %vm360, %v4681, -inf
    %4687 = vmax.xlane.f32.xlu0 %v4686
    %v4688 = vpop.xlane.xlu0 %4687
    %v4689 = vsub.f32 %v4681, %v4688
    %v4690 = vmul.f32 %v4689, 1.442695
    %v4691 = vpow.pop %v4690
    %v4692 = vsel %vm360, %v4691, 0.0
    %4693 = vadd.xlane.f32.xlu0 %v4692
    %v4694 = vpop.xlane.xlu0 %4693
    %v4695 = vrcp.pop %v4694
    %v4696 = vmul.f32 %v4691, %v4695
    %v4697 = vpack.c.bf16 %v4696, %v4696
    %4698 = vrot.lane.b32.xlu0 %v4366, 104
    %v4699 = vpop.permute.xlu0 %4698
    %v4701 = vsel %vm360, %v4697, 0
    %v4704 = vsel %vm423, %v4699, 0
    %4706 = vmatprep.subr.bf16.mxu0 0
    %4707 = vmatpush1.bf16.msra.mxu0 %v4704
    %4708 = vmatprep.subr.bf16.mxu0 0
    %4709 = vmatpush1.bf16.msra.mxu0 0
    %4710 = vmatprep.subr.bf16.mxu0 0
    %4711 = vmatpush1.bf16.msra.mxu0 0
    %4712 = vmatprep.subr.bf16.mxu0 0
    %4713 = vmatpush1.bf16.msra.mxu0 0
    %4714 = vmatprep.subr.bf16.mxu0 0
    %4715 = vmatpush1.bf16.msra.mxu0 0
    %4716 = vmatprep.subr.bf16.mxu0 0
    %4717 = vmatpush1.bf16.msra.mxu0 0
    %4718 = vmatprep.subr.bf16.mxu0 0
    %4719 = vmatpush1.bf16.msra.mxu0 0
    %4720 = vmatprep.subr.bf16.mxu0 0
    %4721 = vmatpush1.bf16.msra.mxu0 0
    %4722 = vmatprep.subr.bf16.mxu0 0
    %4723 = vmatpush1.bf16.msra.mxu0 0
    %4724 = vmatprep.subr.bf16.mxu0 0
    %4725 = vmatpush1.bf16.msra.mxu0 0
    %4726 = vmatprep.subr.bf16.mxu0 0
    %4727 = vmatpush1.bf16.msra.mxu0 0
    %4728 = vmatprep.subr.bf16.mxu0 0
    %4729 = vmatpush1.bf16.msra.mxu0 0
    %4730 = vmatprep.subr.bf16.mxu0 0
    %4731 = vmatpush1.bf16.msra.mxu0 0
    %4732 = vmatprep.subr.bf16.mxu0 0
    %4733 = vmatpush1.bf16.msra.mxu0 0
    %4734 = vmatprep.subr.bf16.mxu0 0
    %4735 = vmatpush1.bf16.msra.mxu0 0
    %4736 = vmatprep.subr.bf16.mxu0 0
    %4737 = vmatpush1.bf16.msra.mxu0 0
    %4738 = vmatprep.mubr.bf16.mxu0 0
    %4739 = vmatmul.mubr.bf16.gmra.mrb[0].mxu0 %v4701
    %v4740 = vpop.f32.mrb[0].mxu0
    %v4741 = vadd.f32 0.0, %v4740
    %v4742 = vpop.f32.mrb[0].mxu0
    %v4743 = vpop.f32.mrb[0].mxu0
    %v4744 = vpop.f32.mrb[0].mxu0
    %4745 = vdwg.mxu0
    %4747 = vrot.lane.b32.xlu0 %v4521, 8
    %v4748 = vpop.permute.xlu0 %4747
    %4751 = vrot.lane.b32.xlu0 %v4631, 16
    %v4752 = vpop.permute.xlu0 %4751
    %4755 = vrot.lane.b32.xlu0 %v4741, 24
    %v4756 = vpop.permute.xlu0 %4755
    %v4758 = vsel %vm360, %v4408, %v4748
    %v4759 = vsel %vm813, %v4758, %v4752
    %v4760 = vsel %vm815, %v4759, %v4756
    %v4761 = vpack.c.bf16 %v4305, %v4305
    %v4762 = vpack.c.bf16 %v4183, %v4183
    %v4764 = vsel %vm360, %v4761, 0
    %v4767 = vsel %vm360, %v4762, 0
    %4769 = vmatprep.subr.bf16.mxu0 0
    %4770 = vmatpush1.bf16.xpose.msra.mxu0 %v4767
    %4771 = vmatprep.subr.bf16.mxu0 0
    %4772 = vmatpush1.bf16.xpose.msra.mxu0 0
    %4773 = vmatprep.subr.bf16.mxu0 0
    %4774 = vmatpush1.bf16.xpose.msra.mxu0 0
    %4775 = vmatprep.subr.bf16.mxu0 0
    %4776 = vmatpush1.bf16.xpose.msra.mxu0 0
    %4777 = vmatprep.subr.bf16.mxu0 0
    %4778 = vmatpush1.bf16.xpose.msra.mxu0 0
    %4779 = vmatprep.subr.bf16.mxu0 0
    %4780 = vmatpush1.bf16.xpose.msra.mxu0 0
    %4781 = vmatprep.subr.bf16.mxu0 0
    %4782 = vmatpush1.bf16.xpose.msra.mxu0 0
    %4783 = vmatprep.subr.bf16.mxu0 0
    %4784 = vmatpush1.bf16.xpose.msra.mxu0 0
    %4785 = vmatprep.subr.bf16.mxu0 0
    %4786 = vmatpush1.bf16.xpose.msra.mxu0 0
    %4787 = vmatprep.subr.bf16.mxu0 0
    %4788 = vmatpush1.bf16.xpose.msra.mxu0 0
    %4789 = vmatprep.subr.bf16.mxu0 0
    %4790 = vmatpush1.bf16.xpose.msra.mxu0 0
    %4791 = vmatprep.subr.bf16.mxu0 0
    %4792 = vmatpush1.bf16.xpose.msra.mxu0 0
    %4793 = vmatprep.subr.bf16.mxu0 0
    %4794 = vmatpush1.bf16.xpose.msra.mxu0 0
    %4795 = vmatprep.subr.bf16.mxu0 0
    %4796 = vmatpush1.bf16.xpose.msra.mxu0 0
    %4797 = vmatprep.subr.bf16.mxu0 0
    %4798 = vmatpush1.bf16.xpose.msra.mxu0 0
    %4799 = vmatprep.subr.bf16.mxu0 0
    %4800 = vmatpush1.bf16.xpose.msra.mxu0 0
    %4801 = vmatprep.mubr.bf16.mxu0 0
    %4802 = vmatmul.mubr.bf16.gmra.mrb[0].mxu0 %v4764
    %v4803 = vpop.f32.mrb[0].mxu0
    %v4804 = vadd.f32 0.0, %v4803
    %v4805 = vpop.f32.mrb[0].mxu0
    %v4806 = vpop.f32.mrb[0].mxu0
    %v4807 = vpop.f32.mrb[0].mxu0
    %4808 = vdwg.mxu0
    %v4809 = vsel %vm360, %v4804, -inf
    %4810 = vmax.xlane.f32.xlu0 %v4809
    %v4811 = vpop.xlane.xlu0 %4810
    %v4812 = vsub.f32 %v4804, %v4811
    %v4813 = vmul.f32 %v4812, 1.442695
    %v4814 = vpow.pop %v4813
    %v4815 = vsel %vm360, %v4814, 0.0
    %4816 = vadd.xlane.f32.xlu0 %v4815
    %v4817 = vpop.xlane.xlu0 %4816
    %v4818 = vrcp.pop %v4817
    %v4819 = vmul.f32 %v4814, %v4818
    %v4820 = vpack.c.bf16 %v4819, %v4819
    %v4821 = vpack.c.bf16 %v4240, %v4240
    %v4823 = vsel %vm360, %v4820, 0
    %v4826 = vsel %vm423, %v4821, 0
    %4828 = vmatprep.subr.bf16.mxu0 0
    %4829 = vmatpush1.bf16.msra.mxu0 %v4826
    %4830 = vmatprep.subr.bf16.mxu0 0
    %4831 = vmatpush1.bf16.msra.mxu0 0
    %4832 = vmatprep.subr.bf16.mxu0 0
    %4833 = vmatpush1.bf16.msra.mxu0 0
    %4834 = vmatprep.subr.bf16.mxu0 0
    %4835 = vmatpush1.bf16.msra.mxu0 0
    %4836 = vmatprep.subr.bf16.mxu0 0
    %4837 = vmatpush1.bf16.msra.mxu0 0
    %4838 = vmatprep.subr.bf16.mxu0 0
    %4839 = vmatpush1.bf16.msra.mxu0 0
    %4840 = vmatprep.subr.bf16.mxu0 0
    %4841 = vmatpush1.bf16.msra.mxu0 0
    %4842 = vmatprep.subr.bf16.mxu0 0
    %4843 = vmatpush1.bf16.msra.mxu0 0
    %4844 = vmatprep.subr.bf16.mxu0 0
    %4845 = vmatpush1.bf16.msra.mxu0 0
    %4846 = vmatprep.subr.bf16.mxu0 0
    %4847 = vmatpush1.bf16.msra.mxu0 0
    %4848 = vmatprep.subr.bf16.mxu0 0
    %4849 = vmatpush1.bf16.msra.mxu0 0
    %4850 = vmatprep.subr.bf16.mxu0 0
    %4851 = vmatpush1.bf16.msra.mxu0 0
    %4852 = vmatprep.subr.bf16.mxu0 0
    %4853 = vmatpush1.bf16.msra.mxu0 0
    %4854 = vmatprep.subr.bf16.mxu0 0
    %4855 = vmatpush1.bf16.msra.mxu0 0
    %4856 = vmatprep.subr.bf16.mxu0 0
    %4857 = vmatpush1.bf16.msra.mxu0 0
    %4858 = vmatprep.subr.bf16.mxu0 0
    %4859 = vmatpush1.bf16.msra.mxu0 0
    %4860 = vmatprep.mubr.bf16.mxu0 0
    %4861 = vmatmul.mubr.bf16.gmra.mrb[0].mxu0 %v4823
    %v4862 = vpop.f32.mrb[0].mxu0
    %v4863 = vadd.f32 0.0, %v4862
    %v4864 = vpop.f32.mrb[0].mxu0
    %v4865 = vpop.f32.mrb[0].mxu0
    %v4866 = vpop.f32.mrb[0].mxu0
    %4867 = vdwg.mxu0
    %4869 = vrot.lane.b32.xlu0 %v4761, 120
    %v4870 = vpop.permute.xlu0 %4869
    %4872 = vrot.lane.b32.xlu0 %v4762, 120
    %v4873 = vpop.permute.xlu0 %4872
    %v4875 = vsel %vm360, %v4870, 0
    %v4878 = vsel %vm360, %v4873, 0
    %4880 = vmatprep.subr.bf16.mxu0 0
    %4881 = vmatpush1.bf16.xpose.msra.mxu0 %v4878
    %4882 = vmatprep.subr.bf16.mxu0 0
    %4883 = vmatpush1.bf16.xpose.msra.mxu0 0
    %4884 = vmatprep.subr.bf16.mxu0 0
    %4885 = vmatpush1.bf16.xpose.msra.mxu0 0
    %4886 = vmatprep.subr.bf16.mxu0 0
    %4887 = vmatpush1.bf16.xpose.msra.mxu0 0
    %4888 = vmatprep.subr.bf16.mxu0 0
    %4889 = vmatpush1.bf16.xpose.msra.mxu0 0
    %4890 = vmatprep.subr.bf16.mxu0 0
    %4891 = vmatpush1.bf16.xpose.msra.mxu0 0
    %4892 = vmatprep.subr.bf16.mxu0 0
    %4893 = vmatpush1.bf16.xpose.msra.mxu0 0
    %4894 = vmatprep.subr.bf16.mxu0 0
    %4895 = vmatpush1.bf16.xpose.msra.mxu0 0
    %4896 = vmatprep.subr.bf16.mxu0 0
    %4897 = vmatpush1.bf16.xpose.msra.mxu0 0
    %4898 = vmatprep.subr.bf16.mxu0 0
    %4899 = vmatpush1.bf16.xpose.msra.mxu0 0
    %4900 = vmatprep.subr.bf16.mxu0 0
    %4901 = vmatpush1.bf16.xpose.msra.mxu0 0
    %4902 = vmatprep.subr.bf16.mxu0 0
    %4903 = vmatpush1.bf16.xpose.msra.mxu0 0
    %4904 = vmatprep.subr.bf16.mxu0 0
    %4905 = vmatpush1.bf16.xpose.msra.mxu0 0
    %4906 = vmatprep.subr.bf16.mxu0 0
    %4907 = vmatpush1.bf16.xpose.msra.mxu0 0
    %4908 = vmatprep.subr.bf16.mxu0 0
    %4909 = vmatpush1.bf16.xpose.msra.mxu0 0
    %4910 = vmatprep.subr.bf16.mxu0 0
    %4911 = vmatpush1.bf16.xpose.msra.mxu0 0
    %4912 = vmatprep.mubr.bf16.mxu0 0
    %4913 = vmatmul.mubr.bf16.gmra.mrb[0].mxu0 %v4875
    %v4914 = vpop.f32.mrb[0].mxu0
    %v4915 = vadd.f32 0.0, %v4914
    %v4916 = vpop.f32.mrb[0].mxu0
    %v4917 = vpop.f32.mrb[0].mxu0
    %v4918 = vpop.f32.mrb[0].mxu0
    %4919 = vdwg.mxu0
    %v4920 = vsel %vm360, %v4915, -inf
    %4921 = vmax.xlane.f32.xlu0 %v4920
    %v4922 = vpop.xlane.xlu0 %4921
    %v4923 = vsub.f32 %v4915, %v4922
    %v4924 = vmul.f32 %v4923, 1.442695
    %v4925 = vpow.pop %v4924
    %v4926 = vsel %vm360, %v4925, 0.0
    %4927 = vadd.xlane.f32.xlu0 %v4926
    %v4928 = vpop.xlane.xlu0 %4927
    %v4929 = vrcp.pop %v4928
    %v4930 = vmul.f32 %v4925, %v4929
    %v4931 = vpack.c.bf16 %v4930, %v4930
    %4933 = vrot.lane.b32.xlu0 %v4821, 120
    %v4934 = vpop.permute.xlu0 %4933
    %v4936 = vsel %vm360, %v4931, 0
    %v4939 = vsel %vm423, %v4934, 0
    %4941 = vmatprep.subr.bf16.mxu0 0
    %4942 = vmatpush1.bf16.msra.mxu0 %v4939
    %4943 = vmatprep.subr.bf16.mxu0 0
    %4944 = vmatpush1.bf16.msra.mxu0 0
    %4945 = vmatprep.subr.bf16.mxu0 0
    %4946 = vmatpush1.bf16.msra.mxu0 0
    %4947 = vmatprep.subr.bf16.mxu0 0
    %4948 = vmatpush1.bf16.msra.mxu0 0
    %4949 = vmatprep.subr.bf16.mxu0 0
    %4950 = vmatpush1.bf16.msra.mxu0 0
    %4951 = vmatprep.subr.bf16.mxu0 0
    %4952 = vmatpush1.bf16.msra.mxu0 0
    %4953 = vmatprep.subr.bf16.mxu0 0
    %4954 = vmatpush1.bf16.msra.mxu0 0
    %4955 = vmatprep.subr.bf16.mxu0 0
    %4956 = vmatpush1.bf16.msra.mxu0 0
    %4957 = vmatprep.subr.bf16.mxu0 0
    %4958 = vmatpush1.bf16.msra.mxu0 0
    %4959 = vmatprep.subr.bf16.mxu0 0
    %4960 = vmatpush1.bf16.msra.mxu0 0
    %4961 = vmatprep.subr.bf16.mxu0 0
    %4962 = vmatpush1.bf16.msra.mxu0 0
    %4963 = vmatprep.subr.bf16.mxu0 0
    %4964 = vmatpush1.bf16.msra.mxu0 0
    %4965 = vmatprep.subr.bf16.mxu0 0
    %4966 = vmatpush1.bf16.msra.mxu0 0
    %4967 = vmatprep.subr.bf16.mxu0 0
    %4968 = vmatpush1.bf16.msra.mxu0 0
    %4969 = vmatprep.subr.bf16.mxu0 0
    %4970 = vmatpush1.bf16.msra.mxu0 0
    %4971 = vmatprep.subr.bf16.mxu0 0
    %4972 = vmatpush1.bf16.msra.mxu0 0
    %4973 = vmatprep.mubr.bf16.mxu0 0
    %4974 = vmatmul.mubr.bf16.gmra.mrb[0].mxu0 %v4936
    %v4975 = vpop.f32.mrb[0].mxu0
    %v4976 = vadd.f32 0.0, %v4975
    %v4977 = vpop.f32.mrb[0].mxu0
    %v4978 = vpop.f32.mrb[0].mxu0
    %v4979 = vpop.f32.mrb[0].mxu0
    %4980 = vdwg.mxu0
    %4981 = vrot.lane.b32.xlu0 %v4761, 112
    %v4982 = vpop.permute.xlu0 %4981
    %4983 = vrot.lane.b32.xlu0 %v4762, 112
    %v4984 = vpop.permute.xlu0 %4983
    %v4986 = vsel %vm360, %v4982, 0
    %v4989 = vsel %vm360, %v4984, 0
    %4991 = vmatprep.subr.bf16.mxu0 0
    %4992 = vmatpush1.bf16.xpose.msra.mxu0 %v4989
    %4993 = vmatprep.subr.bf16.mxu0 0
    %4994 = vmatpush1.bf16.xpose.msra.mxu0 0
    %4995 = vmatprep.subr.bf16.mxu0 0
    %4996 = vmatpush1.bf16.xpose.msra.mxu0 0
    %4997 = vmatprep.subr.bf16.mxu0 0
    %4998 = vmatpush1.bf16.xpose.msra.mxu0 0
    %4999 = vmatprep.subr.bf16.mxu0 0
    %5000 = vmatpush1.bf16.xpose.msra.mxu0 0
    %5001 = vmatprep.subr.bf16.mxu0 0
    %5002 = vmatpush1.bf16.xpose.msra.mxu0 0
    %5003 = vmatprep.subr.bf16.mxu0 0
    %5004 = vmatpush1.bf16.xpose.msra.mxu0 0
    %5005 = vmatprep.subr.bf16.mxu0 0
    %5006 = vmatpush1.bf16.xpose.msra.mxu0 0
    %5007 = vmatprep.subr.bf16.mxu0 0
    %5008 = vmatpush1.bf16.xpose.msra.mxu0 0
    %5009 = vmatprep.subr.bf16.mxu0 0
    %5010 = vmatpush1.bf16.xpose.msra.mxu0 0
    %5011 = vmatprep.subr.bf16.mxu0 0
    %5012 = vmatpush1.bf16.xpose.msra.mxu0 0
    %5013 = vmatprep.subr.bf16.mxu0 0
    %5014 = vmatpush1.bf16.xpose.msra.mxu0 0
    %5015 = vmatprep.subr.bf16.mxu0 0
    %5016 = vmatpush1.bf16.xpose.msra.mxu0 0
    %5017 = vmatprep.subr.bf16.mxu0 0
    %5018 = vmatpush1.bf16.xpose.msra.mxu0 0
    %5019 = vmatprep.subr.bf16.mxu0 0
    %5020 = vmatpush1.bf16.xpose.msra.mxu0 0
    %5021 = vmatprep.subr.bf16.mxu0 0
    %5022 = vmatpush1.bf16.xpose.msra.mxu0 0
    %5023 = vmatprep.mubr.bf16.mxu0 0
    %5024 = vmatmul.mubr.bf16.gmra.mrb[0].mxu0 %v4986
    %v5025 = vpop.f32.mrb[0].mxu0
    %v5026 = vadd.f32 0.0, %v5025
    %v5027 = vpop.f32.mrb[0].mxu0
    %v5028 = vpop.f32.mrb[0].mxu0
    %v5029 = vpop.f32.mrb[0].mxu0
    %5030 = vdwg.mxu0
    %v5031 = vsel %vm360, %v5026, -inf
    %5032 = vmax.xlane.f32.xlu0 %v5031
    %v5033 = vpop.xlane.xlu0 %5032
    %v5034 = vsub.f32 %v5026, %v5033
    %v5035 = vmul.f32 %v5034, 1.442695
    %v5036 = vpow.pop %v5035
    %v5037 = vsel %vm360, %v5036, 0.0
    %5038 = vadd.xlane.f32.xlu0 %v5037
    %v5039 = vpop.xlane.xlu0 %5038
    %v5040 = vrcp.pop %v5039
    %v5041 = vmul.f32 %v5036, %v5040
    %v5042 = vpack.c.bf16 %v5041, %v5041
    %5043 = vrot.lane.b32.xlu0 %v4821, 112
    %v5044 = vpop.permute.xlu0 %5043
    %v5046 = vsel %vm360, %v5042, 0
    %v5049 = vsel %vm423, %v5044, 0
    %5051 = vmatprep.subr.bf16.mxu0 0
    %5052 = vmatpush1.bf16.msra.mxu0 %v5049
    %5053 = vmatprep.subr.bf16.mxu0 0
    %5054 = vmatpush1.bf16.msra.mxu0 0
    %5055 = vmatprep.subr.bf16.mxu0 0
    %5056 = vmatpush1.bf16.msra.mxu0 0
    %5057 = vmatprep.subr.bf16.mxu0 0
    %5058 = vmatpush1.bf16.msra.mxu0 0
    %5059 = vmatprep.subr.bf16.mxu0 0
    %5060 = vmatpush1.bf16.msra.mxu0 0
    %5061 = vmatprep.subr.bf16.mxu0 0
    %5062 = vmatpush1.bf16.msra.mxu0 0
    %5063 = vmatprep.subr.bf16.mxu0 0
    %5064 = vmatpush1.bf16.msra.mxu0 0
    %5065 = vmatprep.subr.bf16.mxu0 0
    %5066 = vmatpush1.bf16.msra.mxu0 0
    %5067 = vmatprep.subr.bf16.mxu0 0
    %5068 = vmatpush1.bf16.msra.mxu0 0
    %5069 = vmatprep.subr.bf16.mxu0 0
    %5070 = vmatpush1.bf16.msra.mxu0 0
    %5071 = vmatprep.subr.bf16.mxu0 0
    %5072 = vmatpush1.bf16.msra.mxu0 0
    %5073 = vmatprep.subr.bf16.mxu0 0
    %5074 = vmatpush1.bf16.msra.mxu0 0
    %5075 = vmatprep.subr.bf16.mxu0 0
    %5076 = vmatpush1.bf16.msra.mxu0 0
    %5077 = vmatprep.subr.bf16.mxu0 0
    %5078 = vmatpush1.bf16.msra.mxu0 0
    %5079 = vmatprep.subr.bf16.mxu0 0
    %5080 = vmatpush1.bf16.msra.mxu0 0
    %5081 = vmatprep.subr.bf16.mxu0 0
    %5082 = vmatpush1.bf16.msra.mxu0 0
    %5083 = vmatprep.mubr.bf16.mxu0 0
    %5084 = vmatmul.mubr.bf16.gmra.mrb[0].mxu0 %v5046
    %v5085 = vpop.f32.mrb[0].mxu0
    %v5086 = vadd.f32 0.0, %v5085
    %v5087 = vpop.f32.mrb[0].mxu0
    %v5088 = vpop.f32.mrb[0].mxu0
    %v5089 = vpop.f32.mrb[0].mxu0
    %5090 = vdwg.mxu0
    %5091 = vrot.lane.b32.xlu0 %v4761, 104
    %v5092 = vpop.permute.xlu0 %5091
    %5093 = vrot.lane.b32.xlu0 %v4762, 104
    %v5094 = vpop.permute.xlu0 %5093
    %v5096 = vsel %vm360, %v5092, 0
    %v5099 = vsel %vm360, %v5094, 0
    %5101 = vmatprep.subr.bf16.mxu0 0
    %5102 = vmatpush1.bf16.xpose.msra.mxu0 %v5099
    %5103 = vmatprep.subr.bf16.mxu0 0
    %5104 = vmatpush1.bf16.xpose.msra.mxu0 0
    %5105 = vmatprep.subr.bf16.mxu0 0
    %5106 = vmatpush1.bf16.xpose.msra.mxu0 0
    %5107 = vmatprep.subr.bf16.mxu0 0
    %5108 = vmatpush1.bf16.xpose.msra.mxu0 0
    %5109 = vmatprep.subr.bf16.mxu0 0
    %5110 = vmatpush1.bf16.xpose.msra.mxu0 0
    %5111 = vmatprep.subr.bf16.mxu0 0
    %5112 = vmatpush1.bf16.xpose.msra.mxu0 0
    %5113 = vmatprep.subr.bf16.mxu0 0
    %5114 = vmatpush1.bf16.xpose.msra.mxu0 0
    %5115 = vmatprep.subr.bf16.mxu0 0
    %5116 = vmatpush1.bf16.xpose.msra.mxu0 0
    %5117 = vmatprep.subr.bf16.mxu0 0
    %5118 = vmatpush1.bf16.xpose.msra.mxu0 0
    %5119 = vmatprep.subr.bf16.mxu0 0
    %5120 = vmatpush1.bf16.xpose.msra.mxu0 0
    %5121 = vmatprep.subr.bf16.mxu0 0
    %5122 = vmatpush1.bf16.xpose.msra.mxu0 0
    %5123 = vmatprep.subr.bf16.mxu0 0
    %5124 = vmatpush1.bf16.xpose.msra.mxu0 0
    %5125 = vmatprep.subr.bf16.mxu0 0
    %5126 = vmatpush1.bf16.xpose.msra.mxu0 0
    %5127 = vmatprep.subr.bf16.mxu0 0
    %5128 = vmatpush1.bf16.xpose.msra.mxu0 0
    %5129 = vmatprep.subr.bf16.mxu0 0
    %5130 = vmatpush1.bf16.xpose.msra.mxu0 0
    %5131 = vmatprep.subr.bf16.mxu0 0
    %5132 = vmatpush1.bf16.xpose.msra.mxu0 0
    %5133 = vmatprep.mubr.bf16.mxu0 0
    %5134 = vmatmul.mubr.bf16.gmra.mrb[0].mxu0 %v5096
    %v5135 = vpop.f32.mrb[0].mxu0
    %v5136 = vadd.f32 0.0, %v5135
    %v5137 = vpop.f32.mrb[0].mxu0
    %v5138 = vpop.f32.mrb[0].mxu0
    %v5139 = vpop.f32.mrb[0].mxu0
    %5140 = vdwg.mxu0
    %v5141 = vsel %vm360, %v5136, -inf
    %5142 = vmax.xlane.f32.xlu0 %v5141
    %v5143 = vpop.xlane.xlu0 %5142
    %v5144 = vsub.f32 %v5136, %v5143
    %v5145 = vmul.f32 %v5144, 1.442695
    %v5146 = vpow.pop %v5145
    %v5147 = vsel %vm360, %v5146, 0.0
    %5148 = vadd.xlane.f32.xlu0 %v5147
    %v5149 = vpop.xlane.xlu0 %5148
    %v5150 = vrcp.pop %v5149
    %v5151 = vmul.f32 %v5146, %v5150
    %v5152 = vpack.c.bf16 %v5151, %v5151
    %5153 = vrot.lane.b32.xlu0 %v4821, 104
    %v5154 = vpop.permute.xlu0 %5153
    %v5156 = vsel %vm360, %v5152, 0
    %v5159 = vsel %vm423, %v5154, 0
    %5161 = vmatprep.subr.bf16.mxu0 0
    %5162 = vmatpush1.bf16.msra.mxu0 %v5159
    %5163 = vmatprep.subr.bf16.mxu0 0
    %5164 = vmatpush1.bf16.msra.mxu0 0
    %5165 = vmatprep.subr.bf16.mxu0 0
    %5166 = vmatpush1.bf16.msra.mxu0 0
    %5167 = vmatprep.subr.bf16.mxu0 0
    %5168 = vmatpush1.bf16.msra.mxu0 0
    %5169 = vmatprep.subr.bf16.mxu0 0
    %5170 = vmatpush1.bf16.msra.mxu0 0
    %5171 = vmatprep.subr.bf16.mxu0 0
    %5172 = vmatpush1.bf16.msra.mxu0 0
    %5173 = vmatprep.subr.bf16.mxu0 0
    %5174 = vmatpush1.bf16.msra.mxu0 0
    %5175 = vmatprep.subr.bf16.mxu0 0
    %5176 = vmatpush1.bf16.msra.mxu0 0
    %5177 = vmatprep.subr.bf16.mxu0 0
    %5178 = vmatpush1.bf16.msra.mxu0 0
    %5179 = vmatprep.subr.bf16.mxu0 0
    %5180 = vmatpush1.bf16.msra.mxu0 0
    %5181 = vmatprep.subr.bf16.mxu0 0
    %5182 = vmatpush1.bf16.msra.mxu0 0
    %5183 = vmatprep.subr.bf16.mxu0 0
    %5184 = vmatpush1.bf16.msra.mxu0 0
    %5185 = vmatprep.subr.bf16.mxu0 0
    %5186 = vmatpush1.bf16.msra.mxu0 0
    %5187 = vmatprep.subr.bf16.mxu0 0
    %5188 = vmatpush1.bf16.msra.mxu0 0
    %5189 = vmatprep.subr.bf16.mxu0 0
    %5190 = vmatpush1.bf16.msra.mxu0 0
    %5191 = vmatprep.subr.bf16.mxu0 0
    %5192 = vmatpush1.bf16.msra.mxu0 0
    %5193 = vmatprep.mubr.bf16.mxu0 0
    %5194 = vmatmul.mubr.bf16.gmra.mrb[0].mxu0 %v5156
    %v5195 = vpop.f32.mrb[0].mxu0
    %v5196 = vadd.f32 0.0, %v5195
    %v5197 = vpop.f32.mrb[0].mxu0
    %v5198 = vpop.f32.mrb[0].mxu0
    %v5199 = vpop.f32.mrb[0].mxu0
    %5200 = vdwg.mxu0
    %5202 = vrot.lane.b32.xlu0 %v4976, 8
    %v5203 = vpop.permute.xlu0 %5202
    %5206 = vrot.lane.b32.xlu0 %v5086, 16
    %v5207 = vpop.permute.xlu0 %5206
    %5210 = vrot.lane.b32.xlu0 %v5196, 24
    %v5211 = vpop.permute.xlu0 %5210
    %v5213 = vsel %vm360, %v4863, %v5203
    %v5214 = vsel %vm813, %v5213, %v5207
    %v5215 = vsel %vm815, %v5214, %v5211
    %v5216 = vld [vmem:[%s3 + $0x120] sm:$0xf]
    %v5217 = vld [vmem:[%s3 + $0x124] sm:$0xf]
    %v5218 = vld [vmem:[%s3 + $0x128] sm:$0xf]
    %v5219 = vld [vmem:[%s3 + $0x12c] sm:$0xf]
    %v5220 = vld [vmem:[%s3 + $0x130] sm:$0xf]
    %v5221 = vld [vmem:[%s3 + $0x134] sm:$0xf]
    %v5222 = vld [vmem:[%s3 + $0x138] sm:$0xf]
    %v5223 = vld [vmem:[%s3 + $0x13c] sm:$0xf]
    %v5224 = vpack.c.bf16 %v5215, %v4760
    %v5229 = vunpack.c.l.b16 %v5220
    %v5230 = vunpack.c.l.b16 %v5221
    %v5231 = vunpack.c.l.b16 %v5222
    %v5232 = vunpack.c.l.b16 %v5223
    %v5233 = vpack.c.b16 %v5230, %v5229
    %v5234 = vpack.c.b16 %v5232, %v5231
    %v5238 = vsel %vm141, %v5224, 0
    %5240 = vmatprep.subr.bf16.mxu0 0
    %5241 = vmatpush1.bf16.msra.mxu0 %v5233
    %5242 = vmatprep.subr.bf16.mxu0 0
    %5243 = vmatpush1.bf16.msra.mxu0 %v5234
    %5244 = vmatprep.subr.bf16.mxu0 0
    %5245 = vmatpush1.bf16.msra.mxu0 0
    %5246 = vmatprep.subr.bf16.mxu0 0
    %5247 = vmatpush1.bf16.msra.mxu0 0
    %5248 = vmatprep.subr.bf16.mxu0 0
    %5249 = vmatpush1.bf16.msra.mxu0 0
    %5250 = vmatprep.subr.bf16.mxu0 0
    %5251 = vmatpush1.bf16.msra.mxu0 0
    %5252 = vmatprep.subr.bf16.mxu0 0
    %5253 = vmatpush1.bf16.msra.mxu0 0
    %5254 = vmatprep.subr.bf16.mxu0 0
    %5255 = vmatpush1.bf16.msra.mxu0 0
    %5256 = vmatprep.subr.bf16.mxu0 0
    %5257 = vmatpush1.bf16.msra.mxu0 0
    %5258 = vmatprep.subr.bf16.mxu0 0
    %5259 = vmatpush1.bf16.msra.mxu0 0
    %5260 = vmatprep.subr.bf16.mxu0 0
    %5261 = vmatpush1.bf16.msra.mxu0 0
    %5262 = vmatprep.subr.bf16.mxu0 0
    %5263 = vmatpush1.bf16.msra.mxu0 0
    %5264 = vmatprep.subr.bf16.mxu0 0
    %5265 = vmatpush1.bf16.msra.mxu0 0
    %5266 = vmatprep.subr.bf16.mxu0 0
    %5267 = vmatpush1.bf16.msra.mxu0 0
    %5268 = vmatprep.subr.bf16.mxu0 0
    %5269 = vmatpush1.bf16.msra.mxu0 0
    %5270 = vmatprep.subr.bf16.mxu0 0
    %5271 = vmatpush1.bf16.msra.mxu0 0
    %5272 = vmatprep.mubr.bf16.mxu0 0
    %5273 = vmatmul.mubr.bf16.gmra.mrb[0].mxu0 %v5238
    %v5274 = vpop.f32.mrb[0].mxu0
    %v5275 = vadd.f32 0.0, %v5274
    %v5276 = vpop.f32.mrb[0].mxu0
    %v5277 = vpop.f32.mrb[0].mxu0
    %v5278 = vadd.f32 0.0, %v5277
    %v5279 = vpop.f32.mrb[0].mxu0
    %5280 = vdwg.mxu0
    %v5285 = vunpack.c.l.b16 %v5216
    %v5286 = vunpack.c.l.b16 %v5217
    %v5287 = vunpack.c.l.b16 %v5218
    %v5288 = vunpack.c.l.b16 %v5219
    %v5289 = vpack.c.b16 %v5286, %v5285
    %v5290 = vpack.c.b16 %v5288, %v5287
    %5293 = vmatprep.subr.bf16.mxu0 0
    %5294 = vmatpush1.bf16.msra.mxu0 %v5289
    %5295 = vmatprep.subr.bf16.mxu0 0
    %5296 = vmatpush1.bf16.msra.mxu0 %v5290
    %5297 = vmatprep.subr.bf16.mxu0 0
    %5298 = vmatpush1.bf16.msra.mxu0 0
    %5299 = vmatprep.subr.bf16.mxu0 0
    %5300 = vmatpush1.bf16.msra.mxu0 0
    %5301 = vmatprep.subr.bf16.mxu0 0
    %5302 = vmatpush1.bf16.msra.mxu0 0
    %5303 = vmatprep.subr.bf16.mxu0 0
    %5304 = vmatpush1.bf16.msra.mxu0 0
    %5305 = vmatprep.subr.bf16.mxu0 0
    %5306 = vmatpush1.bf16.msra.mxu0 0
    %5307 = vmatprep.subr.bf16.mxu0 0
    %5308 = vmatpush1.bf16.msra.mxu0 0
    %5309 = vmatprep.subr.bf16.mxu0 0
    %5310 = vmatpush1.bf16.msra.mxu0 0
    %5311 = vmatprep.subr.bf16.mxu0 0
    %5312 = vmatpush1.bf16.msra.mxu0 0
    %5313 = vmatprep.subr.bf16.mxu0 0
    %5314 = vmatpush1.bf16.msra.mxu0 0
    %5315 = vmatprep.subr.bf16.mxu0 0
    %5316 = vmatpush1.bf16.msra.mxu0 0
    %5317 = vmatprep.subr.bf16.mxu0 0
    %5318 = vmatpush1.bf16.msra.mxu0 0
    %5319 = vmatprep.subr.bf16.mxu0 0
    %5320 = vmatpush1.bf16.msra.mxu0 0
    %5321 = vmatprep.subr.bf16.mxu0 0
    %5322 = vmatpush1.bf16.msra.mxu0 0
    %5323 = vmatprep.subr.bf16.mxu0 0
    %5324 = vmatpush1.bf16.msra.mxu0 0
    %5325 = vmatprep.mubr.bf16.mxu0 0
    %5326 = vmatmul.mubr.bf16.gmra.mrb[0].mxu0 %v4261
    %v5327 = vpop.f32.mrb[0].mxu0
    %v5328 = vadd.f32 %v5275, %v5327
    %v5329 = vpop.f32.mrb[0].mxu0
    %v5330 = vpop.f32.mrb[0].mxu0
    %v5331 = vadd.f32 %v5278, %v5330
    %v5332 = vpop.f32.mrb[0].mxu0
    %5333 = vdwg.mxu0
    %v5334 = vld [vmem:[%s4 + $0x18] sm:$0x1]
    %v5335 = vlaneseq
    %v5336 = vshrl.u32 %v5335, 7
    %v5337 = vsub.s32 0, %v5336
    %v5338 = vrot.slane %v5334, %v5337
    %v5339 = vadd.f32 %v5328, %v5338
    %v5340 = vadd.f32 %v5331, %v5338
    %v5341 = vadd.f32 %v5339, %v4127
    %v5342 = vadd.f32 %v5340, %v4128
    %v5343 = vld [vmem:[%s4 + $0x19] sm:$0x1]
    %v5344 = vld [vmem:[%s4 + $0x1a] sm:$0x1]
    %v5345 = vsel %vm141, %v5341, 0.0
    %5346 = vadd.xlane.f32.xlu0 %v5345
    %v5347 = vpop.xlane.xlu0 %5346
    %v5348 = vsel %vm141, %v5342, 0.0
    %5349 = vadd.xlane.f32.xlu0 %v5348
    %v5350 = vpop.xlane.xlu0 %5349
    %v5351 = vmul.f32 %v5347, %v148
    %v5352 = vmul.f32 %v5350, %v148
    %v5353 = vsub.f32 %v5341, %v5351
    %v5354 = vsub.f32 %v5342, %v5352
    %v5355 = vmul.f32 %v5353, %v5353
    %v5356 = vmul.f32 %v5354, %v5354
    %v5357 = vsel %vm141, %v5355, 0.0
    %5358 = vadd.xlane.f32.xlu0 %v5357
    %v5359 = vpop.xlane.xlu0 %5358
    %v5360 = vsel %vm141, %v5356, 0.0
    %5361 = vadd.xlane.f32.xlu0 %v5360
    %v5362 = vpop.xlane.xlu0 %5361
    %v5363 = vmul.f32 %v5359, %v148
    %v5364 = vmul.f32 %v5362, %v148
    %v5365 = vadd.f32 %v5363, 1e-05
    %v5366 = vadd.f32 %v5364, 1e-05
    %v5367 = vrsqrt.pop %v5365
    %v5368 = vrsqrt.pop %v5366
    %v5369 = vmul.f32 %v5353, %v5367
    %v5370 = vmul.f32 %v5354, %v5368
    %v5371 = vlaneseq
    %v5372 = vshrl.u32 %v5371, 7
    %v5373 = vsub.s32 0, %v5372
    %v5374 = vrot.slane %v5343, %v5373
    %v5375 = vmul.f32 %v5369, %v5374
    %v5376 = vmul.f32 %v5370, %v5374
    %v5377 = vlaneseq
    %v5378 = vshrl.u32 %v5377, 7
    %v5379 = vsub.s32 0, %v5378
    %v5380 = vrot.slane %v5344, %v5379
    %v5381 = vadd.f32 %v5375, %v5380
    %v5382 = vadd.f32 %v5376, %v5380
    %5383 = vst.msk [vmem:[#allocation2] sm:$0xff] %vm141, %v5381
    %5384 = vst.msk [vmem:[#allocation2 + $0x8] sm:$0xff] %vm141, %v5382
    // Predicated region
    $region22: #{deterministic_encoder.1} parent=1 // pred_check
      _
    $region23: #{deterministic_encoder.1} parent=1 // pred_check_branch
      %5386 = sbr.rel (0) target = $region25
    $region24: #{deterministic_encoder.1} parent=1 // pred_region
      %s5388 = ssub.s32 256, 256
      %5389 = vsyncadd [#allocation3], %s5388
      %s5390 = sshll.u32 [#allocation2], 4
      %s5391 = int_to_ptr.vmem [resolvable:$true] %s5390
      %5396 = dma.vmem_to_hbm [thread:$0]  %s5391, 256, %s5, [#allocation3], 128, 128, 8
    $region25: #{deterministic_encoder.1} parent=1 // pred_fallthru
      _
    // Predicated region
    $region26: #{deterministic_encoder.1} parent=1 // pred_check
      _
    $region27: #{deterministic_encoder.1} parent=1 // pred_check_branch
      %5398 = sbr.rel (0) target = $region29
    $region28: #{deterministic_encoder.1} parent=1 // pred_region
      %5399 = dma.done [#allocation3], 256
    $region29: #{deterministic_encoder.1} parent=1 // pred_fallthru
      _
    %5400 = vsyncpa [#allocation3], 1

</llo_original>
